<compile_context>
chip_gen: v5e
topology: v5e:2x2
jax: 0.10.0
libtpu: 0.0.40
codegen_flags: <defaults>
</compile_context>

<pallas_src>
import functools

import jax
import jax.numpy as jnp
import numpy as np
from jax.experimental import pallas as pl
from jax.experimental.pallas import tpu as pltpu


def _sigmoid(x):
    return 1.0 / (1.0 + jnp.exp(-x))


# ---------------------------------------------------------------------------
# Trace-time (numpy) constant spatial operators: shifts, avg-pool, nearest
# upsample as small 0/1 (or 1/r^2) matrices so the kernel only does matmuls
# and elementwise math on a lane-dense (C, H*W) layout.
# ---------------------------------------------------------------------------
def _shift_matrices(H, W):
    """S[t] (HW, HW): (x @ S[t])[c, p] = x[c, p shifted by tap t] (0 outside)."""
    HW = H * W
    rows, cols = np.divmod(np.arange(HW), W)
    S = np.zeros((9, HW, HW), np.float32)
    t = 0
    for dy in (-1, 0, 1):
        for dx in (-1, 0, 1):
            valid = ((rows + dy >= 0) & (rows + dy < H) &
                     (cols + dx >= 0) & (cols + dx < W))
            src = (rows + dy) * W + (cols + dx)
            p = np.nonzero(valid)[0]
            S[t, src[p], p] = 1.0
            t += 1
    return S


def _pool_matrix(H, W, r):
    """P (HW, Hp*Wp): x @ P == AvgPool2d(r, stride=r) on the flattened map."""
    Hp, Wp = H // r, W // r
    q = np.arange(H * W)
    rows, cols = q // W, q % W
    m = (rows // r) * Wp + (cols // r)
    P = np.zeros((H * W, Hp * Wp), np.float32)
    P[q, m] = 1.0 / (r * r)
    return P


def _upsample_matrix(H, W, r):
    """U (Hp*Wp, HW): y @ U == nearest-neighbour upsample by factor r."""
    Hp, Wp = H // r, W // r
    p = np.arange(H * W)
    rows, cols = p // W, p % W
    m = (rows // r) * Wp + (cols // r)
    U = np.zeros((Hp * Wp, H * W), np.float32)
    U[m, p] = 1.0
    return U


# ---------------------------------------------------------------------------
# Fused SSELB kernel (one grid step == one image).
# ---------------------------------------------------------------------------
def _make_sselb_kernel(C, half):
    f32, bf16 = jnp.float32, jnp.bfloat16

    def _im2col(v, s_ref):
        """v: (c, HW) f32 -> (9c, HW) bf16 patches (taps stacked on rows)."""
        vb = v.astype(bf16)
        parts = [
            jnp.dot(vb, s_ref[t], preferred_element_type=f32).astype(bf16)
            for t in range(9)
        ]
        return jnp.concatenate(parts, axis=0)

    def _conv(v, s_ref, w_ref, b_ref):
        """3x3 'same' conv as ONE (Cout, 9*Cin) @ (9*Cin, HW) MXU matmul."""
        patches = _im2col(v, s_ref)
        return jnp.dot(w_ref[...], patches,
                       preferred_element_type=f32) + b_ref[...]

    def kernel(x_ref, s_ref, a_ref, u_ref,
               w31_ref, b31_ref, wf2_ref, bf2_ref, wf4_ref, bf4_ref,
               wc1_ref, bc1_ref, wc2_ref, bc2_ref,
               du1w_ref, du1b_ref, du2w_ref, du2b_ref, o_ref):
        x = x_ref[0].astype(f32)                       # (C, HW)
        x1 = x[:half]                                  # (half, HW)

        # ---------------- SCconv ----------------
        # f3(x1) | f1(x2) fused via a block-diagonal weight (single matmul).
        mixed = _conv(x, s_ref, w31_ref, b31_ref)      # (C, HW)

        # f2 branch: AvgPool(r)+shift folded into A[t]; conv; upsample via U.
        x1b = x1.astype(bf16)
        lr_parts = [
            jnp.dot(x1b, a_ref[t], preferred_element_type=f32).astype(bf16)
            for t in range(9)
        ]
        patches_lr = jnp.concatenate(lr_parts, axis=0)            # (9*half, HpWp)
        f2_lr = jnp.dot(wf2_ref[...], patches_lr,
                        preferred_element_type=f32) + bf2_ref[...]
        up = jnp.dot(f2_lr.astype(bf16), u_ref[...],
                     preferred_element_type=f32)                  # (half, HW)

        gate = _sigmoid(x1 + up)                       # sigmoid(x1 + up(f2(x1)))
        out_x1 = mixed[:half] * gate                   # f3(x1) * gate
        out_x2 = jnp.maximum(mixed[half:], 0.0)        # relu(f1(x2))

        sc_top = jnp.maximum(_conv(out_x1, s_ref, wf4_ref, bf4_ref), 0.0)
        sc = jnp.concatenate([sc_top, out_x2], axis=0)            # SCconv output

        # ---------------- CA body ----------------
        y = jnp.maximum(_conv(sc, s_ref, wc1_ref, bc1_ref), 0.0)
        y = _conv(y, s_ref, wc2_ref, bc2_ref)                     # (C, HW)

        # Squeeze / excite (keep an 8-wide replicated column so every matmul
        # has a lane-friendly N dim).
        pooled = jnp.broadcast_to(jnp.mean(y, axis=1, keepdims=True), (C, 8))
        z = jnp.maximum(
            jnp.dot(du1w_ref[...], pooled,
                    preferred_element_type=f32) + du1b_ref[...], 0.0)
        att = _sigmoid(
            jnp.dot(du2w_ref[...], z,
                    preferred_element_type=f32) + du2b_ref[...])
        out = y * att[:, 0:1] + sc + x                 # CA residual + SSELB residual
        o_ref[0] = out.astype(o_ref.dtype)

    return kernel


# ---------------------------------------------------------------------------
# Public wrapper: NCHW in / NCHW out (no transposes -- NCHW is already the
# channels-first, spatial-last layout the kernel wants).
# ---------------------------------------------------------------------------
def sselb_forward(x_nchw, params, pooling_r):
    N, C, H, W = x_nchw.shape
    assert C % 2 == 0 and H % pooling_r == 0 and W % pooling_r == 0
    half = C // 2
    HW = H * W
    r = pooling_r
    Hp, Wp = H // r, W // r
    HWp = Hp * Wp
    bfdt = jnp.bfloat16

    # Constant spatial operators (computed once at trace time).
    S = jnp.asarray(_shift_matrices(H, W), bfdt)                        # (9,HW,HW)
    A = jnp.asarray(np.einsum('qm,tmn->tqn', _pool_matrix(H, W, r),
                              _shift_matrices(Hp, Wp)), bfdt)           # (9,HW,HWp)
    U = jnp.asarray(_upsample_matrix(H, W, r), bfdt)                    # (HWp,HW)

    # Conv weights (HWIO) -> (Cout, 9*Cin), bf16.  HWIO flattening order
    # (ky, kx, ci) matches the tap order used by _shift_matrices.
    def wmat(w):
        kh, kw, ci, co = w.shape
        return w.reshape(kh * kw * ci, co).T.astype(bfdt)

    # f3 (acts on x1) and f1 (acts on x2) fused into one block-diagonal weight.
    w3 = params['f3_w'].reshape(9, half, half)
    w1 = params['f1_w'].reshape(9, half, half)
    zpad = jnp.zeros((9, half, half), w3.dtype)
    wcomb = jnp.concatenate(
        [jnp.concatenate([w3, zpad], axis=2),
         jnp.concatenate([zpad, w1], axis=2)], axis=1)                  # (9, C, C)
    w31 = wcomb.reshape(9 * C, C).T.astype(bfdt)                        # (C, 9C)
    b31 = jnp.concatenate([params['f3_b'], params['f1_b']]).reshape(C, 1)

    wf2, bf2 = wmat(params['f2_w']), params['f2_b'].reshape(half, 1)
    wf4, bf4 = wmat(params['f4_w']), params['f4_b'].reshape(half, 1)
    wc1, bc1 = wmat(params['ca_c1_w']), params['ca_c1_b'].reshape(C, 1)
    wc2, bc2 = wmat(params['ca_c2_w']), params['ca_c2_b'].reshape(C, 1)
    du1w, du1b = params['du1_w'].T, params['du1_b'].reshape(-1, 1)      # (Cr,C),(Cr,1)
    du2w, du2b = params['du2_w'].T, params['du2_b'].reshape(-1, 1)      # (C,Cr),(C,1)

    # NCHW -> (N, C, H*W): a free reshape, lane axis = H*W.
    x_flat = x_nchw.reshape(N, C, HW)

    args = (x_flat, S, A, U, w31, b31, wf2, bf2, wf4, bf4,
            wc1, bc1, wc2, bc2, du1w, du1b, du2w, du2b)

    def full(shape):
        return pl.BlockSpec(shape, lambda n, _s=shape: (0,) * len(_s))

    in_specs = [pl.BlockSpec((1, C, HW), lambda n: (n, 0, 0))]
    in_specs += [full(tuple(a.shape)) for a in args[1:]]

    flops = N * (2 * HW * HW * 9 * (3 * C + half)                   # shift matmuls
                 + 2 * HW * 9 * (3 * C * C + half * half)           # conv matmuls
                 + 9 * 2 * half * HW * HWp + 2 * half * 9 * half * HWp
                 + 2 * half * HWp * HW + 2 * C * HW * 8)
    bytes_accessed = int(2 * x_flat.size * 4 +
                         sum(int(a.size) * a.dtype.itemsize for a in args[1:]))

    out = pl.pallas_call(
        _make_sselb_kernel(C, half),
        out_shape=jax.ShapeDtypeStruct((N, C, HW), x_nchw.dtype),
        grid=(N,),
        in_specs=in_specs,
        out_specs=pl.BlockSpec((1, C, HW), lambda n: (n, 0, 0)),
        compiler_params=pltpu.CompilerParams(
            dimension_semantics=("parallel",)),
        cost_estimate=pl.CostEstimate(
            flops=int(flops),
            transcendentals=int(N * (half * HW + 8 * C)),
            bytes_accessed=bytes_accessed),
    )(*args)
    return out.reshape(N, C, H, W)


# ---------------------------------------------------------------------------
# Pure-JAX reference (for correctness check).
# ---------------------------------------------------------------------------
def _conv3x3_ref(x, w, b):
    out = jax.lax.conv_general_dilated(
        x, w, window_strides=(1, 1), padding='SAME',
        dimension_numbers=('NHWC', 'HWIO', 'NHWC'))
    return out + b.reshape(1, 1, 1, -1)


def sselb_ref(x_nchw, params, pooling_r):
    x = jnp.transpose(x_nchw, (0, 2, 3, 1))
    N, H, W, C = x.shape
    half = C // 2
    r = pooling_r
    x1, x2 = x[..., :half], x[..., half:]
    Hp, Wp = H // r, W // r
    x1_pool = x1.reshape(N, Hp, r, Wp, r, half).mean(axis=(2, 4))
    f2_out = _conv3x3_ref(x1_pool, params['f2_w'], params['f2_b'])
    up = jnp.repeat(jnp.repeat(f2_out, r, axis=1), r, axis=2)
    out_x1 = jax.nn.sigmoid(x1 + up)
    out_x1 = _conv3x3_ref(x1, params['f3_w'], params['f3_b']) * out_x1
    out_x1 = jax.nn.relu(_conv3x3_ref(out_x1, params['f4_w'], params['f4_b']))
    out_x2 = jax.nn.relu(_conv3x3_ref(x2, params['f1_w'], params['f1_b']))
    sc_out = jnp.concatenate([out_x1, out_x2], axis=-1)

    y = jax.nn.relu(_conv3x3_ref(sc_out, params['ca_c1_w'], params['ca_c1_b']))
    y = _conv3x3_ref(y, params['ca_c2_w'], params['ca_c2_b'])
    pooled = jnp.mean(y, axis=(1, 2))
    z = jax.nn.relu(pooled @ params['du1_w'] + params['du1_b'])
    att = jax.nn.sigmoid(z @ params['du2_w'] + params['du2_b'])
    ca = y * att[:, None, None, :] + sc_out
    out = ca + x
    return jnp.transpose(out, (0, 3, 1, 2))


# ---------------------------------------------------------------------------
# Deterministic parameter initialization (shapes from SSELB.__init__).
# ---------------------------------------------------------------------------
def init_params(key, n_feats=32, kernel_size=3, reduction=16):
    half = n_feats // 2
    cr = n_feats // reduction
    ks = jax.random.split(key, 20)

    def wconv(k, cin, cout):
        fan_in = cin * kernel_size * kernel_size
        return (jax.random.normal(k, (kernel_size, kernel_size, cin, cout),
                                  jnp.float32) / jnp.sqrt(fan_in))

    def bias(k, c):
        return 0.01 * jax.random.normal(k, (c,), jnp.float32)

    return {
        'f1_w': wconv(ks[0], half, half), 'f1_b': bias(ks[1], half),
        'f2_w': wconv(ks[2], half, half), 'f2_b': bias(ks[3], half),
        'f3_w': wconv(ks[4], half, half), 'f3_b': bias(ks[5], half),
        'f4_w': wconv(ks[6], half, half), 'f4_b': bias(ks[7], half),
        'ca_c1_w': wconv(ks[8], n_feats, n_feats), 'ca_c1_b': bias(ks[9], n_feats),
        'ca_c2_w': wconv(ks[10], n_feats, n_feats), 'ca_c2_b': bias(ks[11], n_feats),
        'du1_w': jax.random.normal(ks[12], (n_feats, cr), jnp.float32) / jnp.sqrt(n_feats),
        'du1_b': bias(ks[13], cr),
        'du2_w': jax.random.normal(ks[14], (cr, n_feats), jnp.float32) / jnp.sqrt(cr),
        'du2_b': bias(ks[15], n_feats),
    }


if __name__ == "__main__":
    n_feats, kernel_size, pooling_r = 32, 3, 4   # n_feats multiple of reduction=16
    N, H, W = 2, 16, 16

    key = jax.random.PRNGKey(0)
    kp, kx = jax.random.split(key)
    params = init_params(kp, n_feats=n_feats, kernel_size=kernel_size)
    x = jax.random.normal(kx, (N, n_feats, H, W), jnp.float32)   # NCHW like PyTorch

    fwd = jax.jit(functools.partial(sselb_forward, params=params,
                                    pooling_r=pooling_r))
    out = jax.block_until_ready(fwd(x))

    ref = jax.block_until_ready(sselb_ref(x, params, pooling_r))
    assert out.shape == x.shape and out.dtype == x.dtype
    max_err = float(jnp.max(jnp.abs(out - ref)))
    # bf16 matmul operands (f32 accumulation) -> small, bounded numerical drift.
    assert max_err < 5e-2, f"mismatch vs reference: {max_err}"

    print("KERNEL_OK")
</pallas_src>

<mosaic_0001>
module attributes {stable_mosaic.version = 11 : i64} {
  func.func @kernel(%arg0: i32, %arg1: memref<1x32x256xf32, #tpu.memory_space<vmem>>, %arg2: memref<9x256x256xbf16, #tpu.memory_space<vmem>>, %arg3: memref<9x256x16xbf16, #tpu.memory_space<vmem>>, %arg4: memref<16x256xbf16, #tpu.memory_space<vmem>>, %arg5: memref<32x288xbf16, #tpu.memory_space<vmem>>, %arg6: memref<32x1xf32, #tpu.memory_space<vmem>>, %arg7: memref<16x144xbf16, #tpu.memory_space<vmem>>, %arg8: memref<16x1xf32, #tpu.memory_space<vmem>>, %arg9: memref<16x144xbf16, #tpu.memory_space<vmem>>, %arg10: memref<16x1xf32, #tpu.memory_space<vmem>>, %arg11: memref<32x288xbf16, #tpu.memory_space<vmem>>, %arg12: memref<32x1xf32, #tpu.memory_space<vmem>>, %arg13: memref<32x288xbf16, #tpu.memory_space<vmem>>, %arg14: memref<32x1xf32, #tpu.memory_space<vmem>>, %arg15: memref<2x32xf32, #tpu.memory_space<vmem>>, %arg16: memref<2x1xf32, #tpu.memory_space<vmem>>, %arg17: memref<32x2xf32, #tpu.memory_space<vmem>>, %arg18: memref<32x1xf32, #tpu.memory_space<vmem>>, %arg19: memref<1x32x256xf32, #tpu.memory_space<vmem>>) attributes {dimension_semantics = [#tpu.dimension_semantics<parallel>], iteration_bounds = array<i64: 2>, scalar_prefetch = 0 : i64, scratch_operands = 0 : i64, tpu.core_type = #tpu.core_type<tc>, window_params = [{transform_indices = @transform_0, window_bounds = array<i64: 1, 32, 256>}, {pipeline_mode = #tpu.pipeline_mode<synchronous>, transform_indices = @transform_1, window_bounds = array<i64: 9, 256, 256>}, {pipeline_mode = #tpu.pipeline_mode<synchronous>, transform_indices = @transform_2, window_bounds = array<i64: 9, 256, 16>}, {pipeline_mode = #tpu.pipeline_mode<synchronous>, transform_indices = @transform_3, window_bounds = array<i64: 16, 256>}, {pipeline_mode = #tpu.pipeline_mode<synchronous>, transform_indices = @transform_4, window_bounds = array<i64: 32, 288>}, {pipeline_mode = #tpu.pipeline_mode<synchronous>, transform_indices = @transform_5, window_bounds = array<i64: 32, 1>}, {pipeline_mode = #tpu.pipeline_mode<synchronous>, transform_indices = @transform_6, window_bounds = array<i64: 16, 144>}, {pipeline_mode = #tpu.pipeline_mode<synchronous>, transform_indices = @transform_7, window_bounds = array<i64: 16, 1>}, {pipeline_mode = #tpu.pipeline_mode<synchronous>, transform_indices = @transform_8, window_bounds = array<i64: 16, 144>}, {pipeline_mode = #tpu.pipeline_mode<synchronous>, transform_indices = @transform_9, window_bounds = array<i64: 16, 1>}, {pipeline_mode = #tpu.pipeline_mode<synchronous>, transform_indices = @transform_10, window_bounds = array<i64: 32, 288>}, {pipeline_mode = #tpu.pipeline_mode<synchronous>, transform_indices = @transform_11, window_bounds = array<i64: 32, 1>}, {pipeline_mode = #tpu.pipeline_mode<synchronous>, transform_indices = @transform_12, window_bounds = array<i64: 32, 288>}, {pipeline_mode = #tpu.pipeline_mode<synchronous>, transform_indices = @transform_13, window_bounds = array<i64: 32, 1>}, {pipeline_mode = #tpu.pipeline_mode<synchronous>, transform_indices = @transform_14, window_bounds = array<i64: 2, 32>}, {pipeline_mode = #tpu.pipeline_mode<synchronous>, transform_indices = @transform_15, window_bounds = array<i64: 2, 1>}, {pipeline_mode = #tpu.pipeline_mode<synchronous>, transform_indices = @transform_16, window_bounds = array<i64: 32, 2>}, {pipeline_mode = #tpu.pipeline_mode<synchronous>, transform_indices = @transform_17, window_bounds = array<i64: 32, 1>}, {transform_indices = @transform_18, window_bounds = array<i64: 1, 32, 256>}]} {
    %c0 = arith.constant 0 : index
    %c0_0 = arith.constant 0 : index
    %c0_1 = arith.constant 0 : index
    %0 = vector.load %arg1[%c0, %c0_0, %c0_1] : memref<1x32x256xf32, #tpu.memory_space<vmem>>, vector<1x32x256xf32>
    %1 = vector.shape_cast %0 : vector<1x32x256xf32> to vector<32x256xf32>
    %2 = vector.extract_strided_slice %1 {offsets = [0, 0], sizes = [16, 256], strides = [1, 1]} : vector<32x256xf32> to vector<16x256xf32>
    %3 = arith.truncf %1 : vector<32x256xf32> to vector<32x256xbf16>
    %c0_2 = arith.constant 0 : index
    %c0_3 = arith.constant 0 : index
    %c0_4 = arith.constant 0 : index
    %4 = vector.load %arg2[%c0_2, %c0_3, %c0_4] : memref<9x256x256xbf16, #tpu.memory_space<vmem>>, vector<1x256x256xbf16>
    %5 = vector.shape_cast %4 : vector<1x256x256xbf16> to vector<256x256xbf16>
    %cst = arith.constant dense<0.000000e+00> : vector<32x256xf32>
    %6 = tpu.matmul %3, %5, %cst {dimension_numbers = #tpu.dot_dimension_numbers<[1], [0], [0], [1], [0, 0, 1, 1], [], []>} : vector<32x256xbf16>, vector<256x256xbf16>, vector<32x256xf32> -> vector<32x256xf32>
    %7 = arith.truncf %6 : vector<32x256xf32> to vector<32x256xbf16>
    %c1 = arith.constant 1 : index
    %c0_5 = arith.constant 0 : index
    %c0_6 = arith.constant 0 : index
    %8 = vector.load %arg2[%c1, %c0_5, %c0_6] : memref<9x256x256xbf16, #tpu.memory_space<vmem>>, vector<1x256x256xbf16>
    %9 = vector.shape_cast %8 : vector<1x256x256xbf16> to vector<256x256xbf16>
    %cst_7 = arith.constant dense<0.000000e+00> : vector<32x256xf32>
    %10 = tpu.matmul %3, %9, %cst_7 {dimension_numbers = #tpu.dot_dimension_numbers<[1], [0], [0], [1], [0, 0, 1, 1], [], []>} : vector<32x256xbf16>, vector<256x256xbf16>, vector<32x256xf32> -> vector<32x256xf32>
    %11 = arith.truncf %10 : vector<32x256xf32> to vector<32x256xbf16>
    %c2 = arith.constant 2 : index
    %c0_8 = arith.constant 0 : index
    %c0_9 = arith.constant 0 : index
    %12 = vector.load %arg2[%c2, %c0_8, %c0_9] : memref<9x256x256xbf16, #tpu.memory_space<vmem>>, vector<1x256x256xbf16>
    %13 = vector.shape_cast %12 : vector<1x256x256xbf16> to vector<256x256xbf16>
    %cst_10 = arith.constant dense<0.000000e+00> : vector<32x256xf32>
    %14 = tpu.matmul %3, %13, %cst_10 {dimension_numbers = #tpu.dot_dimension_numbers<[1], [0], [0], [1], [0, 0, 1, 1], [], []>} : vector<32x256xbf16>, vector<256x256xbf16>, vector<32x256xf32> -> vector<32x256xf32>
    %15 = arith.truncf %14 : vector<32x256xf32> to vector<32x256xbf16>
    %c3 = arith.constant 3 : index
    %c0_11 = arith.constant 0 : index
    %c0_12 = arith.constant 0 : index
    %16 = vector.load %arg2[%c3, %c0_11, %c0_12] : memref<9x256x256xbf16, #tpu.memory_space<vmem>>, vector<1x256x256xbf16>
    %17 = vector.shape_cast %16 : vector<1x256x256xbf16> to vector<256x256xbf16>
    %cst_13 = arith.constant dense<0.000000e+00> : vector<32x256xf32>
    %18 = tpu.matmul %3, %17, %cst_13 {dimension_numbers = #tpu.dot_dimension_numbers<[1], [0], [0], [1], [0, 0, 1, 1], [], []>} : vector<32x256xbf16>, vector<256x256xbf16>, vector<32x256xf32> -> vector<32x256xf32>
    %19 = arith.truncf %18 : vector<32x256xf32> to vector<32x256xbf16>
    %c4 = arith.constant 4 : index
    %c0_14 = arith.constant 0 : index
    %c0_15 = arith.constant 0 : index
    %20 = vector.load %arg2[%c4, %c0_14, %c0_15] : memref<9x256x256xbf16, #tpu.memory_space<vmem>>, vector<1x256x256xbf16>
    %21 = vector.shape_cast %20 : vector<1x256x256xbf16> to vector<256x256xbf16>
    %cst_16 = arith.constant dense<0.000000e+00> : vector<32x256xf32>
    %22 = tpu.matmul %3, %21, %cst_16 {dimension_numbers = #tpu.dot_dimension_numbers<[1], [0], [0], [1], [0, 0, 1, 1], [], []>} : vector<32x256xbf16>, vector<256x256xbf16>, vector<32x256xf32> -> vector<32x256xf32>
    %23 = arith.truncf %22 : vector<32x256xf32> to vector<32x256xbf16>
    %c5 = arith.constant 5 : index
    %c0_17 = arith.constant 0 : index
    %c0_18 = arith.constant 0 : index
    %24 = vector.load %arg2[%c5, %c0_17, %c0_18] : memref<9x256x256xbf16, #tpu.memory_space<vmem>>, vector<1x256x256xbf16>
    %25 = vector.shape_cast %24 : vector<1x256x256xbf16> to vector<256x256xbf16>
    %cst_19 = arith.constant dense<0.000000e+00> : vector<32x256xf32>
    %26 = tpu.matmul %3, %25, %cst_19 {dimension_numbers = #tpu.dot_dimension_numbers<[1], [0], [0], [1], [0, 0, 1, 1], [], []>} : vector<32x256xbf16>, vector<256x256xbf16>, vector<32x256xf32> -> vector<32x256xf32>
    %27 = arith.truncf %26 : vector<32x256xf32> to vector<32x256xbf16>
    %c6 = arith.constant 6 : index
    %c0_20 = arith.constant 0 : index
    %c0_21 = arith.constant 0 : index
    %28 = vector.load %arg2[%c6, %c0_20, %c0_21] : memref<9x256x256xbf16, #tpu.memory_space<vmem>>, vector<1x256x256xbf16>
    %29 = vector.shape_cast %28 : vector<1x256x256xbf16> to vector<256x256xbf16>
    %cst_22 = arith.constant dense<0.000000e+00> : vector<32x256xf32>
    %30 = tpu.matmul %3, %29, %cst_22 {dimension_numbers = #tpu.dot_dimension_numbers<[1], [0], [0], [1], [0, 0, 1, 1], [], []>} : vector<32x256xbf16>, vector<256x256xbf16>, vector<32x256xf32> -> vector<32x256xf32>
    %31 = arith.truncf %30 : vector<32x256xf32> to vector<32x256xbf16>
    %c7 = arith.constant 7 : index
    %c0_23 = arith.constant 0 : index
    %c0_24 = arith.constant 0 : index
    %32 = vector.load %arg2[%c7, %c0_23, %c0_24] : memref<9x256x256xbf16, #tpu.memory_space<vmem>>, vector<1x256x256xbf16>
    %33 = vector.shape_cast %32 : vector<1x256x256xbf16> to vector<256x256xbf16>
    %cst_25 = arith.constant dense<0.000000e+00> : vector<32x256xf32>
    %34 = tpu.matmul %3, %33, %cst_25 {dimension_numbers = #tpu.dot_dimension_numbers<[1], [0], [0], [1], [0, 0, 1, 1], [], []>} : vector<32x256xbf16>, vector<256x256xbf16>, vector<32x256xf32> -> vector<32x256xf32>
    %35 = arith.truncf %34 : vector<32x256xf32> to vector<32x256xbf16>
    %c8 = arith.constant 8 : index
    %c0_26 = arith.constant 0 : index
    %c0_27 = arith.constant 0 : index
    %36 = vector.load %arg2[%c8, %c0_26, %c0_27] : memref<9x256x256xbf16, #tpu.memory_space<vmem>>, vector<1x256x256xbf16>
    %37 = vector.shape_cast %36 : vector<1x256x256xbf16> to vector<256x256xbf16>
    %cst_28 = arith.constant dense<0.000000e+00> : vector<32x256xf32>
    %38 = tpu.matmul %3, %37, %cst_28 {dimension_numbers = #tpu.dot_dimension_numbers<[1], [0], [0], [1], [0, 0, 1, 1], [], []>} : vector<32x256xbf16>, vector<256x256xbf16>, vector<32x256xf32> -> vector<32x256xf32>
    %39 = arith.truncf %38 : vector<32x256xf32> to vector<32x256xbf16>
    %40 = tpu.concatenate %7, %11, %15, %19, %23, %27, %31, %35, %39 in 0 : vector<32x256xbf16>, vector<32x256xbf16>, vector<32x256xbf16>, vector<32x256xbf16>, vector<32x256xbf16>, vector<32x256xbf16>, vector<32x256xbf16>, vector<32x256xbf16>, vector<32x256xbf16> -> vector<288x256xbf16>
    %c0_29 = arith.constant 0 : index
    %c0_30 = arith.constant 0 : index
    %41 = vector.load %arg5[%c0_29, %c0_30] : memref<32x288xbf16, #tpu.memory_space<vmem>>, vector<32x288xbf16>
    %cst_31 = arith.constant dense<0.000000e+00> : vector<32x256xf32>
    %42 = tpu.matmul %41, %40, %cst_31 {dimension_numbers = #tpu.dot_dimension_numbers<[1], [0], [0], [1], [0, 0, 1, 1], [], []>} : vector<32x288xbf16>, vector<288x256xbf16>, vector<32x256xf32> -> vector<32x256xf32>
    %c0_32 = arith.constant 0 : index
    %c0_33 = arith.constant 0 : index
    %43 = vector.load %arg6[%c0_32, %c0_33] : memref<32x1xf32, #tpu.memory_space<vmem>>, vector<32x1xf32>
    %44 = vector.broadcast %43 : vector<32x1xf32> to vector<32x256xf32>
    %45 = arith.addf %42, %44 : vector<32x256xf32>
    %46 = arith.truncf %2 : vector<16x256xf32> to vector<16x256xbf16>
    %c0_34 = arith.constant 0 : index
    %c0_35 = arith.constant 0 : index
    %c0_36 = arith.constant 0 : index
    %47 = vector.load %arg3[%c0_34, %c0_35, %c0_36] : memref<9x256x16xbf16, #tpu.memory_space<vmem>>, vector<1x256x16xbf16>
    %48 = vector.shape_cast %47 : vector<1x256x16xbf16> to vector<256x16xbf16>
    %cst_37 = arith.constant dense<0.000000e+00> : vector<16x16xf32>
    %49 = tpu.matmul %46, %48, %cst_37 {dimension_numbers = #tpu.dot_dimension_numbers<[1], [0], [0], [1], [0, 0, 1, 1], [], []>} : vector<16x256xbf16>, vector<256x16xbf16>, vector<16x16xf32> -> vector<16x16xf32>
    %50 = arith.truncf %49 : vector<16x16xf32> to vector<16x16xbf16>
    %c1_38 = arith.constant 1 : index
    %c0_39 = arith.constant 0 : index
    %c0_40 = arith.constant 0 : index
    %51 = vector.load %arg3[%c1_38, %c0_39, %c0_40] : memref<9x256x16xbf16, #tpu.memory_space<vmem>>, vector<1x256x16xbf16>
    %52 = vector.shape_cast %51 : vector<1x256x16xbf16> to vector<256x16xbf16>
    %cst_41 = arith.constant dense<0.000000e+00> : vector<16x16xf32>
    %53 = tpu.matmul %46, %52, %cst_41 {dimension_numbers = #tpu.dot_dimension_numbers<[1], [0], [0], [1], [0, 0, 1, 1], [], []>} : vector<16x256xbf16>, vector<256x16xbf16>, vector<16x16xf32> -> vector<16x16xf32>
    %54 = arith.truncf %53 : vector<16x16xf32> to vector<16x16xbf16>
    %c2_42 = arith.constant 2 : index
    %c0_43 = arith.constant 0 : index
    %c0_44 = arith.constant 0 : index
    %55 = vector.load %arg3[%c2_42, %c0_43, %c0_44] : memref<9x256x16xbf16, #tpu.memory_space<vmem>>, vector<1x256x16xbf16>
    %56 = vector.shape_cast %55 : vector<1x256x16xbf16> to vector<256x16xbf16>
    %cst_45 = arith.constant dense<0.000000e+00> : vector<16x16xf32>
    %57 = tpu.matmul %46, %56, %cst_45 {dimension_numbers = #tpu.dot_dimension_numbers<[1], [0], [0], [1], [0, 0, 1, 1], [], []>} : vector<16x256xbf16>, vector<256x16xbf16>, vector<16x16xf32> -> vector<16x16xf32>
    %58 = arith.truncf %57 : vector<16x16xf32> to vector<16x16xbf16>
    %c3_46 = arith.constant 3 : index
    %c0_47 = arith.constant 0 : index
    %c0_48 = arith.constant 0 : index
    %59 = vector.load %arg3[%c3_46, %c0_47, %c0_48] : memref<9x256x16xbf16, #tpu.memory_space<vmem>>, vector<1x256x16xbf16>
    %60 = vector.shape_cast %59 : vector<1x256x16xbf16> to vector<256x16xbf16>
    %cst_49 = arith.constant dense<0.000000e+00> : vector<16x16xf32>
    %61 = tpu.matmul %46, %60, %cst_49 {dimension_numbers = #tpu.dot_dimension_numbers<[1], [0], [0], [1], [0, 0, 1, 1], [], []>} : vector<16x256xbf16>, vector<256x16xbf16>, vector<16x16xf32> -> vector<16x16xf32>
    %62 = arith.truncf %61 : vector<16x16xf32> to vector<16x16xbf16>
    %c4_50 = arith.constant 4 : index
    %c0_51 = arith.constant 0 : index
    %c0_52 = arith.constant 0 : index
    %63 = vector.load %arg3[%c4_50, %c0_51, %c0_52] : memref<9x256x16xbf16, #tpu.memory_space<vmem>>, vector<1x256x16xbf16>
    %64 = vector.shape_cast %63 : vector<1x256x16xbf16> to vector<256x16xbf16>
    %cst_53 = arith.constant dense<0.000000e+00> : vector<16x16xf32>
    %65 = tpu.matmul %46, %64, %cst_53 {dimension_numbers = #tpu.dot_dimension_numbers<[1], [0], [0], [1], [0, 0, 1, 1], [], []>} : vector<16x256xbf16>, vector<256x16xbf16>, vector<16x16xf32> -> vector<16x16xf32>
    %66 = arith.truncf %65 : vector<16x16xf32> to vector<16x16xbf16>
    %c5_54 = arith.constant 5 : index
    %c0_55 = arith.constant 0 : index
    %c0_56 = arith.constant 0 : index
    %67 = vector.load %arg3[%c5_54, %c0_55, %c0_56] : memref<9x256x16xbf16, #tpu.memory_space<vmem>>, vector<1x256x16xbf16>
    %68 = vector.shape_cast %67 : vector<1x256x16xbf16> to vector<256x16xbf16>
    %cst_57 = arith.constant dense<0.000000e+00> : vector<16x16xf32>
    %69 = tpu.matmul %46, %68, %cst_57 {dimension_numbers = #tpu.dot_dimension_numbers<[1], [0], [0], [1], [0, 0, 1, 1], [], []>} : vector<16x256xbf16>, vector<256x16xbf16>, vector<16x16xf32> -> vector<16x16xf32>
    %70 = arith.truncf %69 : vector<16x16xf32> to vector<16x16xbf16>
    %c6_58 = arith.constant 6 : index
    %c0_59 = arith.constant 0 : index
    %c0_60 = arith.constant 0 : index
    %71 = vector.load %arg3[%c6_58, %c0_59, %c0_60] : memref<9x256x16xbf16, #tpu.memory_space<vmem>>, vector<1x256x16xbf16>
    %72 = vector.shape_cast %71 : vector<1x256x16xbf16> to vector<256x16xbf16>
    %cst_61 = arith.constant dense<0.000000e+00> : vector<16x16xf32>
    %73 = tpu.matmul %46, %72, %cst_61 {dimension_numbers = #tpu.dot_dimension_numbers<[1], [0], [0], [1], [0, 0, 1, 1], [], []>} : vector<16x256xbf16>, vector<256x16xbf16>, vector<16x16xf32> -> vector<16x16xf32>
    %74 = arith.truncf %73 : vector<16x16xf32> to vector<16x16xbf16>
    %c7_62 = arith.constant 7 : index
    %c0_63 = arith.constant 0 : index
    %c0_64 = arith.constant 0 : index
    %75 = vector.load %arg3[%c7_62, %c0_63, %c0_64] : memref<9x256x16xbf16, #tpu.memory_space<vmem>>, vector<1x256x16xbf16>
    %76 = vector.shape_cast %75 : vector<1x256x16xbf16> to vector<256x16xbf16>
    %cst_65 = arith.constant dense<0.000000e+00> : vector<16x16xf32>
    %77 = tpu.matmul %46, %76, %cst_65 {dimension_numbers = #tpu.dot_dimension_numbers<[1], [0], [0], [1], [0, 0, 1, 1], [], []>} : vector<16x256xbf16>, vector<256x16xbf16>, vector<16x16xf32> -> vector<16x16xf32>
    %78 = arith.truncf %77 : vector<16x16xf32> to vector<16x16xbf16>
    %c8_66 = arith.constant 8 : index
    %c0_67 = arith.constant 0 : index
    %c0_68 = arith.constant 0 : index
    %79 = vector.load %arg3[%c8_66, %c0_67, %c0_68] : memref<9x256x16xbf16, #tpu.memory_space<vmem>>, vector<1x256x16xbf16>
    %80 = vector.shape_cast %79 : vector<1x256x16xbf16> to vector<256x16xbf16>
    %cst_69 = arith.constant dense<0.000000e+00> : vector<16x16xf32>
    %81 = tpu.matmul %46, %80, %cst_69 {dimension_numbers = #tpu.dot_dimension_numbers<[1], [0], [0], [1], [0, 0, 1, 1], [], []>} : vector<16x256xbf16>, vector<256x16xbf16>, vector<16x16xf32> -> vector<16x16xf32>
    %82 = arith.truncf %81 : vector<16x16xf32> to vector<16x16xbf16>
    %83 = tpu.concatenate %50, %54, %58, %62, %66, %70, %74, %78, %82 in 0 : vector<16x16xbf16>, vector<16x16xbf16>, vector<16x16xbf16>, vector<16x16xbf16>, vector<16x16xbf16>, vector<16x16xbf16>, vector<16x16xbf16>, vector<16x16xbf16>, vector<16x16xbf16> -> vector<144x16xbf16>
    %c0_70 = arith.constant 0 : index
    %c0_71 = arith.constant 0 : index
    %84 = vector.load %arg7[%c0_70, %c0_71] : memref<16x144xbf16, #tpu.memory_space<vmem>>, vector<16x144xbf16>
    %cst_72 = arith.constant dense<0.000000e+00> : vector<16x16xf32>
    %85 = tpu.matmul %84, %83, %cst_72 {dimension_numbers = #tpu.dot_dimension_numbers<[1], [0], [0], [1], [0, 0, 1, 1], [], []>} : vector<16x144xbf16>, vector<144x16xbf16>, vector<16x16xf32> -> vector<16x16xf32>
    %c0_73 = arith.constant 0 : index
    %c0_74 = arith.constant 0 : index
    %86 = vector.load %arg8[%c0_73, %c0_74] : memref<16x1xf32, #tpu.memory_space<vmem>>, vector<16x1xf32>
    %87 = vector.broadcast %86 : vector<16x1xf32> to vector<16x16xf32>
    %88 = arith.addf %85, %87 : vector<16x16xf32>
    %89 = arith.truncf %88 : vector<16x16xf32> to vector<16x16xbf16>
    %c0_75 = arith.constant 0 : index
    %c0_76 = arith.constant 0 : index
    %90 = vector.load %arg4[%c0_75, %c0_76] : memref<16x256xbf16, #tpu.memory_space<vmem>>, vector<16x256xbf16>
    %cst_77 = arith.constant dense<0.000000e+00> : vector<16x256xf32>
    %91 = tpu.matmul %89, %90, %cst_77 {dimension_numbers = #tpu.dot_dimension_numbers<[1], [0], [0], [1], [0, 0, 1, 1], [], []>} : vector<16x16xbf16>, vector<16x256xbf16>, vector<16x256xf32> -> vector<16x256xf32>
    %92 = arith.addf %2, %91 : vector<16x256xf32>
    %cst_78 = arith.constant 0.000000e+00 : f32
    %93 = vector.broadcast %cst_78 : f32 to vector<16x256xf32>
    %94 = arith.subf %93, %92 : vector<16x256xf32>
    %95 = math.exp %94 : vector<16x256xf32>
    %cst_79 = arith.constant 1.000000e+00 : f32
    %96 = vector.broadcast %cst_79 : f32 to vector<16x256xf32>
    %97 = arith.addf %96, %95 : vector<16x256xf32>
    %cst_80 = arith.constant 1.000000e+00 : f32
    %98 = vector.broadcast %cst_80 : f32 to vector<16x256xf32>
    %99 = arith.divf %98, %97 : vector<16x256xf32>
    %100 = vector.extract_strided_slice %45 {offsets = [0, 0], sizes = [16, 256], strides = [1, 1]} : vector<32x256xf32> to vector<16x256xf32>
    %101 = arith.mulf %100, %99 : vector<16x256xf32>
    %102 = vector.extract_strided_slice %45 {offsets = [16, 0], sizes = [16, 256], strides = [1, 1]} : vector<32x256xf32> to vector<16x256xf32>
    %cst_81 = arith.constant 0.000000e+00 : f32
    %103 = vector.broadcast %cst_81 : f32 to vector<16x256xf32>
    %104 = arith.maximumf %102, %103 : vector<16x256xf32>
    %105 = arith.truncf %101 : vector<16x256xf32> to vector<16x256xbf16>
    %c0_82 = arith.constant 0 : index
    %c0_83 = arith.constant 0 : index
    %c0_84 = arith.constant 0 : index
    %106 = vector.load %arg2[%c0_82, %c0_83, %c0_84] : memref<9x256x256xbf16, #tpu.memory_space<vmem>>, vector<1x256x256xbf16>
    %107 = vector.shape_cast %106 : vector<1x256x256xbf16> to vector<256x256xbf16>
    %cst_85 = arith.constant dense<0.000000e+00> : vector<16x256xf32>
    %108 = tpu.matmul %105, %107, %cst_85 {dimension_numbers = #tpu.dot_dimension_numbers<[1], [0], [0], [1], [0, 0, 1, 1], [], []>} : vector<16x256xbf16>, vector<256x256xbf16>, vector<16x256xf32> -> vector<16x256xf32>
    %109 = arith.truncf %108 : vector<16x256xf32> to vector<16x256xbf16>
    %c1_86 = arith.constant 1 : index
    %c0_87 = arith.constant 0 : index
    %c0_88 = arith.constant 0 : index
    %110 = vector.load %arg2[%c1_86, %c0_87, %c0_88] : memref<9x256x256xbf16, #tpu.memory_space<vmem>>, vector<1x256x256xbf16>
    %111 = vector.shape_cast %110 : vector<1x256x256xbf16> to vector<256x256xbf16>
    %cst_89 = arith.constant dense<0.000000e+00> : vector<16x256xf32>
    %112 = tpu.matmul %105, %111, %cst_89 {dimension_numbers = #tpu.dot_dimension_numbers<[1], [0], [0], [1], [0, 0, 1, 1], [], []>} : vector<16x256xbf16>, vector<256x256xbf16>, vector<16x256xf32> -> vector<16x256xf32>
    %113 = arith.truncf %112 : vector<16x256xf32> to vector<16x256xbf16>
    %c2_90 = arith.constant 2 : index
    %c0_91 = arith.constant 0 : index
    %c0_92 = arith.constant 0 : index
    %114 = vector.load %arg2[%c2_90, %c0_91, %c0_92] : memref<9x256x256xbf16, #tpu.memory_space<vmem>>, vector<1x256x256xbf16>
    %115 = vector.shape_cast %114 : vector<1x256x256xbf16> to vector<256x256xbf16>
    %cst_93 = arith.constant dense<0.000000e+00> : vector<16x256xf32>
    %116 = tpu.matmul %105, %115, %cst_93 {dimension_numbers = #tpu.dot_dimension_numbers<[1], [0], [0], [1], [0, 0, 1, 1], [], []>} : vector<16x256xbf16>, vector<256x256xbf16>, vector<16x256xf32> -> vector<16x256xf32>
    %117 = arith.truncf %116 : vector<16x256xf32> to vector<16x256xbf16>
    %c3_94 = arith.constant 3 : index
    %c0_95 = arith.constant 0 : index
    %c0_96 = arith.constant 0 : index
    %118 = vector.load %arg2[%c3_94, %c0_95, %c0_96] : memref<9x256x256xbf16, #tpu.memory_space<vmem>>, vector<1x256x256xbf16>
    %119 = vector.shape_cast %118 : vector<1x256x256xbf16> to vector<256x256xbf16>
    %cst_97 = arith.constant dense<0.000000e+00> : vector<16x256xf32>
    %120 = tpu.matmul %105, %119, %cst_97 {dimension_numbers = #tpu.dot_dimension_numbers<[1], [0], [0], [1], [0, 0, 1, 1], [], []>} : vector<16x256xbf16>, vector<256x256xbf16>, vector<16x256xf32> -> vector<16x256xf32>
    %121 = arith.truncf %120 : vector<16x256xf32> to vector<16x256xbf16>
    %c4_98 = arith.constant 4 : index
    %c0_99 = arith.constant 0 : index
    %c0_100 = arith.constant 0 : index
    %122 = vector.load %arg2[%c4_98, %c0_99, %c0_100] : memref<9x256x256xbf16, #tpu.memory_space<vmem>>, vector<1x256x256xbf16>
    %123 = vector.shape_cast %122 : vector<1x256x256xbf16> to vector<256x256xbf16>
    %cst_101 = arith.constant dense<0.000000e+00> : vector<16x256xf32>
    %124 = tpu.matmul %105, %123, %cst_101 {dimension_numbers = #tpu.dot_dimension_numbers<[1], [0], [0], [1], [0, 0, 1, 1], [], []>} : vector<16x256xbf16>, vector<256x256xbf16>, vector<16x256xf32> -> vector<16x256xf32>
    %125 = arith.truncf %124 : vector<16x256xf32> to vector<16x256xbf16>
    %c5_102 = arith.constant 5 : index
    %c0_103 = arith.constant 0 : index
    %c0_104 = arith.constant 0 : index
    %126 = vector.load %arg2[%c5_102, %c0_103, %c0_104] : memref<9x256x256xbf16, #tpu.memory_space<vmem>>, vector<1x256x256xbf16>
    %127 = vector.shape_cast %126 : vector<1x256x256xbf16> to vector<256x256xbf16>
    %cst_105 = arith.constant dense<0.000000e+00> : vector<16x256xf32>
    %128 = tpu.matmul %105, %127, %cst_105 {dimension_numbers = #tpu.dot_dimension_numbers<[1], [0], [0], [1], [0, 0, 1, 1], [], []>} : vector<16x256xbf16>, vector<256x256xbf16>, vector<16x256xf32> -> vector<16x256xf32>
    %129 = arith.truncf %128 : vector<16x256xf32> to vector<16x256xbf16>
    %c6_106 = arith.constant 6 : index
    %c0_107 = arith.constant 0 : index
    %c0_108 = arith.constant 0 : index
    %130 = vector.load %arg2[%c6_106, %c0_107, %c0_108] : memref<9x256x256xbf16, #tpu.memory_space<vmem>>, vector<1x256x256xbf16>
    %131 = vector.shape_cast %130 : vector<1x256x256xbf16> to vector<256x256xbf16>
    %cst_109 = arith.constant dense<0.000000e+00> : vector<16x256xf32>
    %132 = tpu.matmul %105, %131, %cst_109 {dimension_numbers = #tpu.dot_dimension_numbers<[1], [0], [0], [1], [0, 0, 1, 1], [], []>} : vector<16x256xbf16>, vector<256x256xbf16>, vector<16x256xf32> -> vector<16x256xf32>
    %133 = arith.truncf %132 : vector<16x256xf32> to vector<16x256xbf16>
    %c7_110 = arith.constant 7 : index
    %c0_111 = arith.constant 0 : index
    %c0_112 = arith.constant 0 : index
    %134 = vector.load %arg2[%c7_110, %c0_111, %c0_112] : memref<9x256x256xbf16, #tpu.memory_space<vmem>>, vector<1x256x256xbf16>
    %135 = vector.shape_cast %134 : vector<1x256x256xbf16> to vector<256x256xbf16>
    %cst_113 = arith.constant dense<0.000000e+00> : vector<16x256xf32>
    %136 = tpu.matmul %105, %135, %cst_113 {dimension_numbers = #tpu.dot_dimension_numbers<[1], [0], [0], [1], [0, 0, 1, 1], [], []>} : vector<16x256xbf16>, vector<256x256xbf16>, vector<16x256xf32> -> vector<16x256xf32>
    %137 = arith.truncf %136 : vector<16x256xf32> to vector<16x256xbf16>
    %c8_114 = arith.constant 8 : index
    %c0_115 = arith.constant 0 : index
    %c0_116 = arith.constant 0 : index
    %138 = vector.load %arg2[%c8_114, %c0_115, %c0_116] : memref<9x256x256xbf16, #tpu.memory_space<vmem>>, vector<1x256x256xbf16>
    %139 = vector.shape_cast %138 : vector<1x256x256xbf16> to vector<256x256xbf16>
    %cst_117 = arith.constant dense<0.000000e+00> : vector<16x256xf32>
    %140 = tpu.matmul %105, %139, %cst_117 {dimension_numbers = #tpu.dot_dimension_numbers<[1], [0], [0], [1], [0, 0, 1, 1], [], []>} : vector<16x256xbf16>, vector<256x256xbf16>, vector<16x256xf32> -> vector<16x256xf32>
    %141 = arith.truncf %140 : vector<16x256xf32> to vector<16x256xbf16>
    %142 = tpu.concatenate %109, %113, %117, %121, %125, %129, %133, %137, %141 in 0 : vector<16x256xbf16>, vector<16x256xbf16>, vector<16x256xbf16>, vector<16x256xbf16>, vector<16x256xbf16>, vector<16x256xbf16>, vector<16x256xbf16>, vector<16x256xbf16>, vector<16x256xbf16> -> vector<144x256xbf16>
    %c0_118 = arith.constant 0 : index
    %c0_119 = arith.constant 0 : index
    %143 = vector.load %arg9[%c0_118, %c0_119] : memref<16x144xbf16, #tpu.memory_space<vmem>>, vector<16x144xbf16>
    %cst_120 = arith.constant dense<0.000000e+00> : vector<16x256xf32>
    %144 = tpu.matmul %143, %142, %cst_120 {dimension_numbers = #tpu.dot_dimension_numbers<[1], [0], [0], [1], [0, 0, 1, 1], [], []>} : vector<16x144xbf16>, vector<144x256xbf16>, vector<16x256xf32> -> vector<16x256xf32>
    %c0_121 = arith.constant 0 : index
    %c0_122 = arith.constant 0 : index
    %145 = vector.load %arg10[%c0_121, %c0_122] : memref<16x1xf32, #tpu.memory_space<vmem>>, vector<16x1xf32>
    %146 = vector.broadcast %145 : vector<16x1xf32> to vector<16x256xf32>
    %147 = arith.addf %144, %146 : vector<16x256xf32>
    %cst_123 = arith.constant 0.000000e+00 : f32
    %148 = vector.broadcast %cst_123 : f32 to vector<16x256xf32>
    %149 = arith.maximumf %147, %148 : vector<16x256xf32>
    %150 = tpu.concatenate %149, %104 in 0 : vector<16x256xf32>, vector<16x256xf32> -> vector<32x256xf32>
    %151 = arith.truncf %150 : vector<32x256xf32> to vector<32x256xbf16>
    %c0_124 = arith.constant 0 : index
    %c0_125 = arith.constant 0 : index
    %c0_126 = arith.constant 0 : index
    %152 = vector.load %arg2[%c0_124, %c0_125, %c0_126] : memref<9x256x256xbf16, #tpu.memory_space<vmem>>, vector<1x256x256xbf16>
    %153 = vector.shape_cast %152 : vector<1x256x256xbf16> to vector<256x256xbf16>
    %cst_127 = arith.constant dense<0.000000e+00> : vector<32x256xf32>
    %154 = tpu.matmul %151, %153, %cst_127 {dimension_numbers = #tpu.dot_dimension_numbers<[1], [0], [0], [1], [0, 0, 1, 1], [], []>} : vector<32x256xbf16>, vector<256x256xbf16>, vector<32x256xf32> -> vector<32x256xf32>
    %155 = arith.truncf %154 : vector<32x256xf32> to vector<32x256xbf16>
    %c1_128 = arith.constant 1 : index
    %c0_129 = arith.constant 0 : index
    %c0_130 = arith.constant 0 : index
    %156 = vector.load %arg2[%c1_128, %c0_129, %c0_130] : memref<9x256x256xbf16, #tpu.memory_space<vmem>>, vector<1x256x256xbf16>
    %157 = vector.shape_cast %156 : vector<1x256x256xbf16> to vector<256x256xbf16>
    %cst_131 = arith.constant dense<0.000000e+00> : vector<32x256xf32>
    %158 = tpu.matmul %151, %157, %cst_131 {dimension_numbers = #tpu.dot_dimension_numbers<[1], [0], [0], [1], [0, 0, 1, 1], [], []>} : vector<32x256xbf16>, vector<256x256xbf16>, vector<32x256xf32> -> vector<32x256xf32>
    %159 = arith.truncf %158 : vector<32x256xf32> to vector<32x256xbf16>
    %c2_132 = arith.constant 2 : index
    %c0_133 = arith.constant 0 : index
    %c0_134 = arith.constant 0 : index
    %160 = vector.load %arg2[%c2_132, %c0_133, %c0_134] : memref<9x256x256xbf16, #tpu.memory_space<vmem>>, vector<1x256x256xbf16>
    %161 = vector.shape_cast %160 : vector<1x256x256xbf16> to vector<256x256xbf16>
    %cst_135 = arith.constant dense<0.000000e+00> : vector<32x256xf32>
    %162 = tpu.matmul %151, %161, %cst_135 {dimension_numbers = #tpu.dot_dimension_numbers<[1], [0], [0], [1], [0, 0, 1, 1], [], []>} : vector<32x256xbf16>, vector<256x256xbf16>, vector<32x256xf32> -> vector<32x256xf32>
    %163 = arith.truncf %162 : vector<32x256xf32> to vector<32x256xbf16>
    %c3_136 = arith.constant 3 : index
    %c0_137 = arith.constant 0 : index
    %c0_138 = arith.constant 0 : index
    %164 = vector.load %arg2[%c3_136, %c0_137, %c0_138] : memref<9x256x256xbf16, #tpu.memory_space<vmem>>, vector<1x256x256xbf16>
    %165 = vector.shape_cast %164 : vector<1x256x256xbf16> to vector<256x256xbf16>
    %cst_139 = arith.constant dense<0.000000e+00> : vector<32x256xf32>
    %166 = tpu.matmul %151, %165, %cst_139 {dimension_numbers = #tpu.dot_dimension_numbers<[1], [0], [0], [1], [0, 0, 1, 1], [], []>} : vector<32x256xbf16>, vector<256x256xbf16>, vector<32x256xf32> -> vector<32x256xf32>
    %167 = arith.truncf %166 : vector<32x256xf32> to vector<32x256xbf16>
    %c4_140 = arith.constant 4 : index
    %c0_141 = arith.constant 0 : index
    %c0_142 = arith.constant 0 : index
    %168 = vector.load %arg2[%c4_140, %c0_141, %c0_142] : memref<9x256x256xbf16, #tpu.memory_space<vmem>>, vector<1x256x256xbf16>
    %169 = vector.shape_cast %168 : vector<1x256x256xbf16> to vector<256x256xbf16>
    %cst_143 = arith.constant dense<0.000000e+00> : vector<32x256xf32>
    %170 = tpu.matmul %151, %169, %cst_143 {dimension_numbers = #tpu.dot_dimension_numbers<[1], [0], [0], [1], [0, 0, 1, 1], [], []>} : vector<32x256xbf16>, vector<256x256xbf16>, vector<32x256xf32> -> vector<32x256xf32>
    %171 = arith.truncf %170 : vector<32x256xf32> to vector<32x256xbf16>
    %c5_144 = arith.constant 5 : index
    %c0_145 = arith.constant 0 : index
    %c0_146 = arith.constant 0 : index
    %172 = vector.load %arg2[%c5_144, %c0_145, %c0_146] : memref<9x256x256xbf16, #tpu.memory_space<vmem>>, vector<1x256x256xbf16>
    %173 = vector.shape_cast %172 : vector<1x256x256xbf16> to vector<256x256xbf16>
    %cst_147 = arith.constant dense<0.000000e+00> : vector<32x256xf32>
    %174 = tpu.matmul %151, %173, %cst_147 {dimension_numbers = #tpu.dot_dimension_numbers<[1], [0], [0], [1], [0, 0, 1, 1], [], []>} : vector<32x256xbf16>, vector<256x256xbf16>, vector<32x256xf32> -> vector<32x256xf32>
    %175 = arith.truncf %174 : vector<32x256xf32> to vector<32x256xbf16>
    %c6_148 = arith.constant 6 : index
    %c0_149 = arith.constant 0 : index
    %c0_150 = arith.constant 0 : index
    %176 = vector.load %arg2[%c6_148, %c0_149, %c0_150] : memref<9x256x256xbf16, #tpu.memory_space<vmem>>, vector<1x256x256xbf16>
    %177 = vector.shape_cast %176 : vector<1x256x256xbf16> to vector<256x256xbf16>
    %cst_151 = arith.constant dense<0.000000e+00> : vector<32x256xf32>
    %178 = tpu.matmul %151, %177, %cst_151 {dimension_numbers = #tpu.dot_dimension_numbers<[1], [0], [0], [1], [0, 0, 1, 1], [], []>} : vector<32x256xbf16>, vector<256x256xbf16>, vector<32x256xf32> -> vector<32x256xf32>
    %179 = arith.truncf %178 : vector<32x256xf32> to vector<32x256xbf16>
    %c7_152 = arith.constant 7 : index
    %c0_153 = arith.constant 0 : index
    %c0_154 = arith.constant 0 : index
    %180 = vector.load %arg2[%c7_152, %c0_153, %c0_154] : memref<9x256x256xbf16, #tpu.memory_space<vmem>>, vector<1x256x256xbf16>
    %181 = vector.shape_cast %180 : vector<1x256x256xbf16> to vector<256x256xbf16>
    %cst_155 = arith.constant dense<0.000000e+00> : vector<32x256xf32>
    %182 = tpu.matmul %151, %181, %cst_155 {dimension_numbers = #tpu.dot_dimension_numbers<[1], [0], [0], [1], [0, 0, 1, 1], [], []>} : vector<32x256xbf16>, vector<256x256xbf16>, vector<32x256xf32> -> vector<32x256xf32>
    %183 = arith.truncf %182 : vector<32x256xf32> to vector<32x256xbf16>
    %c8_156 = arith.constant 8 : index
    %c0_157 = arith.constant 0 : index
    %c0_158 = arith.constant 0 : index
    %184 = vector.load %arg2[%c8_156, %c0_157, %c0_158] : memref<9x256x256xbf16, #tpu.memory_space<vmem>>, vector<1x256x256xbf16>
    %185 = vector.shape_cast %184 : vector<1x256x256xbf16> to vector<256x256xbf16>
    %cst_159 = arith.constant dense<0.000000e+00> : vector<32x256xf32>
    %186 = tpu.matmul %151, %185, %cst_159 {dimension_numbers = #tpu.dot_dimension_numbers<[1], [0], [0], [1], [0, 0, 1, 1], [], []>} : vector<32x256xbf16>, vector<256x256xbf16>, vector<32x256xf32> -> vector<32x256xf32>
    %187 = arith.truncf %186 : vector<32x256xf32> to vector<32x256xbf16>
    %188 = tpu.concatenate %155, %159, %163, %167, %171, %175, %179, %183, %187 in 0 : vector<32x256xbf16>, vector<32x256xbf16>, vector<32x256xbf16>, vector<32x256xbf16>, vector<32x256xbf16>, vector<32x256xbf16>, vector<32x256xbf16>, vector<32x256xbf16>, vector<32x256xbf16> -> vector<288x256xbf16>
    %c0_160 = arith.constant 0 : index
    %c0_161 = arith.constant 0 : index
    %189 = vector.load %arg11[%c0_160, %c0_161] : memref<32x288xbf16, #tpu.memory_space<vmem>>, vector<32x288xbf16>
    %cst_162 = arith.constant dense<0.000000e+00> : vector<32x256xf32>
    %190 = tpu.matmul %189, %188, %cst_162 {dimension_numbers = #tpu.dot_dimension_numbers<[1], [0], [0], [1], [0, 0, 1, 1], [], []>} : vector<32x288xbf16>, vector<288x256xbf16>, vector<32x256xf32> -> vector<32x256xf32>
    %c0_163 = arith.constant 0 : index
    %c0_164 = arith.constant 0 : index
    %191 = vector.load %arg12[%c0_163, %c0_164] : memref<32x1xf32, #tpu.memory_space<vmem>>, vector<32x1xf32>
    %192 = vector.broadcast %191 : vector<32x1xf32> to vector<32x256xf32>
    %193 = arith.addf %190, %192 : vector<32x256xf32>
    %cst_165 = arith.constant 0.000000e+00 : f32
    %194 = vector.broadcast %cst_165 : f32 to vector<32x256xf32>
    %195 = arith.maximumf %193, %194 : vector<32x256xf32>
    %196 = arith.truncf %195 : vector<32x256xf32> to vector<32x256xbf16>
    %c0_166 = arith.constant 0 : index
    %c0_167 = arith.constant 0 : index
    %c0_168 = arith.constant 0 : index
    %197 = vector.load %arg2[%c0_166, %c0_167, %c0_168] : memref<9x256x256xbf16, #tpu.memory_space<vmem>>, vector<1x256x256xbf16>
    %198 = vector.shape_cast %197 : vector<1x256x256xbf16> to vector<256x256xbf16>
    %cst_169 = arith.constant dense<0.000000e+00> : vector<32x256xf32>
    %199 = tpu.matmul %196, %198, %cst_169 {dimension_numbers = #tpu.dot_dimension_numbers<[1], [0], [0], [1], [0, 0, 1, 1], [], []>} : vector<32x256xbf16>, vector<256x256xbf16>, vector<32x256xf32> -> vector<32x256xf32>
    %200 = arith.truncf %199 : vector<32x256xf32> to vector<32x256xbf16>
    %c1_170 = arith.constant 1 : index
    %c0_171 = arith.constant 0 : index
    %c0_172 = arith.constant 0 : index
    %201 = vector.load %arg2[%c1_170, %c0_171, %c0_172] : memref<9x256x256xbf16, #tpu.memory_space<vmem>>, vector<1x256x256xbf16>
    %202 = vector.shape_cast %201 : vector<1x256x256xbf16> to vector<256x256xbf16>
    %cst_173 = arith.constant dense<0.000000e+00> : vector<32x256xf32>
    %203 = tpu.matmul %196, %202, %cst_173 {dimension_numbers = #tpu.dot_dimension_numbers<[1], [0], [0], [1], [0, 0, 1, 1], [], []>} : vector<32x256xbf16>, vector<256x256xbf16>, vector<32x256xf32> -> vector<32x256xf32>
    %204 = arith.truncf %203 : vector<32x256xf32> to vector<32x256xbf16>
    %c2_174 = arith.constant 2 : index
    %c0_175 = arith.constant 0 : index
    %c0_176 = arith.constant 0 : index
    %205 = vector.load %arg2[%c2_174, %c0_175, %c0_176] : memref<9x256x256xbf16, #tpu.memory_space<vmem>>, vector<1x256x256xbf16>
    %206 = vector.shape_cast %205 : vector<1x256x256xbf16> to vector<256x256xbf16>
    %cst_177 = arith.constant dense<0.000000e+00> : vector<32x256xf32>
    %207 = tpu.matmul %196, %206, %cst_177 {dimension_numbers = #tpu.dot_dimension_numbers<[1], [0], [0], [1], [0, 0, 1, 1], [], []>} : vector<32x256xbf16>, vector<256x256xbf16>, vector<32x256xf32> -> vector<32x256xf32>
    %208 = arith.truncf %207 : vector<32x256xf32> to vector<32x256xbf16>
    %c3_178 = arith.constant 3 : index
    %c0_179 = arith.constant 0 : index
    %c0_180 = arith.constant 0 : index
    %209 = vector.load %arg2[%c3_178, %c0_179, %c0_180] : memref<9x256x256xbf16, #tpu.memory_space<vmem>>, vector<1x256x256xbf16>
    %210 = vector.shape_cast %209 : vector<1x256x256xbf16> to vector<256x256xbf16>
    %cst_181 = arith.constant dense<0.000000e+00> : vector<32x256xf32>
    %211 = tpu.matmul %196, %210, %cst_181 {dimension_numbers = #tpu.dot_dimension_numbers<[1], [0], [0], [1], [0, 0, 1, 1], [], []>} : vector<32x256xbf16>, vector<256x256xbf16>, vector<32x256xf32> -> vector<32x256xf32>
    %212 = arith.truncf %211 : vector<32x256xf32> to vector<32x256xbf16>
    %c4_182 = arith.constant 4 : index
    %c0_183 = arith.constant 0 : index
    %c0_184 = arith.constant 0 : index
    %213 = vector.load %arg2[%c4_182, %c0_183, %c0_184] : memref<9x256x256xbf16, #tpu.memory_space<vmem>>, vector<1x256x256xbf16>
    %214 = vector.shape_cast %213 : vector<1x256x256xbf16> to vector<256x256xbf16>
    %cst_185 = arith.constant dense<0.000000e+00> : vector<32x256xf32>
    %215 = tpu.matmul %196, %214, %cst_185 {dimension_numbers = #tpu.dot_dimension_numbers<[1], [0], [0], [1], [0, 0, 1, 1], [], []>} : vector<32x256xbf16>, vector<256x256xbf16>, vector<32x256xf32> -> vector<32x256xf32>
    %216 = arith.truncf %215 : vector<32x256xf32> to vector<32x256xbf16>
    %c5_186 = arith.constant 5 : index
    %c0_187 = arith.constant 0 : index
    %c0_188 = arith.constant 0 : index
    %217 = vector.load %arg2[%c5_186, %c0_187, %c0_188] : memref<9x256x256xbf16, #tpu.memory_space<vmem>>, vector<1x256x256xbf16>
    %218 = vector.shape_cast %217 : vector<1x256x256xbf16> to vector<256x256xbf16>
    %cst_189 = arith.constant dense<0.000000e+00> : vector<32x256xf32>
    %219 = tpu.matmul %196, %218, %cst_189 {dimension_numbers = #tpu.dot_dimension_numbers<[1], [0], [0], [1], [0, 0, 1, 1], [], []>} : vector<32x256xbf16>, vector<256x256xbf16>, vector<32x256xf32> -> vector<32x256xf32>
    %220 = arith.truncf %219 : vector<32x256xf32> to vector<32x256xbf16>
    %c6_190 = arith.constant 6 : index
    %c0_191 = arith.constant 0 : index
    %c0_192 = arith.constant 0 : index
    %221 = vector.load %arg2[%c6_190, %c0_191, %c0_192] : memref<9x256x256xbf16, #tpu.memory_space<vmem>>, vector<1x256x256xbf16>
    %222 = vector.shape_cast %221 : vector<1x256x256xbf16> to vector<256x256xbf16>
    %cst_193 = arith.constant dense<0.000000e+00> : vector<32x256xf32>
    %223 = tpu.matmul %196, %222, %cst_193 {dimension_numbers = #tpu.dot_dimension_numbers<[1], [0], [0], [1], [0, 0, 1, 1], [], []>} : vector<32x256xbf16>, vector<256x256xbf16>, vector<32x256xf32> -> vector<32x256xf32>
    %224 = arith.truncf %223 : vector<32x256xf32> to vector<32x256xbf16>
    %c7_194 = arith.constant 7 : index
    %c0_195 = arith.constant 0 : index
    %c0_196 = arith.constant 0 : index
    %225 = vector.load %arg2[%c7_194, %c0_195, %c0_196] : memref<9x256x256xbf16, #tpu.memory_space<vmem>>, vector<1x256x256xbf16>
    %226 = vector.shape_cast %225 : vector<1x256x256xbf16> to vector<256x256xbf16>
    %cst_197 = arith.constant dense<0.000000e+00> : vector<32x256xf32>
    %227 = tpu.matmul %196, %226, %cst_197 {dimension_numbers = #tpu.dot_dimension_numbers<[1], [0], [0], [1], [0, 0, 1, 1], [], []>} : vector<32x256xbf16>, vector<256x256xbf16>, vector<32x256xf32> -> vector<32x256xf32>
    %228 = arith.truncf %227 : vector<32x256xf32> to vector<32x256xbf16>
    %c8_198 = arith.constant 8 : index
    %c0_199 = arith.constant 0 : index
    %c0_200 = arith.constant 0 : index
    %229 = vector.load %arg2[%c8_198, %c0_199, %c0_200] : memref<9x256x256xbf16, #tpu.memory_space<vmem>>, vector<1x256x256xbf16>
    %230 = vector.shape_cast %229 : vector<1x256x256xbf16> to vector<256x256xbf16>
    %cst_201 = arith.constant dense<0.000000e+00> : vector<32x256xf32>
    %231 = tpu.matmul %196, %230, %cst_201 {dimension_numbers = #tpu.dot_dimension_numbers<[1], [0], [0], [1], [0, 0, 1, 1], [], []>} : vector<32x256xbf16>, vector<256x256xbf16>, vector<32x256xf32> -> vector<32x256xf32>
    %232 = arith.truncf %231 : vector<32x256xf32> to vector<32x256xbf16>
    %233 = tpu.concatenate %200, %204, %208, %212, %216, %220, %224, %228, %232 in 0 : vector<32x256xbf16>, vector<32x256xbf16>, vector<32x256xbf16>, vector<32x256xbf16>, vector<32x256xbf16>, vector<32x256xbf16>, vector<32x256xbf16>, vector<32x256xbf16>, vector<32x256xbf16> -> vector<288x256xbf16>
    %c0_202 = arith.constant 0 : index
    %c0_203 = arith.constant 0 : index
    %234 = vector.load %arg13[%c0_202, %c0_203] : memref<32x288xbf16, #tpu.memory_space<vmem>>, vector<32x288xbf16>
    %cst_204 = arith.constant dense<0.000000e+00> : vector<32x256xf32>
    %235 = tpu.matmul %234, %233, %cst_204 {dimension_numbers = #tpu.dot_dimension_numbers<[1], [0], [0], [1], [0, 0, 1, 1], [], []>} : vector<32x288xbf16>, vector<288x256xbf16>, vector<32x256xf32> -> vector<32x256xf32>
    %c0_205 = arith.constant 0 : index
    %c0_206 = arith.constant 0 : index
    %236 = vector.load %arg14[%c0_205, %c0_206] : memref<32x1xf32, #tpu.memory_space<vmem>>, vector<32x1xf32>
    %237 = vector.broadcast %236 : vector<32x1xf32> to vector<32x256xf32>
    %238 = arith.addf %235, %237 : vector<32x256xf32>
    %cst_207 = arith.constant dense<0.000000e+00> : vector<32xf32>
    %239 = vector.multi_reduction <add>, %238, %cst_207 [1] : vector<32x256xf32> to vector<32xf32>
    %240 = vector.shape_cast %239 : vector<32xf32> to vector<32x1xf32>
    %cst_208 = arith.constant 2.560000e+02 : f32
    %241 = vector.broadcast %cst_208 : f32 to vector<32x1xf32>
    %242 = arith.divf %240, %241 : vector<32x1xf32>
    %243 = vector.shape_cast %242 : vector<32x1xf32> to vector<32x1xf32>
    %244 = vector.broadcast %243 : vector<32x1xf32> to vector<32x8xf32>
    %c0_209 = arith.constant 0 : index
    %c0_210 = arith.constant 0 : index
    %245 = vector.load %arg15[%c0_209, %c0_210] : memref<2x32xf32, #tpu.memory_space<vmem>>, vector<2x32xf32>
    %cst_211 = arith.constant dense<0.000000e+00> : vector<2x8xf32>
    %246 = tpu.matmul %245, %244, %cst_211 {dimension_numbers = #tpu.dot_dimension_numbers<[1], [0], [0], [1], [0, 0, 1, 1], [], []>} : vector<2x32xf32>, vector<32x8xf32>, vector<2x8xf32> -> vector<2x8xf32>
    %c0_212 = arith.constant 0 : index
    %c0_213 = arith.constant 0 : index
    %247 = vector.load %arg16[%c0_212, %c0_213] : memref<2x1xf32, #tpu.memory_space<vmem>>, vector<2x1xf32>
    %248 = vector.broadcast %247 : vector<2x1xf32> to vector<2x8xf32>
    %249 = arith.addf %246, %248 : vector<2x8xf32>
    %cst_214 = arith.constant 0.000000e+00 : f32
    %250 = vector.broadcast %cst_214 : f32 to vector<2x8xf32>
    %251 = arith.maximumf %249, %250 : vector<2x8xf32>
    %c0_215 = arith.constant 0 : index
    %c0_216 = arith.constant 0 : index
    %252 = vector.load %arg17[%c0_215, %c0_216] : memref<32x2xf32, #tpu.memory_space<vmem>>, vector<32x2xf32>
    %cst_217 = arith.constant dense<0.000000e+00> : vector<32x8xf32>
    %253 = tpu.matmul %252, %251, %cst_217 {dimension_numbers = #tpu.dot_dimension_numbers<[1], [0], [0], [1], [0, 0, 1, 1], [], []>} : vector<32x2xf32>, vector<2x8xf32>, vector<32x8xf32> -> vector<32x8xf32>
    %c0_218 = arith.constant 0 : index
    %c0_219 = arith.constant 0 : index
    %254 = vector.load %arg18[%c0_218, %c0_219] : memref<32x1xf32, #tpu.memory_space<vmem>>, vector<32x1xf32>
    %255 = vector.broadcast %254 : vector<32x1xf32> to vector<32x8xf32>
    %256 = arith.addf %253, %255 : vector<32x8xf32>
    %cst_220 = arith.constant 0.000000e+00 : f32
    %257 = vector.broadcast %cst_220 : f32 to vector<32x8xf32>
    %258 = arith.subf %257, %256 : vector<32x8xf32>
    %259 = math.exp %258 : vector<32x8xf32>
    %cst_221 = arith.constant 1.000000e+00 : f32
    %260 = vector.broadcast %cst_221 : f32 to vector<32x8xf32>
    %261 = arith.addf %260, %259 : vector<32x8xf32>
    %cst_222 = arith.constant 1.000000e+00 : f32
    %262 = vector.broadcast %cst_222 : f32 to vector<32x8xf32>
    %263 = arith.divf %262, %261 : vector<32x8xf32>
    %264 = vector.extract_strided_slice %263 {offsets = [0, 0], sizes = [32, 1], strides = [1, 1]} : vector<32x8xf32> to vector<32x1xf32>
    %265 = vector.broadcast %264 : vector<32x1xf32> to vector<32x256xf32>
    %266 = arith.mulf %238, %265 : vector<32x256xf32>
    %267 = arith.addf %266, %150 : vector<32x256xf32>
    %268 = arith.addf %267, %1 : vector<32x256xf32>
    %c0_223 = arith.constant 0 : index
    %c0_224 = arith.constant 0 : index
    %c0_225 = arith.constant 0 : index
    %269 = vector.load %arg19[%c0_223, %c0_224, %c0_225] : memref<1x32x256xf32, #tpu.memory_space<vmem>>, vector<1x32x256xf32>
    %270 = vector.shape_cast %269 : vector<1x32x256xf32> to vector<32x256xf32>
    %271 = vector.shape_cast %268 : vector<32x256xf32> to vector<1x32x256xf32>
    tpu.vector_store %arg19[%c0_223, %c0_224, %c0_225], %271 {strides = array<i32>} : memref<1x32x256xf32, #tpu.memory_space<vmem>>, vector<1x32x256xf32>,
    return
  }
  func.func @transform_0(%arg0: i32) -> (i32, i32, i32) {
    %c0_i32 = arith.constant 0 : i32
    %c0_i32_0 = arith.constant 0 : i32
    %c0_i32_1 = arith.constant 0 : i32
    return %arg0, %c0_i32, %c0_i32_0 : i32, i32, i32
  }
  func.func @transform_1(%arg0: i32) -> (i32, i32, i32) {
    %c0_i32 = arith.constant 0 : i32
    %c0_i32_0 = arith.constant 0 : i32
    %c0_i32_1 = arith.constant 0 : i32
    %c0_i32_2 = arith.constant 0 : i32
    return %c0_i32, %c0_i32_0, %c0_i32_1 : i32, i32, i32
  }
  func.func @transform_2(%arg0: i32) -> (i32, i32, i32) {
    %c0_i32 = arith.constant 0 : i32
    %c0_i32_0 = arith.constant 0 : i32
    %c0_i32_1 = arith.constant 0 : i32
    %c0_i32_2 = arith.constant 0 : i32
    return %c0_i32, %c0_i32_0, %c0_i32_1 : i32, i32, i32
  }
  func.func @transform_3(%arg0: i32) -> (i32, i32) {
    %c0_i32 = arith.constant 0 : i32
    %c0_i32_0 = arith.constant 0 : i32
    %c0_i32_1 = arith.constant 0 : i32
    return %c0_i32, %c0_i32_0 : i32, i32
  }
  func.func @transform_4(%arg0: i32) -> (i32, i32) {
    %c0_i32 = arith.constant 0 : i32
    %c0_i32_0 = arith.constant 0 : i32
    %c0_i32_1 = arith.constant 0 : i32
    return %c0_i32, %c0_i32_0 : i32, i32
  }
  func.func @transform_5(%arg0: i32) -> (i32, i32) {
    %c0_i32 = arith.constant 0 : i32
    %c0_i32_0 = arith.constant 0 : i32
    %c0_i32_1 = arith.constant 0 : i32
    return %c0_i32, %c0_i32_0 : i32, i32
  }
  func.func @transform_6(%arg0: i32) -> (i32, i32) {
    %c0_i32 = arith.constant 0 : i32
    %c0_i32_0 = arith.constant 0 : i32
    %c0_i32_1 = arith.constant 0 : i32
    return %c0_i32, %c0_i32_0 : i32, i32
  }
  func.func @transform_7(%arg0: i32) -> (i32, i32) {
    %c0_i32 = arith.constant 0 : i32
    %c0_i32_0 = arith.constant 0 : i32
    %c0_i32_1 = arith.constant 0 : i32
    return %c0_i32, %c0_i32_0 : i32, i32
  }
  func.func @transform_8(%arg0: i32) -> (i32, i32) {
    %c0_i32 = arith.constant 0 : i32
    %c0_i32_0 = arith.constant 0 : i32
    %c0_i32_1 = arith.constant 0 : i32
    return %c0_i32, %c0_i32_0 : i32, i32
  }
  func.func @transform_9(%arg0: i32) -> (i32, i32) {
    %c0_i32 = arith.constant 0 : i32
    %c0_i32_0 = arith.constant 0 : i32
    %c0_i32_1 = arith.constant 0 : i32
    return %c0_i32, %c0_i32_0 : i32, i32
  }
  func.func @transform_10(%arg0: i32) -> (i32, i32) {
    %c0_i32 = arith.constant 0 : i32
    %c0_i32_0 = arith.constant 0 : i32
    %c0_i32_1 = arith.constant 0 : i32
    return %c0_i32, %c0_i32_0 : i32, i32
  }
  func.func @transform_11(%arg0: i32) -> (i32, i32) {
    %c0_i32 = arith.constant 0 : i32
    %c0_i32_0 = arith.constant 0 : i32
    %c0_i32_1 = arith.constant 0 : i32
    return %c0_i32, %c0_i32_0 : i32, i32
  }
  func.func @transform_12(%arg0: i32) -> (i32, i32) {
    %c0_i32 = arith.constant 0 : i32
    %c0_i32_0 = arith.constant 0 : i32
    %c0_i32_1 = arith.constant 0 : i32
    return %c0_i32, %c0_i32_0 : i32, i32
  }
  func.func @transform_13(%arg0: i32) -> (i32, i32) {
    %c0_i32 = arith.constant 0 : i32
    %c0_i32_0 = arith.constant 0 : i32
    %c0_i32_1 = arith.constant 0 : i32
    return %c0_i32, %c0_i32_0 : i32, i32
  }
  func.func @transform_14(%arg0: i32) -> (i32, i32) {
    %c0_i32 = arith.constant 0 : i32
    %c0_i32_0 = arith.constant 0 : i32
    %c0_i32_1 = arith.constant 0 : i32
    return %c0_i32, %c0_i32_0 : i32, i32
  }
  func.func @transform_15(%arg0: i32) -> (i32, i32) {
    %c0_i32 = arith.constant 0 : i32
    %c0_i32_0 = arith.constant 0 : i32
    %c0_i32_1 = arith.constant 0 : i32
    return %c0_i32, %c0_i32_0 : i32, i32
  }
  func.func @transform_16(%arg0: i32) -> (i32, i32) {
    %c0_i32 = arith.constant 0 : i32
    %c0_i32_0 = arith.constant 0 : i32
    %c0_i32_1 = arith.constant 0 : i32
    return %c0_i32, %c0_i32_0 : i32, i32
  }
  func.func @transform_17(%arg0: i32) -> (i32, i32) {
    %c0_i32 = arith.constant 0 : i32
    %c0_i32_0 = arith.constant 0 : i32
    %c0_i32_1 = arith.constant 0 : i32
    return %c0_i32, %c0_i32_0 : i32, i32
  }
  func.func @transform_18(%arg0: i32) -> (i32, i32, i32) {
    %c0_i32 = arith.constant 0 : i32
    %c0_i32_0 = arith.constant 0 : i32
    %c0_i32_1 = arith.constant 0 : i32
    return %arg0, %c0_i32, %c0_i32_0 : i32, i32, i32
  }
}

</mosaic_0001>

<llo_original>
// kernel: sselb_forward.1
$region0: #{sselb_forward.1}
  #allocation0 [shape = 'u32[]', space=smem, size = 0x4, offset = 0x4, fixed_abs, tag = 'smem constant byte address 0x4 - core index']
  #allocation1 [shape = 'u32[72,128]{1,0:T(1,128)}', space=vmem, size = 0x9000, scoped, tag = 'internal scratch']
  %s0 = inlined_call_operand.vmem [shape: f32[2,32,256], index: 0, kind: input, shape index: {}]
  %s1 = inlined_call_operand.hbm [shape: bf16[9,256,256], index: 1, kind: input, shape index: {}]
  %s2 = inlined_call_operand.hbm [shape: bf16[9,256,16], index: 2, kind: input, shape index: {}]
  %s3 = inlined_call_operand.hbm [shape: bf16[16,256], index: 3, kind: input, shape index: {}]
  %s4 = inlined_call_operand.hbm [shape: bf16[32,288], index: 4, kind: input, shape index: {}]
  %s5 = inlined_call_operand.hbm [shape: f32[32,1], index: 5, kind: input, shape index: {}]
  %s6 = inlined_call_operand.hbm [shape: bf16[16,144], index: 6, kind: input, shape index: {}]
  %s7 = inlined_call_operand.hbm [shape: f32[16,1], index: 7, kind: input, shape index: {}]
  %s8 = inlined_call_operand.hbm [shape: bf16[16,144], index: 8, kind: input, shape index: {}]
  %s9 = inlined_call_operand.hbm [shape: f32[16,1], index: 9, kind: input, shape index: {}]
  %s10 = inlined_call_operand.hbm [shape: bf16[32,288], index: 10, kind: input, shape index: {}]
  %s11 = inlined_call_operand.hbm [shape: f32[32,1], index: 11, kind: input, shape index: {}]
  %s12 = inlined_call_operand.hbm [shape: bf16[32,288], index: 12, kind: input, shape index: {}]
  %s13 = inlined_call_operand.hbm [shape: f32[32,1], index: 13, kind: input, shape index: {}]
  %s14 = inlined_call_operand.hbm [shape: f32[2,32], index: 14, kind: input, shape index: {}]
  %s15 = inlined_call_operand.hbm [shape: f32[2,1], index: 15, kind: input, shape index: {}]
  %s16 = inlined_call_operand.hbm [shape: f32[32,2], index: 16, kind: input, shape index: {}]
  %s17 = inlined_call_operand.hbm [shape: f32[32,1], index: 17, kind: input, shape index: {}]
  %s18 = inlined_call_operand.vmem [shape: f32[2,32,256], index: 18, kind: output, shape index: {}]
  %s19 = sld [smem:[#allocation0]]
  $region173: #{sselb_forward.1} parent=0
    _
  %s21 = ssub.s32 1, %s19
  %s22 = scalar_select 0, %s21, %s19
  $region1: #{sselb_forward.1} parent=0
    #allocation2 [shape = 'u8[1179648]{0}', space=vmem, size = 0x120000, scoped, tag = 'input window, operand 1, single buffered']
    #allocation3 [shape = 's32[2]{0}', space=sflag, size = 0x8, scoped, tag = 'scoped memory for sselb_forward.1']
    #allocation4 [shape = 'u8[589824]{0}', space=vmem, size = 0x90000, scoped, tag = 'input window, operand 2, single buffered']
    #allocation5 [shape = 's32[1]{0}', space=sflag, size = 0x4, scoped, tag = 'scoped memory for sselb_forward.1']
    #allocation6 [shape = 'u8[8192]{0}', space=vmem, size = 0x2000, scoped, tag = 'input window, operand 3, single buffered']
    #allocation7 [shape = 'u8[24576]{0}', space=vmem, size = 0x6000, scoped, tag = 'input window, operand 4, single buffered']
    #allocation8 [shape = 's32[1]{0}', space=sflag, size = 0x4, scoped, tag = 'scoped memory for sselb_forward.1']
    #allocation9 [shape = 'u8[16384]{0}', space=vmem, size = 0x4000, scoped, tag = 'input window, operand 5, single buffered']
    #allocation10 [shape = 'u8[8192]{0}', space=vmem, size = 0x2000, scoped, tag = 'input window, operand 6, single buffered']
    #allocation11 [shape = 's32[1]{0}', space=sflag, size = 0x4, scoped, tag = 'scoped memory for sselb_forward.1']
    #allocation12 [shape = 'u8[8192]{0}', space=vmem, size = 0x2000, scoped, tag = 'input window, operand 7, single buffered']
    #allocation13 [shape = 'u8[8192]{0}', space=vmem, size = 0x2000, scoped, tag = 'input window, operand 8, single buffered']
    #allocation14 [shape = 's32[1]{0}', space=sflag, size = 0x4, scoped, tag = 'scoped memory for sselb_forward.1']
    #allocation15 [shape = 'u8[8192]{0}', space=vmem, size = 0x2000, scoped, tag = 'input window, operand 9, single buffered']
    #allocation16 [shape = 'u8[24576]{0}', space=vmem, size = 0x6000, scoped, tag = 'input window, operand 10, single buffered']
    #allocation17 [shape = 's32[1]{0}', space=sflag, size = 0x4, scoped, tag = 'scoped memory for sselb_forward.1']
    #allocation18 [shape = 'u8[16384]{0}', space=vmem, size = 0x4000, scoped, tag = 'input window, operand 11, single buffered']
    #allocation19 [shape = 'u8[24576]{0}', space=vmem, size = 0x6000, scoped, tag = 'input window, operand 12, single buffered']
    #allocation20 [shape = 's32[1]{0}', space=sflag, size = 0x4, scoped, tag = 'scoped memory for sselb_forward.1']
    #allocation21 [shape = 'u8[16384]{0}', space=vmem, size = 0x4000, scoped, tag = 'input window, operand 13, single buffered']
    #allocation22 [shape = 'u8[1024]{0}', space=vmem, size = 0x400, scoped, tag = 'input window, operand 14, single buffered']
    #allocation23 [shape = 's32[1]{0}', space=sflag, size = 0x4, scoped, tag = 'scoped memory for sselb_forward.1']
    #allocation24 [shape = 'u8[1024]{0}', space=vmem, size = 0x400, scoped, tag = 'input window, operand 15, single buffered']
    #allocation25 [shape = 'u8[16384]{0}', space=vmem, size = 0x4000, scoped, tag = 'input window, operand 16, single buffered']
    #allocation26 [shape = 's32[1]{0}', space=sflag, size = 0x4, scoped, tag = 'scoped memory for sselb_forward.1']
    #allocation27 [shape = 'u8[16384]{0}', space=vmem, size = 0x4000, scoped, tag = 'input window, operand 17, single buffered']
    %23 = vsyncpa [#allocation3], 0
    %24 = vsyncpa [#allocation5], 0
    %25 = vsyncpa [#allocation8], 0
    %26 = vsyncpa [#allocation11], 0
    %27 = vsyncpa [#allocation14], 0
    %28 = vsyncpa [#allocation17], 0
    %29 = vsyncpa [#allocation20], 0
    %30 = vsyncpa [#allocation23], 0
    %31 = vsyncpa [#allocation26], 0
    loop: start=0, step=1, limit=4
    $region2: #{sselb_forward.1} parent=1 // loop_pre_header
      _
    $region3: #{sselb_forward.1} parent=1 // loop_header
      %s33 = sphi 0, %s37
      %p34 = scmp.ge.s32.totalorder %s33, 4
      %s43 = sphi 0, %s45
      %s46 = sphi 0, %s43
      %s47 = sphi 0, %s46
      %s63 = sphi 0, %s47
      %s67 = sphi 0, %s67
      %s69 = sphi 0, %s67
      %s70 = sphi 0, %s69
      %s84 = sphi 0, %s70
      %s88 = sphi 0, %s88
      %s90 = sphi 0, %s88
      %s91 = sphi 0, %s90
      %s105 = sphi 0, %s91
      %s109 = sphi 0, %s109
      %s111 = sphi 0, %s109
      %s112 = sphi 0, %s111
      %s126 = sphi 0, %s112
      %s130 = sphi 0, %s130
      %s132 = sphi 0, %s130
      %s133 = sphi 0, %s132
      %s147 = sphi 0, %s133
      %s151 = sphi 0, %s151
      %s153 = sphi 0, %s151
      %s154 = sphi 0, %s153
      %s168 = sphi 0, %s154
      %s172 = sphi 0, %s172
      %s174 = sphi 0, %s172
      %s175 = sphi 0, %s174
      %s189 = sphi 0, %s175
      %s193 = sphi 0, %s193
      %s195 = sphi 0, %s193
      %s196 = sphi 0, %s195
      %s210 = sphi 0, %s196
      %s214 = sphi 0, %s214
      %s216 = sphi 0, %s214
      %s217 = sphi 0, %s216
      %s231 = sphi 0, %s217
      %s235 = sphi 0, %s235
      %s237 = sphi 0, %s235
      %s238 = sphi 0, %s237
      %s252 = sphi 0, %s238
      %s256 = sphi 0, %s256
      %s258 = sphi 0, %s256
      %s259 = sphi 0, %s258
      %s273 = sphi 0, %s259
      %s277 = sphi 0, %s277
      %s279 = sphi 0, %s277
      %s280 = sphi 0, %s279
      %s294 = sphi 0, %s280
      %s298 = sphi 0, %s298
      %s300 = sphi 0, %s298
      %s301 = sphi 0, %s300
      %s315 = sphi 0, %s301
      %s319 = sphi 0, %s319
      %s321 = sphi 0, %s319
      %s322 = sphi 0, %s321
      %s336 = sphi 0, %s322
      %s340 = sphi 0, %s340
      %s342 = sphi 0, %s340
      %s343 = sphi 0, %s342
      %s357 = sphi 0, %s343
      %s361 = sphi 0, %s361
      %s363 = sphi 0, %s361
      %s364 = sphi 0, %s363
      %s378 = sphi 0, %s364
      %s382 = sphi 0, %s382
      %s384 = sphi 0, %s382
      %s385 = sphi 0, %s384
      %s399 = sphi 0, %s385
      %s403 = sphi 0, %s403
      %s405 = sphi 0, %s403
      %s406 = sphi 0, %s405
      %s420 = sphi 0, %s406
      %s426 = sphi 0, %s428
      %s429 = sphi 0, %s426
      %s430 = sphi 0, %s429
      %s446 = sphi 0, %s430
    $region4: #{sselb_forward.1} parent=1 // loop_header_branch
      %36 = sbr.rel (%p34) target = $region8
    $region5: #{sselb_forward.1} parent=1 // loop_body
      %s38 = ssub.s32 %s33, 1
      %s39 = ssub.s32 %s33, 2
      %s40 = sadd.s32 %s33, 1
      %s41 = ssub.s32 %s33, %s40
      %p42 = scmp.eq.s32.totalorder %s41, 0
      %s44 = sadd.s32 %s43, 1
      %s45 = scalar_select %p42, %s43, %s44
      %p48 = pneg %p42
      %p49 = scmp.eq.s32.totalorder %s33, 1
      %p50 = por %p48, %p49
      %p51 = scmp.ne.s32.totalorder %s43, %s46
      %p52 = scmp.eq.s32.totalorder %s33, 0
      %p53 = por %p51, %p52
      %p54 = scmp.ne.s32.totalorder %s43, %s46
      %p55 = scmp.eq.s32.totalorder %s38, 1
      %p56 = por %p54, %p55
      %p57 = scmp.ne.s32.totalorder %s46, %s47
      %p58 = scmp.eq.s32.totalorder %s38, 0
      %p59 = por %p57, %p58
      %p60 = scmp.ne.s32.totalorder %s46, %s47
      %p61 = scmp.eq.s32.totalorder %s39, 1
      %p62 = por %p60, %p61
      %p64 = scmp.ne.s32.totalorder %s47, %s63
      %p65 = scmp.eq.s32.totalorder %s39, 0
      %p66 = por %p64, %p65
      %s68 = sadd.s32 %s67, 1
      %p71 = scmp.eq.s32.totalorder %s33, 1
      %p72 = scmp.ne.s32.totalorder %s67, %s69
      %p73 = scmp.eq.s32.totalorder %s33, 0
      %p74 = por %p72, %p73
      %p75 = scmp.ne.s32.totalorder %s67, %s69
      %p76 = scmp.eq.s32.totalorder %s38, 1
      %p77 = por %p75, %p76
      %p78 = scmp.ne.s32.totalorder %s69, %s70
      %p79 = scmp.eq.s32.totalorder %s38, 0
      %p80 = por %p78, %p79
      %p81 = scmp.ne.s32.totalorder %s69, %s70
      %p82 = scmp.eq.s32.totalorder %s39, 1
      %p83 = por %p81, %p82
      %p85 = scmp.ne.s32.totalorder %s70, %s84
      %p86 = scmp.eq.s32.totalorder %s39, 0
      %p87 = por %p85, %p86
      %s89 = sadd.s32 %s88, 1
      %p92 = scmp.eq.s32.totalorder %s33, 1
      %p93 = scmp.ne.s32.totalorder %s88, %s90
      %p94 = scmp.eq.s32.totalorder %s33, 0
      %p95 = por %p93, %p94
      %p96 = scmp.ne.s32.totalorder %s88, %s90
      %p97 = scmp.eq.s32.totalorder %s38, 1
      %p98 = por %p96, %p97
      %p99 = scmp.ne.s32.totalorder %s90, %s91
      %p100 = scmp.eq.s32.totalorder %s38, 0
      %p101 = por %p99, %p100
      %p102 = scmp.ne.s32.totalorder %s90, %s91
      %p103 = scmp.eq.s32.totalorder %s39, 1
      %p104 = por %p102, %p103
      %p106 = scmp.ne.s32.totalorder %s91, %s105
      %p107 = scmp.eq.s32.totalorder %s39, 0
      %p108 = por %p106, %p107
      %s110 = sadd.s32 %s109, 1
      %p113 = scmp.eq.s32.totalorder %s33, 1
      %p114 = scmp.ne.s32.totalorder %s109, %s111
      %p115 = scmp.eq.s32.totalorder %s33, 0
      %p116 = por %p114, %p115
      %p117 = scmp.ne.s32.totalorder %s109, %s111
      %p118 = scmp.eq.s32.totalorder %s38, 1
      %p119 = por %p117, %p118
      %p120 = scmp.ne.s32.totalorder %s111, %s112
      %p121 = scmp.eq.s32.totalorder %s38, 0
      %p122 = por %p120, %p121
      %p123 = scmp.ne.s32.totalorder %s111, %s112
      %p124 = scmp.eq.s32.totalorder %s39, 1
      %p125 = por %p123, %p124
      %p127 = scmp.ne.s32.totalorder %s112, %s126
      %p128 = scmp.eq.s32.totalorder %s39, 0
      %p129 = por %p127, %p128
      %s131 = sadd.s32 %s130, 1
      %p134 = scmp.eq.s32.totalorder %s33, 1
      %p135 = scmp.ne.s32.totalorder %s130, %s132
      %p136 = scmp.eq.s32.totalorder %s33, 0
      %p137 = por %p135, %p136
      %p138 = scmp.ne.s32.totalorder %s130, %s132
      %p139 = scmp.eq.s32.totalorder %s38, 1
      %p140 = por %p138, %p139
      %p141 = scmp.ne.s32.totalorder %s132, %s133
      %p142 = scmp.eq.s32.totalorder %s38, 0
      %p143 = por %p141, %p142
      %p144 = scmp.ne.s32.totalorder %s132, %s133
      %p145 = scmp.eq.s32.totalorder %s39, 1
      %p146 = por %p144, %p145
      %p148 = scmp.ne.s32.totalorder %s133, %s147
      %p149 = scmp.eq.s32.totalorder %s39, 0
      %p150 = por %p148, %p149
      %s152 = sadd.s32 %s151, 1
      %p155 = scmp.eq.s32.totalorder %s33, 1
      %p156 = scmp.ne.s32.totalorder %s151, %s153
      %p157 = scmp.eq.s32.totalorder %s33, 0
      %p158 = por %p156, %p157
      %p159 = scmp.ne.s32.totalorder %s151, %s153
      %p160 = scmp.eq.s32.totalorder %s38, 1
      %p161 = por %p159, %p160
      %p162 = scmp.ne.s32.totalorder %s153, %s154
      %p163 = scmp.eq.s32.totalorder %s38, 0
      %p164 = por %p162, %p163
      %p165 = scmp.ne.s32.totalorder %s153, %s154
      %p166 = scmp.eq.s32.totalorder %s39, 1
      %p167 = por %p165, %p166
      %p169 = scmp.ne.s32.totalorder %s154, %s168
      %p170 = scmp.eq.s32.totalorder %s39, 0
      %p171 = por %p169, %p170
      %s173 = sadd.s32 %s172, 1
      %p176 = scmp.eq.s32.totalorder %s33, 1
      %p177 = scmp.ne.s32.totalorder %s172, %s174
      %p178 = scmp.eq.s32.totalorder %s33, 0
      %p179 = por %p177, %p178
      %p180 = scmp.ne.s32.totalorder %s172, %s174
      %p181 = scmp.eq.s32.totalorder %s38, 1
      %p182 = por %p180, %p181
      %p183 = scmp.ne.s32.totalorder %s174, %s175
      %p184 = scmp.eq.s32.totalorder %s38, 0
      %p185 = por %p183, %p184
      %p186 = scmp.ne.s32.totalorder %s174, %s175
      %p187 = scmp.eq.s32.totalorder %s39, 1
      %p188 = por %p186, %p187
      %p190 = scmp.ne.s32.totalorder %s175, %s189
      %p191 = scmp.eq.s32.totalorder %s39, 0
      %p192 = por %p190, %p191
      %s194 = sadd.s32 %s193, 1
      %p197 = scmp.eq.s32.totalorder %s33, 1
      %p198 = scmp.ne.s32.totalorder %s193, %s195
      %p199 = scmp.eq.s32.totalorder %s33, 0
      %p200 = por %p198, %p199
      %p201 = scmp.ne.s32.totalorder %s193, %s195
      %p202 = scmp.eq.s32.totalorder %s38, 1
      %p203 = por %p201, %p202
      %p204 = scmp.ne.s32.totalorder %s195, %s196
      %p205 = scmp.eq.s32.totalorder %s38, 0
      %p206 = por %p204, %p205
      %p207 = scmp.ne.s32.totalorder %s195, %s196
      %p208 = scmp.eq.s32.totalorder %s39, 1
      %p209 = por %p207, %p208
      %p211 = scmp.ne.s32.totalorder %s196, %s210
      %p212 = scmp.eq.s32.totalorder %s39, 0
      %p213 = por %p211, %p212
      %s215 = sadd.s32 %s214, 1
      %p218 = scmp.eq.s32.totalorder %s33, 1
      %p219 = scmp.ne.s32.totalorder %s214, %s216
      %p220 = scmp.eq.s32.totalorder %s33, 0
      %p221 = por %p219, %p220
      %p222 = scmp.ne.s32.totalorder %s214, %s216
      %p223 = scmp.eq.s32.totalorder %s38, 1
      %p224 = por %p222, %p223
      %p225 = scmp.ne.s32.totalorder %s216, %s217
      %p226 = scmp.eq.s32.totalorder %s38, 0
      %p227 = por %p225, %p226
      %p228 = scmp.ne.s32.totalorder %s216, %s217
      %p229 = scmp.eq.s32.totalorder %s39, 1
      %p230 = por %p228, %p229
      %p232 = scmp.ne.s32.totalorder %s217, %s231
      %p233 = scmp.eq.s32.totalorder %s39, 0
      %p234 = por %p232, %p233
      %s236 = sadd.s32 %s235, 1
      %p239 = scmp.eq.s32.totalorder %s33, 1
      %p240 = scmp.ne.s32.totalorder %s235, %s237
      %p241 = scmp.eq.s32.totalorder %s33, 0
      %p242 = por %p240, %p241
      %p243 = scmp.ne.s32.totalorder %s235, %s237
      %p244 = scmp.eq.s32.totalorder %s38, 1
      %p245 = por %p243, %p244
      %p246 = scmp.ne.s32.totalorder %s237, %s238
      %p247 = scmp.eq.s32.totalorder %s38, 0
      %p248 = por %p246, %p247
      %p249 = scmp.ne.s32.totalorder %s237, %s238
      %p250 = scmp.eq.s32.totalorder %s39, 1
      %p251 = por %p249, %p250
      %p253 = scmp.ne.s32.totalorder %s238, %s252
      %p254 = scmp.eq.s32.totalorder %s39, 0
      %p255 = por %p253, %p254
      %s257 = sadd.s32 %s256, 1
      %p260 = scmp.eq.s32.totalorder %s33, 1
      %p261 = scmp.ne.s32.totalorder %s256, %s258
      %p262 = scmp.eq.s32.totalorder %s33, 0
      %p263 = por %p261, %p262
      %p264 = scmp.ne.s32.totalorder %s256, %s258
      %p265 = scmp.eq.s32.totalorder %s38, 1
      %p266 = por %p264, %p265
      %p267 = scmp.ne.s32.totalorder %s258, %s259
      %p268 = scmp.eq.s32.totalorder %s38, 0
      %p269 = por %p267, %p268
      %p270 = scmp.ne.s32.totalorder %s258, %s259
      %p271 = scmp.eq.s32.totalorder %s39, 1
      %p272 = por %p270, %p271
      %p274 = scmp.ne.s32.totalorder %s259, %s273
      %p275 = scmp.eq.s32.totalorder %s39, 0
      %p276 = por %p274, %p275
      %s278 = sadd.s32 %s277, 1
      %p281 = scmp.eq.s32.totalorder %s33, 1
      %p282 = scmp.ne.s32.totalorder %s277, %s279
      %p283 = scmp.eq.s32.totalorder %s33, 0
      %p284 = por %p282, %p283
      %p285 = scmp.ne.s32.totalorder %s277, %s279
      %p286 = scmp.eq.s32.totalorder %s38, 1
      %p287 = por %p285, %p286
      %p288 = scmp.ne.s32.totalorder %s279, %s280
      %p289 = scmp.eq.s32.totalorder %s38, 0
      %p290 = por %p288, %p289
      %p291 = scmp.ne.s32.totalorder %s279, %s280
      %p292 = scmp.eq.s32.totalorder %s39, 1
      %p293 = por %p291, %p292
      %p295 = scmp.ne.s32.totalorder %s280, %s294
      %p296 = scmp.eq.s32.totalorder %s39, 0
      %p297 = por %p295, %p296
      %s299 = sadd.s32 %s298, 1
      %p302 = scmp.eq.s32.totalorder %s33, 1
      %p303 = scmp.ne.s32.totalorder %s298, %s300
      %p304 = scmp.eq.s32.totalorder %s33, 0
      %p305 = por %p303, %p304
      %p306 = scmp.ne.s32.totalorder %s298, %s300
      %p307 = scmp.eq.s32.totalorder %s38, 1
      %p308 = por %p306, %p307
      %p309 = scmp.ne.s32.totalorder %s300, %s301
      %p310 = scmp.eq.s32.totalorder %s38, 0
      %p311 = por %p309, %p310
      %p312 = scmp.ne.s32.totalorder %s300, %s301
      %p313 = scmp.eq.s32.totalorder %s39, 1
      %p314 = por %p312, %p313
      %p316 = scmp.ne.s32.totalorder %s301, %s315
      %p317 = scmp.eq.s32.totalorder %s39, 0
      %p318 = por %p316, %p317
      %s320 = sadd.s32 %s319, 1
      %p323 = scmp.eq.s32.totalorder %s33, 1
      %p324 = scmp.ne.s32.totalorder %s319, %s321
      %p325 = scmp.eq.s32.totalorder %s33, 0
      %p326 = por %p324, %p325
      %p327 = scmp.ne.s32.totalorder %s319, %s321
      %p328 = scmp.eq.s32.totalorder %s38, 1
      %p329 = por %p327, %p328
      %p330 = scmp.ne.s32.totalorder %s321, %s322
      %p331 = scmp.eq.s32.totalorder %s38, 0
      %p332 = por %p330, %p331
      %p333 = scmp.ne.s32.totalorder %s321, %s322
      %p334 = scmp.eq.s32.totalorder %s39, 1
      %p335 = por %p333, %p334
      %p337 = scmp.ne.s32.totalorder %s322, %s336
      %p338 = scmp.eq.s32.totalorder %s39, 0
      %p339 = por %p337, %p338
      %s341 = sadd.s32 %s340, 1
      %p344 = scmp.eq.s32.totalorder %s33, 1
      %p345 = scmp.ne.s32.totalorder %s340, %s342
      %p346 = scmp.eq.s32.totalorder %s33, 0
      %p347 = por %p345, %p346
      %p348 = scmp.ne.s32.totalorder %s340, %s342
      %p349 = scmp.eq.s32.totalorder %s38, 1
      %p350 = por %p348, %p349
      %p351 = scmp.ne.s32.totalorder %s342, %s343
      %p352 = scmp.eq.s32.totalorder %s38, 0
      %p353 = por %p351, %p352
      %p354 = scmp.ne.s32.totalorder %s342, %s343
      %p355 = scmp.eq.s32.totalorder %s39, 1
      %p356 = por %p354, %p355
      %p358 = scmp.ne.s32.totalorder %s343, %s357
      %p359 = scmp.eq.s32.totalorder %s39, 0
      %p360 = por %p358, %p359
      %s362 = sadd.s32 %s361, 1
      %p365 = scmp.eq.s32.totalorder %s33, 1
      %p366 = scmp.ne.s32.totalorder %s361, %s363
      %p367 = scmp.eq.s32.totalorder %s33, 0
      %p368 = por %p366, %p367
      %p369 = scmp.ne.s32.totalorder %s361, %s363
      %p370 = scmp.eq.s32.totalorder %s38, 1
      %p371 = por %p369, %p370
      %p372 = scmp.ne.s32.totalorder %s363, %s364
      %p373 = scmp.eq.s32.totalorder %s38, 0
      %p374 = por %p372, %p373
      %p375 = scmp.ne.s32.totalorder %s363, %s364
      %p376 = scmp.eq.s32.totalorder %s39, 1
      %p377 = por %p375, %p376
      %p379 = scmp.ne.s32.totalorder %s364, %s378
      %p380 = scmp.eq.s32.totalorder %s39, 0
      %p381 = por %p379, %p380
      %s383 = sadd.s32 %s382, 1
      %p386 = scmp.eq.s32.totalorder %s33, 1
      %p387 = scmp.ne.s32.totalorder %s382, %s384
      %p388 = scmp.eq.s32.totalorder %s33, 0
      %p389 = por %p387, %p388
      %p390 = scmp.ne.s32.totalorder %s382, %s384
      %p391 = scmp.eq.s32.totalorder %s38, 1
      %p392 = por %p390, %p391
      %p393 = scmp.ne.s32.totalorder %s384, %s385
      %p394 = scmp.eq.s32.totalorder %s38, 0
      %p395 = por %p393, %p394
      %p396 = scmp.ne.s32.totalorder %s384, %s385
      %p397 = scmp.eq.s32.totalorder %s39, 1
      %p398 = por %p396, %p397
      %p400 = scmp.ne.s32.totalorder %s385, %s399
      %p401 = scmp.eq.s32.totalorder %s39, 0
      %p402 = por %p400, %p401
      %s404 = sadd.s32 %s403, 1
      %p407 = scmp.eq.s32.totalorder %s33, 1
      %p408 = scmp.ne.s32.totalorder %s403, %s405
      %p409 = scmp.eq.s32.totalorder %s33, 0
      %p410 = por %p408, %p409
      %p411 = scmp.ne.s32.totalorder %s403, %s405
      %p412 = scmp.eq.s32.totalorder %s38, 1
      %p413 = por %p411, %p412
      %p414 = scmp.ne.s32.totalorder %s405, %s406
      %p415 = scmp.eq.s32.totalorder %s38, 0
      %p416 = por %p414, %p415
      %p417 = scmp.ne.s32.totalorder %s405, %s406
      %p418 = scmp.eq.s32.totalorder %s39, 1
      %p419 = por %p417, %p418
      %p421 = scmp.ne.s32.totalorder %s406, %s420
      %p422 = scmp.eq.s32.totalorder %s39, 0
      %p423 = por %p421, %p422
      %s424 = ssub.s32 %s33, %s40
      %p425 = scmp.eq.s32.totalorder %s424, 0
      %s427 = sadd.s32 %s426, 1
      %s428 = scalar_select %p425, %s426, %s427
      %p431 = pneg %p425
      %p432 = scmp.eq.s32.totalorder %s33, 1
      %p433 = por %p431, %p432
      %p434 = scmp.ne.s32.totalorder %s426, %s429
      %p435 = scmp.eq.s32.totalorder %s33, 0
      %p436 = por %p434, %p435
      %p437 = scmp.ne.s32.totalorder %s426, %s429
      %p438 = scmp.eq.s32.totalorder %s38, 1
      %p439 = por %p437, %p438
      %p440 = scmp.ne.s32.totalorder %s429, %s430
      %p441 = scmp.eq.s32.totalorder %s38, 0
      %p442 = por %p440, %p441
      %p443 = scmp.ne.s32.totalorder %s429, %s430
      %p444 = scmp.eq.s32.totalorder %s39, 1
      %p445 = por %p443, %p444
      %p447 = scmp.ne.s32.totalorder %s430, %s446
      %p448 = scmp.eq.s32.totalorder %s39, 0
      %p449 = por %p447, %p448
      %p450 = scmp.le.s32.totalorder 1, %s33
      %p451 = scmp.lt.s32.totalorder %s33, 3
      %p452 = pnand %p450, %p451
      %p453 = pneg %p452
      // Predicated region
      $region9: #{sselb_forward.1} parent=5 // pred_check
        _
      $region10: #{sselb_forward.1} parent=5 // pred_check_branch
        %455 = sbr.rel (%p452) target = $region12
      $region11: #{sselb_forward.1} parent=5 // pred_region
        %s456 = ssub.s32 %s33, 1
        // Predicated region
        $region13: #{sselb_forward.1} parent=11 // pred_check
          %p457 = pneg %p80
        $region14: #{sselb_forward.1} parent=11 // pred_check_branch
          %459 = sbr.rel (%p457) target = $region16
        $region15: #{sselb_forward.1} parent=11 // pred_region
          %461 = vsyncadd [#allocation3], 0
          %s462 = sshll.u32 %s1, 4
          %s463 = int_to_ptr.hbm [resolvable:$true] %s462
          %s464 = sshll.u32 [#allocation2], 4
          %s465 = int_to_ptr.vmem [resolvable:$true] %s464
          %470 = dma.hbm_to_vmem [thread:$0]  %s463, 36864, %s465, [#allocation3], 128, 128, 8
        $region16: #{sselb_forward.1} parent=11 // pred_fallthru
          _
        // Predicated region
        $region17: #{sselb_forward.1} parent=11 // pred_check
          %p471 = pneg %p101
        $region18: #{sselb_forward.1} parent=11 // pred_check_branch
          %473 = sbr.rel (%p471) target = $region20
        $region19: #{sselb_forward.1} parent=11 // pred_region
          %475 = vsyncadd [#allocation5], 0
          %s476 = sshll.u32 %s2, 4
          %s477 = int_to_ptr.hbm [resolvable:$true] %s476
          %s478 = sshll.u32 [#allocation4], 4
          %s479 = int_to_ptr.vmem [resolvable:$true] %s478
          %484 = dma.hbm_to_vmem [thread:$0]  %s477, 18432, %s479, [#allocation5], 64, 64, 4
        $region20: #{sselb_forward.1} parent=11 // pred_fallthru
          _
        // Predicated region
        $region21: #{sselb_forward.1} parent=11 // pred_check
          %p485 = pneg %p122
        $region22: #{sselb_forward.1} parent=11 // pred_check_branch
          %487 = sbr.rel (%p485) target = $region24
        $region23: #{sselb_forward.1} parent=11 // pred_region
          %489 = vsyncadd [#allocation5], 0
          %s490 = sshll.u32 %s3, 4
          %s491 = int_to_ptr.hbm [resolvable:$true] %s490
          %s492 = sshll.u32 [#allocation6], 4
          %s493 = int_to_ptr.vmem [resolvable:$true] %s492
          %498 = dma.hbm_to_vmem [thread:$0]  %s491, 256, %s493, [#allocation5], 128, 128, 8
        $region24: #{sselb_forward.1} parent=11 // pred_fallthru
          _
        // Predicated region
        $region25: #{sselb_forward.1} parent=11 // pred_check
          %p499 = pneg %p143
        $region26: #{sselb_forward.1} parent=11 // pred_check_branch
          %501 = sbr.rel (%p499) target = $region28
        $region27: #{sselb_forward.1} parent=11 // pred_region
          %503 = vsyncadd [#allocation8], 0
          %s504 = sshll.u32 %s4, 4
          %s505 = int_to_ptr.hbm [resolvable:$true] %s504
          %s506 = sshll.u32 [#allocation7], 4
          %s507 = int_to_ptr.vmem [resolvable:$true] %s506
          %512 = dma.hbm_to_vmem [thread:$0]  %s505, 768, %s507, [#allocation8], 192, 192, 12
        $region28: #{sselb_forward.1} parent=11 // pred_fallthru
          _
        // Predicated region
        $region29: #{sselb_forward.1} parent=11 // pred_check
          %p513 = pneg %p164
        $region30: #{sselb_forward.1} parent=11 // pred_check_branch
          %515 = sbr.rel (%p513) target = $region32
        $region31: #{sselb_forward.1} parent=11 // pred_region
          %517 = vsyncadd [#allocation8], 0
          %s518 = sshll.u32 %s5, 4
          %s519 = int_to_ptr.hbm [resolvable:$true] %s518
          %s520 = sshll.u32 [#allocation9], 4
          %s521 = int_to_ptr.vmem [resolvable:$true] %s520
          %526 = dma.hbm_to_vmem [thread:$0]  %s519, 512, %s521, [#allocation8], 128, 128, 8
        $region32: #{sselb_forward.1} parent=11 // pred_fallthru
          _
        // Predicated region
        $region33: #{sselb_forward.1} parent=11 // pred_check
          %p527 = pneg %p185
        $region34: #{sselb_forward.1} parent=11 // pred_check_branch
          %529 = sbr.rel (%p527) target = $region36
        $region35: #{sselb_forward.1} parent=11 // pred_region
          %531 = vsyncadd [#allocation11], 0
          %s532 = sshll.u32 %s6, 4
          %s533 = int_to_ptr.hbm [resolvable:$true] %s532
          %s534 = sshll.u32 [#allocation10], 4
          %s535 = int_to_ptr.vmem [resolvable:$true] %s534
          %540 = dma.hbm_to_vmem [thread:$0]  %s533, 256, %s535, [#allocation11], 128, 128, 8
        $region36: #{sselb_forward.1} parent=11 // pred_fallthru
          _
        // Predicated region
        $region37: #{sselb_forward.1} parent=11 // pred_check
          %p541 = pneg %p206
        $region38: #{sselb_forward.1} parent=11 // pred_check_branch
          %543 = sbr.rel (%p541) target = $region40
        $region39: #{sselb_forward.1} parent=11 // pred_region
          %545 = vsyncadd [#allocation11], 0
          %s546 = sshll.u32 %s7, 4
          %s547 = int_to_ptr.hbm [resolvable:$true] %s546
          %s548 = sshll.u32 [#allocation12], 4
          %s549 = int_to_ptr.vmem [resolvable:$true] %s548
          %554 = dma.hbm_to_vmem [thread:$0]  %s547, 256, %s549, [#allocation11], 128, 128, 8
        $region40: #{sselb_forward.1} parent=11 // pred_fallthru
          _
        // Predicated region
        $region41: #{sselb_forward.1} parent=11 // pred_check
          %p555 = pneg %p227
        $region42: #{sselb_forward.1} parent=11 // pred_check_branch
          %557 = sbr.rel (%p555) target = $region44
        $region43: #{sselb_forward.1} parent=11 // pred_region
          %559 = vsyncadd [#allocation14], 0
          %s560 = sshll.u32 %s8, 4
          %s561 = int_to_ptr.hbm [resolvable:$true] %s560
          %s562 = sshll.u32 [#allocation13], 4
          %s563 = int_to_ptr.vmem [resolvable:$true] %s562
          %568 = dma.hbm_to_vmem [thread:$0]  %s561, 256, %s563, [#allocation14], 128, 128, 8
        $region44: #{sselb_forward.1} parent=11 // pred_fallthru
          _
        // Predicated region
        $region45: #{sselb_forward.1} parent=11 // pred_check
          %p569 = pneg %p248
        $region46: #{sselb_forward.1} parent=11 // pred_check_branch
          %571 = sbr.rel (%p569) target = $region48
        $region47: #{sselb_forward.1} parent=11 // pred_region
          %573 = vsyncadd [#allocation14], 0
          %s574 = sshll.u32 %s9, 4
          %s575 = int_to_ptr.hbm [resolvable:$true] %s574
          %s576 = sshll.u32 [#allocation15], 4
          %s577 = int_to_ptr.vmem [resolvable:$true] %s576
          %582 = dma.hbm_to_vmem [thread:$0]  %s575, 256, %s577, [#allocation14], 128, 128, 8
        $region48: #{sselb_forward.1} parent=11 // pred_fallthru
          _
        // Predicated region
        $region49: #{sselb_forward.1} parent=11 // pred_check
          %p583 = pneg %p269
        $region50: #{sselb_forward.1} parent=11 // pred_check_branch
          %585 = sbr.rel (%p583) target = $region52
        $region51: #{sselb_forward.1} parent=11 // pred_region
          %587 = vsyncadd [#allocation17], 0
          %s588 = sshll.u32 %s10, 4
          %s589 = int_to_ptr.hbm [resolvable:$true] %s588
          %s590 = sshll.u32 [#allocation16], 4
          %s591 = int_to_ptr.vmem [resolvable:$true] %s590
          %596 = dma.hbm_to_vmem [thread:$0]  %s589, 768, %s591, [#allocation17], 192, 192, 12
        $region52: #{sselb_forward.1} parent=11 // pred_fallthru
          _
        // Predicated region
        $region53: #{sselb_forward.1} parent=11 // pred_check
          %p597 = pneg %p290
        $region54: #{sselb_forward.1} parent=11 // pred_check_branch
          %599 = sbr.rel (%p597) target = $region56
        $region55: #{sselb_forward.1} parent=11 // pred_region
          %601 = vsyncadd [#allocation17], 0
          %s602 = sshll.u32 %s11, 4
          %s603 = int_to_ptr.hbm [resolvable:$true] %s602
          %s604 = sshll.u32 [#allocation18], 4
          %s605 = int_to_ptr.vmem [resolvable:$true] %s604
          %610 = dma.hbm_to_vmem [thread:$0]  %s603, 512, %s605, [#allocation17], 128, 128, 8
        $region56: #{sselb_forward.1} parent=11 // pred_fallthru
          _
        // Predicated region
        $region57: #{sselb_forward.1} parent=11 // pred_check
          %p611 = pneg %p311
        $region58: #{sselb_forward.1} parent=11 // pred_check_branch
          %613 = sbr.rel (%p611) target = $region60
        $region59: #{sselb_forward.1} parent=11 // pred_region
          %615 = vsyncadd [#allocation20], 0
          %s616 = sshll.u32 %s12, 4
          %s617 = int_to_ptr.hbm [resolvable:$true] %s616
          %s618 = sshll.u32 [#allocation19], 4
          %s619 = int_to_ptr.vmem [resolvable:$true] %s618
          %624 = dma.hbm_to_vmem [thread:$0]  %s617, 768, %s619, [#allocation20], 192, 192, 12
        $region60: #{sselb_forward.1} parent=11 // pred_fallthru
          _
        // Predicated region
        $region61: #{sselb_forward.1} parent=11 // pred_check
          %p625 = pneg %p332
        $region62: #{sselb_forward.1} parent=11 // pred_check_branch
          %627 = sbr.rel (%p625) target = $region64
        $region63: #{sselb_forward.1} parent=11 // pred_region
          %629 = vsyncadd [#allocation20], 0
          %s630 = sshll.u32 %s13, 4
          %s631 = int_to_ptr.hbm [resolvable:$true] %s630
          %s632 = sshll.u32 [#allocation21], 4
          %s633 = int_to_ptr.vmem [resolvable:$true] %s632
          %638 = dma.hbm_to_vmem [thread:$0]  %s631, 512, %s633, [#allocation20], 128, 128, 8
        $region64: #{sselb_forward.1} parent=11 // pred_fallthru
          _
        // Predicated region
        $region65: #{sselb_forward.1} parent=11 // pred_check
          %p639 = pneg %p353
        $region66: #{sselb_forward.1} parent=11 // pred_check_branch
          %641 = sbr.rel (%p639) target = $region68
        $region67: #{sselb_forward.1} parent=11 // pred_region
          %643 = vsyncadd [#allocation23], 0
          %s645 = sshll.u32 %s14, 4
          %s646 = int_to_ptr.hbm [resolvable:$true] %s645
          %s647 = sshll.u32 [#allocation22], 4
          %s648 = int_to_ptr.vmem [resolvable:$true] %s647
          %650 = dma.hbm_to_vmem [thread:$0]  %s646, 32, %s648, [#allocation23]
        $region68: #{sselb_forward.1} parent=11 // pred_fallthru
          _
        // Predicated region
        $region69: #{sselb_forward.1} parent=11 // pred_check
          %p651 = pneg %p374
        $region70: #{sselb_forward.1} parent=11 // pred_check_branch
          %653 = sbr.rel (%p651) target = $region72
        $region71: #{sselb_forward.1} parent=11 // pred_region
          %655 = vsyncadd [#allocation23], 0
          %s657 = sshll.u32 %s15, 4
          %s658 = int_to_ptr.hbm [resolvable:$true] %s657
          %s659 = sshll.u32 [#allocation24], 4
          %s660 = int_to_ptr.vmem [resolvable:$true] %s659
          %662 = dma.hbm_to_vmem [thread:$0]  %s658, 32, %s660, [#allocation23]
        $region72: #{sselb_forward.1} parent=11 // pred_fallthru
          _
        // Predicated region
        $region73: #{sselb_forward.1} parent=11 // pred_check
          %p663 = pneg %p395
        $region74: #{sselb_forward.1} parent=11 // pred_check_branch
          %665 = sbr.rel (%p663) target = $region76
        $region75: #{sselb_forward.1} parent=11 // pred_region
          %667 = vsyncadd [#allocation26], 0
          %s668 = sshll.u32 %s16, 4
          %s669 = int_to_ptr.hbm [resolvable:$true] %s668
          %s670 = sshll.u32 [#allocation25], 4
          %s671 = int_to_ptr.vmem [resolvable:$true] %s670
          %676 = dma.hbm_to_vmem [thread:$0]  %s669, 512, %s671, [#allocation26], 128, 128, 8
        $region76: #{sselb_forward.1} parent=11 // pred_fallthru
          _
        // Predicated region
        $region77: #{sselb_forward.1} parent=11 // pred_check
          %p677 = pneg %p416
        $region78: #{sselb_forward.1} parent=11 // pred_check_branch
          %679 = sbr.rel (%p677) target = $region80
        $region79: #{sselb_forward.1} parent=11 // pred_region
          %681 = vsyncadd [#allocation26], 0
          %s682 = sshll.u32 %s17, 4
          %s683 = int_to_ptr.hbm [resolvable:$true] %s682
          %s684 = sshll.u32 [#allocation27], 4
          %s685 = int_to_ptr.vmem [resolvable:$true] %s684
          %690 = dma.hbm_to_vmem [thread:$0]  %s683, 512, %s685, [#allocation26], 128, 128, 8
        $region80: #{sselb_forward.1} parent=11 // pred_fallthru
          _
      $region12: #{sselb_forward.1} parent=5 // pred_fallthru
        _
      %p691 = scmp.lt.s32.totalorder %s33, 2
      // Predicated region
      $region81: #{sselb_forward.1} parent=5 // pred_check
        %p692 = pneg %p691
      $region82: #{sselb_forward.1} parent=5 // pred_check_branch
        %694 = sbr.rel (%p692) target = $region84
      $region83: #{sselb_forward.1} parent=5 // pred_region
        // Predicated region
        $region85: #{sselb_forward.1} parent=83 // pred_check
          %p695 = pneg %p53
        $region86: #{sselb_forward.1} parent=83 // pred_check_branch
          %697 = sbr.rel (%p695) target = $region88
        $region87: #{sselb_forward.1} parent=83 // pred_region
          %p698 = scmp.lt.s32.totalorder %s33, 1
          %s699 = scalar_select %p698, %s33, 1
          %s700 = smul.addr %s699, 8
          %s701 = smul.addr %s700, 8
          %s702 = scalar_lea.vmem %s0, %s701
        $region88: #{sselb_forward.1} parent=83 // pred_fallthru
          _
      $region84: #{sselb_forward.1} parent=5 // pred_fallthru
        _
      %p703 = scmp.le.s32.totalorder 1, %s33
      %p704 = scmp.lt.s32.totalorder %s33, 3
      %p705 = pnand %p703, %p704
      %p706 = pneg %p705
      // Predicated region
      $region89: #{sselb_forward.1} parent=5 // pred_check
        _
      $region90: #{sselb_forward.1} parent=5 // pred_check_branch
        %708 = sbr.rel (%p705) target = $region92
      $region91: #{sselb_forward.1} parent=5 // pred_region
        %s709 = ssub.s32 %s33, 1
        // Predicated region
        $region93: #{sselb_forward.1} parent=91 // pred_check
          %p710 = pneg %p80
        $region94: #{sselb_forward.1} parent=91 // pred_check_branch
          %712 = sbr.rel (%p710) target = $region96
        $region95: #{sselb_forward.1} parent=91 // pred_region
          %714 = dma.done [#allocation3], 36864
        $region96: #{sselb_forward.1} parent=91 // pred_fallthru
          _
        // Predicated region
        $region97: #{sselb_forward.1} parent=91 // pred_check
          %p715 = pneg %p101
        $region98: #{sselb_forward.1} parent=91 // pred_check_branch
          %717 = sbr.rel (%p715) target = $region100
        $region99: #{sselb_forward.1} parent=91 // pred_region
          %719 = dma.done [#allocation5], 18432
        $region100: #{sselb_forward.1} parent=91 // pred_fallthru
          _
        // Predicated region
        $region101: #{sselb_forward.1} parent=91 // pred_check
          %p720 = pneg %p122
        $region102: #{sselb_forward.1} parent=91 // pred_check_branch
          %722 = sbr.rel (%p720) target = $region104
        $region103: #{sselb_forward.1} parent=91 // pred_region
          %724 = dma.done [#allocation5], 256
        $region104: #{sselb_forward.1} parent=91 // pred_fallthru
          _
        // Predicated region
        $region105: #{sselb_forward.1} parent=91 // pred_check
          %p725 = pneg %p143
        $region106: #{sselb_forward.1} parent=91 // pred_check_branch
          %727 = sbr.rel (%p725) target = $region108
        $region107: #{sselb_forward.1} parent=91 // pred_region
          %729 = dma.done [#allocation8], 768
        $region108: #{sselb_forward.1} parent=91 // pred_fallthru
          _
        // Predicated region
        $region109: #{sselb_forward.1} parent=91 // pred_check
          %p730 = pneg %p164
        $region110: #{sselb_forward.1} parent=91 // pred_check_branch
          %732 = sbr.rel (%p730) target = $region112
        $region111: #{sselb_forward.1} parent=91 // pred_region
          %734 = dma.done [#allocation8], 512
        $region112: #{sselb_forward.1} parent=91 // pred_fallthru
          _
        // Predicated region
        $region113: #{sselb_forward.1} parent=91 // pred_check
          %p735 = pneg %p185
        $region114: #{sselb_forward.1} parent=91 // pred_check_branch
          %737 = sbr.rel (%p735) target = $region116
        $region115: #{sselb_forward.1} parent=91 // pred_region
          %739 = dma.done [#allocation11], 256
        $region116: #{sselb_forward.1} parent=91 // pred_fallthru
          _
        // Predicated region
        $region117: #{sselb_forward.1} parent=91 // pred_check
          %p740 = pneg %p206
        $region118: #{sselb_forward.1} parent=91 // pred_check_branch
          %742 = sbr.rel (%p740) target = $region120
        $region119: #{sselb_forward.1} parent=91 // pred_region
          %744 = dma.done [#allocation11], 256
        $region120: #{sselb_forward.1} parent=91 // pred_fallthru
          _
        // Predicated region
        $region121: #{sselb_forward.1} parent=91 // pred_check
          %p745 = pneg %p227
        $region122: #{sselb_forward.1} parent=91 // pred_check_branch
          %747 = sbr.rel (%p745) target = $region124
        $region123: #{sselb_forward.1} parent=91 // pred_region
          %749 = dma.done [#allocation14], 256
        $region124: #{sselb_forward.1} parent=91 // pred_fallthru
          _
        // Predicated region
        $region125: #{sselb_forward.1} parent=91 // pred_check
          %p750 = pneg %p248
        $region126: #{sselb_forward.1} parent=91 // pred_check_branch
          %752 = sbr.rel (%p750) target = $region128
        $region127: #{sselb_forward.1} parent=91 // pred_region
          %754 = dma.done [#allocation14], 256
        $region128: #{sselb_forward.1} parent=91 // pred_fallthru
          _
        // Predicated region
        $region129: #{sselb_forward.1} parent=91 // pred_check
          %p755 = pneg %p269
        $region130: #{sselb_forward.1} parent=91 // pred_check_branch
          %757 = sbr.rel (%p755) target = $region132
        $region131: #{sselb_forward.1} parent=91 // pred_region
          %759 = dma.done [#allocation17], 768
        $region132: #{sselb_forward.1} parent=91 // pred_fallthru
          _
        // Predicated region
        $region133: #{sselb_forward.1} parent=91 // pred_check
          %p760 = pneg %p290
        $region134: #{sselb_forward.1} parent=91 // pred_check_branch
          %762 = sbr.rel (%p760) target = $region136
        $region135: #{sselb_forward.1} parent=91 // pred_region
          %764 = dma.done [#allocation17], 512
        $region136: #{sselb_forward.1} parent=91 // pred_fallthru
          _
        // Predicated region
        $region137: #{sselb_forward.1} parent=91 // pred_check
          %p765 = pneg %p311
        $region138: #{sselb_forward.1} parent=91 // pred_check_branch
          %767 = sbr.rel (%p765) target = $region140
        $region139: #{sselb_forward.1} parent=91 // pred_region
          %769 = dma.done [#allocation20], 768
        $region140: #{sselb_forward.1} parent=91 // pred_fallthru
          _
        // Predicated region
        $region141: #{sselb_forward.1} parent=91 // pred_check
          %p770 = pneg %p332
        $region142: #{sselb_forward.1} parent=91 // pred_check_branch
          %772 = sbr.rel (%p770) target = $region144
        $region143: #{sselb_forward.1} parent=91 // pred_region
          %774 = dma.done [#allocation20], 512
        $region144: #{sselb_forward.1} parent=91 // pred_fallthru
          _
        // Predicated region
        $region145: #{sselb_forward.1} parent=91 // pred_check
          %p775 = pneg %p353
        $region146: #{sselb_forward.1} parent=91 // pred_check_branch
          %777 = sbr.rel (%p775) target = $region148
        $region147: #{sselb_forward.1} parent=91 // pred_region
          %779 = dma.done [#allocation23], 32
        $region148: #{sselb_forward.1} parent=91 // pred_fallthru
          _
        // Predicated region
        $region149: #{sselb_forward.1} parent=91 // pred_check
          %p780 = pneg %p374
        $region150: #{sselb_forward.1} parent=91 // pred_check_branch
          %782 = sbr.rel (%p780) target = $region152
        $region151: #{sselb_forward.1} parent=91 // pred_region
          %784 = dma.done [#allocation23], 32
        $region152: #{sselb_forward.1} parent=91 // pred_fallthru
          _
        // Predicated region
        $region153: #{sselb_forward.1} parent=91 // pred_check
          %p785 = pneg %p395
        $region154: #{sselb_forward.1} parent=91 // pred_check_branch
          %787 = sbr.rel (%p785) target = $region156
        $region155: #{sselb_forward.1} parent=91 // pred_region
          %789 = dma.done [#allocation26], 512
        $region156: #{sselb_forward.1} parent=91 // pred_fallthru
          _
        // Predicated region
        $region157: #{sselb_forward.1} parent=91 // pred_check
          %p790 = pneg %p416
        $region158: #{sselb_forward.1} parent=91 // pred_check_branch
          %792 = sbr.rel (%p790) target = $region160
        $region159: #{sselb_forward.1} parent=91 // pred_region
          %794 = dma.done [#allocation26], 512
        $region160: #{sselb_forward.1} parent=91 // pred_fallthru
          _
        %p795 = scmp.lt.s32.totalorder %s38, 1
        %s796 = scalar_select %p795, %s38, 1
        %s797 = smul.addr %s796, 8
        %s798 = smul.addr %s797, 8
        %s799 = scalar_lea.vmem %s0, %s798
        %p800 = pneg %p59
        %p801 = pneg %p56
        %p802 = pneg %p80
        %p803 = pneg %p77
        %p804 = pneg %p101
        %p805 = pneg %p98
        %p806 = pneg %p122
        %p807 = pneg %p119
        %p808 = pneg %p143
        %p809 = pneg %p140
        %p810 = pneg %p164
        %p811 = pneg %p161
        %p812 = pneg %p185
        %p813 = pneg %p182
        %p814 = pneg %p206
        %p815 = pneg %p203
        %p816 = pneg %p227
        %p817 = pneg %p224
        %p818 = pneg %p248
        %p819 = pneg %p245
        %p820 = pneg %p269
        %p821 = pneg %p266
        %p822 = pneg %p290
        %p823 = pneg %p287
        %p824 = pneg %p311
        %p825 = pneg %p308
        %p826 = pneg %p332
        %p827 = pneg %p329
        %p828 = pneg %p353
        %p829 = pneg %p350
        %p830 = pneg %p374
        %p831 = pneg %p371
        %p832 = pneg %p395
        %p833 = pneg %p392
        %p834 = pneg %p416
        %p835 = pneg %p413
        %p836 = pneg %p442
        %p837 = pneg %p439
        %p838 = scmp.lt.s32.totalorder %s38, 1
        %s839 = scalar_select %p838, %s38, 1
        %s840 = smul.addr %s839, 8
        %s841 = smul.addr %s840, 8
        %s842 = scalar_lea.vmem %s18, %s841
        %p843 = scmp.lt.s32.totalorder %s38, 1
        %s844 = scalar_select %p843, %s38, 1
        %s845 = smul.addr %s844, 8
        %s846 = smul.addr %s845, 8
        %s847 = scalar_lea.vmem %s0, %s846
        %p848 = scmp.lt.s32.totalorder %s38, 1
        %s849 = scalar_select %p848, %s38, 1
        %s850 = smul.addr %s849, 8
        %s851 = smul.addr %s850, 8
        %s852 = scalar_lea.vmem %s18, %s851
        %v854 = vld [vmem:[%s847] sm:$0xff]
        %v855 = vld [vmem:[%s847 + $0x8] sm:$0xff]
        %v856 = vld [vmem:[%s847 + $0x10] sm:$0xff]
        %v857 = vld [vmem:[%s847 + $0x18] sm:$0xff]
        %v858 = vld [vmem:[%s847 + $0x20] sm:$0xff]
        %v859 = vld [vmem:[%s847 + $0x28] sm:$0xff]
        %v860 = vld [vmem:[%s847 + $0x30] sm:$0xff]
        %v861 = vld [vmem:[%s847 + $0x38] sm:$0xff]
        %v862 = vpack.c.bf16 %v856, %v854
        %v863 = vpack.c.bf16 %v857, %v855
        %v864 = vpack.c.bf16 %v860, %v858
        %v865 = vpack.c.bf16 %v861, %v859
        %v866 = vld [vmem:[#allocation2] sm:$0xff]
        %v867 = vld [vmem:[#allocation2 + $0x8] sm:$0xff]
        %v868 = vld [vmem:[#allocation2 + $0x10] sm:$0xff]
        %v869 = vld [vmem:[#allocation2 + $0x18] sm:$0xff]
        %v870 = vld [vmem:[#allocation2 + $0x20] sm:$0xff]
        %v871 = vld [vmem:[#allocation2 + $0x28] sm:$0xff]
        %v872 = vld [vmem:[#allocation2 + $0x30] sm:$0xff]
        %v873 = vld [vmem:[#allocation2 + $0x38] sm:$0xff]
        %v874 = vld [vmem:[#allocation2 + $0x40] sm:$0xff]
        %v875 = vld [vmem:[#allocation2 + $0x48] sm:$0xff]
        %v876 = vld [vmem:[#allocation2 + $0x50] sm:$0xff]
        %v877 = vld [vmem:[#allocation2 + $0x58] sm:$0xff]
        %v878 = vld [vmem:[#allocation2 + $0x60] sm:$0xff]
        %v879 = vld [vmem:[#allocation2 + $0x68] sm:$0xff]
        %v880 = vld [vmem:[#allocation2 + $0x70] sm:$0xff]
        %v881 = vld [vmem:[#allocation2 + $0x78] sm:$0xff]
        %v882 = vld [vmem:[#allocation2 + $0x80] sm:$0xff]
        %v883 = vld [vmem:[#allocation2 + $0x88] sm:$0xff]
        %v884 = vld [vmem:[#allocation2 + $0x90] sm:$0xff]
        %v885 = vld [vmem:[#allocation2 + $0x98] sm:$0xff]
        %v886 = vld [vmem:[#allocation2 + $0xa0] sm:$0xff]
        %v887 = vld [vmem:[#allocation2 + $0xa8] sm:$0xff]
        %v888 = vld [vmem:[#allocation2 + $0xb0] sm:$0xff]
        %v889 = vld [vmem:[#allocation2 + $0xb8] sm:$0xff]
        %v890 = vld [vmem:[#allocation2 + $0xc0] sm:$0xff]
        %v891 = vld [vmem:[#allocation2 + $0xc8] sm:$0xff]
        %v892 = vld [vmem:[#allocation2 + $0xd0] sm:$0xff]
        %v893 = vld [vmem:[#allocation2 + $0xd8] sm:$0xff]
        %v894 = vld [vmem:[#allocation2 + $0xe0] sm:$0xff]
        %v895 = vld [vmem:[#allocation2 + $0xe8] sm:$0xff]
        %v896 = vld [vmem:[#allocation2 + $0xf0] sm:$0xff]
        %v897 = vld [vmem:[#allocation2 + $0xf8] sm:$0xff]
        %v930 = vunpack.c.l.b16 %v866
        %v931 = vunpack.c.h.b16 %v866
        %v932 = vunpack.c.l.b16 %v867
        %v933 = vunpack.c.h.b16 %v867
        %v934 = vunpack.c.l.b16 %v868
        %v935 = vunpack.c.h.b16 %v868
        %v936 = vunpack.c.l.b16 %v869
        %v937 = vunpack.c.h.b16 %v869
        %v938 = vunpack.c.l.b16 %v870
        %v939 = vunpack.c.h.b16 %v870
        %v940 = vunpack.c.l.b16 %v871
        %v941 = vunpack.c.h.b16 %v871
        %v942 = vunpack.c.l.b16 %v872
        %v943 = vunpack.c.h.b16 %v872
        %v944 = vunpack.c.l.b16 %v873
        %v945 = vunpack.c.h.b16 %v873
        %v946 = vunpack.c.l.b16 %v874
        %v947 = vunpack.c.h.b16 %v874
        %v948 = vunpack.c.l.b16 %v875
        %v949 = vunpack.c.h.b16 %v875
        %v950 = vunpack.c.l.b16 %v876
        %v951 = vunpack.c.h.b16 %v876
        %v952 = vunpack.c.l.b16 %v877
        %v953 = vunpack.c.h.b16 %v877
        %v954 = vunpack.c.l.b16 %v878
        %v955 = vunpack.c.h.b16 %v878
        %v956 = vunpack.c.l.b16 %v879
        %v957 = vunpack.c.h.b16 %v879
        %v958 = vunpack.c.l.b16 %v880
        %v959 = vunpack.c.h.b16 %v880
        %v960 = vunpack.c.l.b16 %v881
        %v961 = vunpack.c.h.b16 %v881
        %v962 = vunpack.c.l.b16 %v882
        %v963 = vunpack.c.h.b16 %v882
        %v964 = vunpack.c.l.b16 %v883
        %v965 = vunpack.c.h.b16 %v883
        %v966 = vunpack.c.l.b16 %v884
        %v967 = vunpack.c.h.b16 %v884
        %v968 = vunpack.c.l.b16 %v885
        %v969 = vunpack.c.h.b16 %v885
        %v970 = vunpack.c.l.b16 %v886
        %v971 = vunpack.c.h.b16 %v886
        %v972 = vunpack.c.l.b16 %v887
        %v973 = vunpack.c.h.b16 %v887
        %v974 = vunpack.c.l.b16 %v888
        %v975 = vunpack.c.h.b16 %v888
        %v976 = vunpack.c.l.b16 %v889
        %v977 = vunpack.c.h.b16 %v889
        %v978 = vunpack.c.l.b16 %v890
        %v979 = vunpack.c.h.b16 %v890
        %v980 = vunpack.c.l.b16 %v891
        %v981 = vunpack.c.h.b16 %v891
        %v982 = vunpack.c.l.b16 %v892
        %v983 = vunpack.c.h.b16 %v892
        %v984 = vunpack.c.l.b16 %v893
        %v985 = vunpack.c.h.b16 %v893
        %v986 = vunpack.c.l.b16 %v894
        %v987 = vunpack.c.h.b16 %v894
        %v988 = vunpack.c.l.b16 %v895
        %v989 = vunpack.c.h.b16 %v895
        %v990 = vunpack.c.l.b16 %v896
        %v991 = vunpack.c.h.b16 %v896
        %v992 = vunpack.c.l.b16 %v897
        %v993 = vunpack.c.h.b16 %v897
        %v994 = vpack.c.b16 %v932, %v930
        %v995 = vpack.c.b16 %v933, %v931
        %v996 = vpack.c.b16 %v936, %v934
        %v997 = vpack.c.b16 %v937, %v935
        %v998 = vpack.c.b16 %v940, %v938
        %v999 = vpack.c.b16 %v941, %v939
        %v1000 = vpack.c.b16 %v944, %v942
        %v1001 = vpack.c.b16 %v945, %v943
        %v1002 = vpack.c.b16 %v948, %v946
        %v1003 = vpack.c.b16 %v949, %v947
        %v1004 = vpack.c.b16 %v952, %v950
        %v1005 = vpack.c.b16 %v953, %v951
        %v1006 = vpack.c.b16 %v956, %v954
        %v1007 = vpack.c.b16 %v957, %v955
        %v1008 = vpack.c.b16 %v960, %v958
        %v1009 = vpack.c.b16 %v961, %v959
        %v1010 = vpack.c.b16 %v964, %v962
        %v1011 = vpack.c.b16 %v965, %v963
        %v1012 = vpack.c.b16 %v968, %v966
        %v1013 = vpack.c.b16 %v969, %v967
        %v1014 = vpack.c.b16 %v972, %v970
        %v1015 = vpack.c.b16 %v973, %v971
        %v1016 = vpack.c.b16 %v976, %v974
        %v1017 = vpack.c.b16 %v977, %v975
        %v1018 = vpack.c.b16 %v980, %v978
        %v1019 = vpack.c.b16 %v981, %v979
        %v1020 = vpack.c.b16 %v984, %v982
        %v1021 = vpack.c.b16 %v985, %v983
        %v1022 = vpack.c.b16 %v988, %v986
        %v1023 = vpack.c.b16 %v989, %v987
        %v1024 = vpack.c.b16 %v992, %v990
        %v1025 = vpack.c.b16 %v993, %v991
        %1058 = vmatpush.bf16.msra.mxu0 %v1008
        %1059 = vmatpush.bf16.msra.mxu0 %v1006
        %1060 = vmatpush.bf16.msra.mxu0 %v1004
        %1061 = vmatpush.bf16.msra.mxu0 %v1002
        %1062 = vmatpush.bf16.msra.mxu0 %v1000
        %1063 = vmatpush.bf16.msra.mxu0 %v998
        %1064 = vmatpush.bf16.msra.mxu0 %v996
        %1065 = vmatpush.bf16.msra.mxu0 %v994
        %1066 = vmatmul.bf16.gmra.mxu0 %v862
        %v1067 = vpop.f32.mrf.mxu0
        %v1068 = vadd.f32 0.0, %v1067
        %v1069 = vpop.f32.mrf.mxu0
        %v1070 = vadd.f32 0.0, %v1069
        %1071 = vmatmul.bf16.gmra.mxu0 %v864
        %v1072 = vpop.f32.mrf.mxu0
        %v1073 = vadd.f32 0.0, %v1072
        %v1074 = vpop.f32.mrf.mxu0
        %v1075 = vadd.f32 0.0, %v1074
        %1076 = vdwg.mxu0
        %1077 = vmatpush.bf16.msra.mxu0 %v1024
        %1078 = vmatpush.bf16.msra.mxu0 %v1022
        %1079 = vmatpush.bf16.msra.mxu0 %v1020
        %1080 = vmatpush.bf16.msra.mxu0 %v1018
        %1081 = vmatpush.bf16.msra.mxu0 %v1016
        %1082 = vmatpush.bf16.msra.mxu0 %v1014
        %1083 = vmatpush.bf16.msra.mxu0 %v1012
        %1084 = vmatpush.bf16.msra.mxu0 %v1010
        %1085 = vmatmul.bf16.gmra.mxu0 %v863
        %v1086 = vpop.f32.mrf.mxu0
        %v1087 = vadd.f32 %v1068, %v1086
        %v1088 = vpop.f32.mrf.mxu0
        %v1089 = vadd.f32 %v1070, %v1088
        %1090 = vmatmul.bf16.gmra.mxu0 %v865
        %v1091 = vpop.f32.mrf.mxu0
        %v1092 = vadd.f32 %v1073, %v1091
        %v1093 = vpop.f32.mrf.mxu0
        %v1094 = vadd.f32 %v1075, %v1093
        %1095 = vdwg.mxu0
        %1096 = vmatpush.bf16.msra.mxu0 %v1009
        %1097 = vmatpush.bf16.msra.mxu0 %v1007
        %1098 = vmatpush.bf16.msra.mxu0 %v1005
        %1099 = vmatpush.bf16.msra.mxu0 %v1003
        %1100 = vmatpush.bf16.msra.mxu0 %v1001
        %1101 = vmatpush.bf16.msra.mxu0 %v999
        %1102 = vmatpush.bf16.msra.mxu0 %v997
        %1103 = vmatpush.bf16.msra.mxu0 %v995
        %1104 = vmatmul.bf16.gmra.mxu0 %v862
        %v1105 = vpop.f32.mrf.mxu0
        %v1106 = vadd.f32 0.0, %v1105
        %v1107 = vpop.f32.mrf.mxu0
        %v1108 = vadd.f32 0.0, %v1107
        %1109 = vmatmul.bf16.gmra.mxu0 %v864
        %v1110 = vpop.f32.mrf.mxu0
        %v1111 = vadd.f32 0.0, %v1110
        %v1112 = vpop.f32.mrf.mxu0
        %v1113 = vadd.f32 0.0, %v1112
        %1114 = vdwg.mxu0
        %1115 = vmatpush.bf16.msra.mxu0 %v1025
        %1116 = vmatpush.bf16.msra.mxu0 %v1023
        %1117 = vmatpush.bf16.msra.mxu0 %v1021
        %1118 = vmatpush.bf16.msra.mxu0 %v1019
        %1119 = vmatpush.bf16.msra.mxu0 %v1017
        %1120 = vmatpush.bf16.msra.mxu0 %v1015
        %1121 = vmatpush.bf16.msra.mxu0 %v1013
        %1122 = vmatpush.bf16.msra.mxu0 %v1011
        %1123 = vmatmul.bf16.gmra.mxu0 %v863
        %v1124 = vpop.f32.mrf.mxu0
        %v1125 = vadd.f32 %v1106, %v1124
        %v1126 = vpop.f32.mrf.mxu0
        %v1127 = vadd.f32 %v1108, %v1126
        %1128 = vmatmul.bf16.gmra.mxu0 %v865
        %v1129 = vpop.f32.mrf.mxu0
        %v1130 = vadd.f32 %v1111, %v1129
        %v1131 = vpop.f32.mrf.mxu0
        %v1132 = vadd.f32 %v1113, %v1131
        %1133 = vdwg.mxu0
        %v1134 = vpack.c.bf16 %v1125, %v1087
        %v1135 = vpack.c.bf16 %v1127, %v1089
        %v1136 = vpack.c.bf16 %v1130, %v1092
        %v1137 = vpack.c.bf16 %v1132, %v1094
        %s1138 = scalar_lea.vmem [#allocation2], 256
        %v1139 = vld [vmem:[%s1138] sm:$0xff]
        %v1140 = vld [vmem:[%s1138 + $0x8] sm:$0xff]
        %v1141 = vld [vmem:[%s1138 + $0x10] sm:$0xff]
        %v1142 = vld [vmem:[%s1138 + $0x18] sm:$0xff]
        %v1143 = vld [vmem:[%s1138 + $0x20] sm:$0xff]
        %v1144 = vld [vmem:[%s1138 + $0x28] sm:$0xff]
        %v1145 = vld [vmem:[%s1138 + $0x30] sm:$0xff]
        %v1146 = vld [vmem:[%s1138 + $0x38] sm:$0xff]
        %v1147 = vld [vmem:[%s1138 + $0x40] sm:$0xff]
        %v1148 = vld [vmem:[%s1138 + $0x48] sm:$0xff]
        %v1149 = vld [vmem:[%s1138 + $0x50] sm:$0xff]
        %v1150 = vld [vmem:[%s1138 + $0x58] sm:$0xff]
        %v1151 = vld [vmem:[%s1138 + $0x60] sm:$0xff]
        %v1152 = vld [vmem:[%s1138 + $0x68] sm:$0xff]
        %v1153 = vld [vmem:[%s1138 + $0x70] sm:$0xff]
        %v1154 = vld [vmem:[%s1138 + $0x78] sm:$0xff]
        %v1155 = vld [vmem:[%s1138 + $0x80] sm:$0xff]
        %v1156 = vld [vmem:[%s1138 + $0x88] sm:$0xff]
        %v1157 = vld [vmem:[%s1138 + $0x90] sm:$0xff]
        %v1158 = vld [vmem:[%s1138 + $0x98] sm:$0xff]
        %v1159 = vld [vmem:[%s1138 + $0xa0] sm:$0xff]
        %v1160 = vld [vmem:[%s1138 + $0xa8] sm:$0xff]
        %v1161 = vld [vmem:[%s1138 + $0xb0] sm:$0xff]
        %v1162 = vld [vmem:[%s1138 + $0xb8] sm:$0xff]
        %v1163 = vld [vmem:[%s1138 + $0xc0] sm:$0xff]
        %v1164 = vld [vmem:[%s1138 + $0xc8] sm:$0xff]
        %v1165 = vld [vmem:[%s1138 + $0xd0] sm:$0xff]
        %v1166 = vld [vmem:[%s1138 + $0xd8] sm:$0xff]
        %v1167 = vld [vmem:[%s1138 + $0xe0] sm:$0xff]
        %v1168 = vld [vmem:[%s1138 + $0xe8] sm:$0xff]
        %v1169 = vld [vmem:[%s1138 + $0xf0] sm:$0xff]
        %v1170 = vld [vmem:[%s1138 + $0xf8] sm:$0xff]
        %v1203 = vunpack.c.l.b16 %v1139
        %v1204 = vunpack.c.h.b16 %v1139
        %v1205 = vunpack.c.l.b16 %v1140
        %v1206 = vunpack.c.h.b16 %v1140
        %v1207 = vunpack.c.l.b16 %v1141
        %v1208 = vunpack.c.h.b16 %v1141
        %v1209 = vunpack.c.l.b16 %v1142
        %v1210 = vunpack.c.h.b16 %v1142
        %v1211 = vunpack.c.l.b16 %v1143
        %v1212 = vunpack.c.h.b16 %v1143
        %v1213 = vunpack.c.l.b16 %v1144
        %v1214 = vunpack.c.h.b16 %v1144
        %v1215 = vunpack.c.l.b16 %v1145
        %v1216 = vunpack.c.h.b16 %v1145
        %v1217 = vunpack.c.l.b16 %v1146
        %v1218 = vunpack.c.h.b16 %v1146
        %v1219 = vunpack.c.l.b16 %v1147
        %v1220 = vunpack.c.h.b16 %v1147
        %v1221 = vunpack.c.l.b16 %v1148
        %v1222 = vunpack.c.h.b16 %v1148
        %v1223 = vunpack.c.l.b16 %v1149
        %v1224 = vunpack.c.h.b16 %v1149
        %v1225 = vunpack.c.l.b16 %v1150
        %v1226 = vunpack.c.h.b16 %v1150
        %v1227 = vunpack.c.l.b16 %v1151
        %v1228 = vunpack.c.h.b16 %v1151
        %v1229 = vunpack.c.l.b16 %v1152
        %v1230 = vunpack.c.h.b16 %v1152
        %v1231 = vunpack.c.l.b16 %v1153
        %v1232 = vunpack.c.h.b16 %v1153
        %v1233 = vunpack.c.l.b16 %v1154
        %v1234 = vunpack.c.h.b16 %v1154
        %v1235 = vunpack.c.l.b16 %v1155
        %v1236 = vunpack.c.h.b16 %v1155
        %v1237 = vunpack.c.l.b16 %v1156
        %v1238 = vunpack.c.h.b16 %v1156
        %v1239 = vunpack.c.l.b16 %v1157
        %v1240 = vunpack.c.h.b16 %v1157
        %v1241 = vunpack.c.l.b16 %v1158
        %v1242 = vunpack.c.h.b16 %v1158
        %v1243 = vunpack.c.l.b16 %v1159
        %v1244 = vunpack.c.h.b16 %v1159
        %v1245 = vunpack.c.l.b16 %v1160
        %v1246 = vunpack.c.h.b16 %v1160
        %v1247 = vunpack.c.l.b16 %v1161
        %v1248 = vunpack.c.h.b16 %v1161
        %v1249 = vunpack.c.l.b16 %v1162
        %v1250 = vunpack.c.h.b16 %v1162
        %v1251 = vunpack.c.l.b16 %v1163
        %v1252 = vunpack.c.h.b16 %v1163
        %v1253 = vunpack.c.l.b16 %v1164
        %v1254 = vunpack.c.h.b16 %v1164
        %v1255 = vunpack.c.l.b16 %v1165
        %v1256 = vunpack.c.h.b16 %v1165
        %v1257 = vunpack.c.l.b16 %v1166
        %v1258 = vunpack.c.h.b16 %v1166
        %v1259 = vunpack.c.l.b16 %v1167
        %v1260 = vunpack.c.h.b16 %v1167
        %v1261 = vunpack.c.l.b16 %v1168
        %v1262 = vunpack.c.h.b16 %v1168
        %v1263 = vunpack.c.l.b16 %v1169
        %v1264 = vunpack.c.h.b16 %v1169
        %v1265 = vunpack.c.l.b16 %v1170
        %v1266 = vunpack.c.h.b16 %v1170
        %v1267 = vpack.c.b16 %v1205, %v1203
        %v1268 = vpack.c.b16 %v1206, %v1204
        %v1269 = vpack.c.b16 %v1209, %v1207
        %v1270 = vpack.c.b16 %v1210, %v1208
        %v1271 = vpack.c.b16 %v1213, %v1211
        %v1272 = vpack.c.b16 %v1214, %v1212
        %v1273 = vpack.c.b16 %v1217, %v1215
        %v1274 = vpack.c.b16 %v1218, %v1216
        %v1275 = vpack.c.b16 %v1221, %v1219
        %v1276 = vpack.c.b16 %v1222, %v1220
        %v1277 = vpack.c.b16 %v1225, %v1223
        %v1278 = vpack.c.b16 %v1226, %v1224
        %v1279 = vpack.c.b16 %v1229, %v1227
        %v1280 = vpack.c.b16 %v1230, %v1228
        %v1281 = vpack.c.b16 %v1233, %v1231
        %v1282 = vpack.c.b16 %v1234, %v1232
        %v1283 = vpack.c.b16 %v1237, %v1235
        %v1284 = vpack.c.b16 %v1238, %v1236
        %v1285 = vpack.c.b16 %v1241, %v1239
        %v1286 = vpack.c.b16 %v1242, %v1240
        %v1287 = vpack.c.b16 %v1245, %v1243
        %v1288 = vpack.c.b16 %v1246, %v1244
        %v1289 = vpack.c.b16 %v1249, %v1247
        %v1290 = vpack.c.b16 %v1250, %v1248
        %v1291 = vpack.c.b16 %v1253, %v1251
        %v1292 = vpack.c.b16 %v1254, %v1252
        %v1293 = vpack.c.b16 %v1257, %v1255
        %v1294 = vpack.c.b16 %v1258, %v1256
        %v1295 = vpack.c.b16 %v1261, %v1259
        %v1296 = vpack.c.b16 %v1262, %v1260
        %v1297 = vpack.c.b16 %v1265, %v1263
        %v1298 = vpack.c.b16 %v1266, %v1264
        %1331 = vmatpush.bf16.msra.mxu0 %v1281
        %1332 = vmatpush.bf16.msra.mxu0 %v1279
        %1333 = vmatpush.bf16.msra.mxu0 %v1277
        %1334 = vmatpush.bf16.msra.mxu0 %v1275
        %1335 = vmatpush.bf16.msra.mxu0 %v1273
        %1336 = vmatpush.bf16.msra.mxu0 %v1271
        %1337 = vmatpush.bf16.msra.mxu0 %v1269
        %1338 = vmatpush.bf16.msra.mxu0 %v1267
        %1339 = vmatmul.bf16.gmra.mxu0 %v862
        %v1340 = vpop.f32.mrf.mxu0
        %v1341 = vadd.f32 0.0, %v1340
        %v1342 = vpop.f32.mrf.mxu0
        %v1343 = vadd.f32 0.0, %v1342
        %1344 = vmatmul.bf16.gmra.mxu0 %v864
        %v1345 = vpop.f32.mrf.mxu0
        %v1346 = vadd.f32 0.0, %v1345
        %v1347 = vpop.f32.mrf.mxu0
        %v1348 = vadd.f32 0.0, %v1347
        %1349 = vdwg.mxu0
        %1350 = vmatpush.bf16.msra.mxu0 %v1297
        %1351 = vmatpush.bf16.msra.mxu0 %v1295
        %1352 = vmatpush.bf16.msra.mxu0 %v1293
        %1353 = vmatpush.bf16.msra.mxu0 %v1291
        %1354 = vmatpush.bf16.msra.mxu0 %v1289
        %1355 = vmatpush.bf16.msra.mxu0 %v1287
        %1356 = vmatpush.bf16.msra.mxu0 %v1285
        %1357 = vmatpush.bf16.msra.mxu0 %v1283
        %1358 = vmatmul.bf16.gmra.mxu0 %v863
        %v1359 = vpop.f32.mrf.mxu0
        %v1360 = vadd.f32 %v1341, %v1359
        %v1361 = vpop.f32.mrf.mxu0
        %v1362 = vadd.f32 %v1343, %v1361
        %1363 = vmatmul.bf16.gmra.mxu0 %v865
        %v1364 = vpop.f32.mrf.mxu0
        %v1365 = vadd.f32 %v1346, %v1364
        %v1366 = vpop.f32.mrf.mxu0
        %v1367 = vadd.f32 %v1348, %v1366
        %1368 = vdwg.mxu0
        %1369 = vmatpush.bf16.msra.mxu0 %v1282
        %1370 = vmatpush.bf16.msra.mxu0 %v1280
        %1371 = vmatpush.bf16.msra.mxu0 %v1278
        %1372 = vmatpush.bf16.msra.mxu0 %v1276
        %1373 = vmatpush.bf16.msra.mxu0 %v1274
        %1374 = vmatpush.bf16.msra.mxu0 %v1272
        %1375 = vmatpush.bf16.msra.mxu0 %v1270
        %1376 = vmatpush.bf16.msra.mxu0 %v1268
        %1377 = vmatmul.bf16.gmra.mxu0 %v862
        %v1378 = vpop.f32.mrf.mxu0
        %v1379 = vadd.f32 0.0, %v1378
        %v1380 = vpop.f32.mrf.mxu0
        %v1381 = vadd.f32 0.0, %v1380
        %1382 = vmatmul.bf16.gmra.mxu0 %v864
        %v1383 = vpop.f32.mrf.mxu0
        %v1384 = vadd.f32 0.0, %v1383
        %v1385 = vpop.f32.mrf.mxu0
        %v1386 = vadd.f32 0.0, %v1385
        %1387 = vdwg.mxu0
        %1388 = vmatpush.bf16.msra.mxu0 %v1298
        %1389 = vmatpush.bf16.msra.mxu0 %v1296
        %1390 = vmatpush.bf16.msra.mxu0 %v1294
        %1391 = vmatpush.bf16.msra.mxu0 %v1292
        %1392 = vmatpush.bf16.msra.mxu0 %v1290
        %1393 = vmatpush.bf16.msra.mxu0 %v1288
        %1394 = vmatpush.bf16.msra.mxu0 %v1286
        %1395 = vmatpush.bf16.msra.mxu0 %v1284
        %1396 = vmatmul.bf16.gmra.mxu0 %v863
        %v1397 = vpop.f32.mrf.mxu0
        %v1398 = vadd.f32 %v1379, %v1397
        %v1399 = vpop.f32.mrf.mxu0
        %v1400 = vadd.f32 %v1381, %v1399
        %1401 = vmatmul.bf16.gmra.mxu0 %v865
        %v1402 = vpop.f32.mrf.mxu0
        %v1403 = vadd.f32 %v1384, %v1402
        %v1404 = vpop.f32.mrf.mxu0
        %v1405 = vadd.f32 %v1386, %v1404
        %1406 = vdwg.mxu0
        %v1407 = vpack.c.bf16 %v1398, %v1360
        %v1408 = vpack.c.bf16 %v1400, %v1362
        %v1409 = vpack.c.bf16 %v1403, %v1365
        %v1410 = vpack.c.bf16 %v1405, %v1367
        %s1411 = scalar_lea.vmem [#allocation2], 512
        %v1412 = vld [vmem:[%s1411] sm:$0xff]
        %v1413 = vld [vmem:[%s1411 + $0x8] sm:$0xff]
        %v1414 = vld [vmem:[%s1411 + $0x10] sm:$0xff]
        %v1415 = vld [vmem:[%s1411 + $0x18] sm:$0xff]
        %v1416 = vld [vmem:[%s1411 + $0x20] sm:$0xff]
        %v1417 = vld [vmem:[%s1411 + $0x28] sm:$0xff]
        %v1418 = vld [vmem:[%s1411 + $0x30] sm:$0xff]
        %v1419 = vld [vmem:[%s1411 + $0x38] sm:$0xff]
        %v1420 = vld [vmem:[%s1411 + $0x40] sm:$0xff]
        %v1421 = vld [vmem:[%s1411 + $0x48] sm:$0xff]
        %v1422 = vld [vmem:[%s1411 + $0x50] sm:$0xff]
        %v1423 = vld [vmem:[%s1411 + $0x58] sm:$0xff]
        %v1424 = vld [vmem:[%s1411 + $0x60] sm:$0xff]
        %v1425 = vld [vmem:[%s1411 + $0x68] sm:$0xff]
        %v1426 = vld [vmem:[%s1411 + $0x70] sm:$0xff]
        %v1427 = vld [vmem:[%s1411 + $0x78] sm:$0xff]
        %v1428 = vld [vmem:[%s1411 + $0x80] sm:$0xff]
        %v1429 = vld [vmem:[%s1411 + $0x88] sm:$0xff]
        %v1430 = vld [vmem:[%s1411 + $0x90] sm:$0xff]
        %v1431 = vld [vmem:[%s1411 + $0x98] sm:$0xff]
        %v1432 = vld [vmem:[%s1411 + $0xa0] sm:$0xff]
        %v1433 = vld [vmem:[%s1411 + $0xa8] sm:$0xff]
        %v1434 = vld [vmem:[%s1411 + $0xb0] sm:$0xff]
        %v1435 = vld [vmem:[%s1411 + $0xb8] sm:$0xff]
        %v1436 = vld [vmem:[%s1411 + $0xc0] sm:$0xff]
        %v1437 = vld [vmem:[%s1411 + $0xc8] sm:$0xff]
        %v1438 = vld [vmem:[%s1411 + $0xd0] sm:$0xff]
        %v1439 = vld [vmem:[%s1411 + $0xd8] sm:$0xff]
        %v1440 = vld [vmem:[%s1411 + $0xe0] sm:$0xff]
        %v1441 = vld [vmem:[%s1411 + $0xe8] sm:$0xff]
        %v1442 = vld [vmem:[%s1411 + $0xf0] sm:$0xff]
        %v1443 = vld [vmem:[%s1411 + $0xf8] sm:$0xff]
        %v1476 = vunpack.c.l.b16 %v1412
        %v1477 = vunpack.c.h.b16 %v1412
        %v1478 = vunpack.c.l.b16 %v1413
        %v1479 = vunpack.c.h.b16 %v1413
        %v1480 = vunpack.c.l.b16 %v1414
        %v1481 = vunpack.c.h.b16 %v1414
        %v1482 = vunpack.c.l.b16 %v1415
        %v1483 = vunpack.c.h.b16 %v1415
        %v1484 = vunpack.c.l.b16 %v1416
        %v1485 = vunpack.c.h.b16 %v1416
        %v1486 = vunpack.c.l.b16 %v1417
        %v1487 = vunpack.c.h.b16 %v1417
        %v1488 = vunpack.c.l.b16 %v1418
        %v1489 = vunpack.c.h.b16 %v1418
        %v1490 = vunpack.c.l.b16 %v1419
        %v1491 = vunpack.c.h.b16 %v1419
        %v1492 = vunpack.c.l.b16 %v1420
        %v1493 = vunpack.c.h.b16 %v1420
        %v1494 = vunpack.c.l.b16 %v1421
        %v1495 = vunpack.c.h.b16 %v1421
        %v1496 = vunpack.c.l.b16 %v1422
        %v1497 = vunpack.c.h.b16 %v1422
        %v1498 = vunpack.c.l.b16 %v1423
        %v1499 = vunpack.c.h.b16 %v1423
        %v1500 = vunpack.c.l.b16 %v1424
        %v1501 = vunpack.c.h.b16 %v1424
        %v1502 = vunpack.c.l.b16 %v1425
        %v1503 = vunpack.c.h.b16 %v1425
        %v1504 = vunpack.c.l.b16 %v1426
        %v1505 = vunpack.c.h.b16 %v1426
        %v1506 = vunpack.c.l.b16 %v1427
        %v1507 = vunpack.c.h.b16 %v1427
        %v1508 = vunpack.c.l.b16 %v1428
        %v1509 = vunpack.c.h.b16 %v1428
        %v1510 = vunpack.c.l.b16 %v1429
        %v1511 = vunpack.c.h.b16 %v1429
        %v1512 = vunpack.c.l.b16 %v1430
        %v1513 = vunpack.c.h.b16 %v1430
        %v1514 = vunpack.c.l.b16 %v1431
        %v1515 = vunpack.c.h.b16 %v1431
        %v1516 = vunpack.c.l.b16 %v1432
        %v1517 = vunpack.c.h.b16 %v1432
        %v1518 = vunpack.c.l.b16 %v1433
        %v1519 = vunpack.c.h.b16 %v1433
        %v1520 = vunpack.c.l.b16 %v1434
        %v1521 = vunpack.c.h.b16 %v1434
        %v1522 = vunpack.c.l.b16 %v1435
        %v1523 = vunpack.c.h.b16 %v1435
        %v1524 = vunpack.c.l.b16 %v1436
        %v1525 = vunpack.c.h.b16 %v1436
        %v1526 = vunpack.c.l.b16 %v1437
        %v1527 = vunpack.c.h.b16 %v1437
        %v1528 = vunpack.c.l.b16 %v1438
        %v1529 = vunpack.c.h.b16 %v1438
        %v1530 = vunpack.c.l.b16 %v1439
        %v1531 = vunpack.c.h.b16 %v1439
        %v1532 = vunpack.c.l.b16 %v1440
        %v1533 = vunpack.c.h.b16 %v1440
        %v1534 = vunpack.c.l.b16 %v1441
        %v1535 = vunpack.c.h.b16 %v1441
        %v1536 = vunpack.c.l.b16 %v1442
        %v1537 = vunpack.c.h.b16 %v1442
        %v1538 = vunpack.c.l.b16 %v1443
        %v1539 = vunpack.c.h.b16 %v1443
        %v1540 = vpack.c.b16 %v1478, %v1476
        %v1541 = vpack.c.b16 %v1479, %v1477
        %v1542 = vpack.c.b16 %v1482, %v1480
        %v1543 = vpack.c.b16 %v1483, %v1481
        %v1544 = vpack.c.b16 %v1486, %v1484
        %v1545 = vpack.c.b16 %v1487, %v1485
        %v1546 = vpack.c.b16 %v1490, %v1488
        %v1547 = vpack.c.b16 %v1491, %v1489
        %v1548 = vpack.c.b16 %v1494, %v1492
        %v1549 = vpack.c.b16 %v1495, %v1493
        %v1550 = vpack.c.b16 %v1498, %v1496
        %v1551 = vpack.c.b16 %v1499, %v1497
        %v1552 = vpack.c.b16 %v1502, %v1500
        %v1553 = vpack.c.b16 %v1503, %v1501
        %v1554 = vpack.c.b16 %v1506, %v1504
        %v1555 = vpack.c.b16 %v1507, %v1505
        %v1556 = vpack.c.b16 %v1510, %v1508
        %v1557 = vpack.c.b16 %v1511, %v1509
        %v1558 = vpack.c.b16 %v1514, %v1512
        %v1559 = vpack.c.b16 %v1515, %v1513
        %v1560 = vpack.c.b16 %v1518, %v1516
        %v1561 = vpack.c.b16 %v1519, %v1517
        %v1562 = vpack.c.b16 %v1522, %v1520
        %v1563 = vpack.c.b16 %v1523, %v1521
        %v1564 = vpack.c.b16 %v1526, %v1524
        %v1565 = vpack.c.b16 %v1527, %v1525
        %v1566 = vpack.c.b16 %v1530, %v1528
        %v1567 = vpack.c.b16 %v1531, %v1529
        %v1568 = vpack.c.b16 %v1534, %v1532
        %v1569 = vpack.c.b16 %v1535, %v1533
        %v1570 = vpack.c.b16 %v1538, %v1536
        %v1571 = vpack.c.b16 %v1539, %v1537
        %1604 = vmatpush.bf16.msra.mxu0 %v1554
        %1605 = vmatpush.bf16.msra.mxu0 %v1552
        %1606 = vmatpush.bf16.msra.mxu0 %v1550
        %1607 = vmatpush.bf16.msra.mxu0 %v1548
        %1608 = vmatpush.bf16.msra.mxu0 %v1546
        %1609 = vmatpush.bf16.msra.mxu0 %v1544
        %1610 = vmatpush.bf16.msra.mxu0 %v1542
        %1611 = vmatpush.bf16.msra.mxu0 %v1540
        %1612 = vmatmul.bf16.gmra.mxu0 %v862
        %v1613 = vpop.f32.mrf.mxu0
        %v1614 = vadd.f32 0.0, %v1613
        %v1615 = vpop.f32.mrf.mxu0
        %v1616 = vadd.f32 0.0, %v1615
        %1617 = vmatmul.bf16.gmra.mxu0 %v864
        %v1618 = vpop.f32.mrf.mxu0
        %v1619 = vadd.f32 0.0, %v1618
        %v1620 = vpop.f32.mrf.mxu0
        %v1621 = vadd.f32 0.0, %v1620
        %1622 = vdwg.mxu0
        %1623 = vmatpush.bf16.msra.mxu0 %v1570
        %1624 = vmatpush.bf16.msra.mxu0 %v1568
        %1625 = vmatpush.bf16.msra.mxu0 %v1566
        %1626 = vmatpush.bf16.msra.mxu0 %v1564
        %1627 = vmatpush.bf16.msra.mxu0 %v1562
        %1628 = vmatpush.bf16.msra.mxu0 %v1560
        %1629 = vmatpush.bf16.msra.mxu0 %v1558
        %1630 = vmatpush.bf16.msra.mxu0 %v1556
        %1631 = vmatmul.bf16.gmra.mxu0 %v863
        %v1632 = vpop.f32.mrf.mxu0
        %v1633 = vadd.f32 %v1614, %v1632
        %v1634 = vpop.f32.mrf.mxu0
        %v1635 = vadd.f32 %v1616, %v1634
        %1636 = vmatmul.bf16.gmra.mxu0 %v865
        %v1637 = vpop.f32.mrf.mxu0
        %v1638 = vadd.f32 %v1619, %v1637
        %v1639 = vpop.f32.mrf.mxu0
        %v1640 = vadd.f32 %v1621, %v1639
        %1641 = vdwg.mxu0
        %1642 = vmatpush.bf16.msra.mxu0 %v1555
        %1643 = vmatpush.bf16.msra.mxu0 %v1553
        %1644 = vmatpush.bf16.msra.mxu0 %v1551
        %1645 = vmatpush.bf16.msra.mxu0 %v1549
        %1646 = vmatpush.bf16.msra.mxu0 %v1547
        %1647 = vmatpush.bf16.msra.mxu0 %v1545
        %1648 = vmatpush.bf16.msra.mxu0 %v1543
        %1649 = vmatpush.bf16.msra.mxu0 %v1541
        %1650 = vmatmul.bf16.gmra.mxu0 %v862
        %v1651 = vpop.f32.mrf.mxu0
        %v1652 = vadd.f32 0.0, %v1651
        %v1653 = vpop.f32.mrf.mxu0
        %v1654 = vadd.f32 0.0, %v1653
        %1655 = vmatmul.bf16.gmra.mxu0 %v864
        %v1656 = vpop.f32.mrf.mxu0
        %v1657 = vadd.f32 0.0, %v1656
        %v1658 = vpop.f32.mrf.mxu0
        %v1659 = vadd.f32 0.0, %v1658
        %1660 = vdwg.mxu0
        %1661 = vmatpush.bf16.msra.mxu0 %v1571
        %1662 = vmatpush.bf16.msra.mxu0 %v1569
        %1663 = vmatpush.bf16.msra.mxu0 %v1567
        %1664 = vmatpush.bf16.msra.mxu0 %v1565
        %1665 = vmatpush.bf16.msra.mxu0 %v1563
        %1666 = vmatpush.bf16.msra.mxu0 %v1561
        %1667 = vmatpush.bf16.msra.mxu0 %v1559
        %1668 = vmatpush.bf16.msra.mxu0 %v1557
        %1669 = vmatmul.bf16.gmra.mxu0 %v863
        %v1670 = vpop.f32.mrf.mxu0
        %v1671 = vadd.f32 %v1652, %v1670
        %v1672 = vpop.f32.mrf.mxu0
        %v1673 = vadd.f32 %v1654, %v1672
        %1674 = vmatmul.bf16.gmra.mxu0 %v865
        %v1675 = vpop.f32.mrf.mxu0
        %v1676 = vadd.f32 %v1657, %v1675
        %v1677 = vpop.f32.mrf.mxu0
        %v1678 = vadd.f32 %v1659, %v1677
        %1679 = vdwg.mxu0
        %v1680 = vpack.c.bf16 %v1671, %v1633
        %v1681 = vpack.c.bf16 %v1673, %v1635
        %v1682 = vpack.c.bf16 %v1676, %v1638
        %v1683 = vpack.c.bf16 %v1678, %v1640
        %s1684 = scalar_lea.vmem [#allocation2], 768
        %v1685 = vld [vmem:[%s1684] sm:$0xff]
        %v1686 = vld [vmem:[%s1684 + $0x8] sm:$0xff]
        %v1687 = vld [vmem:[%s1684 + $0x10] sm:$0xff]
        %v1688 = vld [vmem:[%s1684 + $0x18] sm:$0xff]
        %v1689 = vld [vmem:[%s1684 + $0x20] sm:$0xff]
        %v1690 = vld [vmem:[%s1684 + $0x28] sm:$0xff]
        %v1691 = vld [vmem:[%s1684 + $0x30] sm:$0xff]
        %v1692 = vld [vmem:[%s1684 + $0x38] sm:$0xff]
        %v1693 = vld [vmem:[%s1684 + $0x40] sm:$0xff]
        %v1694 = vld [vmem:[%s1684 + $0x48] sm:$0xff]
        %v1695 = vld [vmem:[%s1684 + $0x50] sm:$0xff]
        %v1696 = vld [vmem:[%s1684 + $0x58] sm:$0xff]
        %v1697 = vld [vmem:[%s1684 + $0x60] sm:$0xff]
        %v1698 = vld [vmem:[%s1684 + $0x68] sm:$0xff]
        %v1699 = vld [vmem:[%s1684 + $0x70] sm:$0xff]
        %v1700 = vld [vmem:[%s1684 + $0x78] sm:$0xff]
        %v1701 = vld [vmem:[%s1684 + $0x80] sm:$0xff]
        %v1702 = vld [vmem:[%s1684 + $0x88] sm:$0xff]
        %v1703 = vld [vmem:[%s1684 + $0x90] sm:$0xff]
        %v1704 = vld [vmem:[%s1684 + $0x98] sm:$0xff]
        %v1705 = vld [vmem:[%s1684 + $0xa0] sm:$0xff]
        %v1706 = vld [vmem:[%s1684 + $0xa8] sm:$0xff]
        %v1707 = vld [vmem:[%s1684 + $0xb0] sm:$0xff]
        %v1708 = vld [vmem:[%s1684 + $0xb8] sm:$0xff]
        %v1709 = vld [vmem:[%s1684 + $0xc0] sm:$0xff]
        %v1710 = vld [vmem:[%s1684 + $0xc8] sm:$0xff]
        %v1711 = vld [vmem:[%s1684 + $0xd0] sm:$0xff]
        %v1712 = vld [vmem:[%s1684 + $0xd8] sm:$0xff]
        %v1713 = vld [vmem:[%s1684 + $0xe0] sm:$0xff]
        %v1714 = vld [vmem:[%s1684 + $0xe8] sm:$0xff]
        %v1715 = vld [vmem:[%s1684 + $0xf0] sm:$0xff]
        %v1716 = vld [vmem:[%s1684 + $0xf8] sm:$0xff]
        %v1749 = vunpack.c.l.b16 %v1685
        %v1750 = vunpack.c.h.b16 %v1685
        %v1751 = vunpack.c.l.b16 %v1686
        %v1752 = vunpack.c.h.b16 %v1686
        %v1753 = vunpack.c.l.b16 %v1687
        %v1754 = vunpack.c.h.b16 %v1687
        %v1755 = vunpack.c.l.b16 %v1688
        %v1756 = vunpack.c.h.b16 %v1688
        %v1757 = vunpack.c.l.b16 %v1689
        %v1758 = vunpack.c.h.b16 %v1689
        %v1759 = vunpack.c.l.b16 %v1690
        %v1760 = vunpack.c.h.b16 %v1690
        %v1761 = vunpack.c.l.b16 %v1691
        %v1762 = vunpack.c.h.b16 %v1691
        %v1763 = vunpack.c.l.b16 %v1692
        %v1764 = vunpack.c.h.b16 %v1692
        %v1765 = vunpack.c.l.b16 %v1693
        %v1766 = vunpack.c.h.b16 %v1693
        %v1767 = vunpack.c.l.b16 %v1694
        %v1768 = vunpack.c.h.b16 %v1694
        %v1769 = vunpack.c.l.b16 %v1695
        %v1770 = vunpack.c.h.b16 %v1695
        %v1771 = vunpack.c.l.b16 %v1696
        %v1772 = vunpack.c.h.b16 %v1696
        %v1773 = vunpack.c.l.b16 %v1697
        %v1774 = vunpack.c.h.b16 %v1697
        %v1775 = vunpack.c.l.b16 %v1698
        %v1776 = vunpack.c.h.b16 %v1698
        %v1777 = vunpack.c.l.b16 %v1699
        %v1778 = vunpack.c.h.b16 %v1699
        %v1779 = vunpack.c.l.b16 %v1700
        %v1780 = vunpack.c.h.b16 %v1700
        %v1781 = vunpack.c.l.b16 %v1701
        %v1782 = vunpack.c.h.b16 %v1701
        %v1783 = vunpack.c.l.b16 %v1702
        %v1784 = vunpack.c.h.b16 %v1702
        %v1785 = vunpack.c.l.b16 %v1703
        %v1786 = vunpack.c.h.b16 %v1703
        %v1787 = vunpack.c.l.b16 %v1704
        %v1788 = vunpack.c.h.b16 %v1704
        %v1789 = vunpack.c.l.b16 %v1705
        %v1790 = vunpack.c.h.b16 %v1705
        %v1791 = vunpack.c.l.b16 %v1706
        %v1792 = vunpack.c.h.b16 %v1706
        %v1793 = vunpack.c.l.b16 %v1707
        %v1794 = vunpack.c.h.b16 %v1707
        %v1795 = vunpack.c.l.b16 %v1708
        %v1796 = vunpack.c.h.b16 %v1708
        %v1797 = vunpack.c.l.b16 %v1709
        %v1798 = vunpack.c.h.b16 %v1709
        %v1799 = vunpack.c.l.b16 %v1710
        %v1800 = vunpack.c.h.b16 %v1710
        %v1801 = vunpack.c.l.b16 %v1711
        %v1802 = vunpack.c.h.b16 %v1711
        %v1803 = vunpack.c.l.b16 %v1712
        %v1804 = vunpack.c.h.b16 %v1712
        %v1805 = vunpack.c.l.b16 %v1713
        %v1806 = vunpack.c.h.b16 %v1713
        %v1807 = vunpack.c.l.b16 %v1714
        %v1808 = vunpack.c.h.b16 %v1714
        %v1809 = vunpack.c.l.b16 %v1715
        %v1810 = vunpack.c.h.b16 %v1715
        %v1811 = vunpack.c.l.b16 %v1716
        %v1812 = vunpack.c.h.b16 %v1716
        %v1813 = vpack.c.b16 %v1751, %v1749
        %v1814 = vpack.c.b16 %v1752, %v1750
        %v1815 = vpack.c.b16 %v1755, %v1753
        %v1816 = vpack.c.b16 %v1756, %v1754
        %v1817 = vpack.c.b16 %v1759, %v1757
        %v1818 = vpack.c.b16 %v1760, %v1758
        %v1819 = vpack.c.b16 %v1763, %v1761
        %v1820 = vpack.c.b16 %v1764, %v1762
        %v1821 = vpack.c.b16 %v1767, %v1765
        %v1822 = vpack.c.b16 %v1768, %v1766
        %v1823 = vpack.c.b16 %v1771, %v1769
        %v1824 = vpack.c.b16 %v1772, %v1770
        %v1825 = vpack.c.b16 %v1775, %v1773
        %v1826 = vpack.c.b16 %v1776, %v1774
        %v1827 = vpack.c.b16 %v1779, %v1777
        %v1828 = vpack.c.b16 %v1780, %v1778
        %v1829 = vpack.c.b16 %v1783, %v1781
        %v1830 = vpack.c.b16 %v1784, %v1782
        %v1831 = vpack.c.b16 %v1787, %v1785
        %v1832 = vpack.c.b16 %v1788, %v1786
        %v1833 = vpack.c.b16 %v1791, %v1789
        %v1834 = vpack.c.b16 %v1792, %v1790
        %v1835 = vpack.c.b16 %v1795, %v1793
        %v1836 = vpack.c.b16 %v1796, %v1794
        %v1837 = vpack.c.b16 %v1799, %v1797
        %v1838 = vpack.c.b16 %v1800, %v1798
        %v1839 = vpack.c.b16 %v1803, %v1801
        %v1840 = vpack.c.b16 %v1804, %v1802
        %v1841 = vpack.c.b16 %v1807, %v1805
        %v1842 = vpack.c.b16 %v1808, %v1806
        %v1843 = vpack.c.b16 %v1811, %v1809
        %v1844 = vpack.c.b16 %v1812, %v1810
        %1877 = vmatpush.bf16.msra.mxu0 %v1827
        %1878 = vmatpush.bf16.msra.mxu0 %v1825
        %1879 = vmatpush.bf16.msra.mxu0 %v1823
        %1880 = vmatpush.bf16.msra.mxu0 %v1821
        %1881 = vmatpush.bf16.msra.mxu0 %v1819
        %1882 = vmatpush.bf16.msra.mxu0 %v1817
        %1883 = vmatpush.bf16.msra.mxu0 %v1815
        %1884 = vmatpush.bf16.msra.mxu0 %v1813
        %1885 = vmatmul.bf16.gmra.mxu0 %v862
        %v1886 = vpop.f32.mrf.mxu0
        %v1887 = vadd.f32 0.0, %v1886
        %v1888 = vpop.f32.mrf.mxu0
        %v1889 = vadd.f32 0.0, %v1888
        %1890 = vmatmul.bf16.gmra.mxu0 %v864
        %v1891 = vpop.f32.mrf.mxu0
        %v1892 = vadd.f32 0.0, %v1891
        %v1893 = vpop.f32.mrf.mxu0
        %v1894 = vadd.f32 0.0, %v1893
        %1895 = vdwg.mxu0
        %1896 = vmatpush.bf16.msra.mxu0 %v1843
        %1897 = vmatpush.bf16.msra.mxu0 %v1841
        %1898 = vmatpush.bf16.msra.mxu0 %v1839
        %1899 = vmatpush.bf16.msra.mxu0 %v1837
        %1900 = vmatpush.bf16.msra.mxu0 %v1835
        %1901 = vmatpush.bf16.msra.mxu0 %v1833
        %1902 = vmatpush.bf16.msra.mxu0 %v1831
        %1903 = vmatpush.bf16.msra.mxu0 %v1829
        %1904 = vmatmul.bf16.gmra.mxu0 %v863
        %v1905 = vpop.f32.mrf.mxu0
        %v1906 = vadd.f32 %v1887, %v1905
        %v1907 = vpop.f32.mrf.mxu0
        %v1908 = vadd.f32 %v1889, %v1907
        %1909 = vmatmul.bf16.gmra.mxu0 %v865
        %v1910 = vpop.f32.mrf.mxu0
        %v1911 = vadd.f32 %v1892, %v1910
        %v1912 = vpop.f32.mrf.mxu0
        %v1913 = vadd.f32 %v1894, %v1912
        %1914 = vdwg.mxu0
        %1915 = vmatpush.bf16.msra.mxu0 %v1828
        %1916 = vmatpush.bf16.msra.mxu0 %v1826
        %1917 = vmatpush.bf16.msra.mxu0 %v1824
        %1918 = vmatpush.bf16.msra.mxu0 %v1822
        %1919 = vmatpush.bf16.msra.mxu0 %v1820
        %1920 = vmatpush.bf16.msra.mxu0 %v1818
        %1921 = vmatpush.bf16.msra.mxu0 %v1816
        %1922 = vmatpush.bf16.msra.mxu0 %v1814
        %1923 = vmatmul.bf16.gmra.mxu0 %v862
        %v1924 = vpop.f32.mrf.mxu0
        %v1925 = vadd.f32 0.0, %v1924
        %v1926 = vpop.f32.mrf.mxu0
        %v1927 = vadd.f32 0.0, %v1926
        %1928 = vmatmul.bf16.gmra.mxu0 %v864
        %v1929 = vpop.f32.mrf.mxu0
        %v1930 = vadd.f32 0.0, %v1929
        %v1931 = vpop.f32.mrf.mxu0
        %v1932 = vadd.f32 0.0, %v1931
        %1933 = vdwg.mxu0
        %1934 = vmatpush.bf16.msra.mxu0 %v1844
        %1935 = vmatpush.bf16.msra.mxu0 %v1842
        %1936 = vmatpush.bf16.msra.mxu0 %v1840
        %1937 = vmatpush.bf16.msra.mxu0 %v1838
        %1938 = vmatpush.bf16.msra.mxu0 %v1836
        %1939 = vmatpush.bf16.msra.mxu0 %v1834
        %1940 = vmatpush.bf16.msra.mxu0 %v1832
        %1941 = vmatpush.bf16.msra.mxu0 %v1830
        %1942 = vmatmul.bf16.gmra.mxu0 %v863
        %v1943 = vpop.f32.mrf.mxu0
        %v1944 = vadd.f32 %v1925, %v1943
        %v1945 = vpop.f32.mrf.mxu0
        %v1946 = vadd.f32 %v1927, %v1945
        %1947 = vmatmul.bf16.gmra.mxu0 %v865
        %v1948 = vpop.f32.mrf.mxu0
        %v1949 = vadd.f32 %v1930, %v1948
        %v1950 = vpop.f32.mrf.mxu0
        %v1951 = vadd.f32 %v1932, %v1950
        %1952 = vdwg.mxu0
        %v1953 = vpack.c.bf16 %v1944, %v1906
        %v1954 = vpack.c.bf16 %v1946, %v1908
        %v1955 = vpack.c.bf16 %v1949, %v1911
        %v1956 = vpack.c.bf16 %v1951, %v1913
        %s1957 = scalar_lea.vmem [#allocation2], 1024
        %v1958 = vld [vmem:[%s1957] sm:$0xff]
        %v1959 = vld [vmem:[%s1957 + $0x8] sm:$0xff]
        %v1960 = vld [vmem:[%s1957 + $0x10] sm:$0xff]
        %v1961 = vld [vmem:[%s1957 + $0x18] sm:$0xff]
        %v1962 = vld [vmem:[%s1957 + $0x20] sm:$0xff]
        %v1963 = vld [vmem:[%s1957 + $0x28] sm:$0xff]
        %v1964 = vld [vmem:[%s1957 + $0x30] sm:$0xff]
        %v1965 = vld [vmem:[%s1957 + $0x38] sm:$0xff]
        %v1966 = vld [vmem:[%s1957 + $0x40] sm:$0xff]
        %v1967 = vld [vmem:[%s1957 + $0x48] sm:$0xff]
        %v1968 = vld [vmem:[%s1957 + $0x50] sm:$0xff]
        %v1969 = vld [vmem:[%s1957 + $0x58] sm:$0xff]
        %v1970 = vld [vmem:[%s1957 + $0x60] sm:$0xff]
        %v1971 = vld [vmem:[%s1957 + $0x68] sm:$0xff]
        %v1972 = vld [vmem:[%s1957 + $0x70] sm:$0xff]
        %v1973 = vld [vmem:[%s1957 + $0x78] sm:$0xff]
        %v1974 = vld [vmem:[%s1957 + $0x80] sm:$0xff]
        %v1975 = vld [vmem:[%s1957 + $0x88] sm:$0xff]
        %v1976 = vld [vmem:[%s1957 + $0x90] sm:$0xff]
        %v1977 = vld [vmem:[%s1957 + $0x98] sm:$0xff]
        %v1978 = vld [vmem:[%s1957 + $0xa0] sm:$0xff]
        %v1979 = vld [vmem:[%s1957 + $0xa8] sm:$0xff]
        %v1980 = vld [vmem:[%s1957 + $0xb0] sm:$0xff]
        %v1981 = vld [vmem:[%s1957 + $0xb8] sm:$0xff]
        %v1982 = vld [vmem:[%s1957 + $0xc0] sm:$0xff]
        %v1983 = vld [vmem:[%s1957 + $0xc8] sm:$0xff]
        %v1984 = vld [vmem:[%s1957 + $0xd0] sm:$0xff]
        %v1985 = vld [vmem:[%s1957 + $0xd8] sm:$0xff]
        %v1986 = vld [vmem:[%s1957 + $0xe0] sm:$0xff]
        %v1987 = vld [vmem:[%s1957 + $0xe8] sm:$0xff]
        %v1988 = vld [vmem:[%s1957 + $0xf0] sm:$0xff]
        %v1989 = vld [vmem:[%s1957 + $0xf8] sm:$0xff]
        %v2022 = vunpack.c.l.b16 %v1958
        %v2023 = vunpack.c.h.b16 %v1958
        %v2024 = vunpack.c.l.b16 %v1959
        %v2025 = vunpack.c.h.b16 %v1959
        %v2026 = vunpack.c.l.b16 %v1960
        %v2027 = vunpack.c.h.b16 %v1960
        %v2028 = vunpack.c.l.b16 %v1961
        %v2029 = vunpack.c.h.b16 %v1961
        %v2030 = vunpack.c.l.b16 %v1962
        %v2031 = vunpack.c.h.b16 %v1962
        %v2032 = vunpack.c.l.b16 %v1963
        %v2033 = vunpack.c.h.b16 %v1963
        %v2034 = vunpack.c.l.b16 %v1964
        %v2035 = vunpack.c.h.b16 %v1964
        %v2036 = vunpack.c.l.b16 %v1965
        %v2037 = vunpack.c.h.b16 %v1965
        %v2038 = vunpack.c.l.b16 %v1966
        %v2039 = vunpack.c.h.b16 %v1966
        %v2040 = vunpack.c.l.b16 %v1967
        %v2041 = vunpack.c.h.b16 %v1967
        %v2042 = vunpack.c.l.b16 %v1968
        %v2043 = vunpack.c.h.b16 %v1968
        %v2044 = vunpack.c.l.b16 %v1969
        %v2045 = vunpack.c.h.b16 %v1969
        %v2046 = vunpack.c.l.b16 %v1970
        %v2047 = vunpack.c.h.b16 %v1970
        %v2048 = vunpack.c.l.b16 %v1971
        %v2049 = vunpack.c.h.b16 %v1971
        %v2050 = vunpack.c.l.b16 %v1972
        %v2051 = vunpack.c.h.b16 %v1972
        %v2052 = vunpack.c.l.b16 %v1973
        %v2053 = vunpack.c.h.b16 %v1973
        %v2054 = vunpack.c.l.b16 %v1974
        %v2055 = vunpack.c.h.b16 %v1974
        %v2056 = vunpack.c.l.b16 %v1975
        %v2057 = vunpack.c.h.b16 %v1975
        %v2058 = vunpack.c.l.b16 %v1976
        %v2059 = vunpack.c.h.b16 %v1976
        %v2060 = vunpack.c.l.b16 %v1977
        %v2061 = vunpack.c.h.b16 %v1977
        %v2062 = vunpack.c.l.b16 %v1978
        %v2063 = vunpack.c.h.b16 %v1978
        %v2064 = vunpack.c.l.b16 %v1979
        %v2065 = vunpack.c.h.b16 %v1979
        %v2066 = vunpack.c.l.b16 %v1980
        %v2067 = vunpack.c.h.b16 %v1980
        %v2068 = vunpack.c.l.b16 %v1981
        %v2069 = vunpack.c.h.b16 %v1981
        %v2070 = vunpack.c.l.b16 %v1982
        %v2071 = vunpack.c.h.b16 %v1982
        %v2072 = vunpack.c.l.b16 %v1983
        %v2073 = vunpack.c.h.b16 %v1983
        %v2074 = vunpack.c.l.b16 %v1984
        %v2075 = vunpack.c.h.b16 %v1984
        %v2076 = vunpack.c.l.b16 %v1985
        %v2077 = vunpack.c.h.b16 %v1985
        %v2078 = vunpack.c.l.b16 %v1986
        %v2079 = vunpack.c.h.b16 %v1986
        %v2080 = vunpack.c.l.b16 %v1987
        %v2081 = vunpack.c.h.b16 %v1987
        %v2082 = vunpack.c.l.b16 %v1988
        %v2083 = vunpack.c.h.b16 %v1988
        %v2084 = vunpack.c.l.b16 %v1989
        %v2085 = vunpack.c.h.b16 %v1989
        %v2086 = vpack.c.b16 %v2024, %v2022
        %v2087 = vpack.c.b16 %v2025, %v2023
        %v2088 = vpack.c.b16 %v2028, %v2026
        %v2089 = vpack.c.b16 %v2029, %v2027
        %v2090 = vpack.c.b16 %v2032, %v2030
        %v2091 = vpack.c.b16 %v2033, %v2031
        %v2092 = vpack.c.b16 %v2036, %v2034
        %v2093 = vpack.c.b16 %v2037, %v2035
        %v2094 = vpack.c.b16 %v2040, %v2038
        %v2095 = vpack.c.b16 %v2041, %v2039
        %v2096 = vpack.c.b16 %v2044, %v2042
        %v2097 = vpack.c.b16 %v2045, %v2043
        %v2098 = vpack.c.b16 %v2048, %v2046
        %v2099 = vpack.c.b16 %v2049, %v2047
        %v2100 = vpack.c.b16 %v2052, %v2050
        %v2101 = vpack.c.b16 %v2053, %v2051
        %v2102 = vpack.c.b16 %v2056, %v2054
        %v2103 = vpack.c.b16 %v2057, %v2055
        %v2104 = vpack.c.b16 %v2060, %v2058
        %v2105 = vpack.c.b16 %v2061, %v2059
        %v2106 = vpack.c.b16 %v2064, %v2062
        %v2107 = vpack.c.b16 %v2065, %v2063
        %v2108 = vpack.c.b16 %v2068, %v2066
        %v2109 = vpack.c.b16 %v2069, %v2067
        %v2110 = vpack.c.b16 %v2072, %v2070
        %v2111 = vpack.c.b16 %v2073, %v2071
        %v2112 = vpack.c.b16 %v2076, %v2074
        %v2113 = vpack.c.b16 %v2077, %v2075
        %v2114 = vpack.c.b16 %v2080, %v2078
        %v2115 = vpack.c.b16 %v2081, %v2079
        %v2116 = vpack.c.b16 %v2084, %v2082
        %v2117 = vpack.c.b16 %v2085, %v2083
        %2150 = vmatpush.bf16.msra.mxu0 %v2100
        %2151 = vmatpush.bf16.msra.mxu0 %v2098
        %2152 = vmatpush.bf16.msra.mxu0 %v2096
        %2153 = vmatpush.bf16.msra.mxu0 %v2094
        %2154 = vmatpush.bf16.msra.mxu0 %v2092
        %2155 = vmatpush.bf16.msra.mxu0 %v2090
        %2156 = vmatpush.bf16.msra.mxu0 %v2088
        %2157 = vmatpush.bf16.msra.mxu0 %v2086
        %2158 = vmatmul.bf16.gmra.mxu0 %v862
        %v2159 = vpop.f32.mrf.mxu0
        %v2160 = vadd.f32 0.0, %v2159
        %v2161 = vpop.f32.mrf.mxu0
        %v2162 = vadd.f32 0.0, %v2161
        %2163 = vmatmul.bf16.gmra.mxu0 %v864
        %v2164 = vpop.f32.mrf.mxu0
        %v2165 = vadd.f32 0.0, %v2164
        %v2166 = vpop.f32.mrf.mxu0
        %v2167 = vadd.f32 0.0, %v2166
        %2168 = vdwg.mxu0
        %2169 = vmatpush.bf16.msra.mxu0 %v2116
        %2170 = vmatpush.bf16.msra.mxu0 %v2114
        %2171 = vmatpush.bf16.msra.mxu0 %v2112
        %2172 = vmatpush.bf16.msra.mxu0 %v2110
        %2173 = vmatpush.bf16.msra.mxu0 %v2108
        %2174 = vmatpush.bf16.msra.mxu0 %v2106
        %2175 = vmatpush.bf16.msra.mxu0 %v2104
        %2176 = vmatpush.bf16.msra.mxu0 %v2102
        %2177 = vmatmul.bf16.gmra.mxu0 %v863
        %v2178 = vpop.f32.mrf.mxu0
        %v2179 = vadd.f32 %v2160, %v2178
        %v2180 = vpop.f32.mrf.mxu0
        %v2181 = vadd.f32 %v2162, %v2180
        %2182 = vmatmul.bf16.gmra.mxu0 %v865
        %v2183 = vpop.f32.mrf.mxu0
        %v2184 = vadd.f32 %v2165, %v2183
        %v2185 = vpop.f32.mrf.mxu0
        %v2186 = vadd.f32 %v2167, %v2185
        %2187 = vdwg.mxu0
        %2188 = vmatpush.bf16.msra.mxu0 %v2101
        %2189 = vmatpush.bf16.msra.mxu0 %v2099
        %2190 = vmatpush.bf16.msra.mxu0 %v2097
        %2191 = vmatpush.bf16.msra.mxu0 %v2095
        %2192 = vmatpush.bf16.msra.mxu0 %v2093
        %2193 = vmatpush.bf16.msra.mxu0 %v2091
        %2194 = vmatpush.bf16.msra.mxu0 %v2089
        %2195 = vmatpush.bf16.msra.mxu0 %v2087
        %2196 = vmatmul.bf16.gmra.mxu0 %v862
        %v2197 = vpop.f32.mrf.mxu0
        %v2198 = vadd.f32 0.0, %v2197
        %v2199 = vpop.f32.mrf.mxu0
        %v2200 = vadd.f32 0.0, %v2199
        %2201 = vmatmul.bf16.gmra.mxu0 %v864
        %v2202 = vpop.f32.mrf.mxu0
        %v2203 = vadd.f32 0.0, %v2202
        %v2204 = vpop.f32.mrf.mxu0
        %v2205 = vadd.f32 0.0, %v2204
        %2206 = vdwg.mxu0
        %2207 = vmatpush.bf16.msra.mxu0 %v2117
        %2208 = vmatpush.bf16.msra.mxu0 %v2115
        %2209 = vmatpush.bf16.msra.mxu0 %v2113
        %2210 = vmatpush.bf16.msra.mxu0 %v2111
        %2211 = vmatpush.bf16.msra.mxu0 %v2109
        %2212 = vmatpush.bf16.msra.mxu0 %v2107
        %2213 = vmatpush.bf16.msra.mxu0 %v2105
        %2214 = vmatpush.bf16.msra.mxu0 %v2103
        %2215 = vmatmul.bf16.gmra.mxu0 %v863
        %v2216 = vpop.f32.mrf.mxu0
        %v2217 = vadd.f32 %v2198, %v2216
        %v2218 = vpop.f32.mrf.mxu0
        %v2219 = vadd.f32 %v2200, %v2218
        %2220 = vmatmul.bf16.gmra.mxu0 %v865
        %v2221 = vpop.f32.mrf.mxu0
        %v2222 = vadd.f32 %v2203, %v2221
        %v2223 = vpop.f32.mrf.mxu0
        %v2224 = vadd.f32 %v2205, %v2223
        %2225 = vdwg.mxu0
        %v2226 = vpack.c.bf16 %v2217, %v2179
        %v2227 = vpack.c.bf16 %v2219, %v2181
        %v2228 = vpack.c.bf16 %v2222, %v2184
        %v2229 = vpack.c.bf16 %v2224, %v2186
        %s2230 = scalar_lea.vmem [#allocation2], 1280
        %v2231 = vld [vmem:[%s2230] sm:$0xff]
        %v2232 = vld [vmem:[%s2230 + $0x8] sm:$0xff]
        %v2233 = vld [vmem:[%s2230 + $0x10] sm:$0xff]
        %v2234 = vld [vmem:[%s2230 + $0x18] sm:$0xff]
        %v2235 = vld [vmem:[%s2230 + $0x20] sm:$0xff]
        %v2236 = vld [vmem:[%s2230 + $0x28] sm:$0xff]
        %v2237 = vld [vmem:[%s2230 + $0x30] sm:$0xff]
        %v2238 = vld [vmem:[%s2230 + $0x38] sm:$0xff]
        %v2239 = vld [vmem:[%s2230 + $0x40] sm:$0xff]
        %v2240 = vld [vmem:[%s2230 + $0x48] sm:$0xff]
        %v2241 = vld [vmem:[%s2230 + $0x50] sm:$0xff]
        %v2242 = vld [vmem:[%s2230 + $0x58] sm:$0xff]
        %v2243 = vld [vmem:[%s2230 + $0x60] sm:$0xff]
        %v2244 = vld [vmem:[%s2230 + $0x68] sm:$0xff]
        %v2245 = vld [vmem:[%s2230 + $0x70] sm:$0xff]
        %v2246 = vld [vmem:[%s2230 + $0x78] sm:$0xff]
        %v2247 = vld [vmem:[%s2230 + $0x80] sm:$0xff]
        %v2248 = vld [vmem:[%s2230 + $0x88] sm:$0xff]
        %v2249 = vld [vmem:[%s2230 + $0x90] sm:$0xff]
        %v2250 = vld [vmem:[%s2230 + $0x98] sm:$0xff]
        %v2251 = vld [vmem:[%s2230 + $0xa0] sm:$0xff]
        %v2252 = vld [vmem:[%s2230 + $0xa8] sm:$0xff]
        %v2253 = vld [vmem:[%s2230 + $0xb0] sm:$0xff]
        %v2254 = vld [vmem:[%s2230 + $0xb8] sm:$0xff]
        %v2255 = vld [vmem:[%s2230 + $0xc0] sm:$0xff]
        %v2256 = vld [vmem:[%s2230 + $0xc8] sm:$0xff]
        %v2257 = vld [vmem:[%s2230 + $0xd0] sm:$0xff]
        %v2258 = vld [vmem:[%s2230 + $0xd8] sm:$0xff]
        %v2259 = vld [vmem:[%s2230 + $0xe0] sm:$0xff]
        %v2260 = vld [vmem:[%s2230 + $0xe8] sm:$0xff]
        %v2261 = vld [vmem:[%s2230 + $0xf0] sm:$0xff]
        %v2262 = vld [vmem:[%s2230 + $0xf8] sm:$0xff]
        %v2295 = vunpack.c.l.b16 %v2231
        %v2296 = vunpack.c.h.b16 %v2231
        %v2297 = vunpack.c.l.b16 %v2232
        %v2298 = vunpack.c.h.b16 %v2232
        %v2299 = vunpack.c.l.b16 %v2233
        %v2300 = vunpack.c.h.b16 %v2233
        %v2301 = vunpack.c.l.b16 %v2234
        %v2302 = vunpack.c.h.b16 %v2234
        %v2303 = vunpack.c.l.b16 %v2235
        %v2304 = vunpack.c.h.b16 %v2235
        %v2305 = vunpack.c.l.b16 %v2236
        %v2306 = vunpack.c.h.b16 %v2236
        %v2307 = vunpack.c.l.b16 %v2237
        %v2308 = vunpack.c.h.b16 %v2237
        %v2309 = vunpack.c.l.b16 %v2238
        %v2310 = vunpack.c.h.b16 %v2238
        %v2311 = vunpack.c.l.b16 %v2239
        %v2312 = vunpack.c.h.b16 %v2239
        %v2313 = vunpack.c.l.b16 %v2240
        %v2314 = vunpack.c.h.b16 %v2240
        %v2315 = vunpack.c.l.b16 %v2241
        %v2316 = vunpack.c.h.b16 %v2241
        %v2317 = vunpack.c.l.b16 %v2242
        %v2318 = vunpack.c.h.b16 %v2242
        %v2319 = vunpack.c.l.b16 %v2243
        %v2320 = vunpack.c.h.b16 %v2243
        %v2321 = vunpack.c.l.b16 %v2244
        %v2322 = vunpack.c.h.b16 %v2244
        %v2323 = vunpack.c.l.b16 %v2245
        %v2324 = vunpack.c.h.b16 %v2245
        %v2325 = vunpack.c.l.b16 %v2246
        %v2326 = vunpack.c.h.b16 %v2246
        %v2327 = vunpack.c.l.b16 %v2247
        %v2328 = vunpack.c.h.b16 %v2247
        %v2329 = vunpack.c.l.b16 %v2248
        %v2330 = vunpack.c.h.b16 %v2248
        %v2331 = vunpack.c.l.b16 %v2249
        %v2332 = vunpack.c.h.b16 %v2249
        %v2333 = vunpack.c.l.b16 %v2250
        %v2334 = vunpack.c.h.b16 %v2250
        %v2335 = vunpack.c.l.b16 %v2251
        %v2336 = vunpack.c.h.b16 %v2251
        %v2337 = vunpack.c.l.b16 %v2252
        %v2338 = vunpack.c.h.b16 %v2252
        %v2339 = vunpack.c.l.b16 %v2253
        %v2340 = vunpack.c.h.b16 %v2253
        %v2341 = vunpack.c.l.b16 %v2254
        %v2342 = vunpack.c.h.b16 %v2254
        %v2343 = vunpack.c.l.b16 %v2255
        %v2344 = vunpack.c.h.b16 %v2255
        %v2345 = vunpack.c.l.b16 %v2256
        %v2346 = vunpack.c.h.b16 %v2256
        %v2347 = vunpack.c.l.b16 %v2257
        %v2348 = vunpack.c.h.b16 %v2257
        %v2349 = vunpack.c.l.b16 %v2258
        %v2350 = vunpack.c.h.b16 %v2258
        %v2351 = vunpack.c.l.b16 %v2259
        %v2352 = vunpack.c.h.b16 %v2259
        %v2353 = vunpack.c.l.b16 %v2260
        %v2354 = vunpack.c.h.b16 %v2260
        %v2355 = vunpack.c.l.b16 %v2261
        %v2356 = vunpack.c.h.b16 %v2261
        %v2357 = vunpack.c.l.b16 %v2262
        %v2358 = vunpack.c.h.b16 %v2262
        %v2359 = vpack.c.b16 %v2297, %v2295
        %v2360 = vpack.c.b16 %v2298, %v2296
        %v2361 = vpack.c.b16 %v2301, %v2299
        %v2362 = vpack.c.b16 %v2302, %v2300
        %v2363 = vpack.c.b16 %v2305, %v2303
        %v2364 = vpack.c.b16 %v2306, %v2304
        %v2365 = vpack.c.b16 %v2309, %v2307
        %v2366 = vpack.c.b16 %v2310, %v2308
        %v2367 = vpack.c.b16 %v2313, %v2311
        %v2368 = vpack.c.b16 %v2314, %v2312
        %v2369 = vpack.c.b16 %v2317, %v2315
        %v2370 = vpack.c.b16 %v2318, %v2316
        %v2371 = vpack.c.b16 %v2321, %v2319
        %v2372 = vpack.c.b16 %v2322, %v2320
        %v2373 = vpack.c.b16 %v2325, %v2323
        %v2374 = vpack.c.b16 %v2326, %v2324
        %v2375 = vpack.c.b16 %v2329, %v2327
        %v2376 = vpack.c.b16 %v2330, %v2328
        %v2377 = vpack.c.b16 %v2333, %v2331
        %v2378 = vpack.c.b16 %v2334, %v2332
        %v2379 = vpack.c.b16 %v2337, %v2335
        %v2380 = vpack.c.b16 %v2338, %v2336
        %v2381 = vpack.c.b16 %v2341, %v2339
        %v2382 = vpack.c.b16 %v2342, %v2340
        %v2383 = vpack.c.b16 %v2345, %v2343
        %v2384 = vpack.c.b16 %v2346, %v2344
        %v2385 = vpack.c.b16 %v2349, %v2347
        %v2386 = vpack.c.b16 %v2350, %v2348
        %v2387 = vpack.c.b16 %v2353, %v2351
        %v2388 = vpack.c.b16 %v2354, %v2352
        %v2389 = vpack.c.b16 %v2357, %v2355
        %v2390 = vpack.c.b16 %v2358, %v2356
        %2423 = vmatpush.bf16.msra.mxu0 %v2373
        %2424 = vmatpush.bf16.msra.mxu0 %v2371
        %2425 = vmatpush.bf16.msra.mxu0 %v2369
        %2426 = vmatpush.bf16.msra.mxu0 %v2367
        %2427 = vmatpush.bf16.msra.mxu0 %v2365
        %2428 = vmatpush.bf16.msra.mxu0 %v2363
        %2429 = vmatpush.bf16.msra.mxu0 %v2361
        %2430 = vmatpush.bf16.msra.mxu0 %v2359
        %2431 = vmatmul.bf16.gmra.mxu0 %v862
        %v2432 = vpop.f32.mrf.mxu0
        %v2433 = vadd.f32 0.0, %v2432
        %v2434 = vpop.f32.mrf.mxu0
        %v2435 = vadd.f32 0.0, %v2434
        %2436 = vmatmul.bf16.gmra.mxu0 %v864
        %v2437 = vpop.f32.mrf.mxu0
        %v2438 = vadd.f32 0.0, %v2437
        %v2439 = vpop.f32.mrf.mxu0
        %v2440 = vadd.f32 0.0, %v2439
        %2441 = vdwg.mxu0
        %2442 = vmatpush.bf16.msra.mxu0 %v2389
        %2443 = vmatpush.bf16.msra.mxu0 %v2387
        %2444 = vmatpush.bf16.msra.mxu0 %v2385
        %2445 = vmatpush.bf16.msra.mxu0 %v2383
        %2446 = vmatpush.bf16.msra.mxu0 %v2381
        %2447 = vmatpush.bf16.msra.mxu0 %v2379
        %2448 = vmatpush.bf16.msra.mxu0 %v2377
        %2449 = vmatpush.bf16.msra.mxu0 %v2375
        %2450 = vmatmul.bf16.gmra.mxu0 %v863
        %v2451 = vpop.f32.mrf.mxu0
        %v2452 = vadd.f32 %v2433, %v2451
        %v2453 = vpop.f32.mrf.mxu0
        %v2454 = vadd.f32 %v2435, %v2453
        %2455 = vmatmul.bf16.gmra.mxu0 %v865
        %v2456 = vpop.f32.mrf.mxu0
        %v2457 = vadd.f32 %v2438, %v2456
        %v2458 = vpop.f32.mrf.mxu0
        %v2459 = vadd.f32 %v2440, %v2458
        %2460 = vdwg.mxu0
        %2461 = vmatpush.bf16.msra.mxu0 %v2374
        %2462 = vmatpush.bf16.msra.mxu0 %v2372
        %2463 = vmatpush.bf16.msra.mxu0 %v2370
        %2464 = vmatpush.bf16.msra.mxu0 %v2368
        %2465 = vmatpush.bf16.msra.mxu0 %v2366
        %2466 = vmatpush.bf16.msra.mxu0 %v2364
        %2467 = vmatpush.bf16.msra.mxu0 %v2362
        %2468 = vmatpush.bf16.msra.mxu0 %v2360
        %2469 = vmatmul.bf16.gmra.mxu0 %v862
        %v2470 = vpop.f32.mrf.mxu0
        %v2471 = vadd.f32 0.0, %v2470
        %v2472 = vpop.f32.mrf.mxu0
        %v2473 = vadd.f32 0.0, %v2472
        %2474 = vmatmul.bf16.gmra.mxu0 %v864
        %v2475 = vpop.f32.mrf.mxu0
        %v2476 = vadd.f32 0.0, %v2475
        %v2477 = vpop.f32.mrf.mxu0
        %v2478 = vadd.f32 0.0, %v2477
        %2479 = vdwg.mxu0
        %2480 = vmatpush.bf16.msra.mxu0 %v2390
        %2481 = vmatpush.bf16.msra.mxu0 %v2388
        %2482 = vmatpush.bf16.msra.mxu0 %v2386
        %2483 = vmatpush.bf16.msra.mxu0 %v2384
        %2484 = vmatpush.bf16.msra.mxu0 %v2382
        %2485 = vmatpush.bf16.msra.mxu0 %v2380
        %2486 = vmatpush.bf16.msra.mxu0 %v2378
        %2487 = vmatpush.bf16.msra.mxu0 %v2376
        %2488 = vmatmul.bf16.gmra.mxu0 %v863
        %v2489 = vpop.f32.mrf.mxu0
        %v2490 = vadd.f32 %v2471, %v2489
        %v2491 = vpop.f32.mrf.mxu0
        %v2492 = vadd.f32 %v2473, %v2491
        %2493 = vmatmul.bf16.gmra.mxu0 %v865
        %v2494 = vpop.f32.mrf.mxu0
        %v2495 = vadd.f32 %v2476, %v2494
        %v2496 = vpop.f32.mrf.mxu0
        %v2497 = vadd.f32 %v2478, %v2496
        %2498 = vdwg.mxu0
        %v2499 = vpack.c.bf16 %v2490, %v2452
        %v2500 = vpack.c.bf16 %v2492, %v2454
        %v2501 = vpack.c.bf16 %v2495, %v2457
        %v2502 = vpack.c.bf16 %v2497, %v2459
        %s2503 = scalar_lea.vmem [#allocation2], 1536
        %v2504 = vld [vmem:[%s2503] sm:$0xff]
        %v2505 = vld [vmem:[%s2503 + $0x8] sm:$0xff]
        %v2506 = vld [vmem:[%s2503 + $0x10] sm:$0xff]
        %v2507 = vld [vmem:[%s2503 + $0x18] sm:$0xff]
        %v2508 = vld [vmem:[%s2503 + $0x20] sm:$0xff]
        %v2509 = vld [vmem:[%s2503 + $0x28] sm:$0xff]
        %v2510 = vld [vmem:[%s2503 + $0x30] sm:$0xff]
        %v2511 = vld [vmem:[%s2503 + $0x38] sm:$0xff]
        %v2512 = vld [vmem:[%s2503 + $0x40] sm:$0xff]
        %v2513 = vld [vmem:[%s2503 + $0x48] sm:$0xff]
        %v2514 = vld [vmem:[%s2503 + $0x50] sm:$0xff]
        %v2515 = vld [vmem:[%s2503 + $0x58] sm:$0xff]
        %v2516 = vld [vmem:[%s2503 + $0x60] sm:$0xff]
        %v2517 = vld [vmem:[%s2503 + $0x68] sm:$0xff]
        %v2518 = vld [vmem:[%s2503 + $0x70] sm:$0xff]
        %v2519 = vld [vmem:[%s2503 + $0x78] sm:$0xff]
        %v2520 = vld [vmem:[%s2503 + $0x80] sm:$0xff]
        %v2521 = vld [vmem:[%s2503 + $0x88] sm:$0xff]
        %v2522 = vld [vmem:[%s2503 + $0x90] sm:$0xff]
        %v2523 = vld [vmem:[%s2503 + $0x98] sm:$0xff]
        %v2524 = vld [vmem:[%s2503 + $0xa0] sm:$0xff]
        %v2525 = vld [vmem:[%s2503 + $0xa8] sm:$0xff]
        %v2526 = vld [vmem:[%s2503 + $0xb0] sm:$0xff]
        %v2527 = vld [vmem:[%s2503 + $0xb8] sm:$0xff]
        %v2528 = vld [vmem:[%s2503 + $0xc0] sm:$0xff]
        %v2529 = vld [vmem:[%s2503 + $0xc8] sm:$0xff]
        %v2530 = vld [vmem:[%s2503 + $0xd0] sm:$0xff]
        %v2531 = vld [vmem:[%s2503 + $0xd8] sm:$0xff]
        %v2532 = vld [vmem:[%s2503 + $0xe0] sm:$0xff]
        %v2533 = vld [vmem:[%s2503 + $0xe8] sm:$0xff]
        %v2534 = vld [vmem:[%s2503 + $0xf0] sm:$0xff]
        %v2535 = vld [vmem:[%s2503 + $0xf8] sm:$0xff]
        %v2568 = vunpack.c.l.b16 %v2504
        %v2569 = vunpack.c.h.b16 %v2504
        %v2570 = vunpack.c.l.b16 %v2505
        %v2571 = vunpack.c.h.b16 %v2505
        %v2572 = vunpack.c.l.b16 %v2506
        %v2573 = vunpack.c.h.b16 %v2506
        %v2574 = vunpack.c.l.b16 %v2507
        %v2575 = vunpack.c.h.b16 %v2507
        %v2576 = vunpack.c.l.b16 %v2508
        %v2577 = vunpack.c.h.b16 %v2508
        %v2578 = vunpack.c.l.b16 %v2509
        %v2579 = vunpack.c.h.b16 %v2509
        %v2580 = vunpack.c.l.b16 %v2510
        %v2581 = vunpack.c.h.b16 %v2510
        %v2582 = vunpack.c.l.b16 %v2511
        %v2583 = vunpack.c.h.b16 %v2511
        %v2584 = vunpack.c.l.b16 %v2512
        %v2585 = vunpack.c.h.b16 %v2512
        %v2586 = vunpack.c.l.b16 %v2513
        %v2587 = vunpack.c.h.b16 %v2513
        %v2588 = vunpack.c.l.b16 %v2514
        %v2589 = vunpack.c.h.b16 %v2514
        %v2590 = vunpack.c.l.b16 %v2515
        %v2591 = vunpack.c.h.b16 %v2515
        %v2592 = vunpack.c.l.b16 %v2516
        %v2593 = vunpack.c.h.b16 %v2516
        %v2594 = vunpack.c.l.b16 %v2517
        %v2595 = vunpack.c.h.b16 %v2517
        %v2596 = vunpack.c.l.b16 %v2518
        %v2597 = vunpack.c.h.b16 %v2518
        %v2598 = vunpack.c.l.b16 %v2519
        %v2599 = vunpack.c.h.b16 %v2519
        %v2600 = vunpack.c.l.b16 %v2520
        %v2601 = vunpack.c.h.b16 %v2520
        %v2602 = vunpack.c.l.b16 %v2521
        %v2603 = vunpack.c.h.b16 %v2521
        %v2604 = vunpack.c.l.b16 %v2522
        %v2605 = vunpack.c.h.b16 %v2522
        %v2606 = vunpack.c.l.b16 %v2523
        %v2607 = vunpack.c.h.b16 %v2523
        %v2608 = vunpack.c.l.b16 %v2524
        %v2609 = vunpack.c.h.b16 %v2524
        %v2610 = vunpack.c.l.b16 %v2525
        %v2611 = vunpack.c.h.b16 %v2525
        %v2612 = vunpack.c.l.b16 %v2526
        %v2613 = vunpack.c.h.b16 %v2526
        %v2614 = vunpack.c.l.b16 %v2527
        %v2615 = vunpack.c.h.b16 %v2527
        %v2616 = vunpack.c.l.b16 %v2528
        %v2617 = vunpack.c.h.b16 %v2528
        %v2618 = vunpack.c.l.b16 %v2529
        %v2619 = vunpack.c.h.b16 %v2529
        %v2620 = vunpack.c.l.b16 %v2530
        %v2621 = vunpack.c.h.b16 %v2530
        %v2622 = vunpack.c.l.b16 %v2531
        %v2623 = vunpack.c.h.b16 %v2531
        %v2624 = vunpack.c.l.b16 %v2532
        %v2625 = vunpack.c.h.b16 %v2532
        %v2626 = vunpack.c.l.b16 %v2533
        %v2627 = vunpack.c.h.b16 %v2533
        %v2628 = vunpack.c.l.b16 %v2534
        %v2629 = vunpack.c.h.b16 %v2534
        %v2630 = vunpack.c.l.b16 %v2535
        %v2631 = vunpack.c.h.b16 %v2535
        %v2632 = vpack.c.b16 %v2570, %v2568
        %v2633 = vpack.c.b16 %v2571, %v2569
        %v2634 = vpack.c.b16 %v2574, %v2572
        %v2635 = vpack.c.b16 %v2575, %v2573
        %v2636 = vpack.c.b16 %v2578, %v2576
        %v2637 = vpack.c.b16 %v2579, %v2577
        %v2638 = vpack.c.b16 %v2582, %v2580
        %v2639 = vpack.c.b16 %v2583, %v2581
        %v2640 = vpack.c.b16 %v2586, %v2584
        %v2641 = vpack.c.b16 %v2587, %v2585
        %v2642 = vpack.c.b16 %v2590, %v2588
        %v2643 = vpack.c.b16 %v2591, %v2589
        %v2644 = vpack.c.b16 %v2594, %v2592
        %v2645 = vpack.c.b16 %v2595, %v2593
        %v2646 = vpack.c.b16 %v2598, %v2596
        %v2647 = vpack.c.b16 %v2599, %v2597
        %v2648 = vpack.c.b16 %v2602, %v2600
        %v2649 = vpack.c.b16 %v2603, %v2601
        %v2650 = vpack.c.b16 %v2606, %v2604
        %v2651 = vpack.c.b16 %v2607, %v2605
        %v2652 = vpack.c.b16 %v2610, %v2608
        %v2653 = vpack.c.b16 %v2611, %v2609
        %v2654 = vpack.c.b16 %v2614, %v2612
        %v2655 = vpack.c.b16 %v2615, %v2613
        %v2656 = vpack.c.b16 %v2618, %v2616
        %v2657 = vpack.c.b16 %v2619, %v2617
        %v2658 = vpack.c.b16 %v2622, %v2620
        %v2659 = vpack.c.b16 %v2623, %v2621
        %v2660 = vpack.c.b16 %v2626, %v2624
        %v2661 = vpack.c.b16 %v2627, %v2625
        %v2662 = vpack.c.b16 %v2630, %v2628
        %v2663 = vpack.c.b16 %v2631, %v2629
        %2696 = vmatpush.bf16.msra.mxu0 %v2646
        %2697 = vmatpush.bf16.msra.mxu0 %v2644
        %2698 = vmatpush.bf16.msra.mxu0 %v2642
        %2699 = vmatpush.bf16.msra.mxu0 %v2640
        %2700 = vmatpush.bf16.msra.mxu0 %v2638
        %2701 = vmatpush.bf16.msra.mxu0 %v2636
        %2702 = vmatpush.bf16.msra.mxu0 %v2634
        %2703 = vmatpush.bf16.msra.mxu0 %v2632
        %2704 = vmatmul.bf16.gmra.mxu0 %v862
        %v2705 = vpop.f32.mrf.mxu0
        %v2706 = vadd.f32 0.0, %v2705
        %v2707 = vpop.f32.mrf.mxu0
        %v2708 = vadd.f32 0.0, %v2707
        %2709 = vmatmul.bf16.gmra.mxu0 %v864
        %v2710 = vpop.f32.mrf.mxu0
        %v2711 = vadd.f32 0.0, %v2710
        %v2712 = vpop.f32.mrf.mxu0
        %v2713 = vadd.f32 0.0, %v2712
        %2714 = vdwg.mxu0
        %2715 = vmatpush.bf16.msra.mxu0 %v2662
        %2716 = vmatpush.bf16.msra.mxu0 %v2660
        %2717 = vmatpush.bf16.msra.mxu0 %v2658
        %2718 = vmatpush.bf16.msra.mxu0 %v2656
        %2719 = vmatpush.bf16.msra.mxu0 %v2654
        %2720 = vmatpush.bf16.msra.mxu0 %v2652
        %2721 = vmatpush.bf16.msra.mxu0 %v2650
        %2722 = vmatpush.bf16.msra.mxu0 %v2648
        %2723 = vmatmul.bf16.gmra.mxu0 %v863
        %v2724 = vpop.f32.mrf.mxu0
        %v2725 = vadd.f32 %v2706, %v2724
        %v2726 = vpop.f32.mrf.mxu0
        %v2727 = vadd.f32 %v2708, %v2726
        %2728 = vmatmul.bf16.gmra.mxu0 %v865
        %v2729 = vpop.f32.mrf.mxu0
        %v2730 = vadd.f32 %v2711, %v2729
        %v2731 = vpop.f32.mrf.mxu0
        %v2732 = vadd.f32 %v2713, %v2731
        %2733 = vdwg.mxu0
        %2734 = vmatpush.bf16.msra.mxu0 %v2647
        %2735 = vmatpush.bf16.msra.mxu0 %v2645
        %2736 = vmatpush.bf16.msra.mxu0 %v2643
        %2737 = vmatpush.bf16.msra.mxu0 %v2641
        %2738 = vmatpush.bf16.msra.mxu0 %v2639
        %2739 = vmatpush.bf16.msra.mxu0 %v2637
        %2740 = vmatpush.bf16.msra.mxu0 %v2635
        %2741 = vmatpush.bf16.msra.mxu0 %v2633
        %2742 = vmatmul.bf16.gmra.mxu0 %v862
        %v2743 = vpop.f32.mrf.mxu0
        %v2744 = vadd.f32 0.0, %v2743
        %v2745 = vpop.f32.mrf.mxu0
        %v2746 = vadd.f32 0.0, %v2745
        %2747 = vmatmul.bf16.gmra.mxu0 %v864
        %v2748 = vpop.f32.mrf.mxu0
        %v2749 = vadd.f32 0.0, %v2748
        %v2750 = vpop.f32.mrf.mxu0
        %v2751 = vadd.f32 0.0, %v2750
        %2752 = vdwg.mxu0
        %2753 = vmatpush.bf16.msra.mxu0 %v2663
        %2754 = vmatpush.bf16.msra.mxu0 %v2661
        %2755 = vmatpush.bf16.msra.mxu0 %v2659
        %2756 = vmatpush.bf16.msra.mxu0 %v2657
        %2757 = vmatpush.bf16.msra.mxu0 %v2655
        %2758 = vmatpush.bf16.msra.mxu0 %v2653
        %2759 = vmatpush.bf16.msra.mxu0 %v2651
        %2760 = vmatpush.bf16.msra.mxu0 %v2649
        %2761 = vmatmul.bf16.gmra.mxu0 %v863
        %v2762 = vpop.f32.mrf.mxu0
        %v2763 = vadd.f32 %v2744, %v2762
        %v2764 = vpop.f32.mrf.mxu0
        %v2765 = vadd.f32 %v2746, %v2764
        %2766 = vmatmul.bf16.gmra.mxu0 %v865
        %v2767 = vpop.f32.mrf.mxu0
        %v2768 = vadd.f32 %v2749, %v2767
        %v2769 = vpop.f32.mrf.mxu0
        %v2770 = vadd.f32 %v2751, %v2769
        %2771 = vdwg.mxu0
        %v2772 = vpack.c.bf16 %v2763, %v2725
        %v2773 = vpack.c.bf16 %v2765, %v2727
        %v2774 = vpack.c.bf16 %v2768, %v2730
        %v2775 = vpack.c.bf16 %v2770, %v2732
        %s2776 = scalar_lea.vmem [#allocation2], 1792
        %v2777 = vld [vmem:[%s2776] sm:$0xff]
        %v2778 = vld [vmem:[%s2776 + $0x8] sm:$0xff]
        %v2779 = vld [vmem:[%s2776 + $0x10] sm:$0xff]
        %v2780 = vld [vmem:[%s2776 + $0x18] sm:$0xff]
        %v2781 = vld [vmem:[%s2776 + $0x20] sm:$0xff]
        %v2782 = vld [vmem:[%s2776 + $0x28] sm:$0xff]
        %v2783 = vld [vmem:[%s2776 + $0x30] sm:$0xff]
        %v2784 = vld [vmem:[%s2776 + $0x38] sm:$0xff]
        %v2785 = vld [vmem:[%s2776 + $0x40] sm:$0xff]
        %v2786 = vld [vmem:[%s2776 + $0x48] sm:$0xff]
        %v2787 = vld [vmem:[%s2776 + $0x50] sm:$0xff]
        %v2788 = vld [vmem:[%s2776 + $0x58] sm:$0xff]
        %v2789 = vld [vmem:[%s2776 + $0x60] sm:$0xff]
        %v2790 = vld [vmem:[%s2776 + $0x68] sm:$0xff]
        %v2791 = vld [vmem:[%s2776 + $0x70] sm:$0xff]
        %v2792 = vld [vmem:[%s2776 + $0x78] sm:$0xff]
        %v2793 = vld [vmem:[%s2776 + $0x80] sm:$0xff]
        %v2794 = vld [vmem:[%s2776 + $0x88] sm:$0xff]
        %v2795 = vld [vmem:[%s2776 + $0x90] sm:$0xff]
        %v2796 = vld [vmem:[%s2776 + $0x98] sm:$0xff]
        %v2797 = vld [vmem:[%s2776 + $0xa0] sm:$0xff]
        %v2798 = vld [vmem:[%s2776 + $0xa8] sm:$0xff]
        %v2799 = vld [vmem:[%s2776 + $0xb0] sm:$0xff]
        %v2800 = vld [vmem:[%s2776 + $0xb8] sm:$0xff]
        %v2801 = vld [vmem:[%s2776 + $0xc0] sm:$0xff]
        %v2802 = vld [vmem:[%s2776 + $0xc8] sm:$0xff]
        %v2803 = vld [vmem:[%s2776 + $0xd0] sm:$0xff]
        %v2804 = vld [vmem:[%s2776 + $0xd8] sm:$0xff]
        %v2805 = vld [vmem:[%s2776 + $0xe0] sm:$0xff]
        %v2806 = vld [vmem:[%s2776 + $0xe8] sm:$0xff]
        %v2807 = vld [vmem:[%s2776 + $0xf0] sm:$0xff]
        %v2808 = vld [vmem:[%s2776 + $0xf8] sm:$0xff]
        %v2841 = vunpack.c.l.b16 %v2777
        %v2842 = vunpack.c.h.b16 %v2777
        %v2843 = vunpack.c.l.b16 %v2778
        %v2844 = vunpack.c.h.b16 %v2778
        %v2845 = vunpack.c.l.b16 %v2779
        %v2846 = vunpack.c.h.b16 %v2779
        %v2847 = vunpack.c.l.b16 %v2780
        %v2848 = vunpack.c.h.b16 %v2780
        %v2849 = vunpack.c.l.b16 %v2781
        %v2850 = vunpack.c.h.b16 %v2781
        %v2851 = vunpack.c.l.b16 %v2782
        %v2852 = vunpack.c.h.b16 %v2782
        %v2853 = vunpack.c.l.b16 %v2783
        %v2854 = vunpack.c.h.b16 %v2783
        %v2855 = vunpack.c.l.b16 %v2784
        %v2856 = vunpack.c.h.b16 %v2784
        %v2857 = vunpack.c.l.b16 %v2785
        %v2858 = vunpack.c.h.b16 %v2785
        %v2859 = vunpack.c.l.b16 %v2786
        %v2860 = vunpack.c.h.b16 %v2786
        %v2861 = vunpack.c.l.b16 %v2787
        %v2862 = vunpack.c.h.b16 %v2787
        %v2863 = vunpack.c.l.b16 %v2788
        %v2864 = vunpack.c.h.b16 %v2788
        %v2865 = vunpack.c.l.b16 %v2789
        %v2866 = vunpack.c.h.b16 %v2789
        %v2867 = vunpack.c.l.b16 %v2790
        %v2868 = vunpack.c.h.b16 %v2790
        %v2869 = vunpack.c.l.b16 %v2791
        %v2870 = vunpack.c.h.b16 %v2791
        %v2871 = vunpack.c.l.b16 %v2792
        %v2872 = vunpack.c.h.b16 %v2792
        %v2873 = vunpack.c.l.b16 %v2793
        %v2874 = vunpack.c.h.b16 %v2793
        %v2875 = vunpack.c.l.b16 %v2794
        %v2876 = vunpack.c.h.b16 %v2794
        %v2877 = vunpack.c.l.b16 %v2795
        %v2878 = vunpack.c.h.b16 %v2795
        %v2879 = vunpack.c.l.b16 %v2796
        %v2880 = vunpack.c.h.b16 %v2796
        %v2881 = vunpack.c.l.b16 %v2797
        %v2882 = vunpack.c.h.b16 %v2797
        %v2883 = vunpack.c.l.b16 %v2798
        %v2884 = vunpack.c.h.b16 %v2798
        %v2885 = vunpack.c.l.b16 %v2799
        %v2886 = vunpack.c.h.b16 %v2799
        %v2887 = vunpack.c.l.b16 %v2800
        %v2888 = vunpack.c.h.b16 %v2800
        %v2889 = vunpack.c.l.b16 %v2801
        %v2890 = vunpack.c.h.b16 %v2801
        %v2891 = vunpack.c.l.b16 %v2802
        %v2892 = vunpack.c.h.b16 %v2802
        %v2893 = vunpack.c.l.b16 %v2803
        %v2894 = vunpack.c.h.b16 %v2803
        %v2895 = vunpack.c.l.b16 %v2804
        %v2896 = vunpack.c.h.b16 %v2804
        %v2897 = vunpack.c.l.b16 %v2805
        %v2898 = vunpack.c.h.b16 %v2805
        %v2899 = vunpack.c.l.b16 %v2806
        %v2900 = vunpack.c.h.b16 %v2806
        %v2901 = vunpack.c.l.b16 %v2807
        %v2902 = vunpack.c.h.b16 %v2807
        %v2903 = vunpack.c.l.b16 %v2808
        %v2904 = vunpack.c.h.b16 %v2808
        %v2905 = vpack.c.b16 %v2843, %v2841
        %v2906 = vpack.c.b16 %v2844, %v2842
        %v2907 = vpack.c.b16 %v2847, %v2845
        %v2908 = vpack.c.b16 %v2848, %v2846
        %v2909 = vpack.c.b16 %v2851, %v2849
        %v2910 = vpack.c.b16 %v2852, %v2850
        %v2911 = vpack.c.b16 %v2855, %v2853
        %v2912 = vpack.c.b16 %v2856, %v2854
        %v2913 = vpack.c.b16 %v2859, %v2857
        %v2914 = vpack.c.b16 %v2860, %v2858
        %v2915 = vpack.c.b16 %v2863, %v2861
        %v2916 = vpack.c.b16 %v2864, %v2862
        %v2917 = vpack.c.b16 %v2867, %v2865
        %v2918 = vpack.c.b16 %v2868, %v2866
        %v2919 = vpack.c.b16 %v2871, %v2869
        %v2920 = vpack.c.b16 %v2872, %v2870
        %v2921 = vpack.c.b16 %v2875, %v2873
        %v2922 = vpack.c.b16 %v2876, %v2874
        %v2923 = vpack.c.b16 %v2879, %v2877
        %v2924 = vpack.c.b16 %v2880, %v2878
        %v2925 = vpack.c.b16 %v2883, %v2881
        %v2926 = vpack.c.b16 %v2884, %v2882
        %v2927 = vpack.c.b16 %v2887, %v2885
        %v2928 = vpack.c.b16 %v2888, %v2886
        %v2929 = vpack.c.b16 %v2891, %v2889
        %v2930 = vpack.c.b16 %v2892, %v2890
        %v2931 = vpack.c.b16 %v2895, %v2893
        %v2932 = vpack.c.b16 %v2896, %v2894
        %v2933 = vpack.c.b16 %v2899, %v2897
        %v2934 = vpack.c.b16 %v2900, %v2898
        %v2935 = vpack.c.b16 %v2903, %v2901
        %v2936 = vpack.c.b16 %v2904, %v2902
        %2969 = vmatpush.bf16.msra.mxu0 %v2919
        %2970 = vmatpush.bf16.msra.mxu0 %v2917
        %2971 = vmatpush.bf16.msra.mxu0 %v2915
        %2972 = vmatpush.bf16.msra.mxu0 %v2913
        %2973 = vmatpush.bf16.msra.mxu0 %v2911
        %2974 = vmatpush.bf16.msra.mxu0 %v2909
        %2975 = vmatpush.bf16.msra.mxu0 %v2907
        %2976 = vmatpush.bf16.msra.mxu0 %v2905
        %2977 = vmatmul.bf16.gmra.mxu0 %v862
        %v2978 = vpop.f32.mrf.mxu0
        %v2979 = vadd.f32 0.0, %v2978
        %v2980 = vpop.f32.mrf.mxu0
        %v2981 = vadd.f32 0.0, %v2980
        %2982 = vmatmul.bf16.gmra.mxu0 %v864
        %v2983 = vpop.f32.mrf.mxu0
        %v2984 = vadd.f32 0.0, %v2983
        %v2985 = vpop.f32.mrf.mxu0
        %v2986 = vadd.f32 0.0, %v2985
        %2987 = vdwg.mxu0
        %2988 = vmatpush.bf16.msra.mxu0 %v2935
        %2989 = vmatpush.bf16.msra.mxu0 %v2933
        %2990 = vmatpush.bf16.msra.mxu0 %v2931
        %2991 = vmatpush.bf16.msra.mxu0 %v2929
        %2992 = vmatpush.bf16.msra.mxu0 %v2927
        %2993 = vmatpush.bf16.msra.mxu0 %v2925
        %2994 = vmatpush.bf16.msra.mxu0 %v2923
        %2995 = vmatpush.bf16.msra.mxu0 %v2921
        %2996 = vmatmul.bf16.gmra.mxu0 %v863
        %v2997 = vpop.f32.mrf.mxu0
        %v2998 = vadd.f32 %v2979, %v2997
        %v2999 = vpop.f32.mrf.mxu0
        %v3000 = vadd.f32 %v2981, %v2999
        %3001 = vmatmul.bf16.gmra.mxu0 %v865
        %v3002 = vpop.f32.mrf.mxu0
        %v3003 = vadd.f32 %v2984, %v3002
        %v3004 = vpop.f32.mrf.mxu0
        %v3005 = vadd.f32 %v2986, %v3004
        %3006 = vdwg.mxu0
        %3007 = vmatpush.bf16.msra.mxu0 %v2920
        %3008 = vmatpush.bf16.msra.mxu0 %v2918
        %3009 = vmatpush.bf16.msra.mxu0 %v2916
        %3010 = vmatpush.bf16.msra.mxu0 %v2914
        %3011 = vmatpush.bf16.msra.mxu0 %v2912
        %3012 = vmatpush.bf16.msra.mxu0 %v2910
        %3013 = vmatpush.bf16.msra.mxu0 %v2908
        %3014 = vmatpush.bf16.msra.mxu0 %v2906
        %3015 = vmatmul.bf16.gmra.mxu0 %v862
        %v3016 = vpop.f32.mrf.mxu0
        %v3017 = vadd.f32 0.0, %v3016
        %v3018 = vpop.f32.mrf.mxu0
        %v3019 = vadd.f32 0.0, %v3018
        %3020 = vmatmul.bf16.gmra.mxu0 %v864
        %v3021 = vpop.f32.mrf.mxu0
        %v3022 = vadd.f32 0.0, %v3021
        %v3023 = vpop.f32.mrf.mxu0
        %v3024 = vadd.f32 0.0, %v3023
        %3025 = vdwg.mxu0
        %3026 = vmatpush.bf16.msra.mxu0 %v2936
        %3027 = vmatpush.bf16.msra.mxu0 %v2934
        %3028 = vmatpush.bf16.msra.mxu0 %v2932
        %3029 = vmatpush.bf16.msra.mxu0 %v2930
        %3030 = vmatpush.bf16.msra.mxu0 %v2928
        %3031 = vmatpush.bf16.msra.mxu0 %v2926
        %3032 = vmatpush.bf16.msra.mxu0 %v2924
        %3033 = vmatpush.bf16.msra.mxu0 %v2922
        %3034 = vmatmul.bf16.gmra.mxu0 %v863
        %v3035 = vpop.f32.mrf.mxu0
        %v3036 = vadd.f32 %v3017, %v3035
        %v3037 = vpop.f32.mrf.mxu0
        %v3038 = vadd.f32 %v3019, %v3037
        %3039 = vmatmul.bf16.gmra.mxu0 %v865
        %v3040 = vpop.f32.mrf.mxu0
        %v3041 = vadd.f32 %v3022, %v3040
        %v3042 = vpop.f32.mrf.mxu0
        %v3043 = vadd.f32 %v3024, %v3042
        %3044 = vdwg.mxu0
        %v3045 = vpack.c.bf16 %v3036, %v2998
        %v3046 = vpack.c.bf16 %v3038, %v3000
        %v3047 = vpack.c.bf16 %v3041, %v3003
        %v3048 = vpack.c.bf16 %v3043, %v3005
        %s3049 = scalar_lea.vmem [#allocation2], 2048
        %v3050 = vld [vmem:[%s3049] sm:$0xff]
        %v3051 = vld [vmem:[%s3049 + $0x8] sm:$0xff]
        %v3052 = vld [vmem:[%s3049 + $0x10] sm:$0xff]
        %v3053 = vld [vmem:[%s3049 + $0x18] sm:$0xff]
        %v3054 = vld [vmem:[%s3049 + $0x20] sm:$0xff]
        %v3055 = vld [vmem:[%s3049 + $0x28] sm:$0xff]
        %v3056 = vld [vmem:[%s3049 + $0x30] sm:$0xff]
        %v3057 = vld [vmem:[%s3049 + $0x38] sm:$0xff]
        %v3058 = vld [vmem:[%s3049 + $0x40] sm:$0xff]
        %v3059 = vld [vmem:[%s3049 + $0x48] sm:$0xff]
        %v3060 = vld [vmem:[%s3049 + $0x50] sm:$0xff]
        %v3061 = vld [vmem:[%s3049 + $0x58] sm:$0xff]
        %v3062 = vld [vmem:[%s3049 + $0x60] sm:$0xff]
        %v3063 = vld [vmem:[%s3049 + $0x68] sm:$0xff]
        %v3064 = vld [vmem:[%s3049 + $0x70] sm:$0xff]
        %v3065 = vld [vmem:[%s3049 + $0x78] sm:$0xff]
        %v3066 = vld [vmem:[%s3049 + $0x80] sm:$0xff]
        %v3067 = vld [vmem:[%s3049 + $0x88] sm:$0xff]
        %v3068 = vld [vmem:[%s3049 + $0x90] sm:$0xff]
        %v3069 = vld [vmem:[%s3049 + $0x98] sm:$0xff]
        %v3070 = vld [vmem:[%s3049 + $0xa0] sm:$0xff]
        %v3071 = vld [vmem:[%s3049 + $0xa8] sm:$0xff]
        %v3072 = vld [vmem:[%s3049 + $0xb0] sm:$0xff]
        %v3073 = vld [vmem:[%s3049 + $0xb8] sm:$0xff]
        %v3074 = vld [vmem:[%s3049 + $0xc0] sm:$0xff]
        %v3075 = vld [vmem:[%s3049 + $0xc8] sm:$0xff]
        %v3076 = vld [vmem:[%s3049 + $0xd0] sm:$0xff]
        %v3077 = vld [vmem:[%s3049 + $0xd8] sm:$0xff]
        %v3078 = vld [vmem:[%s3049 + $0xe0] sm:$0xff]
        %v3079 = vld [vmem:[%s3049 + $0xe8] sm:$0xff]
        %v3080 = vld [vmem:[%s3049 + $0xf0] sm:$0xff]
        %v3081 = vld [vmem:[%s3049 + $0xf8] sm:$0xff]
        %v3114 = vunpack.c.l.b16 %v3050
        %v3115 = vunpack.c.h.b16 %v3050
        %v3116 = vunpack.c.l.b16 %v3051
        %v3117 = vunpack.c.h.b16 %v3051
        %v3118 = vunpack.c.l.b16 %v3052
        %v3119 = vunpack.c.h.b16 %v3052
        %v3120 = vunpack.c.l.b16 %v3053
        %v3121 = vunpack.c.h.b16 %v3053
        %v3122 = vunpack.c.l.b16 %v3054
        %v3123 = vunpack.c.h.b16 %v3054
        %v3124 = vunpack.c.l.b16 %v3055
        %v3125 = vunpack.c.h.b16 %v3055
        %v3126 = vunpack.c.l.b16 %v3056
        %v3127 = vunpack.c.h.b16 %v3056
        %v3128 = vunpack.c.l.b16 %v3057
        %v3129 = vunpack.c.h.b16 %v3057
        %v3130 = vunpack.c.l.b16 %v3058
        %v3131 = vunpack.c.h.b16 %v3058
        %v3132 = vunpack.c.l.b16 %v3059
        %v3133 = vunpack.c.h.b16 %v3059
        %v3134 = vunpack.c.l.b16 %v3060
        %v3135 = vunpack.c.h.b16 %v3060
        %v3136 = vunpack.c.l.b16 %v3061
        %v3137 = vunpack.c.h.b16 %v3061
        %v3138 = vunpack.c.l.b16 %v3062
        %v3139 = vunpack.c.h.b16 %v3062
        %v3140 = vunpack.c.l.b16 %v3063
        %v3141 = vunpack.c.h.b16 %v3063
        %v3142 = vunpack.c.l.b16 %v3064
        %v3143 = vunpack.c.h.b16 %v3064
        %v3144 = vunpack.c.l.b16 %v3065
        %v3145 = vunpack.c.h.b16 %v3065
        %v3146 = vunpack.c.l.b16 %v3066
        %v3147 = vunpack.c.h.b16 %v3066
        %v3148 = vunpack.c.l.b16 %v3067
        %v3149 = vunpack.c.h.b16 %v3067
        %v3150 = vunpack.c.l.b16 %v3068
        %v3151 = vunpack.c.h.b16 %v3068
        %v3152 = vunpack.c.l.b16 %v3069
        %v3153 = vunpack.c.h.b16 %v3069
        %v3154 = vunpack.c.l.b16 %v3070
        %v3155 = vunpack.c.h.b16 %v3070
        %v3156 = vunpack.c.l.b16 %v3071
        %v3157 = vunpack.c.h.b16 %v3071
        %v3158 = vunpack.c.l.b16 %v3072
        %v3159 = vunpack.c.h.b16 %v3072
        %v3160 = vunpack.c.l.b16 %v3073
        %v3161 = vunpack.c.h.b16 %v3073
        %v3162 = vunpack.c.l.b16 %v3074
        %v3163 = vunpack.c.h.b16 %v3074
        %v3164 = vunpack.c.l.b16 %v3075
        %v3165 = vunpack.c.h.b16 %v3075
        %v3166 = vunpack.c.l.b16 %v3076
        %v3167 = vunpack.c.h.b16 %v3076
        %v3168 = vunpack.c.l.b16 %v3077
        %v3169 = vunpack.c.h.b16 %v3077
        %v3170 = vunpack.c.l.b16 %v3078
        %v3171 = vunpack.c.h.b16 %v3078
        %v3172 = vunpack.c.l.b16 %v3079
        %v3173 = vunpack.c.h.b16 %v3079
        %v3174 = vunpack.c.l.b16 %v3080
        %v3175 = vunpack.c.h.b16 %v3080
        %v3176 = vunpack.c.l.b16 %v3081
        %v3177 = vunpack.c.h.b16 %v3081
        %v3178 = vpack.c.b16 %v3116, %v3114
        %v3179 = vpack.c.b16 %v3117, %v3115
        %v3180 = vpack.c.b16 %v3120, %v3118
        %v3181 = vpack.c.b16 %v3121, %v3119
        %v3182 = vpack.c.b16 %v3124, %v3122
        %v3183 = vpack.c.b16 %v3125, %v3123
        %v3184 = vpack.c.b16 %v3128, %v3126
        %v3185 = vpack.c.b16 %v3129, %v3127
        %v3186 = vpack.c.b16 %v3132, %v3130
        %v3187 = vpack.c.b16 %v3133, %v3131
        %v3188 = vpack.c.b16 %v3136, %v3134
        %v3189 = vpack.c.b16 %v3137, %v3135
        %v3190 = vpack.c.b16 %v3140, %v3138
        %v3191 = vpack.c.b16 %v3141, %v3139
        %v3192 = vpack.c.b16 %v3144, %v3142
        %v3193 = vpack.c.b16 %v3145, %v3143
        %v3194 = vpack.c.b16 %v3148, %v3146
        %v3195 = vpack.c.b16 %v3149, %v3147
        %v3196 = vpack.c.b16 %v3152, %v3150
        %v3197 = vpack.c.b16 %v3153, %v3151
        %v3198 = vpack.c.b16 %v3156, %v3154
        %v3199 = vpack.c.b16 %v3157, %v3155
        %v3200 = vpack.c.b16 %v3160, %v3158
        %v3201 = vpack.c.b16 %v3161, %v3159
        %v3202 = vpack.c.b16 %v3164, %v3162
        %v3203 = vpack.c.b16 %v3165, %v3163
        %v3204 = vpack.c.b16 %v3168, %v3166
        %v3205 = vpack.c.b16 %v3169, %v3167
        %v3206 = vpack.c.b16 %v3172, %v3170
        %v3207 = vpack.c.b16 %v3173, %v3171
        %v3208 = vpack.c.b16 %v3176, %v3174
        %v3209 = vpack.c.b16 %v3177, %v3175
        %3242 = vmatpush.bf16.msra.mxu0 %v3192
        %3243 = vmatpush.bf16.msra.mxu0 %v3190
        %3244 = vmatpush.bf16.msra.mxu0 %v3188
        %3245 = vmatpush.bf16.msra.mxu0 %v3186
        %3246 = vmatpush.bf16.msra.mxu0 %v3184
        %3247 = vmatpush.bf16.msra.mxu0 %v3182
        %3248 = vmatpush.bf16.msra.mxu0 %v3180
        %3249 = vmatpush.bf16.msra.mxu0 %v3178
        %3250 = vmatmul.bf16.gmra.mxu0 %v862
        %v3251 = vpop.f32.mrf.mxu0
        %v3252 = vadd.f32 0.0, %v3251
        %v3253 = vpop.f32.mrf.mxu0
        %v3254 = vadd.f32 0.0, %v3253
        %3255 = vmatmul.bf16.gmra.mxu0 %v864
        %v3256 = vpop.f32.mrf.mxu0
        %v3257 = vadd.f32 0.0, %v3256
        %v3258 = vpop.f32.mrf.mxu0
        %v3259 = vadd.f32 0.0, %v3258
        %3260 = vdwg.mxu0
        %3261 = vmatpush.bf16.msra.mxu0 %v3208
        %3262 = vmatpush.bf16.msra.mxu0 %v3206
        %3263 = vmatpush.bf16.msra.mxu0 %v3204
        %3264 = vmatpush.bf16.msra.mxu0 %v3202
        %3265 = vmatpush.bf16.msra.mxu0 %v3200
        %3266 = vmatpush.bf16.msra.mxu0 %v3198
        %3267 = vmatpush.bf16.msra.mxu0 %v3196
        %3268 = vmatpush.bf16.msra.mxu0 %v3194
        %3269 = vmatmul.bf16.gmra.mxu0 %v863
        %v3270 = vpop.f32.mrf.mxu0
        %v3271 = vadd.f32 %v3252, %v3270
        %v3272 = vpop.f32.mrf.mxu0
        %v3273 = vadd.f32 %v3254, %v3272
        %3274 = vmatmul.bf16.gmra.mxu0 %v865
        %v3275 = vpop.f32.mrf.mxu0
        %v3276 = vadd.f32 %v3257, %v3275
        %v3277 = vpop.f32.mrf.mxu0
        %v3278 = vadd.f32 %v3259, %v3277
        %3279 = vdwg.mxu0
        %3280 = vmatpush.bf16.msra.mxu0 %v3193
        %3281 = vmatpush.bf16.msra.mxu0 %v3191
        %3282 = vmatpush.bf16.msra.mxu0 %v3189
        %3283 = vmatpush.bf16.msra.mxu0 %v3187
        %3284 = vmatpush.bf16.msra.mxu0 %v3185
        %3285 = vmatpush.bf16.msra.mxu0 %v3183
        %3286 = vmatpush.bf16.msra.mxu0 %v3181
        %3287 = vmatpush.bf16.msra.mxu0 %v3179
        %3288 = vmatmul.bf16.gmra.mxu0 %v862
        %v3289 = vpop.f32.mrf.mxu0
        %v3290 = vadd.f32 0.0, %v3289
        %v3291 = vpop.f32.mrf.mxu0
        %v3292 = vadd.f32 0.0, %v3291
        %3293 = vmatmul.bf16.gmra.mxu0 %v864
        %v3294 = vpop.f32.mrf.mxu0
        %v3295 = vadd.f32 0.0, %v3294
        %v3296 = vpop.f32.mrf.mxu0
        %v3297 = vadd.f32 0.0, %v3296
        %3298 = vdwg.mxu0
        %3299 = vmatpush.bf16.msra.mxu0 %v3209
        %3300 = vmatpush.bf16.msra.mxu0 %v3207
        %3301 = vmatpush.bf16.msra.mxu0 %v3205
        %3302 = vmatpush.bf16.msra.mxu0 %v3203
        %3303 = vmatpush.bf16.msra.mxu0 %v3201
        %3304 = vmatpush.bf16.msra.mxu0 %v3199
        %3305 = vmatpush.bf16.msra.mxu0 %v3197
        %3306 = vmatpush.bf16.msra.mxu0 %v3195
        %3307 = vmatmul.bf16.gmra.mxu0 %v863
        %v3308 = vpop.f32.mrf.mxu0
        %v3309 = vadd.f32 %v3290, %v3308
        %v3310 = vpop.f32.mrf.mxu0
        %v3311 = vadd.f32 %v3292, %v3310
        %3312 = vmatmul.bf16.gmra.mxu0 %v865
        %v3313 = vpop.f32.mrf.mxu0
        %v3314 = vadd.f32 %v3295, %v3313
        %v3315 = vpop.f32.mrf.mxu0
        %v3316 = vadd.f32 %v3297, %v3315
        %3317 = vdwg.mxu0
        %v3318 = vpack.c.bf16 %v3309, %v3271
        %v3319 = vpack.c.bf16 %v3311, %v3273
        %v3320 = vpack.c.bf16 %v3314, %v3276
        %v3321 = vpack.c.bf16 %v3316, %v3278
        %v3326 = vunpack.c.l.b16 %v1134
        %v3327 = vunpack.c.h.b16 %v1134
        %v3328 = vunpack.c.l.b16 %v1135
        %v3329 = vunpack.c.h.b16 %v1135
        %v3330 = vunpack.c.l.b16 %v1136
        %v3331 = vunpack.c.h.b16 %v1136
        %v3332 = vunpack.c.l.b16 %v1137
        %v3333 = vunpack.c.h.b16 %v1137
        %v3334 = vpack.c.b16 %v3328, %v3326
        %v3335 = vpack.c.b16 %v3329, %v3327
        %v3336 = vpack.c.b16 %v3332, %v3330
        %v3337 = vpack.c.b16 %v3333, %v3331
        %v3346 = vunpack.c.l.b16 %v1407
        %v3347 = vunpack.c.h.b16 %v1407
        %v3348 = vunpack.c.l.b16 %v1408
        %v3349 = vunpack.c.h.b16 %v1408
        %v3350 = vunpack.c.l.b16 %v1409
        %v3351 = vunpack.c.h.b16 %v1409
        %v3352 = vunpack.c.l.b16 %v1410
        %v3353 = vunpack.c.h.b16 %v1410
        %v3354 = vpack.c.b16 %v3348, %v3346
        %v3355 = vpack.c.b16 %v3349, %v3347
        %v3356 = vpack.c.b16 %v3352, %v3350
        %v3357 = vpack.c.b16 %v3353, %v3351
        %v3366 = vunpack.c.l.b16 %v1680
        %v3367 = vunpack.c.h.b16 %v1680
        %v3368 = vunpack.c.l.b16 %v1681
        %v3369 = vunpack.c.h.b16 %v1681
        %v3370 = vunpack.c.l.b16 %v1682
        %v3371 = vunpack.c.h.b16 %v1682
        %v3372 = vunpack.c.l.b16 %v1683
        %v3373 = vunpack.c.h.b16 %v1683
        %v3374 = vpack.c.b16 %v3368, %v3366
        %v3375 = vpack.c.b16 %v3369, %v3367
        %v3376 = vpack.c.b16 %v3372, %v3370
        %v3377 = vpack.c.b16 %v3373, %v3371
        %v3386 = vunpack.c.l.b16 %v1953
        %v3387 = vunpack.c.h.b16 %v1953
        %v3388 = vunpack.c.l.b16 %v1954
        %v3389 = vunpack.c.h.b16 %v1954
        %v3390 = vunpack.c.l.b16 %v1955
        %v3391 = vunpack.c.h.b16 %v1955
        %v3392 = vunpack.c.l.b16 %v1956
        %v3393 = vunpack.c.h.b16 %v1956
        %v3394 = vpack.c.b16 %v3388, %v3386
        %v3395 = vpack.c.b16 %v3389, %v3387
        %v3396 = vpack.c.b16 %v3392, %v3390
        %v3397 = vpack.c.b16 %v3393, %v3391
        %v3406 = vunpack.c.l.b16 %v2226
        %v3407 = vunpack.c.h.b16 %v2226
        %v3408 = vunpack.c.l.b16 %v2227
        %v3409 = vunpack.c.h.b16 %v2227
        %v3410 = vunpack.c.l.b16 %v2228
        %v3411 = vunpack.c.h.b16 %v2228
        %v3412 = vunpack.c.l.b16 %v2229
        %v3413 = vunpack.c.h.b16 %v2229
        %v3414 = vpack.c.b16 %v3408, %v3406
        %v3415 = vpack.c.b16 %v3409, %v3407
        %v3416 = vpack.c.b16 %v3412, %v3410
        %v3417 = vpack.c.b16 %v3413, %v3411
        %v3426 = vunpack.c.l.b16 %v2499
        %v3427 = vunpack.c.h.b16 %v2499
        %v3428 = vunpack.c.l.b16 %v2500
        %v3429 = vunpack.c.h.b16 %v2500
        %v3430 = vunpack.c.l.b16 %v2501
        %v3431 = vunpack.c.h.b16 %v2501
        %v3432 = vunpack.c.l.b16 %v2502
        %v3433 = vunpack.c.h.b16 %v2502
        %v3434 = vpack.c.b16 %v3428, %v3426
        %v3435 = vpack.c.b16 %v3429, %v3427
        %v3436 = vpack.c.b16 %v3432, %v3430
        %v3437 = vpack.c.b16 %v3433, %v3431
        %v3446 = vunpack.c.l.b16 %v2772
        %v3447 = vunpack.c.h.b16 %v2772
        %v3448 = vunpack.c.l.b16 %v2773
        %v3449 = vunpack.c.h.b16 %v2773
        %v3450 = vunpack.c.l.b16 %v2774
        %v3451 = vunpack.c.h.b16 %v2774
        %v3452 = vunpack.c.l.b16 %v2775
        %v3453 = vunpack.c.h.b16 %v2775
        %v3454 = vpack.c.b16 %v3448, %v3446
        %v3455 = vpack.c.b16 %v3449, %v3447
        %v3456 = vpack.c.b16 %v3452, %v3450
        %v3457 = vpack.c.b16 %v3453, %v3451
        %v3466 = vunpack.c.l.b16 %v3045
        %v3467 = vunpack.c.h.b16 %v3045
        %v3468 = vunpack.c.l.b16 %v3046
        %v3469 = vunpack.c.h.b16 %v3046
        %v3470 = vunpack.c.l.b16 %v3047
        %v3471 = vunpack.c.h.b16 %v3047
        %v3472 = vunpack.c.l.b16 %v3048
        %v3473 = vunpack.c.h.b16 %v3048
        %v3474 = vpack.c.b16 %v3468, %v3466
        %v3475 = vpack.c.b16 %v3469, %v3467
        %v3476 = vpack.c.b16 %v3472, %v3470
        %v3477 = vpack.c.b16 %v3473, %v3471
        %v3486 = vunpack.c.l.b16 %v3318
        %v3487 = vunpack.c.h.b16 %v3318
        %v3488 = vunpack.c.l.b16 %v3319
        %v3489 = vunpack.c.h.b16 %v3319
        %v3490 = vunpack.c.l.b16 %v3320
        %v3491 = vunpack.c.h.b16 %v3320
        %v3492 = vunpack.c.l.b16 %v3321
        %v3493 = vunpack.c.h.b16 %v3321
        %v3494 = vpack.c.b16 %v3488, %v3486
        %v3495 = vpack.c.b16 %v3489, %v3487
        %v3496 = vpack.c.b16 %v3492, %v3490
        %v3497 = vpack.c.b16 %v3493, %v3491
        %v3502 = vld [vmem:[#allocation7] sm:$0xff]
        %v3503 = vld [vmem:[#allocation7 + $0x8] sm:$0xf]
        %v3504 = vld [vmem:[#allocation7 + $0xc] sm:$0xff]
        %v3505 = vld [vmem:[#allocation7 + $0x14] sm:$0xf]
        %v3506 = vld [vmem:[#allocation7 + $0x18] sm:$0xff]
        %v3507 = vld [vmem:[#allocation7 + $0x20] sm:$0xf]
        %v3508 = vld [vmem:[#allocation7 + $0x24] sm:$0xff]
        %v3509 = vld [vmem:[#allocation7 + $0x2c] sm:$0xf]
        %v3510 = vld [vmem:[#allocation9] sm:$0xff]
        %v3511 = vld [vmem:[#allocation9 + $0x8] sm:$0xff]
        %v3512 = vld [vmem:[#allocation9 + $0x10] sm:$0xff]
        %v3513 = vld [vmem:[#allocation9 + $0x18] sm:$0xff]
        %3515 = vset.pattern.permute.xlu0 0
        %3516 = vperm.xlu0 %3515, %v3510
        %v3517 = vpop.permute.xlu0 %3516
        %3520 = vset.pattern.permute.xlu0 0
        %3521 = vperm.xlu0 %3520, %v3511
        %v3522 = vpop.permute.xlu0 %3521
        %3525 = vset.pattern.permute.xlu0 0
        %3526 = vperm.xlu0 %3525, %v3512
        %v3527 = vpop.permute.xlu0 %3526
        %3530 = vset.pattern.permute.xlu0 0
        %3531 = vperm.xlu0 %3530, %v3513
        %v3532 = vpop.permute.xlu0 %3531
        %v3542 = vunpack.c.l.b16 %v3502
        %v3543 = vunpack.c.h.b16 %v3502
        %v3544 = vunpack.c.l.b16 %v3503
        %v3545 = vunpack.c.l.b16 %v3504
        %v3546 = vunpack.c.h.b16 %v3504
        %v3547 = vunpack.c.l.b16 %v3505
        %v3548 = vunpack.c.l.b16 %v3506
        %v3549 = vunpack.c.h.b16 %v3506
        %v3550 = vunpack.c.l.b16 %v3507
        %v3551 = vunpack.c.l.b16 %v3508
        %v3552 = vunpack.c.h.b16 %v3508
        %v3553 = vunpack.c.l.b16 %v3509
        %v3554 = vpack.c.b16 %v3545, %v3542
        %v3555 = vpack.c.b16 %v3546, %v3543
        %v3556 = vpack.c.b16 %v3547, %v3544
        %v3557 = vpack.c.b16 %v3551, %v3548
        %v3558 = vpack.c.b16 %v3552, %v3549
        %v3559 = vpack.c.b16 %v3553, %v3550
        %vm3564 = vcmask 261120
        %v3566 = vsel %vm3564, %v3556, 0
        %v3569 = vsel %vm3564, %v3559, 0
        %3571 = vmatpush.bf16.msra.mxu0 %v3396
        %3572 = vmatpush.bf16.msra.mxu0 %v3394
        %3573 = vmatpush.bf16.msra.mxu0 %v3376
        %3574 = vmatpush.bf16.msra.mxu0 %v3374
        %3575 = vmatpush.bf16.msra.mxu0 %v3356
        %3576 = vmatpush.bf16.msra.mxu0 %v3354
        %3577 = vmatpush.bf16.msra.mxu0 %v3336
        %3578 = vmatpush.bf16.msra.mxu0 %v3334
        %3579 = vmatmul.bf16.gmra.mxu0 %v3554
        %v3580 = vpop.f32.mrf.mxu0
        %v3581 = vadd.f32 %v3517, %v3580
        %v3582 = vpop.f32.mrf.mxu0
        %v3583 = vadd.f32 %v3522, %v3582
        %3584 = vmatmul.bf16.gmra.mxu0 %v3557
        %v3585 = vpop.f32.mrf.mxu0
        %v3586 = vadd.f32 %v3527, %v3585
        %v3587 = vpop.f32.mrf.mxu0
        %v3588 = vadd.f32 %v3532, %v3587
        %3589 = vdwg.mxu0
        %3590 = vmatpush.bf16.msra.mxu0 %v3476
        %3591 = vmatpush.bf16.msra.mxu0 %v3474
        %3592 = vmatpush.bf16.msra.mxu0 %v3456
        %3593 = vmatpush.bf16.msra.mxu0 %v3454
        %3594 = vmatpush.bf16.msra.mxu0 %v3436
        %3595 = vmatpush.bf16.msra.mxu0 %v3434
        %3596 = vmatpush.bf16.msra.mxu0 %v3416
        %3597 = vmatpush.bf16.msra.mxu0 %v3414
        %3598 = vmatmul.bf16.gmra.mxu0 %v3555
        %v3599 = vpop.f32.mrf.mxu0
        %v3600 = vadd.f32 %v3581, %v3599
        %v3601 = vpop.f32.mrf.mxu0
        %v3602 = vadd.f32 %v3583, %v3601
        %3603 = vmatmul.bf16.gmra.mxu0 %v3558
        %v3604 = vpop.f32.mrf.mxu0
        %v3605 = vadd.f32 %v3586, %v3604
        %v3606 = vpop.f32.mrf.mxu0
        %v3607 = vadd.f32 %v3588, %v3606
        %3608 = vdwg.mxu0
        %3609 = vmatpush.bf16.msra.mxu0 0
        %3610 = vmatpush.bf16.msra.mxu0 0
        %3611 = vmatpush.bf16.msra.mxu0 0
        %3612 = vmatpush.bf16.msra.mxu0 0
        %3613 = vmatpush.bf16.msra.mxu0 0
        %3614 = vmatpush.bf16.msra.mxu0 0
        %3615 = vmatpush.bf16.msra.mxu0 %v3496
        %3616 = vmatpush.bf16.msra.mxu0 %v3494
        %3617 = vmatmul.bf16.gmra.mxu0 %v3566
        %v3618 = vpop.f32.mrf.mxu0
        %v3619 = vadd.f32 %v3600, %v3618
        %v3620 = vpop.f32.mrf.mxu0
        %v3621 = vadd.f32 %v3602, %v3620
        %3622 = vmatmul.bf16.gmra.mxu0 %v3569
        %v3623 = vpop.f32.mrf.mxu0
        %v3624 = vadd.f32 %v3605, %v3623
        %v3625 = vpop.f32.mrf.mxu0
        %v3626 = vadd.f32 %v3607, %v3625
        %3627 = vdwg.mxu0
        %3628 = vmatpush.bf16.msra.mxu0 %v3397
        %3629 = vmatpush.bf16.msra.mxu0 %v3395
        %3630 = vmatpush.bf16.msra.mxu0 %v3377
        %3631 = vmatpush.bf16.msra.mxu0 %v3375
        %3632 = vmatpush.bf16.msra.mxu0 %v3357
        %3633 = vmatpush.bf16.msra.mxu0 %v3355
        %3634 = vmatpush.bf16.msra.mxu0 %v3337
        %3635 = vmatpush.bf16.msra.mxu0 %v3335
        %3636 = vmatmul.bf16.gmra.mxu0 %v3554
        %v3637 = vpop.f32.mrf.mxu0
        %v3638 = vadd.f32 %v3517, %v3637
        %v3639 = vpop.f32.mrf.mxu0
        %v3640 = vadd.f32 %v3522, %v3639
        %3641 = vmatmul.bf16.gmra.mxu0 %v3557
        %v3642 = vpop.f32.mrf.mxu0
        %v3643 = vadd.f32 %v3527, %v3642
        %v3644 = vpop.f32.mrf.mxu0
        %v3645 = vadd.f32 %v3532, %v3644
        %3646 = vdwg.mxu0
        %3647 = vmatpush.bf16.msra.mxu0 %v3477
        %3648 = vmatpush.bf16.msra.mxu0 %v3475
        %3649 = vmatpush.bf16.msra.mxu0 %v3457
        %3650 = vmatpush.bf16.msra.mxu0 %v3455
        %3651 = vmatpush.bf16.msra.mxu0 %v3437
        %3652 = vmatpush.bf16.msra.mxu0 %v3435
        %3653 = vmatpush.bf16.msra.mxu0 %v3417
        %3654 = vmatpush.bf16.msra.mxu0 %v3415
        %3655 = vmatmul.bf16.gmra.mxu0 %v3555
        %v3656 = vpop.f32.mrf.mxu0
        %v3657 = vadd.f32 %v3638, %v3656
        %v3658 = vpop.f32.mrf.mxu0
        %v3659 = vadd.f32 %v3640, %v3658
        %3660 = vmatmul.bf16.gmra.mxu0 %v3558
        %v3661 = vpop.f32.mrf.mxu0
        %v3662 = vadd.f32 %v3643, %v3661
        %v3663 = vpop.f32.mrf.mxu0
        %v3664 = vadd.f32 %v3645, %v3663
        %3665 = vdwg.mxu0
        %3666 = vmatpush.bf16.msra.mxu0 0
        %3667 = vmatpush.bf16.msra.mxu0 0
        %3668 = vmatpush.bf16.msra.mxu0 0
        %3669 = vmatpush.bf16.msra.mxu0 0
        %3670 = vmatpush.bf16.msra.mxu0 0
        %3671 = vmatpush.bf16.msra.mxu0 0
        %3672 = vmatpush.bf16.msra.mxu0 %v3497
        %3673 = vmatpush.bf16.msra.mxu0 %v3495
        %3674 = vmatmul.bf16.gmra.mxu0 %v3566
        %v3675 = vpop.f32.mrf.mxu0
        %v3676 = vadd.f32 %v3657, %v3675
        %v3677 = vpop.f32.mrf.mxu0
        %v3678 = vadd.f32 %v3659, %v3677
        %3679 = vmatmul.bf16.gmra.mxu0 %v3569
        %v3680 = vpop.f32.mrf.mxu0
        %v3681 = vadd.f32 %v3662, %v3680
        %v3682 = vpop.f32.mrf.mxu0
        %v3683 = vadd.f32 %v3664, %v3682
        %3684 = vdwg.mxu0
        %v3685 = vld [vmem:[#allocation4] sm:$0xf]
        %v3686 = vld [vmem:[#allocation4 + $0x4] sm:$0xf]
        %v3687 = vld [vmem:[#allocation4 + $0x8] sm:$0xf]
        %v3688 = vld [vmem:[#allocation4 + $0xc] sm:$0xf]
        %v3689 = vld [vmem:[#allocation4 + $0x10] sm:$0xf]
        %v3690 = vld [vmem:[#allocation4 + $0x14] sm:$0xf]
        %v3691 = vld [vmem:[#allocation4 + $0x18] sm:$0xf]
        %v3692 = vld [vmem:[#allocation4 + $0x1c] sm:$0xf]
        %v3693 = vld [vmem:[#allocation4 + $0x20] sm:$0xf]
        %v3694 = vld [vmem:[#allocation4 + $0x24] sm:$0xf]
        %v3695 = vld [vmem:[#allocation4 + $0x28] sm:$0xf]
        %v3696 = vld [vmem:[#allocation4 + $0x2c] sm:$0xf]
        %v3697 = vld [vmem:[#allocation4 + $0x30] sm:$0xf]
        %v3698 = vld [vmem:[#allocation4 + $0x34] sm:$0xf]
        %v3699 = vld [vmem:[#allocation4 + $0x38] sm:$0xf]
        %v3700 = vld [vmem:[#allocation4 + $0x3c] sm:$0xf]
        %v3701 = vld [vmem:[#allocation4 + $0x40] sm:$0xf]
        %v3702 = vld [vmem:[#allocation4 + $0x44] sm:$0xf]
        %v3703 = vld [vmem:[#allocation4 + $0x48] sm:$0xf]
        %v3704 = vld [vmem:[#allocation4 + $0x4c] sm:$0xf]
        %v3705 = vld [vmem:[#allocation4 + $0x50] sm:$0xf]
        %v3706 = vld [vmem:[#allocation4 + $0x54] sm:$0xf]
        %v3707 = vld [vmem:[#allocation4 + $0x58] sm:$0xf]
        %v3708 = vld [vmem:[#allocation4 + $0x5c] sm:$0xf]
        %v3709 = vld [vmem:[#allocation4 + $0x60] sm:$0xf]
        %v3710 = vld [vmem:[#allocation4 + $0x64] sm:$0xf]
        %v3711 = vld [vmem:[#allocation4 + $0x68] sm:$0xf]
        %v3712 = vld [vmem:[#allocation4 + $0x6c] sm:$0xf]
        %v3713 = vld [vmem:[#allocation4 + $0x70] sm:$0xf]
        %v3714 = vld [vmem:[#allocation4 + $0x74] sm:$0xf]
        %v3715 = vld [vmem:[#allocation4 + $0x78] sm:$0xf]
        %v3716 = vld [vmem:[#allocation4 + $0x7c] sm:$0xf]
        %v3749 = vunpack.c.l.b16 %v3685
        %v3750 = vunpack.c.l.b16 %v3686
        %v3751 = vunpack.c.l.b16 %v3687
        %v3752 = vunpack.c.l.b16 %v3688
        %v3753 = vunpack.c.l.b16 %v3689
        %v3754 = vunpack.c.l.b16 %v3690
        %v3755 = vunpack.c.l.b16 %v3691
        %v3756 = vunpack.c.l.b16 %v3692
        %v3757 = vunpack.c.l.b16 %v3693
        %v3758 = vunpack.c.l.b16 %v3694
        %v3759 = vunpack.c.l.b16 %v3695
        %v3760 = vunpack.c.l.b16 %v3696
        %v3761 = vunpack.c.l.b16 %v3697
        %v3762 = vunpack.c.l.b16 %v3698
        %v3763 = vunpack.c.l.b16 %v3699
        %v3764 = vunpack.c.l.b16 %v3700
        %v3765 = vunpack.c.l.b16 %v3701
        %v3766 = vunpack.c.l.b16 %v3702
        %v3767 = vunpack.c.l.b16 %v3703
        %v3768 = vunpack.c.l.b16 %v3704
        %v3769 = vunpack.c.l.b16 %v3705
        %v3770 = vunpack.c.l.b16 %v3706
        %v3771 = vunpack.c.l.b16 %v3707
        %v3772 = vunpack.c.l.b16 %v3708
        %v3773 = vunpack.c.l.b16 %v3709
        %v3774 = vunpack.c.l.b16 %v3710
        %v3775 = vunpack.c.l.b16 %v3711
        %v3776 = vunpack.c.l.b16 %v3712
        %v3777 = vunpack.c.l.b16 %v3713
        %v3778 = vunpack.c.l.b16 %v3714
        %v3779 = vunpack.c.l.b16 %v3715
        %v3780 = vunpack.c.l.b16 %v3716
        %v3781 = vpack.c.b16 %v3750, %v3749
        %v3782 = vpack.c.b16 %v3752, %v3751
        %v3783 = vpack.c.b16 %v3754, %v3753
        %v3784 = vpack.c.b16 %v3756, %v3755
        %v3785 = vpack.c.b16 %v3758, %v3757
        %v3786 = vpack.c.b16 %v3760, %v3759
        %v3787 = vpack.c.b16 %v3762, %v3761
        %v3788 = vpack.c.b16 %v3764, %v3763
        %v3789 = vpack.c.b16 %v3766, %v3765
        %v3790 = vpack.c.b16 %v3768, %v3767
        %v3791 = vpack.c.b16 %v3770, %v3769
        %v3792 = vpack.c.b16 %v3772, %v3771
        %v3793 = vpack.c.b16 %v3774, %v3773
        %v3794 = vpack.c.b16 %v3776, %v3775
        %v3795 = vpack.c.b16 %v3778, %v3777
        %v3796 = vpack.c.b16 %v3780, %v3779
        %3813 = vmatpush.bf16.msra.mxu0 %v3788
        %3814 = vmatpush.bf16.msra.mxu0 %v3787
        %3815 = vmatpush.bf16.msra.mxu0 %v3786
        %3816 = vmatpush.bf16.msra.mxu0 %v3785
        %3817 = vmatpush.bf16.msra.mxu0 %v3784
        %3818 = vmatpush.bf16.msra.mxu0 %v3783
        %3819 = vmatpush.bf16.msra.mxu0 %v3782
        %3820 = vmatpush.bf16.msra.mxu0 %v3781
        %3821 = vmatmul.bf16.gmra.mxu0 %v862
        %v3822 = vpop.f32.mrf.mxu0
        %v3823 = vadd.f32 0.0, %v3822
        %v3824 = vpop.f32.mrf.mxu0
        %v3825 = vadd.f32 0.0, %v3824
        %3826 = vdwg.mxu0
        %3827 = vmatpush.bf16.msra.mxu0 %v3796
        %3828 = vmatpush.bf16.msra.mxu0 %v3795
        %3829 = vmatpush.bf16.msra.mxu0 %v3794
        %3830 = vmatpush.bf16.msra.mxu0 %v3793
        %3831 = vmatpush.bf16.msra.mxu0 %v3792
        %3832 = vmatpush.bf16.msra.mxu0 %v3791
        %3833 = vmatpush.bf16.msra.mxu0 %v3790
        %3834 = vmatpush.bf16.msra.mxu0 %v3789
        %3835 = vmatmul.bf16.gmra.mxu0 %v863
        %v3836 = vpop.f32.mrf.mxu0
        %v3837 = vadd.f32 %v3823, %v3836
        %v3838 = vpop.f32.mrf.mxu0
        %v3839 = vadd.f32 %v3825, %v3838
        %3840 = vdwg.mxu0
        %v3841 = vpack.c.bf16 %v3837, %v3837
        %v3842 = vpack.c.bf16 %v3839, %v3839
        %s3843 = scalar_lea.vmem [#allocation4], 128
        %v3844 = vld [vmem:[%s3843] sm:$0xf]
        %v3845 = vld [vmem:[%s3843 + $0x4] sm:$0xf]
        %v3846 = vld [vmem:[%s3843 + $0x8] sm:$0xf]
        %v3847 = vld [vmem:[%s3843 + $0xc] sm:$0xf]
        %v3848 = vld [vmem:[%s3843 + $0x10] sm:$0xf]
        %v3849 = vld [vmem:[%s3843 + $0x14] sm:$0xf]
        %v3850 = vld [vmem:[%s3843 + $0x18] sm:$0xf]
        %v3851 = vld [vmem:[%s3843 + $0x1c] sm:$0xf]
        %v3852 = vld [vmem:[%s3843 + $0x20] sm:$0xf]
        %v3853 = vld [vmem:[%s3843 + $0x24] sm:$0xf]
        %v3854 = vld [vmem:[%s3843 + $0x28] sm:$0xf]
        %v3855 = vld [vmem:[%s3843 + $0x2c] sm:$0xf]
        %v3856 = vld [vmem:[%s3843 + $0x30] sm:$0xf]
        %v3857 = vld [vmem:[%s3843 + $0x34] sm:$0xf]
        %v3858 = vld [vmem:[%s3843 + $0x38] sm:$0xf]
        %v3859 = vld [vmem:[%s3843 + $0x3c] sm:$0xf]
        %v3860 = vld [vmem:[%s3843 + $0x40] sm:$0xf]
        %v3861 = vld [vmem:[%s3843 + $0x44] sm:$0xf]
        %v3862 = vld [vmem:[%s3843 + $0x48] sm:$0xf]
        %v3863 = vld [vmem:[%s3843 + $0x4c] sm:$0xf]
        %v3864 = vld [vmem:[%s3843 + $0x50] sm:$0xf]
        %v3865 = vld [vmem:[%s3843 + $0x54] sm:$0xf]
        %v3866 = vld [vmem:[%s3843 + $0x58] sm:$0xf]
        %v3867 = vld [vmem:[%s3843 + $0x5c] sm:$0xf]
        %v3868 = vld [vmem:[%s3843 + $0x60] sm:$0xf]
        %v3869 = vld [vmem:[%s3843 + $0x64] sm:$0xf]
        %v3870 = vld [vmem:[%s3843 + $0x68] sm:$0xf]
        %v3871 = vld [vmem:[%s3843 + $0x6c] sm:$0xf]
        %v3872 = vld [vmem:[%s3843 + $0x70] sm:$0xf]
        %v3873 = vld [vmem:[%s3843 + $0x74] sm:$0xf]
        %v3874 = vld [vmem:[%s3843 + $0x78] sm:$0xf]
        %v3875 = vld [vmem:[%s3843 + $0x7c] sm:$0xf]
        %v3908 = vunpack.c.l.b16 %v3844
        %v3909 = vunpack.c.l.b16 %v3845
        %v3910 = vunpack.c.l.b16 %v3846
        %v3911 = vunpack.c.l.b16 %v3847
        %v3912 = vunpack.c.l.b16 %v3848
        %v3913 = vunpack.c.l.b16 %v3849
        %v3914 = vunpack.c.l.b16 %v3850
        %v3915 = vunpack.c.l.b16 %v3851
        %v3916 = vunpack.c.l.b16 %v3852
        %v3917 = vunpack.c.l.b16 %v3853
        %v3918 = vunpack.c.l.b16 %v3854
        %v3919 = vunpack.c.l.b16 %v3855
        %v3920 = vunpack.c.l.b16 %v3856
        %v3921 = vunpack.c.l.b16 %v3857
        %v3922 = vunpack.c.l.b16 %v3858
        %v3923 = vunpack.c.l.b16 %v3859
        %v3924 = vunpack.c.l.b16 %v3860
        %v3925 = vunpack.c.l.b16 %v3861
        %v3926 = vunpack.c.l.b16 %v3862
        %v3927 = vunpack.c.l.b16 %v3863
        %v3928 = vunpack.c.l.b16 %v3864
        %v3929 = vunpack.c.l.b16 %v3865
        %v3930 = vunpack.c.l.b16 %v3866
        %v3931 = vunpack.c.l.b16 %v3867
        %v3932 = vunpack.c.l.b16 %v3868
        %v3933 = vunpack.c.l.b16 %v3869
        %v3934 = vunpack.c.l.b16 %v3870
        %v3935 = vunpack.c.l.b16 %v3871
        %v3936 = vunpack.c.l.b16 %v3872
        %v3937 = vunpack.c.l.b16 %v3873
        %v3938 = vunpack.c.l.b16 %v3874
        %v3939 = vunpack.c.l.b16 %v3875
        %v3940 = vpack.c.b16 %v3909, %v3908
        %v3941 = vpack.c.b16 %v3911, %v3910
        %v3942 = vpack.c.b16 %v3913, %v3912
        %v3943 = vpack.c.b16 %v3915, %v3914
        %v3944 = vpack.c.b16 %v3917, %v3916
        %v3945 = vpack.c.b16 %v3919, %v3918
        %v3946 = vpack.c.b16 %v3921, %v3920
        %v3947 = vpack.c.b16 %v3923, %v3922
        %v3948 = vpack.c.b16 %v3925, %v3924
        %v3949 = vpack.c.b16 %v3927, %v3926
        %v3950 = vpack.c.b16 %v3929, %v3928
        %v3951 = vpack.c.b16 %v3931, %v3930
        %v3952 = vpack.c.b16 %v3933, %v3932
        %v3953 = vpack.c.b16 %v3935, %v3934
        %v3954 = vpack.c.b16 %v3937, %v3936
        %v3955 = vpack.c.b16 %v3939, %v3938
        %3972 = vmatpush.bf16.msra.mxu0 %v3947
        %3973 = vmatpush.bf16.msra.mxu0 %v3946
        %3974 = vmatpush.bf16.msra.mxu0 %v3945
        %3975 = vmatpush.bf16.msra.mxu0 %v3944
        %3976 = vmatpush.bf16.msra.mxu0 %v3943
        %3977 = vmatpush.bf16.msra.mxu0 %v3942
        %3978 = vmatpush.bf16.msra.mxu0 %v3941
        %3979 = vmatpush.bf16.msra.mxu0 %v3940
        %3980 = vmatmul.bf16.gmra.mxu0 %v862
        %v3981 = vpop.f32.mrf.mxu0
        %v3982 = vadd.f32 0.0, %v3981
        %v3983 = vpop.f32.mrf.mxu0
        %v3984 = vadd.f32 0.0, %v3983
        %3985 = vdwg.mxu0
        %3986 = vmatpush.bf16.msra.mxu0 %v3955
        %3987 = vmatpush.bf16.msra.mxu0 %v3954
        %3988 = vmatpush.bf16.msra.mxu0 %v3953
        %3989 = vmatpush.bf16.msra.mxu0 %v3952
        %3990 = vmatpush.bf16.msra.mxu0 %v3951
        %3991 = vmatpush.bf16.msra.mxu0 %v3950
        %3992 = vmatpush.bf16.msra.mxu0 %v3949
        %3993 = vmatpush.bf16.msra.mxu0 %v3948
        %3994 = vmatmul.bf16.gmra.mxu0 %v863
        %v3995 = vpop.f32.mrf.mxu0
        %v3996 = vadd.f32 %v3982, %v3995
        %v3997 = vpop.f32.mrf.mxu0
        %v3998 = vadd.f32 %v3984, %v3997
        %3999 = vdwg.mxu0
        %v4000 = vpack.c.bf16 %v3996, %v3996
        %v4001 = vpack.c.bf16 %v3998, %v3998
        %s4002 = scalar_lea.vmem [#allocation4], 256
        %v4003 = vld [vmem:[%s4002] sm:$0xf]
        %v4004 = vld [vmem:[%s4002 + $0x4] sm:$0xf]
        %v4005 = vld [vmem:[%s4002 + $0x8] sm:$0xf]
        %v4006 = vld [vmem:[%s4002 + $0xc] sm:$0xf]
        %v4007 = vld [vmem:[%s4002 + $0x10] sm:$0xf]
        %v4008 = vld [vmem:[%s4002 + $0x14] sm:$0xf]
        %v4009 = vld [vmem:[%s4002 + $0x18] sm:$0xf]
        %v4010 = vld [vmem:[%s4002 + $0x1c] sm:$0xf]
        %v4011 = vld [vmem:[%s4002 + $0x20] sm:$0xf]
        %v4012 = vld [vmem:[%s4002 + $0x24] sm:$0xf]
        %v4013 = vld [vmem:[%s4002 + $0x28] sm:$0xf]
        %v4014 = vld [vmem:[%s4002 + $0x2c] sm:$0xf]
        %v4015 = vld [vmem:[%s4002 + $0x30] sm:$0xf]
        %v4016 = vld [vmem:[%s4002 + $0x34] sm:$0xf]
        %v4017 = vld [vmem:[%s4002 + $0x38] sm:$0xf]
        %v4018 = vld [vmem:[%s4002 + $0x3c] sm:$0xf]
        %v4019 = vld [vmem:[%s4002 + $0x40] sm:$0xf]
        %v4020 = vld [vmem:[%s4002 + $0x44] sm:$0xf]
        %v4021 = vld [vmem:[%s4002 + $0x48] sm:$0xf]
        %v4022 = vld [vmem:[%s4002 + $0x4c] sm:$0xf]
        %v4023 = vld [vmem:[%s4002 + $0x50] sm:$0xf]
        %v4024 = vld [vmem:[%s4002 + $0x54] sm:$0xf]
        %v4025 = vld [vmem:[%s4002 + $0x58] sm:$0xf]
        %v4026 = vld [vmem:[%s4002 + $0x5c] sm:$0xf]
        %v4027 = vld [vmem:[%s4002 + $0x60] sm:$0xf]
        %v4028 = vld [vmem:[%s4002 + $0x64] sm:$0xf]
        %v4029 = vld [vmem:[%s4002 + $0x68] sm:$0xf]
        %v4030 = vld [vmem:[%s4002 + $0x6c] sm:$0xf]
        %v4031 = vld [vmem:[%s4002 + $0x70] sm:$0xf]
        %v4032 = vld [vmem:[%s4002 + $0x74] sm:$0xf]
        %v4033 = vld [vmem:[%s4002 + $0x78] sm:$0xf]
        %v4034 = vld [vmem:[%s4002 + $0x7c] sm:$0xf]
        %v4067 = vunpack.c.l.b16 %v4003
        %v4068 = vunpack.c.l.b16 %v4004
        %v4069 = vunpack.c.l.b16 %v4005
        %v4070 = vunpack.c.l.b16 %v4006
        %v4071 = vunpack.c.l.b16 %v4007
        %v4072 = vunpack.c.l.b16 %v4008
        %v4073 = vunpack.c.l.b16 %v4009
        %v4074 = vunpack.c.l.b16 %v4010
        %v4075 = vunpack.c.l.b16 %v4011
        %v4076 = vunpack.c.l.b16 %v4012
        %v4077 = vunpack.c.l.b16 %v4013
        %v4078 = vunpack.c.l.b16 %v4014
        %v4079 = vunpack.c.l.b16 %v4015
        %v4080 = vunpack.c.l.b16 %v4016
        %v4081 = vunpack.c.l.b16 %v4017
        %v4082 = vunpack.c.l.b16 %v4018
        %v4083 = vunpack.c.l.b16 %v4019
        %v4084 = vunpack.c.l.b16 %v4020
        %v4085 = vunpack.c.l.b16 %v4021
        %v4086 = vunpack.c.l.b16 %v4022
        %v4087 = vunpack.c.l.b16 %v4023
        %v4088 = vunpack.c.l.b16 %v4024
        %v4089 = vunpack.c.l.b16 %v4025
        %v4090 = vunpack.c.l.b16 %v4026
        %v4091 = vunpack.c.l.b16 %v4027
        %v4092 = vunpack.c.l.b16 %v4028
        %v4093 = vunpack.c.l.b16 %v4029
        %v4094 = vunpack.c.l.b16 %v4030
        %v4095 = vunpack.c.l.b16 %v4031
        %v4096 = vunpack.c.l.b16 %v4032
        %v4097 = vunpack.c.l.b16 %v4033
        %v4098 = vunpack.c.l.b16 %v4034
        %v4099 = vpack.c.b16 %v4068, %v4067
        %v4100 = vpack.c.b16 %v4070, %v4069
        %v4101 = vpack.c.b16 %v4072, %v4071
        %v4102 = vpack.c.b16 %v4074, %v4073
        %v4103 = vpack.c.b16 %v4076, %v4075
        %v4104 = vpack.c.b16 %v4078, %v4077
        %v4105 = vpack.c.b16 %v4080, %v4079
        %v4106 = vpack.c.b16 %v4082, %v4081
        %v4107 = vpack.c.b16 %v4084, %v4083
        %v4108 = vpack.c.b16 %v4086, %v4085
        %v4109 = vpack.c.b16 %v4088, %v4087
        %v4110 = vpack.c.b16 %v4090, %v4089
        %v4111 = vpack.c.b16 %v4092, %v4091
        %v4112 = vpack.c.b16 %v4094, %v4093
        %v4113 = vpack.c.b16 %v4096, %v4095
        %v4114 = vpack.c.b16 %v4098, %v4097
        %4131 = vmatpush.bf16.msra.mxu0 %v4106
        %4132 = vmatpush.bf16.msra.mxu0 %v4105
        %4133 = vmatpush.bf16.msra.mxu0 %v4104
        %4134 = vmatpush.bf16.msra.mxu0 %v4103
        %4135 = vmatpush.bf16.msra.mxu0 %v4102
        %4136 = vmatpush.bf16.msra.mxu0 %v4101
        %4137 = vmatpush.bf16.msra.mxu0 %v4100
        %4138 = vmatpush.bf16.msra.mxu0 %v4099
        %4139 = vmatmul.bf16.gmra.mxu0 %v862
        %v4140 = vpop.f32.mrf.mxu0
        %v4141 = vadd.f32 0.0, %v4140
        %v4142 = vpop.f32.mrf.mxu0
        %v4143 = vadd.f32 0.0, %v4142
        %4144 = vdwg.mxu0
        %4145 = vmatpush.bf16.msra.mxu0 %v4114
        %4146 = vmatpush.bf16.msra.mxu0 %v4113
        %4147 = vmatpush.bf16.msra.mxu0 %v4112
        %4148 = vmatpush.bf16.msra.mxu0 %v4111
        %4149 = vmatpush.bf16.msra.mxu0 %v4110
        %4150 = vmatpush.bf16.msra.mxu0 %v4109
        %4151 = vmatpush.bf16.msra.mxu0 %v4108
        %4152 = vmatpush.bf16.msra.mxu0 %v4107
        %4153 = vmatmul.bf16.gmra.mxu0 %v863
        %v4154 = vpop.f32.mrf.mxu0
        %v4155 = vadd.f32 %v4141, %v4154
        %v4156 = vpop.f32.mrf.mxu0
        %v4157 = vadd.f32 %v4143, %v4156
        %4158 = vdwg.mxu0
        %v4159 = vpack.c.bf16 %v4155, %v4155
        %v4160 = vpack.c.bf16 %v4157, %v4157
        %s4161 = scalar_lea.vmem [#allocation4], 384
        %v4162 = vld [vmem:[%s4161] sm:$0xf]
        %v4163 = vld [vmem:[%s4161 + $0x4] sm:$0xf]
        %v4164 = vld [vmem:[%s4161 + $0x8] sm:$0xf]
        %v4165 = vld [vmem:[%s4161 + $0xc] sm:$0xf]
        %v4166 = vld [vmem:[%s4161 + $0x10] sm:$0xf]
        %v4167 = vld [vmem:[%s4161 + $0x14] sm:$0xf]
        %v4168 = vld [vmem:[%s4161 + $0x18] sm:$0xf]
        %v4169 = vld [vmem:[%s4161 + $0x1c] sm:$0xf]
        %v4170 = vld [vmem:[%s4161 + $0x20] sm:$0xf]
        %v4171 = vld [vmem:[%s4161 + $0x24] sm:$0xf]
        %v4172 = vld [vmem:[%s4161 + $0x28] sm:$0xf]
        %v4173 = vld [vmem:[%s4161 + $0x2c] sm:$0xf]
        %v4174 = vld [vmem:[%s4161 + $0x30] sm:$0xf]
        %v4175 = vld [vmem:[%s4161 + $0x34] sm:$0xf]
        %v4176 = vld [vmem:[%s4161 + $0x38] sm:$0xf]
        %v4177 = vld [vmem:[%s4161 + $0x3c] sm:$0xf]
        %v4178 = vld [vmem:[%s4161 + $0x40] sm:$0xf]
        %v4179 = vld [vmem:[%s4161 + $0x44] sm:$0xf]
        %v4180 = vld [vmem:[%s4161 + $0x48] sm:$0xf]
        %v4181 = vld [vmem:[%s4161 + $0x4c] sm:$0xf]
        %v4182 = vld [vmem:[%s4161 + $0x50] sm:$0xf]
        %v4183 = vld [vmem:[%s4161 + $0x54] sm:$0xf]
        %v4184 = vld [vmem:[%s4161 + $0x58] sm:$0xf]
        %v4185 = vld [vmem:[%s4161 + $0x5c] sm:$0xf]
        %v4186 = vld [vmem:[%s4161 + $0x60] sm:$0xf]
        %v4187 = vld [vmem:[%s4161 + $0x64] sm:$0xf]
        %v4188 = vld [vmem:[%s4161 + $0x68] sm:$0xf]
        %v4189 = vld [vmem:[%s4161 + $0x6c] sm:$0xf]
        %v4190 = vld [vmem:[%s4161 + $0x70] sm:$0xf]
        %v4191 = vld [vmem:[%s4161 + $0x74] sm:$0xf]
        %v4192 = vld [vmem:[%s4161 + $0x78] sm:$0xf]
        %v4193 = vld [vmem:[%s4161 + $0x7c] sm:$0xf]
        %v4226 = vunpack.c.l.b16 %v4162
        %v4227 = vunpack.c.l.b16 %v4163
        %v4228 = vunpack.c.l.b16 %v4164
        %v4229 = vunpack.c.l.b16 %v4165
        %v4230 = vunpack.c.l.b16 %v4166
        %v4231 = vunpack.c.l.b16 %v4167
        %v4232 = vunpack.c.l.b16 %v4168
        %v4233 = vunpack.c.l.b16 %v4169
        %v4234 = vunpack.c.l.b16 %v4170
        %v4235 = vunpack.c.l.b16 %v4171
        %v4236 = vunpack.c.l.b16 %v4172
        %v4237 = vunpack.c.l.b16 %v4173
        %v4238 = vunpack.c.l.b16 %v4174
        %v4239 = vunpack.c.l.b16 %v4175
        %v4240 = vunpack.c.l.b16 %v4176
        %v4241 = vunpack.c.l.b16 %v4177
        %v4242 = vunpack.c.l.b16 %v4178
        %v4243 = vunpack.c.l.b16 %v4179
        %v4244 = vunpack.c.l.b16 %v4180
        %v4245 = vunpack.c.l.b16 %v4181
        %v4246 = vunpack.c.l.b16 %v4182
        %v4247 = vunpack.c.l.b16 %v4183
        %v4248 = vunpack.c.l.b16 %v4184
        %v4249 = vunpack.c.l.b16 %v4185
        %v4250 = vunpack.c.l.b16 %v4186
        %v4251 = vunpack.c.l.b16 %v4187
        %v4252 = vunpack.c.l.b16 %v4188
        %v4253 = vunpack.c.l.b16 %v4189
        %v4254 = vunpack.c.l.b16 %v4190
        %v4255 = vunpack.c.l.b16 %v4191
        %v4256 = vunpack.c.l.b16 %v4192
        %v4257 = vunpack.c.l.b16 %v4193
        %v4258 = vpack.c.b16 %v4227, %v4226
        %v4259 = vpack.c.b16 %v4229, %v4228
        %v4260 = vpack.c.b16 %v4231, %v4230
        %v4261 = vpack.c.b16 %v4233, %v4232
        %v4262 = vpack.c.b16 %v4235, %v4234
        %v4263 = vpack.c.b16 %v4237, %v4236
        %v4264 = vpack.c.b16 %v4239, %v4238
        %v4265 = vpack.c.b16 %v4241, %v4240
        %v4266 = vpack.c.b16 %v4243, %v4242
        %v4267 = vpack.c.b16 %v4245, %v4244
        %v4268 = vpack.c.b16 %v4247, %v4246
        %v4269 = vpack.c.b16 %v4249, %v4248
        %v4270 = vpack.c.b16 %v4251, %v4250
        %v4271 = vpack.c.b16 %v4253, %v4252
        %v4272 = vpack.c.b16 %v4255, %v4254
        %v4273 = vpack.c.b16 %v4257, %v4256
        %4290 = vmatpush.bf16.msra.mxu0 %v4265
        %4291 = vmatpush.bf16.msra.mxu0 %v4264
        %4292 = vmatpush.bf16.msra.mxu0 %v4263
        %4293 = vmatpush.bf16.msra.mxu0 %v4262
        %4294 = vmatpush.bf16.msra.mxu0 %v4261
        %4295 = vmatpush.bf16.msra.mxu0 %v4260
        %4296 = vmatpush.bf16.msra.mxu0 %v4259
        %4297 = vmatpush.bf16.msra.mxu0 %v4258
        %4298 = vmatmul.bf16.gmra.mxu0 %v862
        %v4299 = vpop.f32.mrf.mxu0
        %v4300 = vadd.f32 0.0, %v4299
        %v4301 = vpop.f32.mrf.mxu0
        %v4302 = vadd.f32 0.0, %v4301
        %4303 = vdwg.mxu0
        %4304 = vmatpush.bf16.msra.mxu0 %v4273
        %4305 = vmatpush.bf16.msra.mxu0 %v4272
        %4306 = vmatpush.bf16.msra.mxu0 %v4271
        %4307 = vmatpush.bf16.msra.mxu0 %v4270
        %4308 = vmatpush.bf16.msra.mxu0 %v4269
        %4309 = vmatpush.bf16.msra.mxu0 %v4268
        %4310 = vmatpush.bf16.msra.mxu0 %v4267
        %4311 = vmatpush.bf16.msra.mxu0 %v4266
        %4312 = vmatmul.bf16.gmra.mxu0 %v863
        %v4313 = vpop.f32.mrf.mxu0
        %v4314 = vadd.f32 %v4300, %v4313
        %v4315 = vpop.f32.mrf.mxu0
        %v4316 = vadd.f32 %v4302, %v4315
        %4317 = vdwg.mxu0
        %v4318 = vpack.c.bf16 %v4314, %v4314
        %v4319 = vpack.c.bf16 %v4316, %v4316
        %s4320 = scalar_lea.vmem [#allocation4], 512
        %v4321 = vld [vmem:[%s4320] sm:$0xf]
        %v4322 = vld [vmem:[%s4320 + $0x4] sm:$0xf]
        %v4323 = vld [vmem:[%s4320 + $0x8] sm:$0xf]
        %v4324 = vld [vmem:[%s4320 + $0xc] sm:$0xf]
        %v4325 = vld [vmem:[%s4320 + $0x10] sm:$0xf]
        %v4326 = vld [vmem:[%s4320 + $0x14] sm:$0xf]
        %v4327 = vld [vmem:[%s4320 + $0x18] sm:$0xf]
        %v4328 = vld [vmem:[%s4320 + $0x1c] sm:$0xf]
        %v4329 = vld [vmem:[%s4320 + $0x20] sm:$0xf]
        %v4330 = vld [vmem:[%s4320 + $0x24] sm:$0xf]
        %v4331 = vld [vmem:[%s4320 + $0x28] sm:$0xf]
        %v4332 = vld [vmem:[%s4320 + $0x2c] sm:$0xf]
        %v4333 = vld [vmem:[%s4320 + $0x30] sm:$0xf]
        %v4334 = vld [vmem:[%s4320 + $0x34] sm:$0xf]
        %v4335 = vld [vmem:[%s4320 + $0x38] sm:$0xf]
        %v4336 = vld [vmem:[%s4320 + $0x3c] sm:$0xf]
        %v4337 = vld [vmem:[%s4320 + $0x40] sm:$0xf]
        %v4338 = vld [vmem:[%s4320 + $0x44] sm:$0xf]
        %v4339 = vld [vmem:[%s4320 + $0x48] sm:$0xf]
        %v4340 = vld [vmem:[%s4320 + $0x4c] sm:$0xf]
        %v4341 = vld [vmem:[%s4320 + $0x50] sm:$0xf]
        %v4342 = vld [vmem:[%s4320 + $0x54] sm:$0xf]
        %v4343 = vld [vmem:[%s4320 + $0x58] sm:$0xf]
        %v4344 = vld [vmem:[%s4320 + $0x5c] sm:$0xf]
        %v4345 = vld [vmem:[%s4320 + $0x60] sm:$0xf]
        %v4346 = vld [vmem:[%s4320 + $0x64] sm:$0xf]
        %v4347 = vld [vmem:[%s4320 + $0x68] sm:$0xf]
        %v4348 = vld [vmem:[%s4320 + $0x6c] sm:$0xf]
        %v4349 = vld [vmem:[%s4320 + $0x70] sm:$0xf]
        %v4350 = vld [vmem:[%s4320 + $0x74] sm:$0xf]
        %v4351 = vld [vmem:[%s4320 + $0x78] sm:$0xf]
        %v4352 = vld [vmem:[%s4320 + $0x7c] sm:$0xf]
        %v4385 = vunpack.c.l.b16 %v4321
        %v4386 = vunpack.c.l.b16 %v4322
        %v4387 = vunpack.c.l.b16 %v4323
        %v4388 = vunpack.c.l.b16 %v4324
        %v4389 = vunpack.c.l.b16 %v4325
        %v4390 = vunpack.c.l.b16 %v4326
        %v4391 = vunpack.c.l.b16 %v4327
        %v4392 = vunpack.c.l.b16 %v4328
        %v4393 = vunpack.c.l.b16 %v4329
        %v4394 = vunpack.c.l.b16 %v4330
        %v4395 = vunpack.c.l.b16 %v4331
        %v4396 = vunpack.c.l.b16 %v4332
        %v4397 = vunpack.c.l.b16 %v4333
        %v4398 = vunpack.c.l.b16 %v4334
        %v4399 = vunpack.c.l.b16 %v4335
        %v4400 = vunpack.c.l.b16 %v4336
        %v4401 = vunpack.c.l.b16 %v4337
        %v4402 = vunpack.c.l.b16 %v4338
        %v4403 = vunpack.c.l.b16 %v4339
        %v4404 = vunpack.c.l.b16 %v4340
        %v4405 = vunpack.c.l.b16 %v4341
        %v4406 = vunpack.c.l.b16 %v4342
        %v4407 = vunpack.c.l.b16 %v4343
        %v4408 = vunpack.c.l.b16 %v4344
        %v4409 = vunpack.c.l.b16 %v4345
        %v4410 = vunpack.c.l.b16 %v4346
        %v4411 = vunpack.c.l.b16 %v4347
        %v4412 = vunpack.c.l.b16 %v4348
        %v4413 = vunpack.c.l.b16 %v4349
        %v4414 = vunpack.c.l.b16 %v4350
        %v4415 = vunpack.c.l.b16 %v4351
        %v4416 = vunpack.c.l.b16 %v4352
        %v4417 = vpack.c.b16 %v4386, %v4385
        %v4418 = vpack.c.b16 %v4388, %v4387
        %v4419 = vpack.c.b16 %v4390, %v4389
        %v4420 = vpack.c.b16 %v4392, %v4391
        %v4421 = vpack.c.b16 %v4394, %v4393
        %v4422 = vpack.c.b16 %v4396, %v4395
        %v4423 = vpack.c.b16 %v4398, %v4397
        %v4424 = vpack.c.b16 %v4400, %v4399
        %v4425 = vpack.c.b16 %v4402, %v4401
        %v4426 = vpack.c.b16 %v4404, %v4403
        %v4427 = vpack.c.b16 %v4406, %v4405
        %v4428 = vpack.c.b16 %v4408, %v4407
        %v4429 = vpack.c.b16 %v4410, %v4409
        %v4430 = vpack.c.b16 %v4412, %v4411
        %v4431 = vpack.c.b16 %v4414, %v4413
        %v4432 = vpack.c.b16 %v4416, %v4415
        %4449 = vmatpush.bf16.msra.mxu0 %v4424
        %4450 = vmatpush.bf16.msra.mxu0 %v4423
        %4451 = vmatpush.bf16.msra.mxu0 %v4422
        %4452 = vmatpush.bf16.msra.mxu0 %v4421
        %4453 = vmatpush.bf16.msra.mxu0 %v4420
        %4454 = vmatpush.bf16.msra.mxu0 %v4419
        %4455 = vmatpush.bf16.msra.mxu0 %v4418
        %4456 = vmatpush.bf16.msra.mxu0 %v4417
        %4457 = vmatmul.bf16.gmra.mxu0 %v862
        %v4458 = vpop.f32.mrf.mxu0
        %v4459 = vadd.f32 0.0, %v4458
        %v4460 = vpop.f32.mrf.mxu0
        %v4461 = vadd.f32 0.0, %v4460
        %4462 = vdwg.mxu0
        %4463 = vmatpush.bf16.msra.mxu0 %v4432
        %4464 = vmatpush.bf16.msra.mxu0 %v4431
        %4465 = vmatpush.bf16.msra.mxu0 %v4430
        %4466 = vmatpush.bf16.msra.mxu0 %v4429
        %4467 = vmatpush.bf16.msra.mxu0 %v4428
        %4468 = vmatpush.bf16.msra.mxu0 %v4427
        %4469 = vmatpush.bf16.msra.mxu0 %v4426
        %4470 = vmatpush.bf16.msra.mxu0 %v4425
        %4471 = vmatmul.bf16.gmra.mxu0 %v863
        %v4472 = vpop.f32.mrf.mxu0
        %v4473 = vadd.f32 %v4459, %v4472
        %v4474 = vpop.f32.mrf.mxu0
        %v4475 = vadd.f32 %v4461, %v4474
        %4476 = vdwg.mxu0
        %v4477 = vpack.c.bf16 %v4473, %v4473
        %v4478 = vpack.c.bf16 %v4475, %v4475
        %s4479 = scalar_lea.vmem [#allocation4], 640
        %v4480 = vld [vmem:[%s4479] sm:$0xf]
        %v4481 = vld [vmem:[%s4479 + $0x4] sm:$0xf]
        %v4482 = vld [vmem:[%s4479 + $0x8] sm:$0xf]
        %v4483 = vld [vmem:[%s4479 + $0xc] sm:$0xf]
        %v4484 = vld [vmem:[%s4479 + $0x10] sm:$0xf]
        %v4485 = vld [vmem:[%s4479 + $0x14] sm:$0xf]
        %v4486 = vld [vmem:[%s4479 + $0x18] sm:$0xf]
        %v4487 = vld [vmem:[%s4479 + $0x1c] sm:$0xf]
        %v4488 = vld [vmem:[%s4479 + $0x20] sm:$0xf]
        %v4489 = vld [vmem:[%s4479 + $0x24] sm:$0xf]
        %v4490 = vld [vmem:[%s4479 + $0x28] sm:$0xf]
        %v4491 = vld [vmem:[%s4479 + $0x2c] sm:$0xf]
        %v4492 = vld [vmem:[%s4479 + $0x30] sm:$0xf]
        %v4493 = vld [vmem:[%s4479 + $0x34] sm:$0xf]
        %v4494 = vld [vmem:[%s4479 + $0x38] sm:$0xf]
        %v4495 = vld [vmem:[%s4479 + $0x3c] sm:$0xf]
        %v4496 = vld [vmem:[%s4479 + $0x40] sm:$0xf]
        %v4497 = vld [vmem:[%s4479 + $0x44] sm:$0xf]
        %v4498 = vld [vmem:[%s4479 + $0x48] sm:$0xf]
        %v4499 = vld [vmem:[%s4479 + $0x4c] sm:$0xf]
        %v4500 = vld [vmem:[%s4479 + $0x50] sm:$0xf]
        %v4501 = vld [vmem:[%s4479 + $0x54] sm:$0xf]
        %v4502 = vld [vmem:[%s4479 + $0x58] sm:$0xf]
        %v4503 = vld [vmem:[%s4479 + $0x5c] sm:$0xf]
        %v4504 = vld [vmem:[%s4479 + $0x60] sm:$0xf]
        %v4505 = vld [vmem:[%s4479 + $0x64] sm:$0xf]
        %v4506 = vld [vmem:[%s4479 + $0x68] sm:$0xf]
        %v4507 = vld [vmem:[%s4479 + $0x6c] sm:$0xf]
        %v4508 = vld [vmem:[%s4479 + $0x70] sm:$0xf]
        %v4509 = vld [vmem:[%s4479 + $0x74] sm:$0xf]
        %v4510 = vld [vmem:[%s4479 + $0x78] sm:$0xf]
        %v4511 = vld [vmem:[%s4479 + $0x7c] sm:$0xf]
        %v4544 = vunpack.c.l.b16 %v4480
        %v4545 = vunpack.c.l.b16 %v4481
        %v4546 = vunpack.c.l.b16 %v4482
        %v4547 = vunpack.c.l.b16 %v4483
        %v4548 = vunpack.c.l.b16 %v4484
        %v4549 = vunpack.c.l.b16 %v4485
        %v4550 = vunpack.c.l.b16 %v4486
        %v4551 = vunpack.c.l.b16 %v4487
        %v4552 = vunpack.c.l.b16 %v4488
        %v4553 = vunpack.c.l.b16 %v4489
        %v4554 = vunpack.c.l.b16 %v4490
        %v4555 = vunpack.c.l.b16 %v4491
        %v4556 = vunpack.c.l.b16 %v4492
        %v4557 = vunpack.c.l.b16 %v4493
        %v4558 = vunpack.c.l.b16 %v4494
        %v4559 = vunpack.c.l.b16 %v4495
        %v4560 = vunpack.c.l.b16 %v4496
        %v4561 = vunpack.c.l.b16 %v4497
        %v4562 = vunpack.c.l.b16 %v4498
        %v4563 = vunpack.c.l.b16 %v4499
        %v4564 = vunpack.c.l.b16 %v4500
        %v4565 = vunpack.c.l.b16 %v4501
        %v4566 = vunpack.c.l.b16 %v4502
        %v4567 = vunpack.c.l.b16 %v4503
        %v4568 = vunpack.c.l.b16 %v4504
        %v4569 = vunpack.c.l.b16 %v4505
        %v4570 = vunpack.c.l.b16 %v4506
        %v4571 = vunpack.c.l.b16 %v4507
        %v4572 = vunpack.c.l.b16 %v4508
        %v4573 = vunpack.c.l.b16 %v4509
        %v4574 = vunpack.c.l.b16 %v4510
        %v4575 = vunpack.c.l.b16 %v4511
        %v4576 = vpack.c.b16 %v4545, %v4544
        %v4577 = vpack.c.b16 %v4547, %v4546
        %v4578 = vpack.c.b16 %v4549, %v4548
        %v4579 = vpack.c.b16 %v4551, %v4550
        %v4580 = vpack.c.b16 %v4553, %v4552
        %v4581 = vpack.c.b16 %v4555, %v4554
        %v4582 = vpack.c.b16 %v4557, %v4556
        %v4583 = vpack.c.b16 %v4559, %v4558
        %v4584 = vpack.c.b16 %v4561, %v4560
        %v4585 = vpack.c.b16 %v4563, %v4562
        %v4586 = vpack.c.b16 %v4565, %v4564
        %v4587 = vpack.c.b16 %v4567, %v4566
        %v4588 = vpack.c.b16 %v4569, %v4568
        %v4589 = vpack.c.b16 %v4571, %v4570
        %v4590 = vpack.c.b16 %v4573, %v4572
        %v4591 = vpack.c.b16 %v4575, %v4574
        %4608 = vmatpush.bf16.msra.mxu0 %v4583
        %4609 = vmatpush.bf16.msra.mxu0 %v4582
        %4610 = vmatpush.bf16.msra.mxu0 %v4581
        %4611 = vmatpush.bf16.msra.mxu0 %v4580
        %4612 = vmatpush.bf16.msra.mxu0 %v4579
        %4613 = vmatpush.bf16.msra.mxu0 %v4578
        %4614 = vmatpush.bf16.msra.mxu0 %v4577
        %4615 = vmatpush.bf16.msra.mxu0 %v4576
        %4616 = vmatmul.bf16.gmra.mxu0 %v862
        %v4617 = vpop.f32.mrf.mxu0
        %v4618 = vadd.f32 0.0, %v4617
        %v4619 = vpop.f32.mrf.mxu0
        %v4620 = vadd.f32 0.0, %v4619
        %4621 = vdwg.mxu0
        %4622 = vmatpush.bf16.msra.mxu0 %v4591
        %4623 = vmatpush.bf16.msra.mxu0 %v4590
        %4624 = vmatpush.bf16.msra.mxu0 %v4589
        %4625 = vmatpush.bf16.msra.mxu0 %v4588
        %4626 = vmatpush.bf16.msra.mxu0 %v4587
        %4627 = vmatpush.bf16.msra.mxu0 %v4586
        %4628 = vmatpush.bf16.msra.mxu0 %v4585
        %4629 = vmatpush.bf16.msra.mxu0 %v4584
        %4630 = vmatmul.bf16.gmra.mxu0 %v863
        %v4631 = vpop.f32.mrf.mxu0
        %v4632 = vadd.f32 %v4618, %v4631
        %v4633 = vpop.f32.mrf.mxu0
        %v4634 = vadd.f32 %v4620, %v4633
        %4635 = vdwg.mxu0
        %v4636 = vpack.c.bf16 %v4632, %v4632
        %v4637 = vpack.c.bf16 %v4634, %v4634
        %s4638 = scalar_lea.vmem [#allocation4], 768
        %v4639 = vld [vmem:[%s4638] sm:$0xf]
        %v4640 = vld [vmem:[%s4638 + $0x4] sm:$0xf]
        %v4641 = vld [vmem:[%s4638 + $0x8] sm:$0xf]
        %v4642 = vld [vmem:[%s4638 + $0xc] sm:$0xf]
        %v4643 = vld [vmem:[%s4638 + $0x10] sm:$0xf]
        %v4644 = vld [vmem:[%s4638 + $0x14] sm:$0xf]
        %v4645 = vld [vmem:[%s4638 + $0x18] sm:$0xf]
        %v4646 = vld [vmem:[%s4638 + $0x1c] sm:$0xf]
        %v4647 = vld [vmem:[%s4638 + $0x20] sm:$0xf]
        %v4648 = vld [vmem:[%s4638 + $0x24] sm:$0xf]
        %v4649 = vld [vmem:[%s4638 + $0x28] sm:$0xf]
        %v4650 = vld [vmem:[%s4638 + $0x2c] sm:$0xf]
        %v4651 = vld [vmem:[%s4638 + $0x30] sm:$0xf]
        %v4652 = vld [vmem:[%s4638 + $0x34] sm:$0xf]
        %v4653 = vld [vmem:[%s4638 + $0x38] sm:$0xf]
        %v4654 = vld [vmem:[%s4638 + $0x3c] sm:$0xf]
        %v4655 = vld [vmem:[%s4638 + $0x40] sm:$0xf]
        %v4656 = vld [vmem:[%s4638 + $0x44] sm:$0xf]
        %v4657 = vld [vmem:[%s4638 + $0x48] sm:$0xf]
        %v4658 = vld [vmem:[%s4638 + $0x4c] sm:$0xf]
        %v4659 = vld [vmem:[%s4638 + $0x50] sm:$0xf]
        %v4660 = vld [vmem:[%s4638 + $0x54] sm:$0xf]
        %v4661 = vld [vmem:[%s4638 + $0x58] sm:$0xf]
        %v4662 = vld [vmem:[%s4638 + $0x5c] sm:$0xf]
        %v4663 = vld [vmem:[%s4638 + $0x60] sm:$0xf]
        %v4664 = vld [vmem:[%s4638 + $0x64] sm:$0xf]
        %v4665 = vld [vmem:[%s4638 + $0x68] sm:$0xf]
        %v4666 = vld [vmem:[%s4638 + $0x6c] sm:$0xf]
        %v4667 = vld [vmem:[%s4638 + $0x70] sm:$0xf]
        %v4668 = vld [vmem:[%s4638 + $0x74] sm:$0xf]
        %v4669 = vld [vmem:[%s4638 + $0x78] sm:$0xf]
        %v4670 = vld [vmem:[%s4638 + $0x7c] sm:$0xf]
        %v4703 = vunpack.c.l.b16 %v4639
        %v4704 = vunpack.c.l.b16 %v4640
        %v4705 = vunpack.c.l.b16 %v4641
        %v4706 = vunpack.c.l.b16 %v4642
        %v4707 = vunpack.c.l.b16 %v4643
        %v4708 = vunpack.c.l.b16 %v4644
        %v4709 = vunpack.c.l.b16 %v4645
        %v4710 = vunpack.c.l.b16 %v4646
        %v4711 = vunpack.c.l.b16 %v4647
        %v4712 = vunpack.c.l.b16 %v4648
        %v4713 = vunpack.c.l.b16 %v4649
        %v4714 = vunpack.c.l.b16 %v4650
        %v4715 = vunpack.c.l.b16 %v4651
        %v4716 = vunpack.c.l.b16 %v4652
        %v4717 = vunpack.c.l.b16 %v4653
        %v4718 = vunpack.c.l.b16 %v4654
        %v4719 = vunpack.c.l.b16 %v4655
        %v4720 = vunpack.c.l.b16 %v4656
        %v4721 = vunpack.c.l.b16 %v4657
        %v4722 = vunpack.c.l.b16 %v4658
        %v4723 = vunpack.c.l.b16 %v4659
        %v4724 = vunpack.c.l.b16 %v4660
        %v4725 = vunpack.c.l.b16 %v4661
        %v4726 = vunpack.c.l.b16 %v4662
        %v4727 = vunpack.c.l.b16 %v4663
        %v4728 = vunpack.c.l.b16 %v4664
        %v4729 = vunpack.c.l.b16 %v4665
        %v4730 = vunpack.c.l.b16 %v4666
        %v4731 = vunpack.c.l.b16 %v4667
        %v4732 = vunpack.c.l.b16 %v4668
        %v4733 = vunpack.c.l.b16 %v4669
        %v4734 = vunpack.c.l.b16 %v4670
        %v4735 = vpack.c.b16 %v4704, %v4703
        %v4736 = vpack.c.b16 %v4706, %v4705
        %v4737 = vpack.c.b16 %v4708, %v4707
        %v4738 = vpack.c.b16 %v4710, %v4709
        %v4739 = vpack.c.b16 %v4712, %v4711
        %v4740 = vpack.c.b16 %v4714, %v4713
        %v4741 = vpack.c.b16 %v4716, %v4715
        %v4742 = vpack.c.b16 %v4718, %v4717
        %v4743 = vpack.c.b16 %v4720, %v4719
        %v4744 = vpack.c.b16 %v4722, %v4721
        %v4745 = vpack.c.b16 %v4724, %v4723
        %v4746 = vpack.c.b16 %v4726, %v4725
        %v4747 = vpack.c.b16 %v4728, %v4727
        %v4748 = vpack.c.b16 %v4730, %v4729
        %v4749 = vpack.c.b16 %v4732, %v4731
        %v4750 = vpack.c.b16 %v4734, %v4733
        %4767 = vmatpush.bf16.msra.mxu0 %v4742
        %4768 = vmatpush.bf16.msra.mxu0 %v4741
        %4769 = vmatpush.bf16.msra.mxu0 %v4740
        %4770 = vmatpush.bf16.msra.mxu0 %v4739
        %4771 = vmatpush.bf16.msra.mxu0 %v4738
        %4772 = vmatpush.bf16.msra.mxu0 %v4737
        %4773 = vmatpush.bf16.msra.mxu0 %v4736
        %4774 = vmatpush.bf16.msra.mxu0 %v4735
        %4775 = vmatmul.bf16.gmra.mxu0 %v862
        %v4776 = vpop.f32.mrf.mxu0
        %v4777 = vadd.f32 0.0, %v4776
        %v4778 = vpop.f32.mrf.mxu0
        %v4779 = vadd.f32 0.0, %v4778
        %4780 = vdwg.mxu0
        %4781 = vmatpush.bf16.msra.mxu0 %v4750
        %4782 = vmatpush.bf16.msra.mxu0 %v4749
        %4783 = vmatpush.bf16.msra.mxu0 %v4748
        %4784 = vmatpush.bf16.msra.mxu0 %v4747
        %4785 = vmatpush.bf16.msra.mxu0 %v4746
        %4786 = vmatpush.bf16.msra.mxu0 %v4745
        %4787 = vmatpush.bf16.msra.mxu0 %v4744
        %4788 = vmatpush.bf16.msra.mxu0 %v4743
        %4789 = vmatmul.bf16.gmra.mxu0 %v863
        %v4790 = vpop.f32.mrf.mxu0
        %v4791 = vadd.f32 %v4777, %v4790
        %v4792 = vpop.f32.mrf.mxu0
        %v4793 = vadd.f32 %v4779, %v4792
        %4794 = vdwg.mxu0
        %v4795 = vpack.c.bf16 %v4791, %v4791
        %v4796 = vpack.c.bf16 %v4793, %v4793
        %s4797 = scalar_lea.vmem [#allocation4], 896
        %v4798 = vld [vmem:[%s4797] sm:$0xf]
        %v4799 = vld [vmem:[%s4797 + $0x4] sm:$0xf]
        %v4800 = vld [vmem:[%s4797 + $0x8] sm:$0xf]
        %v4801 = vld [vmem:[%s4797 + $0xc] sm:$0xf]
        %v4802 = vld [vmem:[%s4797 + $0x10] sm:$0xf]
        %v4803 = vld [vmem:[%s4797 + $0x14] sm:$0xf]
        %v4804 = vld [vmem:[%s4797 + $0x18] sm:$0xf]
        %v4805 = vld [vmem:[%s4797 + $0x1c] sm:$0xf]
        %v4806 = vld [vmem:[%s4797 + $0x20] sm:$0xf]
        %v4807 = vld [vmem:[%s4797 + $0x24] sm:$0xf]
        %v4808 = vld [vmem:[%s4797 + $0x28] sm:$0xf]
        %v4809 = vld [vmem:[%s4797 + $0x2c] sm:$0xf]
        %v4810 = vld [vmem:[%s4797 + $0x30] sm:$0xf]
        %v4811 = vld [vmem:[%s4797 + $0x34] sm:$0xf]
        %v4812 = vld [vmem:[%s4797 + $0x38] sm:$0xf]
        %v4813 = vld [vmem:[%s4797 + $0x3c] sm:$0xf]
        %v4814 = vld [vmem:[%s4797 + $0x40] sm:$0xf]
        %v4815 = vld [vmem:[%s4797 + $0x44] sm:$0xf]
        %v4816 = vld [vmem:[%s4797 + $0x48] sm:$0xf]
        %v4817 = vld [vmem:[%s4797 + $0x4c] sm:$0xf]
        %v4818 = vld [vmem:[%s4797 + $0x50] sm:$0xf]
        %v4819 = vld [vmem:[%s4797 + $0x54] sm:$0xf]
        %v4820 = vld [vmem:[%s4797 + $0x58] sm:$0xf]
        %v4821 = vld [vmem:[%s4797 + $0x5c] sm:$0xf]
        %v4822 = vld [vmem:[%s4797 + $0x60] sm:$0xf]
        %v4823 = vld [vmem:[%s4797 + $0x64] sm:$0xf]
        %v4824 = vld [vmem:[%s4797 + $0x68] sm:$0xf]
        %v4825 = vld [vmem:[%s4797 + $0x6c] sm:$0xf]
        %v4826 = vld [vmem:[%s4797 + $0x70] sm:$0xf]
        %v4827 = vld [vmem:[%s4797 + $0x74] sm:$0xf]
        %v4828 = vld [vmem:[%s4797 + $0x78] sm:$0xf]
        %v4829 = vld [vmem:[%s4797 + $0x7c] sm:$0xf]
        %v4862 = vunpack.c.l.b16 %v4798
        %v4863 = vunpack.c.l.b16 %v4799
        %v4864 = vunpack.c.l.b16 %v4800
        %v4865 = vunpack.c.l.b16 %v4801
        %v4866 = vunpack.c.l.b16 %v4802
        %v4867 = vunpack.c.l.b16 %v4803
        %v4868 = vunpack.c.l.b16 %v4804
        %v4869 = vunpack.c.l.b16 %v4805
        %v4870 = vunpack.c.l.b16 %v4806
        %v4871 = vunpack.c.l.b16 %v4807
        %v4872 = vunpack.c.l.b16 %v4808
        %v4873 = vunpack.c.l.b16 %v4809
        %v4874 = vunpack.c.l.b16 %v4810
        %v4875 = vunpack.c.l.b16 %v4811
        %v4876 = vunpack.c.l.b16 %v4812
        %v4877 = vunpack.c.l.b16 %v4813
        %v4878 = vunpack.c.l.b16 %v4814
        %v4879 = vunpack.c.l.b16 %v4815
        %v4880 = vunpack.c.l.b16 %v4816
        %v4881 = vunpack.c.l.b16 %v4817
        %v4882 = vunpack.c.l.b16 %v4818
        %v4883 = vunpack.c.l.b16 %v4819
        %v4884 = vunpack.c.l.b16 %v4820
        %v4885 = vunpack.c.l.b16 %v4821
        %v4886 = vunpack.c.l.b16 %v4822
        %v4887 = vunpack.c.l.b16 %v4823
        %v4888 = vunpack.c.l.b16 %v4824
        %v4889 = vunpack.c.l.b16 %v4825
        %v4890 = vunpack.c.l.b16 %v4826
        %v4891 = vunpack.c.l.b16 %v4827
        %v4892 = vunpack.c.l.b16 %v4828
        %v4893 = vunpack.c.l.b16 %v4829
        %v4894 = vpack.c.b16 %v4863, %v4862
        %v4895 = vpack.c.b16 %v4865, %v4864
        %v4896 = vpack.c.b16 %v4867, %v4866
        %v4897 = vpack.c.b16 %v4869, %v4868
        %v4898 = vpack.c.b16 %v4871, %v4870
        %v4899 = vpack.c.b16 %v4873, %v4872
        %v4900 = vpack.c.b16 %v4875, %v4874
        %v4901 = vpack.c.b16 %v4877, %v4876
        %v4902 = vpack.c.b16 %v4879, %v4878
        %v4903 = vpack.c.b16 %v4881, %v4880
        %v4904 = vpack.c.b16 %v4883, %v4882
        %v4905 = vpack.c.b16 %v4885, %v4884
        %v4906 = vpack.c.b16 %v4887, %v4886
        %v4907 = vpack.c.b16 %v4889, %v4888
        %v4908 = vpack.c.b16 %v4891, %v4890
        %v4909 = vpack.c.b16 %v4893, %v4892
        %4926 = vmatpush.bf16.msra.mxu0 %v4901
        %4927 = vmatpush.bf16.msra.mxu0 %v4900
        %4928 = vmatpush.bf16.msra.mxu0 %v4899
        %4929 = vmatpush.bf16.msra.mxu0 %v4898
        %4930 = vmatpush.bf16.msra.mxu0 %v4897
        %4931 = vmatpush.bf16.msra.mxu0 %v4896
        %4932 = vmatpush.bf16.msra.mxu0 %v4895
        %4933 = vmatpush.bf16.msra.mxu0 %v4894
        %4934 = vmatmul.bf16.gmra.mxu0 %v862
        %v4935 = vpop.f32.mrf.mxu0
        %v4936 = vadd.f32 0.0, %v4935
        %v4937 = vpop.f32.mrf.mxu0
        %v4938 = vadd.f32 0.0, %v4937
        %4939 = vdwg.mxu0
        %4940 = vmatpush.bf16.msra.mxu0 %v4909
        %4941 = vmatpush.bf16.msra.mxu0 %v4908
        %4942 = vmatpush.bf16.msra.mxu0 %v4907
        %4943 = vmatpush.bf16.msra.mxu0 %v4906
        %4944 = vmatpush.bf16.msra.mxu0 %v4905
        %4945 = vmatpush.bf16.msra.mxu0 %v4904
        %4946 = vmatpush.bf16.msra.mxu0 %v4903
        %4947 = vmatpush.bf16.msra.mxu0 %v4902
        %4948 = vmatmul.bf16.gmra.mxu0 %v863
        %v4949 = vpop.f32.mrf.mxu0
        %v4950 = vadd.f32 %v4936, %v4949
        %v4951 = vpop.f32.mrf.mxu0
        %v4952 = vadd.f32 %v4938, %v4951
        %4953 = vdwg.mxu0
        %v4954 = vpack.c.bf16 %v4950, %v4950
        %v4955 = vpack.c.bf16 %v4952, %v4952
        %s4956 = scalar_lea.vmem [#allocation4], 1024
        %v4957 = vld [vmem:[%s4956] sm:$0xf]
        %v4958 = vld [vmem:[%s4956 + $0x4] sm:$0xf]
        %v4959 = vld [vmem:[%s4956 + $0x8] sm:$0xf]
        %v4960 = vld [vmem:[%s4956 + $0xc] sm:$0xf]
        %v4961 = vld [vmem:[%s4956 + $0x10] sm:$0xf]
        %v4962 = vld [vmem:[%s4956 + $0x14] sm:$0xf]
        %v4963 = vld [vmem:[%s4956 + $0x18] sm:$0xf]
        %v4964 = vld [vmem:[%s4956 + $0x1c] sm:$0xf]
        %v4965 = vld [vmem:[%s4956 + $0x20] sm:$0xf]
        %v4966 = vld [vmem:[%s4956 + $0x24] sm:$0xf]
        %v4967 = vld [vmem:[%s4956 + $0x28] sm:$0xf]
        %v4968 = vld [vmem:[%s4956 + $0x2c] sm:$0xf]
        %v4969 = vld [vmem:[%s4956 + $0x30] sm:$0xf]
        %v4970 = vld [vmem:[%s4956 + $0x34] sm:$0xf]
        %v4971 = vld [vmem:[%s4956 + $0x38] sm:$0xf]
        %v4972 = vld [vmem:[%s4956 + $0x3c] sm:$0xf]
        %v4973 = vld [vmem:[%s4956 + $0x40] sm:$0xf]
        %v4974 = vld [vmem:[%s4956 + $0x44] sm:$0xf]
        %v4975 = vld [vmem:[%s4956 + $0x48] sm:$0xf]
        %v4976 = vld [vmem:[%s4956 + $0x4c] sm:$0xf]
        %v4977 = vld [vmem:[%s4956 + $0x50] sm:$0xf]
        %v4978 = vld [vmem:[%s4956 + $0x54] sm:$0xf]
        %v4979 = vld [vmem:[%s4956 + $0x58] sm:$0xf]
        %v4980 = vld [vmem:[%s4956 + $0x5c] sm:$0xf]
        %v4981 = vld [vmem:[%s4956 + $0x60] sm:$0xf]
        %v4982 = vld [vmem:[%s4956 + $0x64] sm:$0xf]
        %v4983 = vld [vmem:[%s4956 + $0x68] sm:$0xf]
        %v4984 = vld [vmem:[%s4956 + $0x6c] sm:$0xf]
        %v4985 = vld [vmem:[%s4956 + $0x70] sm:$0xf]
        %v4986 = vld [vmem:[%s4956 + $0x74] sm:$0xf]
        %v4987 = vld [vmem:[%s4956 + $0x78] sm:$0xf]
        %v4988 = vld [vmem:[%s4956 + $0x7c] sm:$0xf]
        %v5021 = vunpack.c.l.b16 %v4957
        %v5022 = vunpack.c.l.b16 %v4958
        %v5023 = vunpack.c.l.b16 %v4959
        %v5024 = vunpack.c.l.b16 %v4960
        %v5025 = vunpack.c.l.b16 %v4961
        %v5026 = vunpack.c.l.b16 %v4962
        %v5027 = vunpack.c.l.b16 %v4963
        %v5028 = vunpack.c.l.b16 %v4964
        %v5029 = vunpack.c.l.b16 %v4965
        %v5030 = vunpack.c.l.b16 %v4966
        %v5031 = vunpack.c.l.b16 %v4967
        %v5032 = vunpack.c.l.b16 %v4968
        %v5033 = vunpack.c.l.b16 %v4969
        %v5034 = vunpack.c.l.b16 %v4970
        %v5035 = vunpack.c.l.b16 %v4971
        %v5036 = vunpack.c.l.b16 %v4972
        %v5037 = vunpack.c.l.b16 %v4973
        %v5038 = vunpack.c.l.b16 %v4974
        %v5039 = vunpack.c.l.b16 %v4975
        %v5040 = vunpack.c.l.b16 %v4976
        %v5041 = vunpack.c.l.b16 %v4977
        %v5042 = vunpack.c.l.b16 %v4978
        %v5043 = vunpack.c.l.b16 %v4979
        %v5044 = vunpack.c.l.b16 %v4980
        %v5045 = vunpack.c.l.b16 %v4981
        %v5046 = vunpack.c.l.b16 %v4982
        %v5047 = vunpack.c.l.b16 %v4983
        %v5048 = vunpack.c.l.b16 %v4984
        %v5049 = vunpack.c.l.b16 %v4985
        %v5050 = vunpack.c.l.b16 %v4986
        %v5051 = vunpack.c.l.b16 %v4987
        %v5052 = vunpack.c.l.b16 %v4988
        %v5053 = vpack.c.b16 %v5022, %v5021
        %v5054 = vpack.c.b16 %v5024, %v5023
        %v5055 = vpack.c.b16 %v5026, %v5025
        %v5056 = vpack.c.b16 %v5028, %v5027
        %v5057 = vpack.c.b16 %v5030, %v5029
        %v5058 = vpack.c.b16 %v5032, %v5031
        %v5059 = vpack.c.b16 %v5034, %v5033
        %v5060 = vpack.c.b16 %v5036, %v5035
        %v5061 = vpack.c.b16 %v5038, %v5037
        %v5062 = vpack.c.b16 %v5040, %v5039
        %v5063 = vpack.c.b16 %v5042, %v5041
        %v5064 = vpack.c.b16 %v5044, %v5043
        %v5065 = vpack.c.b16 %v5046, %v5045
        %v5066 = vpack.c.b16 %v5048, %v5047
        %v5067 = vpack.c.b16 %v5050, %v5049
        %v5068 = vpack.c.b16 %v5052, %v5051
        %5085 = vmatpush.bf16.msra.mxu0 %v5060
        %5086 = vmatpush.bf16.msra.mxu0 %v5059
        %5087 = vmatpush.bf16.msra.mxu0 %v5058
        %5088 = vmatpush.bf16.msra.mxu0 %v5057
        %5089 = vmatpush.bf16.msra.mxu0 %v5056
        %5090 = vmatpush.bf16.msra.mxu0 %v5055
        %5091 = vmatpush.bf16.msra.mxu0 %v5054
        %5092 = vmatpush.bf16.msra.mxu0 %v5053
        %5093 = vmatmul.bf16.gmra.mxu0 %v862
        %v5094 = vpop.f32.mrf.mxu0
        %v5095 = vadd.f32 0.0, %v5094
        %v5096 = vpop.f32.mrf.mxu0
        %v5097 = vadd.f32 0.0, %v5096
        %5098 = vdwg.mxu0
        %5099 = vmatpush.bf16.msra.mxu0 %v5068
        %5100 = vmatpush.bf16.msra.mxu0 %v5067
        %5101 = vmatpush.bf16.msra.mxu0 %v5066
        %5102 = vmatpush.bf16.msra.mxu0 %v5065
        %5103 = vmatpush.bf16.msra.mxu0 %v5064
        %5104 = vmatpush.bf16.msra.mxu0 %v5063
        %5105 = vmatpush.bf16.msra.mxu0 %v5062
        %5106 = vmatpush.bf16.msra.mxu0 %v5061
        %5107 = vmatmul.bf16.gmra.mxu0 %v863
        %v5108 = vpop.f32.mrf.mxu0
        %v5109 = vadd.f32 %v5095, %v5108
        %v5110 = vpop.f32.mrf.mxu0
        %v5111 = vadd.f32 %v5097, %v5110
        %5112 = vdwg.mxu0
        %v5113 = vpack.c.bf16 %v5109, %v5109
        %v5114 = vpack.c.bf16 %v5111, %v5111
        %v5117 = vunpack.c.l.b16 %v3841
        %v5118 = vunpack.c.l.b16 %v3842
        %v5119 = vpack.c.b16 %v5118, %v5117
        %v5123 = vunpack.c.l.b16 %v4000
        %v5124 = vunpack.c.l.b16 %v4001
        %v5125 = vpack.c.b16 %v5124, %v5123
        %v5129 = vunpack.c.l.b16 %v4159
        %v5130 = vunpack.c.l.b16 %v4160
        %v5131 = vpack.c.b16 %v5130, %v5129
        %v5135 = vunpack.c.l.b16 %v4318
        %v5136 = vunpack.c.l.b16 %v4319
        %v5137 = vpack.c.b16 %v5136, %v5135
        %v5141 = vunpack.c.l.b16 %v4477
        %v5142 = vunpack.c.l.b16 %v4478
        %v5143 = vpack.c.b16 %v5142, %v5141
        %v5147 = vunpack.c.l.b16 %v4636
        %v5148 = vunpack.c.l.b16 %v4637
        %v5149 = vpack.c.b16 %v5148, %v5147
        %v5153 = vunpack.c.l.b16 %v4795
        %v5154 = vunpack.c.l.b16 %v4796
        %v5155 = vpack.c.b16 %v5154, %v5153
        %v5159 = vunpack.c.l.b16 %v4954
        %v5160 = vunpack.c.l.b16 %v4955
        %v5161 = vpack.c.b16 %v5160, %v5159
        %v5165 = vunpack.c.l.b16 %v5113
        %v5166 = vunpack.c.l.b16 %v5114
        %v5167 = vpack.c.b16 %v5166, %v5165
        %v5169 = vld [vmem:[#allocation10] sm:$0xff]
        %v5170 = vld [vmem:[#allocation10 + $0x8] sm:$0xff]
        %v5171 = vld [vmem:[#allocation12] sm:$0xff]
        %v5172 = vld [vmem:[#allocation12 + $0x8] sm:$0xff]
        %5174 = vset.pattern.permute.xlu0 0
        %5175 = vperm.xlu0 %5174, %v5171
        %v5176 = vpop.permute.xlu0 %5175
        %5179 = vset.pattern.permute.xlu0 0
        %5180 = vperm.xlu0 %5179, %v5172
        %v5181 = vpop.permute.xlu0 %5180
        %v5185 = vunpack.c.l.b16 %v5169
        %v5186 = vunpack.c.h.b16 %v5169
        %v5187 = vunpack.c.l.b16 %v5170
        %v5188 = vunpack.c.h.b16 %v5170
        %v5189 = vpack.c.b16 %v5187, %v5185
        %v5190 = vpack.c.b16 %v5188, %v5186
        %vm5192 = vcmask 130048
        %v5194 = vsel %vm5192, %v5190, 0
        %5196 = vmatpush.bf16.msra.mxu0 %v5161
        %5197 = vmatpush.bf16.msra.mxu0 %v5155
        %5198 = vmatpush.bf16.msra.mxu0 %v5149
        %5199 = vmatpush.bf16.msra.mxu0 %v5143
        %5200 = vmatpush.bf16.msra.mxu0 %v5137
        %5201 = vmatpush.bf16.msra.mxu0 %v5131
        %5202 = vmatpush.bf16.msra.mxu0 %v5125
        %5203 = vmatpush.bf16.msra.mxu0 %v5119
        %5204 = vmatmul.bf16.gmra.mxu0 %v5189
        %v5205 = vpop.f32.mrf.mxu0
        %v5206 = vadd.f32 %v5176, %v5205
        %v5207 = vpop.f32.mrf.mxu0
        %v5208 = vadd.f32 %v5181, %v5207
        %5209 = vdwg.mxu0
        %5210 = vmatpush.bf16.msra.mxu0 0
        %5211 = vmatpush.bf16.msra.mxu0 0
        %5212 = vmatpush.bf16.msra.mxu0 0
        %5213 = vmatpush.bf16.msra.mxu0 0
        %5214 = vmatpush.bf16.msra.mxu0 0
        %5215 = vmatpush.bf16.msra.mxu0 0
        %5216 = vmatpush.bf16.msra.mxu0 0
        %5217 = vmatpush.bf16.msra.mxu0 %v5167
        %5218 = vmatmul.bf16.gmra.mxu0 %v5194
        %v5219 = vpop.f32.mrf.mxu0
        %v5220 = vadd.f32 %v5206, %v5219
        %v5221 = vpop.f32.mrf.mxu0
        %v5222 = vadd.f32 %v5208, %v5221
        %5223 = vdwg.mxu0
        %v5224 = vpack.c.bf16 %v5222, %v5220
        %v5225 = vld [vmem:[#allocation6] sm:$0xff]
        %v5226 = vld [vmem:[#allocation6 + $0x8] sm:$0xff]
        %v5229 = vunpack.c.l.b16 %v5225
        %v5230 = vunpack.c.h.b16 %v5225
        %v5231 = vunpack.c.l.b16 %v5226
        %v5232 = vunpack.c.h.b16 %v5226
        %v5233 = vpack.c.b16 %v5231, %v5229
        %v5234 = vpack.c.b16 %v5232, %v5230
        %v5238 = vsel %vm5192, %v5224, 0
        %5240 = vmatpush.bf16.msra.mxu0 0
        %5241 = vmatpush.bf16.msra.mxu0 0
        %5242 = vmatpush.bf16.msra.mxu0 0
        %5243 = vmatpush.bf16.msra.mxu0 0
        %5244 = vmatpush.bf16.msra.mxu0 0
        %5245 = vmatpush.bf16.msra.mxu0 0
        %5246 = vmatpush.bf16.msra.mxu0 0
        %5247 = vmatpush.bf16.msra.mxu0 %v5233
        %5248 = vmatmul.bf16.gmra.mxu0 %v5238
        %v5249 = vpop.f32.mrf.mxu0
        %v5250 = vadd.f32 0.0, %v5249
        %v5251 = vpop.f32.mrf.mxu0
        %v5252 = vadd.f32 0.0, %v5251
        %5253 = vdwg.mxu0
        %5254 = vmatpush.bf16.msra.mxu0 0
        %5255 = vmatpush.bf16.msra.mxu0 0
        %5256 = vmatpush.bf16.msra.mxu0 0
        %5257 = vmatpush.bf16.msra.mxu0 0
        %5258 = vmatpush.bf16.msra.mxu0 0
        %5259 = vmatpush.bf16.msra.mxu0 0
        %5260 = vmatpush.bf16.msra.mxu0 0
        %5261 = vmatpush.bf16.msra.mxu0 %v5234
        %5262 = vmatmul.bf16.gmra.mxu0 %v5238
        %v5263 = vpop.f32.mrf.mxu0
        %v5264 = vadd.f32 0.0, %v5263
        %v5265 = vpop.f32.mrf.mxu0
        %v5266 = vadd.f32 0.0, %v5265
        %5267 = vdwg.mxu0
        %v5268 = vadd.f32 %v854, %v5250
        %v5269 = vadd.f32 %v855, %v5264
        %v5270 = vadd.f32 %v856, %v5252
        %v5271 = vadd.f32 %v857, %v5266
        %v5272 = vsub.f32 0.0, %v5268
        %v5273 = vsub.f32 0.0, %v5269
        %v5274 = vsub.f32 0.0, %v5270
        %v5275 = vsub.f32 0.0, %v5271
        %v5276 = vmul.f32 %v5272, 1.442695
        %v5277 = vpow.pop %v5276
        %v5278 = vmul.f32 %v5273, 1.442695
        %v5279 = vpow.pop %v5278
        %v5280 = vmul.f32 %v5274, 1.442695
        %v5281 = vpow.pop %v5280
        %v5282 = vmul.f32 %v5275, 1.442695
        %v5283 = vpow.pop %v5282
        %v5284 = vadd.f32 %v5277, 1.0
        %v5285 = vadd.f32 %v5279, 1.0
        %v5286 = vadd.f32 %v5281, 1.0
        %v5287 = vadd.f32 %v5283, 1.0
        %v5288 = vrcp.pop %v5284
        %v5289 = vmul.f32 %v5284, %v5288
        %v5290 = vsub.f32 1.0, %v5289
        %v5291 = vmul.f32 %v5288, %v5290
        %v5292 = vadd.f32 %v5288, %v5291
        %vm5293 = vweird.f32 %v5284
        %vm5294 = vweird.f32 %v5288
        %vm5295 = vmor %vm5293, %vm5294
        %v5296 = vsel %vm5295, %v5288, %v5292
        %v5297 = vand.u32 2147483647, %v5284
        %vm5298 = vcmp.eq.f32.partialorder %v5297, 8.507059e+37
        %v5299 = vand.u32 %v5284, 2147483648
        %v5300 = vor.u32 1.1754944e-38, %v5299
        %v5301 = vsel %vm5298, %v5300, %v5296
        %v5302 = vmul.f32 1.0, %v5301
        %v5303 = vrcp.pop %v5285
        %v5304 = vmul.f32 %v5285, %v5303
        %v5305 = vsub.f32 1.0, %v5304
        %v5306 = vmul.f32 %v5303, %v5305
        %v5307 = vadd.f32 %v5303, %v5306
        %vm5308 = vweird.f32 %v5285
        %vm5309 = vweird.f32 %v5303
        %vm5310 = vmor %vm5308, %vm5309
        %v5311 = vsel %vm5310, %v5303, %v5307
        %v5312 = vand.u32 2147483647, %v5285
        %vm5313 = vcmp.eq.f32.partialorder %v5312, 8.507059e+37
        %v5314 = vand.u32 %v5285, 2147483648
        %v5315 = vor.u32 1.1754944e-38, %v5314
        %v5316 = vsel %vm5313, %v5315, %v5311
        %v5317 = vmul.f32 1.0, %v5316
        %v5318 = vrcp.pop %v5286
        %v5319 = vmul.f32 %v5286, %v5318
        %v5320 = vsub.f32 1.0, %v5319
        %v5321 = vmul.f32 %v5318, %v5320
        %v5322 = vadd.f32 %v5318, %v5321
        %vm5323 = vweird.f32 %v5286
        %vm5324 = vweird.f32 %v5318
        %vm5325 = vmor %vm5323, %vm5324
        %v5326 = vsel %vm5325, %v5318, %v5322
        %v5327 = vand.u32 2147483647, %v5286
        %vm5328 = vcmp.eq.f32.partialorder %v5327, 8.507059e+37
        %v5329 = vand.u32 %v5286, 2147483648
        %v5330 = vor.u32 1.1754944e-38, %v5329
        %v5331 = vsel %vm5328, %v5330, %v5326
        %v5332 = vmul.f32 1.0, %v5331
        %v5333 = vrcp.pop %v5287
        %v5334 = vmul.f32 %v5287, %v5333
        %v5335 = vsub.f32 1.0, %v5334
        %v5336 = vmul.f32 %v5333, %v5335
        %v5337 = vadd.f32 %v5333, %v5336
        %vm5338 = vweird.f32 %v5287
        %vm5339 = vweird.f32 %v5333
        %vm5340 = vmor %vm5338, %vm5339
        %v5341 = vsel %vm5340, %v5333, %v5337
        %v5342 = vand.u32 2147483647, %v5287
        %vm5343 = vcmp.eq.f32.partialorder %v5342, 8.507059e+37
        %v5344 = vand.u32 %v5287, 2147483648
        %v5345 = vor.u32 1.1754944e-38, %v5344
        %v5346 = vsel %vm5343, %v5345, %v5341
        %v5347 = vmul.f32 1.0, %v5346
        %v5348 = vmul.f32 %v3619, %v5302
        %v5349 = vmul.f32 %v3676, %v5317
        %v5350 = vmul.f32 %v3621, %v5332
        %v5351 = vmul.f32 %v3678, %v5347
        %v5352 = vmax.f32 %v3624, 0.0
        %v5353 = vmax.f32 %v3681, 0.0
        %v5354 = vmax.f32 %v3626, 0.0
        %v5355 = vmax.f32 %v3683, 0.0
        %v5356 = vpack.c.bf16 %v5350, %v5348
        %v5357 = vpack.c.bf16 %v5351, %v5349
        %5358 = vmatpush.bf16.msra.mxu0 %v1008
        %5359 = vmatpush.bf16.msra.mxu0 %v1006
        %5360 = vmatpush.bf16.msra.mxu0 %v1004
        %5361 = vmatpush.bf16.msra.mxu0 %v1002
        %5362 = vmatpush.bf16.msra.mxu0 %v1000
        %5363 = vmatpush.bf16.msra.mxu0 %v998
        %5364 = vmatpush.bf16.msra.mxu0 %v996
        %5365 = vmatpush.bf16.msra.mxu0 %v994
        %5366 = vmatmul.bf16.gmra.mxu0 %v5356
        %v5367 = vpop.f32.mrf.mxu0
        %v5368 = vadd.f32 0.0, %v5367
        %v5369 = vpop.f32.mrf.mxu0
        %v5370 = vadd.f32 0.0, %v5369
        %5371 = vdwg.mxu0
        %5372 = vmatpush.bf16.msra.mxu0 %v1024
        %5373 = vmatpush.bf16.msra.mxu0 %v1022
        %5374 = vmatpush.bf16.msra.mxu0 %v1020
        %5375 = vmatpush.bf16.msra.mxu0 %v1018
        %5376 = vmatpush.bf16.msra.mxu0 %v1016
        %5377 = vmatpush.bf16.msra.mxu0 %v1014
        %5378 = vmatpush.bf16.msra.mxu0 %v1012
        %5379 = vmatpush.bf16.msra.mxu0 %v1010
        %5380 = vmatmul.bf16.gmra.mxu0 %v5357
        %v5381 = vpop.f32.mrf.mxu0
        %v5382 = vadd.f32 %v5368, %v5381
        %v5383 = vpop.f32.mrf.mxu0
        %v5384 = vadd.f32 %v5370, %v5383
        %5385 = vdwg.mxu0
        %5386 = vmatpush.bf16.msra.mxu0 %v1009
        %5387 = vmatpush.bf16.msra.mxu0 %v1007
        %5388 = vmatpush.bf16.msra.mxu0 %v1005
        %5389 = vmatpush.bf16.msra.mxu0 %v1003
        %5390 = vmatpush.bf16.msra.mxu0 %v1001
        %5391 = vmatpush.bf16.msra.mxu0 %v999
        %5392 = vmatpush.bf16.msra.mxu0 %v997
        %5393 = vmatpush.bf16.msra.mxu0 %v995
        %5394 = vmatmul.bf16.gmra.mxu0 %v5356
        %v5395 = vpop.f32.mrf.mxu0
        %v5396 = vadd.f32 0.0, %v5395
        %v5397 = vpop.f32.mrf.mxu0
        %v5398 = vadd.f32 0.0, %v5397
        %5399 = vdwg.mxu0
        %5400 = vmatpush.bf16.msra.mxu0 %v1025
        %5401 = vmatpush.bf16.msra.mxu0 %v1023
        %5402 = vmatpush.bf16.msra.mxu0 %v1021
        %5403 = vmatpush.bf16.msra.mxu0 %v1019
        %5404 = vmatpush.bf16.msra.mxu0 %v1017
        %5405 = vmatpush.bf16.msra.mxu0 %v1015
        %5406 = vmatpush.bf16.msra.mxu0 %v1013
        %5407 = vmatpush.bf16.msra.mxu0 %v1011
        %5408 = vmatmul.bf16.gmra.mxu0 %v5357
        %v5409 = vpop.f32.mrf.mxu0
        %v5410 = vadd.f32 %v5396, %v5409
        %v5411 = vpop.f32.mrf.mxu0
        %v5412 = vadd.f32 %v5398, %v5411
        %5413 = vdwg.mxu0
        %v5414 = vpack.c.bf16 %v5410, %v5382
        %v5415 = vpack.c.bf16 %v5412, %v5384
        %5416 = vmatpush.bf16.msra.mxu0 %v1281
        %5417 = vmatpush.bf16.msra.mxu0 %v1279
        %5418 = vmatpush.bf16.msra.mxu0 %v1277
        %5419 = vmatpush.bf16.msra.mxu0 %v1275
        %5420 = vmatpush.bf16.msra.mxu0 %v1273
        %5421 = vmatpush.bf16.msra.mxu0 %v1271
        %5422 = vmatpush.bf16.msra.mxu0 %v1269
        %5423 = vmatpush.bf16.msra.mxu0 %v1267
        %5424 = vmatmul.bf16.gmra.mxu0 %v5356
        %v5425 = vpop.f32.mrf.mxu0
        %v5426 = vadd.f32 0.0, %v5425
        %v5427 = vpop.f32.mrf.mxu0
        %v5428 = vadd.f32 0.0, %v5427
        %5429 = vdwg.mxu0
        %5430 = vmatpush.bf16.msra.mxu0 %v1297
        %5431 = vmatpush.bf16.msra.mxu0 %v1295
        %5432 = vmatpush.bf16.msra.mxu0 %v1293
        %5433 = vmatpush.bf16.msra.mxu0 %v1291
        %5434 = vmatpush.bf16.msra.mxu0 %v1289
        %5435 = vmatpush.bf16.msra.mxu0 %v1287
        %5436 = vmatpush.bf16.msra.mxu0 %v1285
        %5437 = vmatpush.bf16.msra.mxu0 %v1283
        %5438 = vmatmul.bf16.gmra.mxu0 %v5357
        %v5439 = vpop.f32.mrf.mxu0
        %v5440 = vadd.f32 %v5426, %v5439
        %v5441 = vpop.f32.mrf.mxu0
        %v5442 = vadd.f32 %v5428, %v5441
        %5443 = vdwg.mxu0
        %5444 = vmatpush.bf16.msra.mxu0 %v1282
        %5445 = vmatpush.bf16.msra.mxu0 %v1280
        %5446 = vmatpush.bf16.msra.mxu0 %v1278
        %5447 = vmatpush.bf16.msra.mxu0 %v1276
        %5448 = vmatpush.bf16.msra.mxu0 %v1274
        %5449 = vmatpush.bf16.msra.mxu0 %v1272
        %5450 = vmatpush.bf16.msra.mxu0 %v1270
        %5451 = vmatpush.bf16.msra.mxu0 %v1268
        %5452 = vmatmul.bf16.gmra.mxu0 %v5356
        %v5453 = vpop.f32.mrf.mxu0
        %v5454 = vadd.f32 0.0, %v5453
        %v5455 = vpop.f32.mrf.mxu0
        %v5456 = vadd.f32 0.0, %v5455
        %5457 = vdwg.mxu0
        %5458 = vmatpush.bf16.msra.mxu0 %v1298
        %5459 = vmatpush.bf16.msra.mxu0 %v1296
        %5460 = vmatpush.bf16.msra.mxu0 %v1294
        %5461 = vmatpush.bf16.msra.mxu0 %v1292
        %5462 = vmatpush.bf16.msra.mxu0 %v1290
        %5463 = vmatpush.bf16.msra.mxu0 %v1288
        %5464 = vmatpush.bf16.msra.mxu0 %v1286
        %5465 = vmatpush.bf16.msra.mxu0 %v1284
        %5466 = vmatmul.bf16.gmra.mxu0 %v5357
        %v5467 = vpop.f32.mrf.mxu0
        %v5468 = vadd.f32 %v5454, %v5467
        %v5469 = vpop.f32.mrf.mxu0
        %v5470 = vadd.f32 %v5456, %v5469
        %5471 = vdwg.mxu0
        %v5472 = vpack.c.bf16 %v5468, %v5440
        %v5473 = vpack.c.bf16 %v5470, %v5442
        %5474 = vmatpush.bf16.msra.mxu0 %v1554
        %5475 = vmatpush.bf16.msra.mxu0 %v1552
        %5476 = vmatpush.bf16.msra.mxu0 %v1550
        %5477 = vmatpush.bf16.msra.mxu0 %v1548
        %5478 = vmatpush.bf16.msra.mxu0 %v1546
        %5479 = vmatpush.bf16.msra.mxu0 %v1544
        %5480 = vmatpush.bf16.msra.mxu0 %v1542
        %5481 = vmatpush.bf16.msra.mxu0 %v1540
        %5482 = vmatmul.bf16.gmra.mxu0 %v5356
        %v5483 = vpop.f32.mrf.mxu0
        %v5484 = vadd.f32 0.0, %v5483
        %v5485 = vpop.f32.mrf.mxu0
        %v5486 = vadd.f32 0.0, %v5485
        %5487 = vdwg.mxu0
        %5488 = vmatpush.bf16.msra.mxu0 %v1570
        %5489 = vmatpush.bf16.msra.mxu0 %v1568
        %5490 = vmatpush.bf16.msra.mxu0 %v1566
        %5491 = vmatpush.bf16.msra.mxu0 %v1564
        %5492 = vmatpush.bf16.msra.mxu0 %v1562
        %5493 = vmatpush.bf16.msra.mxu0 %v1560
        %5494 = vmatpush.bf16.msra.mxu0 %v1558
        %5495 = vmatpush.bf16.msra.mxu0 %v1556
        %5496 = vmatmul.bf16.gmra.mxu0 %v5357
        %v5497 = vpop.f32.mrf.mxu0
        %v5498 = vadd.f32 %v5484, %v5497
        %v5499 = vpop.f32.mrf.mxu0
        %v5500 = vadd.f32 %v5486, %v5499
        %5501 = vdwg.mxu0
        %5502 = vmatpush.bf16.msra.mxu0 %v1555
        %5503 = vmatpush.bf16.msra.mxu0 %v1553
        %5504 = vmatpush.bf16.msra.mxu0 %v1551
        %5505 = vmatpush.bf16.msra.mxu0 %v1549
        %5506 = vmatpush.bf16.msra.mxu0 %v1547
        %5507 = vmatpush.bf16.msra.mxu0 %v1545
        %5508 = vmatpush.bf16.msra.mxu0 %v1543
        %5509 = vmatpush.bf16.msra.mxu0 %v1541
        %5510 = vmatmul.bf16.gmra.mxu0 %v5356
        %v5511 = vpop.f32.mrf.mxu0
        %v5512 = vadd.f32 0.0, %v5511
        %v5513 = vpop.f32.mrf.mxu0
        %v5514 = vadd.f32 0.0, %v5513
        %5515 = vdwg.mxu0
        %5516 = vmatpush.bf16.msra.mxu0 %v1571
        %5517 = vmatpush.bf16.msra.mxu0 %v1569
        %5518 = vmatpush.bf16.msra.mxu0 %v1567
        %5519 = vmatpush.bf16.msra.mxu0 %v1565
        %5520 = vmatpush.bf16.msra.mxu0 %v1563
        %5521 = vmatpush.bf16.msra.mxu0 %v1561
        %5522 = vmatpush.bf16.msra.mxu0 %v1559
        %5523 = vmatpush.bf16.msra.mxu0 %v1557
        %5524 = vmatmul.bf16.gmra.mxu0 %v5357
        %v5525 = vpop.f32.mrf.mxu0
        %v5526 = vadd.f32 %v5512, %v5525
        %v5527 = vpop.f32.mrf.mxu0
        %v5528 = vadd.f32 %v5514, %v5527
        %5529 = vdwg.mxu0
        %v5530 = vpack.c.bf16 %v5526, %v5498
        %v5531 = vpack.c.bf16 %v5528, %v5500
        %5532 = vmatpush.bf16.msra.mxu0 %v1827
        %5533 = vmatpush.bf16.msra.mxu0 %v1825
        %5534 = vmatpush.bf16.msra.mxu0 %v1823
        %5535 = vmatpush.bf16.msra.mxu0 %v1821
        %5536 = vmatpush.bf16.msra.mxu0 %v1819
        %5537 = vmatpush.bf16.msra.mxu0 %v1817
        %5538 = vmatpush.bf16.msra.mxu0 %v1815
        %5539 = vmatpush.bf16.msra.mxu0 %v1813
        %5540 = vmatmul.bf16.gmra.mxu0 %v5356
        %v5541 = vpop.f32.mrf.mxu0
        %v5542 = vadd.f32 0.0, %v5541
        %v5543 = vpop.f32.mrf.mxu0
        %v5544 = vadd.f32 0.0, %v5543
        %5545 = vdwg.mxu0
        %5546 = vmatpush.bf16.msra.mxu0 %v1843
        %5547 = vmatpush.bf16.msra.mxu0 %v1841
        %5548 = vmatpush.bf16.msra.mxu0 %v1839
        %5549 = vmatpush.bf16.msra.mxu0 %v1837
        %5550 = vmatpush.bf16.msra.mxu0 %v1835
        %5551 = vmatpush.bf16.msra.mxu0 %v1833
        %5552 = vmatpush.bf16.msra.mxu0 %v1831
        %5553 = vmatpush.bf16.msra.mxu0 %v1829
        %5554 = vmatmul.bf16.gmra.mxu0 %v5357
        %v5555 = vpop.f32.mrf.mxu0
        %v5556 = vadd.f32 %v5542, %v5555
        %v5557 = vpop.f32.mrf.mxu0
        %v5558 = vadd.f32 %v5544, %v5557
        %5559 = vdwg.mxu0
        %5560 = vmatpush.bf16.msra.mxu0 %v1828
        %5561 = vmatpush.bf16.msra.mxu0 %v1826
        %5562 = vmatpush.bf16.msra.mxu0 %v1824
        %5563 = vmatpush.bf16.msra.mxu0 %v1822
        %5564 = vmatpush.bf16.msra.mxu0 %v1820
        %5565 = vmatpush.bf16.msra.mxu0 %v1818
        %5566 = vmatpush.bf16.msra.mxu0 %v1816
        %5567 = vmatpush.bf16.msra.mxu0 %v1814
        %5568 = vmatmul.bf16.gmra.mxu0 %v5356
        %v5569 = vpop.f32.mrf.mxu0
        %v5570 = vadd.f32 0.0, %v5569
        %v5571 = vpop.f32.mrf.mxu0
        %v5572 = vadd.f32 0.0, %v5571
        %5573 = vdwg.mxu0
        %5574 = vmatpush.bf16.msra.mxu0 %v1844
        %5575 = vmatpush.bf16.msra.mxu0 %v1842
        %5576 = vmatpush.bf16.msra.mxu0 %v1840
        %5577 = vmatpush.bf16.msra.mxu0 %v1838
        %5578 = vmatpush.bf16.msra.mxu0 %v1836
        %5579 = vmatpush.bf16.msra.mxu0 %v1834
        %5580 = vmatpush.bf16.msra.mxu0 %v1832
        %5581 = vmatpush.bf16.msra.mxu0 %v1830
        %5582 = vmatmul.bf16.gmra.mxu0 %v5357
        %v5583 = vpop.f32.mrf.mxu0
        %v5584 = vadd.f32 %v5570, %v5583
        %v5585 = vpop.f32.mrf.mxu0
        %v5586 = vadd.f32 %v5572, %v5585
        %5587 = vdwg.mxu0
        %v5588 = vpack.c.bf16 %v5584, %v5556
        %v5589 = vpack.c.bf16 %v5586, %v5558
        %5590 = vmatpush.bf16.msra.mxu0 %v2100
        %5591 = vmatpush.bf16.msra.mxu0 %v2098
        %5592 = vmatpush.bf16.msra.mxu0 %v2096
        %5593 = vmatpush.bf16.msra.mxu0 %v2094
        %5594 = vmatpush.bf16.msra.mxu0 %v2092
        %5595 = vmatpush.bf16.msra.mxu0 %v2090
        %5596 = vmatpush.bf16.msra.mxu0 %v2088
        %5597 = vmatpush.bf16.msra.mxu0 %v2086
        %5598 = vmatmul.bf16.gmra.mxu0 %v5356
        %v5599 = vpop.f32.mrf.mxu0
        %v5600 = vadd.f32 0.0, %v5599
        %v5601 = vpop.f32.mrf.mxu0
        %v5602 = vadd.f32 0.0, %v5601
        %5603 = vdwg.mxu0
        %5604 = vmatpush.bf16.msra.mxu0 %v2116
        %5605 = vmatpush.bf16.msra.mxu0 %v2114
        %5606 = vmatpush.bf16.msra.mxu0 %v2112
        %5607 = vmatpush.bf16.msra.mxu0 %v2110
        %5608 = vmatpush.bf16.msra.mxu0 %v2108
        %5609 = vmatpush.bf16.msra.mxu0 %v2106
        %5610 = vmatpush.bf16.msra.mxu0 %v2104
        %5611 = vmatpush.bf16.msra.mxu0 %v2102
        %5612 = vmatmul.bf16.gmra.mxu0 %v5357
        %v5613 = vpop.f32.mrf.mxu0
        %v5614 = vadd.f32 %v5600, %v5613
        %v5615 = vpop.f32.mrf.mxu0
        %v5616 = vadd.f32 %v5602, %v5615
        %5617 = vdwg.mxu0
        %5618 = vmatpush.bf16.msra.mxu0 %v2101
        %5619 = vmatpush.bf16.msra.mxu0 %v2099
        %5620 = vmatpush.bf16.msra.mxu0 %v2097
        %5621 = vmatpush.bf16.msra.mxu0 %v2095
        %5622 = vmatpush.bf16.msra.mxu0 %v2093
        %5623 = vmatpush.bf16.msra.mxu0 %v2091
        %5624 = vmatpush.bf16.msra.mxu0 %v2089
        %5625 = vmatpush.bf16.msra.mxu0 %v2087
        %5626 = vmatmul.bf16.gmra.mxu0 %v5356
        %v5627 = vpop.f32.mrf.mxu0
        %v5628 = vadd.f32 0.0, %v5627
        %v5629 = vpop.f32.mrf.mxu0
        %v5630 = vadd.f32 0.0, %v5629
        %5631 = vdwg.mxu0
        %5632 = vmatpush.bf16.msra.mxu0 %v2117
        %5633 = vmatpush.bf16.msra.mxu0 %v2115
        %5634 = vmatpush.bf16.msra.mxu0 %v2113
        %5635 = vmatpush.bf16.msra.mxu0 %v2111
        %5636 = vmatpush.bf16.msra.mxu0 %v2109
        %5637 = vmatpush.bf16.msra.mxu0 %v2107
        %5638 = vmatpush.bf16.msra.mxu0 %v2105
        %5639 = vmatpush.bf16.msra.mxu0 %v2103
        %5640 = vmatmul.bf16.gmra.mxu0 %v5357
        %v5641 = vpop.f32.mrf.mxu0
        %v5642 = vadd.f32 %v5628, %v5641
        %v5643 = vpop.f32.mrf.mxu0
        %v5644 = vadd.f32 %v5630, %v5643
        %5645 = vdwg.mxu0
        %v5646 = vpack.c.bf16 %v5642, %v5614
        %v5647 = vpack.c.bf16 %v5644, %v5616
        %5648 = vmatpush.bf16.msra.mxu0 %v2373
        %5649 = vmatpush.bf16.msra.mxu0 %v2371
        %5650 = vmatpush.bf16.msra.mxu0 %v2369
        %5651 = vmatpush.bf16.msra.mxu0 %v2367
        %5652 = vmatpush.bf16.msra.mxu0 %v2365
        %5653 = vmatpush.bf16.msra.mxu0 %v2363
        %5654 = vmatpush.bf16.msra.mxu0 %v2361
        %5655 = vmatpush.bf16.msra.mxu0 %v2359
        %5656 = vmatmul.bf16.gmra.mxu0 %v5356
        %v5657 = vpop.f32.mrf.mxu0
        %v5658 = vadd.f32 0.0, %v5657
        %v5659 = vpop.f32.mrf.mxu0
        %v5660 = vadd.f32 0.0, %v5659
        %5661 = vdwg.mxu0
        %5662 = vmatpush.bf16.msra.mxu0 %v2389
        %5663 = vmatpush.bf16.msra.mxu0 %v2387
        %5664 = vmatpush.bf16.msra.mxu0 %v2385
        %5665 = vmatpush.bf16.msra.mxu0 %v2383
        %5666 = vmatpush.bf16.msra.mxu0 %v2381
        %5667 = vmatpush.bf16.msra.mxu0 %v2379
        %5668 = vmatpush.bf16.msra.mxu0 %v2377
        %5669 = vmatpush.bf16.msra.mxu0 %v2375
        %5670 = vmatmul.bf16.gmra.mxu0 %v5357
        %v5671 = vpop.f32.mrf.mxu0
        %v5672 = vadd.f32 %v5658, %v5671
        %v5673 = vpop.f32.mrf.mxu0
        %v5674 = vadd.f32 %v5660, %v5673
        %5675 = vdwg.mxu0
        %5676 = vmatpush.bf16.msra.mxu0 %v2374
        %5677 = vmatpush.bf16.msra.mxu0 %v2372
        %5678 = vmatpush.bf16.msra.mxu0 %v2370
        %5679 = vmatpush.bf16.msra.mxu0 %v2368
        %5680 = vmatpush.bf16.msra.mxu0 %v2366
        %5681 = vmatpush.bf16.msra.mxu0 %v2364
        %5682 = vmatpush.bf16.msra.mxu0 %v2362
        %5683 = vmatpush.bf16.msra.mxu0 %v2360
        %5684 = vmatmul.bf16.gmra.mxu0 %v5356
        %v5685 = vpop.f32.mrf.mxu0
        %v5686 = vadd.f32 0.0, %v5685
        %v5687 = vpop.f32.mrf.mxu0
        %v5688 = vadd.f32 0.0, %v5687
        %5689 = vdwg.mxu0
        %5690 = vmatpush.bf16.msra.mxu0 %v2390
        %5691 = vmatpush.bf16.msra.mxu0 %v2388
        %5692 = vmatpush.bf16.msra.mxu0 %v2386
        %5693 = vmatpush.bf16.msra.mxu0 %v2384
        %5694 = vmatpush.bf16.msra.mxu0 %v2382
        %5695 = vmatpush.bf16.msra.mxu0 %v2380
        %5696 = vmatpush.bf16.msra.mxu0 %v2378
        %5697 = vmatpush.bf16.msra.mxu0 %v2376
        %5698 = vmatmul.bf16.gmra.mxu0 %v5357
        %v5699 = vpop.f32.mrf.mxu0
        %v5700 = vadd.f32 %v5686, %v5699
        %v5701 = vpop.f32.mrf.mxu0
        %v5702 = vadd.f32 %v5688, %v5701
        %5703 = vdwg.mxu0
        %v5704 = vpack.c.bf16 %v5700, %v5672
        %v5705 = vpack.c.bf16 %v5702, %v5674
        %5706 = vmatpush.bf16.msra.mxu0 %v2646
        %5707 = vmatpush.bf16.msra.mxu0 %v2644
        %5708 = vmatpush.bf16.msra.mxu0 %v2642
        %5709 = vmatpush.bf16.msra.mxu0 %v2640
        %5710 = vmatpush.bf16.msra.mxu0 %v2638
        %5711 = vmatpush.bf16.msra.mxu0 %v2636
        %5712 = vmatpush.bf16.msra.mxu0 %v2634
        %5713 = vmatpush.bf16.msra.mxu0 %v2632
        %5714 = vmatmul.bf16.gmra.mxu0 %v5356
        %v5715 = vpop.f32.mrf.mxu0
        %v5716 = vadd.f32 0.0, %v5715
        %v5717 = vpop.f32.mrf.mxu0
        %v5718 = vadd.f32 0.0, %v5717
        %5719 = vdwg.mxu0
        %5720 = vmatpush.bf16.msra.mxu0 %v2662
        %5721 = vmatpush.bf16.msra.mxu0 %v2660
        %5722 = vmatpush.bf16.msra.mxu0 %v2658
        %5723 = vmatpush.bf16.msra.mxu0 %v2656
        %5724 = vmatpush.bf16.msra.mxu0 %v2654
        %5725 = vmatpush.bf16.msra.mxu0 %v2652
        %5726 = vmatpush.bf16.msra.mxu0 %v2650
        %5727 = vmatpush.bf16.msra.mxu0 %v2648
        %5728 = vmatmul.bf16.gmra.mxu0 %v5357
        %v5729 = vpop.f32.mrf.mxu0
        %v5730 = vadd.f32 %v5716, %v5729
        %v5731 = vpop.f32.mrf.mxu0
        %v5732 = vadd.f32 %v5718, %v5731
        %5733 = vdwg.mxu0
        %5734 = vmatpush.bf16.msra.mxu0 %v2647
        %5735 = vmatpush.bf16.msra.mxu0 %v2645
        %5736 = vmatpush.bf16.msra.mxu0 %v2643
        %5737 = vmatpush.bf16.msra.mxu0 %v2641
        %5738 = vmatpush.bf16.msra.mxu0 %v2639
        %5739 = vmatpush.bf16.msra.mxu0 %v2637
        %5740 = vmatpush.bf16.msra.mxu0 %v2635
        %5741 = vmatpush.bf16.msra.mxu0 %v2633
        %5742 = vmatmul.bf16.gmra.mxu0 %v5356
        %v5743 = vpop.f32.mrf.mxu0
        %v5744 = vadd.f32 0.0, %v5743
        %v5745 = vpop.f32.mrf.mxu0
        %v5746 = vadd.f32 0.0, %v5745
        %5747 = vdwg.mxu0
        %5748 = vmatpush.bf16.msra.mxu0 %v2663
        %5749 = vmatpush.bf16.msra.mxu0 %v2661
        %5750 = vmatpush.bf16.msra.mxu0 %v2659
        %5751 = vmatpush.bf16.msra.mxu0 %v2657
        %5752 = vmatpush.bf16.msra.mxu0 %v2655
        %5753 = vmatpush.bf16.msra.mxu0 %v2653
        %5754 = vmatpush.bf16.msra.mxu0 %v2651
        %5755 = vmatpush.bf16.msra.mxu0 %v2649
        %5756 = vmatmul.bf16.gmra.mxu0 %v5357
        %v5757 = vpop.f32.mrf.mxu0
        %v5758 = vadd.f32 %v5744, %v5757
        %v5759 = vpop.f32.mrf.mxu0
        %v5760 = vadd.f32 %v5746, %v5759
        %5761 = vdwg.mxu0
        %v5762 = vpack.c.bf16 %v5758, %v5730
        %v5763 = vpack.c.bf16 %v5760, %v5732
        %5764 = vmatpush.bf16.msra.mxu0 %v2919
        %5765 = vmatpush.bf16.msra.mxu0 %v2917
        %5766 = vmatpush.bf16.msra.mxu0 %v2915
        %5767 = vmatpush.bf16.msra.mxu0 %v2913
        %5768 = vmatpush.bf16.msra.mxu0 %v2911
        %5769 = vmatpush.bf16.msra.mxu0 %v2909
        %5770 = vmatpush.bf16.msra.mxu0 %v2907
        %5771 = vmatpush.bf16.msra.mxu0 %v2905
        %5772 = vmatmul.bf16.gmra.mxu0 %v5356
        %v5773 = vpop.f32.mrf.mxu0
        %v5774 = vadd.f32 0.0, %v5773
        %v5775 = vpop.f32.mrf.mxu0
        %v5776 = vadd.f32 0.0, %v5775
        %5777 = vdwg.mxu0
        %5778 = vmatpush.bf16.msra.mxu0 %v2935
        %5779 = vmatpush.bf16.msra.mxu0 %v2933
        %5780 = vmatpush.bf16.msra.mxu0 %v2931
        %5781 = vmatpush.bf16.msra.mxu0 %v2929
        %5782 = vmatpush.bf16.msra.mxu0 %v2927
        %5783 = vmatpush.bf16.msra.mxu0 %v2925
        %5784 = vmatpush.bf16.msra.mxu0 %v2923
        %5785 = vmatpush.bf16.msra.mxu0 %v2921
        %5786 = vmatmul.bf16.gmra.mxu0 %v5357
        %v5787 = vpop.f32.mrf.mxu0
        %v5788 = vadd.f32 %v5774, %v5787
        %v5789 = vpop.f32.mrf.mxu0
        %v5790 = vadd.f32 %v5776, %v5789
        %5791 = vdwg.mxu0
        %5792 = vmatpush.bf16.msra.mxu0 %v2920
        %5793 = vmatpush.bf16.msra.mxu0 %v2918
        %5794 = vmatpush.bf16.msra.mxu0 %v2916
        %5795 = vmatpush.bf16.msra.mxu0 %v2914
        %5796 = vmatpush.bf16.msra.mxu0 %v2912
        %5797 = vmatpush.bf16.msra.mxu0 %v2910
        %5798 = vmatpush.bf16.msra.mxu0 %v2908
        %5799 = vmatpush.bf16.msra.mxu0 %v2906
        %5800 = vmatmul.bf16.gmra.mxu0 %v5356
        %v5801 = vpop.f32.mrf.mxu0
        %v5802 = vadd.f32 0.0, %v5801
        %v5803 = vpop.f32.mrf.mxu0
        %v5804 = vadd.f32 0.0, %v5803
        %5805 = vdwg.mxu0
        %5806 = vmatpush.bf16.msra.mxu0 %v2936
        %5807 = vmatpush.bf16.msra.mxu0 %v2934
        %5808 = vmatpush.bf16.msra.mxu0 %v2932
        %5809 = vmatpush.bf16.msra.mxu0 %v2930
        %5810 = vmatpush.bf16.msra.mxu0 %v2928
        %5811 = vmatpush.bf16.msra.mxu0 %v2926
        %5812 = vmatpush.bf16.msra.mxu0 %v2924
        %5813 = vmatpush.bf16.msra.mxu0 %v2922
        %5814 = vmatmul.bf16.gmra.mxu0 %v5357
        %v5815 = vpop.f32.mrf.mxu0
        %v5816 = vadd.f32 %v5802, %v5815
        %v5817 = vpop.f32.mrf.mxu0
        %v5818 = vadd.f32 %v5804, %v5817
        %5819 = vdwg.mxu0
        %v5820 = vpack.c.bf16 %v5816, %v5788
        %v5821 = vpack.c.bf16 %v5818, %v5790
        %5822 = vmatpush.bf16.msra.mxu0 %v3192
        %5823 = vmatpush.bf16.msra.mxu0 %v3190
        %5824 = vmatpush.bf16.msra.mxu0 %v3188
        %5825 = vmatpush.bf16.msra.mxu0 %v3186
        %5826 = vmatpush.bf16.msra.mxu0 %v3184
        %5827 = vmatpush.bf16.msra.mxu0 %v3182
        %5828 = vmatpush.bf16.msra.mxu0 %v3180
        %5829 = vmatpush.bf16.msra.mxu0 %v3178
        %5830 = vmatmul.bf16.gmra.mxu0 %v5356
        %v5831 = vpop.f32.mrf.mxu0
        %v5832 = vadd.f32 0.0, %v5831
        %v5833 = vpop.f32.mrf.mxu0
        %v5834 = vadd.f32 0.0, %v5833
        %5835 = vdwg.mxu0
        %5836 = vmatpush.bf16.msra.mxu0 %v3208
        %5837 = vmatpush.bf16.msra.mxu0 %v3206
        %5838 = vmatpush.bf16.msra.mxu0 %v3204
        %5839 = vmatpush.bf16.msra.mxu0 %v3202
        %5840 = vmatpush.bf16.msra.mxu0 %v3200
        %5841 = vmatpush.bf16.msra.mxu0 %v3198
        %5842 = vmatpush.bf16.msra.mxu0 %v3196
        %5843 = vmatpush.bf16.msra.mxu0 %v3194
        %5844 = vmatmul.bf16.gmra.mxu0 %v5357
        %v5845 = vpop.f32.mrf.mxu0
        %v5846 = vadd.f32 %v5832, %v5845
        %v5847 = vpop.f32.mrf.mxu0
        %v5848 = vadd.f32 %v5834, %v5847
        %5849 = vdwg.mxu0
        %5850 = vmatpush.bf16.msra.mxu0 %v3193
        %5851 = vmatpush.bf16.msra.mxu0 %v3191
        %5852 = vmatpush.bf16.msra.mxu0 %v3189
        %5853 = vmatpush.bf16.msra.mxu0 %v3187
        %5854 = vmatpush.bf16.msra.mxu0 %v3185
        %5855 = vmatpush.bf16.msra.mxu0 %v3183
        %5856 = vmatpush.bf16.msra.mxu0 %v3181
        %5857 = vmatpush.bf16.msra.mxu0 %v3179
        %5858 = vmatmul.bf16.gmra.mxu0 %v5356
        %v5859 = vpop.f32.mrf.mxu0
        %v5860 = vadd.f32 0.0, %v5859
        %v5861 = vpop.f32.mrf.mxu0
        %v5862 = vadd.f32 0.0, %v5861
        %5863 = vdwg.mxu0
        %5864 = vmatpush.bf16.msra.mxu0 %v3209
        %5865 = vmatpush.bf16.msra.mxu0 %v3207
        %5866 = vmatpush.bf16.msra.mxu0 %v3205
        %5867 = vmatpush.bf16.msra.mxu0 %v3203
        %5868 = vmatpush.bf16.msra.mxu0 %v3201
        %5869 = vmatpush.bf16.msra.mxu0 %v3199
        %5870 = vmatpush.bf16.msra.mxu0 %v3197
        %5871 = vmatpush.bf16.msra.mxu0 %v3195
        %5872 = vmatmul.bf16.gmra.mxu0 %v5357
        %v5873 = vpop.f32.mrf.mxu0
        %v5874 = vadd.f32 %v5860, %v5873
        %v5875 = vpop.f32.mrf.mxu0
        %v5876 = vadd.f32 %v5862, %v5875
        %5877 = vdwg.mxu0
        %v5878 = vpack.c.bf16 %v5874, %v5846
        %v5879 = vpack.c.bf16 %v5876, %v5848
        %v5882 = vunpack.c.l.b16 %v5414
        %v5883 = vunpack.c.h.b16 %v5414
        %v5884 = vunpack.c.l.b16 %v5415
        %v5885 = vunpack.c.h.b16 %v5415
        %v5886 = vpack.c.b16 %v5884, %v5882
        %v5887 = vpack.c.b16 %v5885, %v5883
        %v5892 = vunpack.c.l.b16 %v5472
        %v5893 = vunpack.c.h.b16 %v5472
        %v5894 = vunpack.c.l.b16 %v5473
        %v5895 = vunpack.c.h.b16 %v5473
        %v5896 = vpack.c.b16 %v5894, %v5892
        %v5897 = vpack.c.b16 %v5895, %v5893
        %v5902 = vunpack.c.l.b16 %v5530
        %v5903 = vunpack.c.h.b16 %v5530
        %v5904 = vunpack.c.l.b16 %v5531
        %v5905 = vunpack.c.h.b16 %v5531
        %v5906 = vpack.c.b16 %v5904, %v5902
        %v5907 = vpack.c.b16 %v5905, %v5903
        %v5912 = vunpack.c.l.b16 %v5588
        %v5913 = vunpack.c.h.b16 %v5588
        %v5914 = vunpack.c.l.b16 %v5589
        %v5915 = vunpack.c.h.b16 %v5589
        %v5916 = vpack.c.b16 %v5914, %v5912
        %v5917 = vpack.c.b16 %v5915, %v5913
        %v5922 = vunpack.c.l.b16 %v5646
        %v5923 = vunpack.c.h.b16 %v5646
        %v5924 = vunpack.c.l.b16 %v5647
        %v5925 = vunpack.c.h.b16 %v5647
        %v5926 = vpack.c.b16 %v5924, %v5922
        %v5927 = vpack.c.b16 %v5925, %v5923
        %v5932 = vunpack.c.l.b16 %v5704
        %v5933 = vunpack.c.h.b16 %v5704
        %v5934 = vunpack.c.l.b16 %v5705
        %v5935 = vunpack.c.h.b16 %v5705
        %v5936 = vpack.c.b16 %v5934, %v5932
        %v5937 = vpack.c.b16 %v5935, %v5933
        %v5942 = vunpack.c.l.b16 %v5762
        %v5943 = vunpack.c.h.b16 %v5762
        %v5944 = vunpack.c.l.b16 %v5763
        %v5945 = vunpack.c.h.b16 %v5763
        %v5946 = vpack.c.b16 %v5944, %v5942
        %v5947 = vpack.c.b16 %v5945, %v5943
        %v5952 = vunpack.c.l.b16 %v5820
        %v5953 = vunpack.c.h.b16 %v5820
        %v5954 = vunpack.c.l.b16 %v5821
        %v5955 = vunpack.c.h.b16 %v5821
        %v5956 = vpack.c.b16 %v5954, %v5952
        %v5957 = vpack.c.b16 %v5955, %v5953
        %v5962 = vunpack.c.l.b16 %v5878
        %v5963 = vunpack.c.h.b16 %v5878
        %v5964 = vunpack.c.l.b16 %v5879
        %v5965 = vunpack.c.h.b16 %v5879
        %v5966 = vpack.c.b16 %v5964, %v5962
        %v5967 = vpack.c.b16 %v5965, %v5963
        %v5970 = vld [vmem:[#allocation13] sm:$0xff]
        %v5971 = vld [vmem:[#allocation13 + $0x8] sm:$0xff]
        %v5972 = vld [vmem:[#allocation15] sm:$0xff]
        %v5973 = vld [vmem:[#allocation15 + $0x8] sm:$0xff]
        %5975 = vset.pattern.permute.xlu0 0
        %5976 = vperm.xlu0 %5975, %v5972
        %v5977 = vpop.permute.xlu0 %5976
        %5980 = vset.pattern.permute.xlu0 0
        %5981 = vperm.xlu0 %5980, %v5973
        %v5982 = vpop.permute.xlu0 %5981
        %v5986 = vunpack.c.l.b16 %v5970
        %v5987 = vunpack.c.h.b16 %v5970
        %v5988 = vunpack.c.l.b16 %v5971
        %v5989 = vunpack.c.h.b16 %v5971
        %v5990 = vpack.c.b16 %v5988, %v5986
        %v5991 = vpack.c.b16 %v5989, %v5987
        %v5994 = vsel %vm5192, %v5991, 0
        %5996 = vmatpush.bf16.msra.mxu0 %v5956
        %5997 = vmatpush.bf16.msra.mxu0 %v5946
        %5998 = vmatpush.bf16.msra.mxu0 %v5936
        %5999 = vmatpush.bf16.msra.mxu0 %v5926
        %6000 = vmatpush.bf16.msra.mxu0 %v5916
        %6001 = vmatpush.bf16.msra.mxu0 %v5906
        %6002 = vmatpush.bf16.msra.mxu0 %v5896
        %6003 = vmatpush.bf16.msra.mxu0 %v5886
        %6004 = vmatmul.bf16.gmra.mxu0 %v5990
        %v6005 = vpop.f32.mrf.mxu0
        %v6006 = vadd.f32 %v5977, %v6005
        %v6007 = vpop.f32.mrf.mxu0
        %v6008 = vadd.f32 %v5982, %v6007
        %6009 = vdwg.mxu0
        %6010 = vmatpush.bf16.msra.mxu0 0
        %6011 = vmatpush.bf16.msra.mxu0 0
        %6012 = vmatpush.bf16.msra.mxu0 0
        %6013 = vmatpush.bf16.msra.mxu0 0
        %6014 = vmatpush.bf16.msra.mxu0 0
        %6015 = vmatpush.bf16.msra.mxu0 0
        %6016 = vmatpush.bf16.msra.mxu0 0
        %6017 = vmatpush.bf16.msra.mxu0 %v5966
        %6018 = vmatmul.bf16.gmra.mxu0 %v5994
        %v6019 = vpop.f32.mrf.mxu0
        %v6020 = vadd.f32 %v6006, %v6019
        %v6021 = vpop.f32.mrf.mxu0
        %v6022 = vadd.f32 %v6008, %v6021
        %6023 = vdwg.mxu0
        %6024 = vmatpush.bf16.msra.mxu0 %v5957
        %6025 = vmatpush.bf16.msra.mxu0 %v5947
        %6026 = vmatpush.bf16.msra.mxu0 %v5937
        %6027 = vmatpush.bf16.msra.mxu0 %v5927
        %6028 = vmatpush.bf16.msra.mxu0 %v5917
        %6029 = vmatpush.bf16.msra.mxu0 %v5907
        %6030 = vmatpush.bf16.msra.mxu0 %v5897
        %6031 = vmatpush.bf16.msra.mxu0 %v5887
        %6032 = vmatmul.bf16.gmra.mxu0 %v5990
        %v6033 = vpop.f32.mrf.mxu0
        %v6034 = vadd.f32 %v5977, %v6033
        %v6035 = vpop.f32.mrf.mxu0
        %v6036 = vadd.f32 %v5982, %v6035
        %6037 = vdwg.mxu0
        %6038 = vmatpush.bf16.msra.mxu0 0
        %6039 = vmatpush.bf16.msra.mxu0 0
        %6040 = vmatpush.bf16.msra.mxu0 0
        %6041 = vmatpush.bf16.msra.mxu0 0
        %6042 = vmatpush.bf16.msra.mxu0 0
        %6043 = vmatpush.bf16.msra.mxu0 0
        %6044 = vmatpush.bf16.msra.mxu0 0
        %6045 = vmatpush.bf16.msra.mxu0 %v5967
        %6046 = vmatmul.bf16.gmra.mxu0 %v5994
        %v6047 = vpop.f32.mrf.mxu0
        %v6048 = vadd.f32 %v6034, %v6047
        %v6049 = vpop.f32.mrf.mxu0
        %v6050 = vadd.f32 %v6036, %v6049
        %6051 = vdwg.mxu0
        %v6052 = vmax.f32 %v6020, 0.0
        %v6053 = vmax.f32 %v6048, 0.0
        %v6054 = vmax.f32 %v6022, 0.0
        %v6055 = vmax.f32 %v6050, 0.0
        %v6056 = vpack.c.bf16 %v6054, %v6052
        %v6057 = vpack.c.bf16 %v6055, %v6053
        %v6058 = vpack.c.bf16 %v5354, %v5352
        %v6059 = vpack.c.bf16 %v5355, %v5353
        %6060 = vmatpush.bf16.msra.mxu0 %v1008
        %6061 = vmatpush.bf16.msra.mxu0 %v1006
        %6062 = vmatpush.bf16.msra.mxu0 %v1004
        %6063 = vmatpush.bf16.msra.mxu0 %v1002
        %6064 = vmatpush.bf16.msra.mxu0 %v1000
        %6065 = vmatpush.bf16.msra.mxu0 %v998
        %6066 = vmatpush.bf16.msra.mxu0 %v996
        %6067 = vmatpush.bf16.msra.mxu0 %v994
        %6068 = vmatmul.bf16.gmra.mxu0 %v6056
        %v6069 = vpop.f32.mrf.mxu0
        %v6070 = vadd.f32 0.0, %v6069
        %v6071 = vpop.f32.mrf.mxu0
        %v6072 = vadd.f32 0.0, %v6071
        %6073 = vmatmul.bf16.gmra.mxu0 %v6058
        %v6074 = vpop.f32.mrf.mxu0
        %v6075 = vadd.f32 0.0, %v6074
        %v6076 = vpop.f32.mrf.mxu0
        %v6077 = vadd.f32 0.0, %v6076
        %6078 = vdwg.mxu0
        %6079 = vmatpush.bf16.msra.mxu0 %v1024
        %6080 = vmatpush.bf16.msra.mxu0 %v1022
        %6081 = vmatpush.bf16.msra.mxu0 %v1020
        %6082 = vmatpush.bf16.msra.mxu0 %v1018
        %6083 = vmatpush.bf16.msra.mxu0 %v1016
        %6084 = vmatpush.bf16.msra.mxu0 %v1014
        %6085 = vmatpush.bf16.msra.mxu0 %v1012
        %6086 = vmatpush.bf16.msra.mxu0 %v1010
        %6087 = vmatmul.bf16.gmra.mxu0 %v6057
        %v6088 = vpop.f32.mrf.mxu0
        %v6089 = vadd.f32 %v6070, %v6088
        %v6090 = vpop.f32.mrf.mxu0
        %v6091 = vadd.f32 %v6072, %v6090
        %6092 = vmatmul.bf16.gmra.mxu0 %v6059
        %v6093 = vpop.f32.mrf.mxu0
        %v6094 = vadd.f32 %v6075, %v6093
        %v6095 = vpop.f32.mrf.mxu0
        %v6096 = vadd.f32 %v6077, %v6095
        %6097 = vdwg.mxu0
        %6098 = vmatpush.bf16.msra.mxu0 %v1009
        %6099 = vmatpush.bf16.msra.mxu0 %v1007
        %6100 = vmatpush.bf16.msra.mxu0 %v1005
        %6101 = vmatpush.bf16.msra.mxu0 %v1003
        %6102 = vmatpush.bf16.msra.mxu0 %v1001
        %6103 = vmatpush.bf16.msra.mxu0 %v999
        %6104 = vmatpush.bf16.msra.mxu0 %v997
        %6105 = vmatpush.bf16.msra.mxu0 %v995
        %6106 = vmatmul.bf16.gmra.mxu0 %v6056
        %v6107 = vpop.f32.mrf.mxu0
        %v6108 = vadd.f32 0.0, %v6107
        %v6109 = vpop.f32.mrf.mxu0
        %v6110 = vadd.f32 0.0, %v6109
        %6111 = vmatmul.bf16.gmra.mxu0 %v6058
        %v6112 = vpop.f32.mrf.mxu0
        %v6113 = vadd.f32 0.0, %v6112
        %v6114 = vpop.f32.mrf.mxu0
        %v6115 = vadd.f32 0.0, %v6114
        %6116 = vdwg.mxu0
        %6117 = vmatpush.bf16.msra.mxu0 %v1025
        %6118 = vmatpush.bf16.msra.mxu0 %v1023
        %6119 = vmatpush.bf16.msra.mxu0 %v1021
        %6120 = vmatpush.bf16.msra.mxu0 %v1019
        %6121 = vmatpush.bf16.msra.mxu0 %v1017
        %6122 = vmatpush.bf16.msra.mxu0 %v1015
        %6123 = vmatpush.bf16.msra.mxu0 %v1013
        %6124 = vmatpush.bf16.msra.mxu0 %v1011
        %6125 = vmatmul.bf16.gmra.mxu0 %v6057
        %v6126 = vpop.f32.mrf.mxu0
        %v6127 = vadd.f32 %v6108, %v6126
        %v6128 = vpop.f32.mrf.mxu0
        %v6129 = vadd.f32 %v6110, %v6128
        %6130 = vmatmul.bf16.gmra.mxu0 %v6059
        %v6131 = vpop.f32.mrf.mxu0
        %v6132 = vadd.f32 %v6113, %v6131
        %v6133 = vpop.f32.mrf.mxu0
        %v6134 = vadd.f32 %v6115, %v6133
        %6135 = vdwg.mxu0
        %v6136 = vpack.c.bf16 %v6127, %v6089
        %v6137 = vpack.c.bf16 %v6129, %v6091
        %v6138 = vpack.c.bf16 %v6132, %v6094
        %v6139 = vpack.c.bf16 %v6134, %v6096
        %6140 = vmatpush.bf16.msra.mxu0 %v1281
        %6141 = vmatpush.bf16.msra.mxu0 %v1279
        %6142 = vmatpush.bf16.msra.mxu0 %v1277
        %6143 = vmatpush.bf16.msra.mxu0 %v1275
        %6144 = vmatpush.bf16.msra.mxu0 %v1273
        %6145 = vmatpush.bf16.msra.mxu0 %v1271
        %6146 = vmatpush.bf16.msra.mxu0 %v1269
        %6147 = vmatpush.bf16.msra.mxu0 %v1267
        %6148 = vmatmul.bf16.gmra.mxu0 %v6056
        %v6149 = vpop.f32.mrf.mxu0
        %v6150 = vadd.f32 0.0, %v6149
        %v6151 = vpop.f32.mrf.mxu0
        %v6152 = vadd.f32 0.0, %v6151
        %6153 = vmatmul.bf16.gmra.mxu0 %v6058
        %v6154 = vpop.f32.mrf.mxu0
        %v6155 = vadd.f32 0.0, %v6154
        %v6156 = vpop.f32.mrf.mxu0
        %v6157 = vadd.f32 0.0, %v6156
        %6158 = vdwg.mxu0
        %6159 = vmatpush.bf16.msra.mxu0 %v1297
        %6160 = vmatpush.bf16.msra.mxu0 %v1295
        %6161 = vmatpush.bf16.msra.mxu0 %v1293
        %6162 = vmatpush.bf16.msra.mxu0 %v1291
        %6163 = vmatpush.bf16.msra.mxu0 %v1289
        %6164 = vmatpush.bf16.msra.mxu0 %v1287
        %6165 = vmatpush.bf16.msra.mxu0 %v1285
        %6166 = vmatpush.bf16.msra.mxu0 %v1283
        %6167 = vmatmul.bf16.gmra.mxu0 %v6057
        %v6168 = vpop.f32.mrf.mxu0
        %v6169 = vadd.f32 %v6150, %v6168
        %v6170 = vpop.f32.mrf.mxu0
        %v6171 = vadd.f32 %v6152, %v6170
        %6172 = vmatmul.bf16.gmra.mxu0 %v6059
        %v6173 = vpop.f32.mrf.mxu0
        %v6174 = vadd.f32 %v6155, %v6173
        %v6175 = vpop.f32.mrf.mxu0
        %v6176 = vadd.f32 %v6157, %v6175
        %6177 = vdwg.mxu0
        %6178 = vmatpush.bf16.msra.mxu0 %v1282
        %6179 = vmatpush.bf16.msra.mxu0 %v1280
        %6180 = vmatpush.bf16.msra.mxu0 %v1278
        %6181 = vmatpush.bf16.msra.mxu0 %v1276
        %6182 = vmatpush.bf16.msra.mxu0 %v1274
        %6183 = vmatpush.bf16.msra.mxu0 %v1272
        %6184 = vmatpush.bf16.msra.mxu0 %v1270
        %6185 = vmatpush.bf16.msra.mxu0 %v1268
        %6186 = vmatmul.bf16.gmra.mxu0 %v6056
        %v6187 = vpop.f32.mrf.mxu0
        %v6188 = vadd.f32 0.0, %v6187
        %v6189 = vpop.f32.mrf.mxu0
        %v6190 = vadd.f32 0.0, %v6189
        %6191 = vmatmul.bf16.gmra.mxu0 %v6058
        %v6192 = vpop.f32.mrf.mxu0
        %v6193 = vadd.f32 0.0, %v6192
        %v6194 = vpop.f32.mrf.mxu0
        %v6195 = vadd.f32 0.0, %v6194
        %6196 = vdwg.mxu0
        %6197 = vmatpush.bf16.msra.mxu0 %v1298
        %6198 = vmatpush.bf16.msra.mxu0 %v1296
        %6199 = vmatpush.bf16.msra.mxu0 %v1294
        %6200 = vmatpush.bf16.msra.mxu0 %v1292
        %6201 = vmatpush.bf16.msra.mxu0 %v1290
        %6202 = vmatpush.bf16.msra.mxu0 %v1288
        %6203 = vmatpush.bf16.msra.mxu0 %v1286
        %6204 = vmatpush.bf16.msra.mxu0 %v1284
        %6205 = vmatmul.bf16.gmra.mxu0 %v6057
        %v6206 = vpop.f32.mrf.mxu0
        %v6207 = vadd.f32 %v6188, %v6206
        %v6208 = vpop.f32.mrf.mxu0
        %v6209 = vadd.f32 %v6190, %v6208
        %6210 = vmatmul.bf16.gmra.mxu0 %v6059
        %v6211 = vpop.f32.mrf.mxu0
        %v6212 = vadd.f32 %v6193, %v6211
        %v6213 = vpop.f32.mrf.mxu0
        %v6214 = vadd.f32 %v6195, %v6213
        %6215 = vdwg.mxu0
        %v6216 = vpack.c.bf16 %v6207, %v6169
        %v6217 = vpack.c.bf16 %v6209, %v6171
        %v6218 = vpack.c.bf16 %v6212, %v6174
        %v6219 = vpack.c.bf16 %v6214, %v6176
        %6220 = vmatpush.bf16.msra.mxu0 %v1554
        %6221 = vmatpush.bf16.msra.mxu0 %v1552
        %6222 = vmatpush.bf16.msra.mxu0 %v1550
        %6223 = vmatpush.bf16.msra.mxu0 %v1548
        %6224 = vmatpush.bf16.msra.mxu0 %v1546
        %6225 = vmatpush.bf16.msra.mxu0 %v1544
        %6226 = vmatpush.bf16.msra.mxu0 %v1542
        %6227 = vmatpush.bf16.msra.mxu0 %v1540
        %6228 = vmatmul.bf16.gmra.mxu0 %v6056
        %v6229 = vpop.f32.mrf.mxu0
        %v6230 = vadd.f32 0.0, %v6229
        %v6231 = vpop.f32.mrf.mxu0
        %v6232 = vadd.f32 0.0, %v6231
        %6233 = vmatmul.bf16.gmra.mxu0 %v6058
        %v6234 = vpop.f32.mrf.mxu0
        %v6235 = vadd.f32 0.0, %v6234
        %v6236 = vpop.f32.mrf.mxu0
        %v6237 = vadd.f32 0.0, %v6236
        %6238 = vdwg.mxu0
        %6239 = vmatpush.bf16.msra.mxu0 %v1570
        %6240 = vmatpush.bf16.msra.mxu0 %v1568
        %6241 = vmatpush.bf16.msra.mxu0 %v1566
        %6242 = vmatpush.bf16.msra.mxu0 %v1564
        %6243 = vmatpush.bf16.msra.mxu0 %v1562
        %6244 = vmatpush.bf16.msra.mxu0 %v1560
        %6245 = vmatpush.bf16.msra.mxu0 %v1558
        %6246 = vmatpush.bf16.msra.mxu0 %v1556
        %6247 = vmatmul.bf16.gmra.mxu0 %v6057
        %v6248 = vpop.f32.mrf.mxu0
        %v6249 = vadd.f32 %v6230, %v6248
        %v6250 = vpop.f32.mrf.mxu0
        %v6251 = vadd.f32 %v6232, %v6250
        %6252 = vmatmul.bf16.gmra.mxu0 %v6059
        %v6253 = vpop.f32.mrf.mxu0
        %v6254 = vadd.f32 %v6235, %v6253
        %v6255 = vpop.f32.mrf.mxu0
        %v6256 = vadd.f32 %v6237, %v6255
        %6257 = vdwg.mxu0
        %6258 = vmatpush.bf16.msra.mxu0 %v1555
        %6259 = vmatpush.bf16.msra.mxu0 %v1553
        %6260 = vmatpush.bf16.msra.mxu0 %v1551
        %6261 = vmatpush.bf16.msra.mxu0 %v1549
        %6262 = vmatpush.bf16.msra.mxu0 %v1547
        %6263 = vmatpush.bf16.msra.mxu0 %v1545
        %6264 = vmatpush.bf16.msra.mxu0 %v1543
        %6265 = vmatpush.bf16.msra.mxu0 %v1541
        %6266 = vmatmul.bf16.gmra.mxu0 %v6056
        %v6267 = vpop.f32.mrf.mxu0
        %v6268 = vadd.f32 0.0, %v6267
        %v6269 = vpop.f32.mrf.mxu0
        %v6270 = vadd.f32 0.0, %v6269
        %6271 = vmatmul.bf16.gmra.mxu0 %v6058
        %v6272 = vpop.f32.mrf.mxu0
        %v6273 = vadd.f32 0.0, %v6272
        %v6274 = vpop.f32.mrf.mxu0
        %v6275 = vadd.f32 0.0, %v6274
        %6276 = vdwg.mxu0
        %6277 = vmatpush.bf16.msra.mxu0 %v1571
        %6278 = vmatpush.bf16.msra.mxu0 %v1569
        %6279 = vmatpush.bf16.msra.mxu0 %v1567
        %6280 = vmatpush.bf16.msra.mxu0 %v1565
        %6281 = vmatpush.bf16.msra.mxu0 %v1563
        %6282 = vmatpush.bf16.msra.mxu0 %v1561
        %6283 = vmatpush.bf16.msra.mxu0 %v1559
        %6284 = vmatpush.bf16.msra.mxu0 %v1557
        %6285 = vmatmul.bf16.gmra.mxu0 %v6057
        %v6286 = vpop.f32.mrf.mxu0
        %v6287 = vadd.f32 %v6268, %v6286
        %v6288 = vpop.f32.mrf.mxu0
        %v6289 = vadd.f32 %v6270, %v6288
        %6290 = vmatmul.bf16.gmra.mxu0 %v6059
        %v6291 = vpop.f32.mrf.mxu0
        %v6292 = vadd.f32 %v6273, %v6291
        %v6293 = vpop.f32.mrf.mxu0
        %v6294 = vadd.f32 %v6275, %v6293
        %6295 = vdwg.mxu0
        %v6296 = vpack.c.bf16 %v6287, %v6249
        %v6297 = vpack.c.bf16 %v6289, %v6251
        %v6298 = vpack.c.bf16 %v6292, %v6254
        %v6299 = vpack.c.bf16 %v6294, %v6256
        %6300 = vmatpush.bf16.msra.mxu0 %v1827
        %6301 = vmatpush.bf16.msra.mxu0 %v1825
        %6302 = vmatpush.bf16.msra.mxu0 %v1823
        %6303 = vmatpush.bf16.msra.mxu0 %v1821
        %6304 = vmatpush.bf16.msra.mxu0 %v1819
        %6305 = vmatpush.bf16.msra.mxu0 %v1817
        %6306 = vmatpush.bf16.msra.mxu0 %v1815
        %6307 = vmatpush.bf16.msra.mxu0 %v1813
        %6308 = vmatmul.bf16.gmra.mxu0 %v6056
        %v6309 = vpop.f32.mrf.mxu0
        %v6310 = vadd.f32 0.0, %v6309
        %v6311 = vpop.f32.mrf.mxu0
        %v6312 = vadd.f32 0.0, %v6311
        %6313 = vmatmul.bf16.gmra.mxu0 %v6058
        %v6314 = vpop.f32.mrf.mxu0
        %v6315 = vadd.f32 0.0, %v6314
        %v6316 = vpop.f32.mrf.mxu0
        %v6317 = vadd.f32 0.0, %v6316
        %6318 = vdwg.mxu0
        %6319 = vmatpush.bf16.msra.mxu0 %v1843
        %6320 = vmatpush.bf16.msra.mxu0 %v1841
        %6321 = vmatpush.bf16.msra.mxu0 %v1839
        %6322 = vmatpush.bf16.msra.mxu0 %v1837
        %6323 = vmatpush.bf16.msra.mxu0 %v1835
        %6324 = vmatpush.bf16.msra.mxu0 %v1833
        %6325 = vmatpush.bf16.msra.mxu0 %v1831
        %6326 = vmatpush.bf16.msra.mxu0 %v1829
        %6327 = vmatmul.bf16.gmra.mxu0 %v6057
        %v6328 = vpop.f32.mrf.mxu0
        %v6329 = vadd.f32 %v6310, %v6328
        %v6330 = vpop.f32.mrf.mxu0
        %v6331 = vadd.f32 %v6312, %v6330
        %6332 = vmatmul.bf16.gmra.mxu0 %v6059
        %v6333 = vpop.f32.mrf.mxu0
        %v6334 = vadd.f32 %v6315, %v6333
        %v6335 = vpop.f32.mrf.mxu0
        %v6336 = vadd.f32 %v6317, %v6335
        %6337 = vdwg.mxu0
        %6338 = vmatpush.bf16.msra.mxu0 %v1828
        %6339 = vmatpush.bf16.msra.mxu0 %v1826
        %6340 = vmatpush.bf16.msra.mxu0 %v1824
        %6341 = vmatpush.bf16.msra.mxu0 %v1822
        %6342 = vmatpush.bf16.msra.mxu0 %v1820
        %6343 = vmatpush.bf16.msra.mxu0 %v1818
        %6344 = vmatpush.bf16.msra.mxu0 %v1816
        %6345 = vmatpush.bf16.msra.mxu0 %v1814
        %6346 = vmatmul.bf16.gmra.mxu0 %v6056
        %v6347 = vpop.f32.mrf.mxu0
        %v6348 = vadd.f32 0.0, %v6347
        %v6349 = vpop.f32.mrf.mxu0
        %v6350 = vadd.f32 0.0, %v6349
        %6351 = vmatmul.bf16.gmra.mxu0 %v6058
        %v6352 = vpop.f32.mrf.mxu0
        %v6353 = vadd.f32 0.0, %v6352
        %v6354 = vpop.f32.mrf.mxu0
        %v6355 = vadd.f32 0.0, %v6354
        %6356 = vdwg.mxu0
        %6357 = vmatpush.bf16.msra.mxu0 %v1844
        %6358 = vmatpush.bf16.msra.mxu0 %v1842
        %6359 = vmatpush.bf16.msra.mxu0 %v1840
        %6360 = vmatpush.bf16.msra.mxu0 %v1838
        %6361 = vmatpush.bf16.msra.mxu0 %v1836
        %6362 = vmatpush.bf16.msra.mxu0 %v1834
        %6363 = vmatpush.bf16.msra.mxu0 %v1832
        %6364 = vmatpush.bf16.msra.mxu0 %v1830
        %6365 = vmatmul.bf16.gmra.mxu0 %v6057
        %v6366 = vpop.f32.mrf.mxu0
        %v6367 = vadd.f32 %v6348, %v6366
        %v6368 = vpop.f32.mrf.mxu0
        %v6369 = vadd.f32 %v6350, %v6368
        %6370 = vmatmul.bf16.gmra.mxu0 %v6059
        %v6371 = vpop.f32.mrf.mxu0
        %v6372 = vadd.f32 %v6353, %v6371
        %v6373 = vpop.f32.mrf.mxu0
        %v6374 = vadd.f32 %v6355, %v6373
        %6375 = vdwg.mxu0
        %v6376 = vpack.c.bf16 %v6367, %v6329
        %v6377 = vpack.c.bf16 %v6369, %v6331
        %v6378 = vpack.c.bf16 %v6372, %v6334
        %v6379 = vpack.c.bf16 %v6374, %v6336
        %6380 = vmatpush.bf16.msra.mxu0 %v2100
        %6381 = vmatpush.bf16.msra.mxu0 %v2098
        %6382 = vmatpush.bf16.msra.mxu0 %v2096
        %6383 = vmatpush.bf16.msra.mxu0 %v2094
        %6384 = vmatpush.bf16.msra.mxu0 %v2092
        %6385 = vmatpush.bf16.msra.mxu0 %v2090
        %6386 = vmatpush.bf16.msra.mxu0 %v2088
        %6387 = vmatpush.bf16.msra.mxu0 %v2086
        %6388 = vmatmul.bf16.gmra.mxu0 %v6056
        %v6389 = vpop.f32.mrf.mxu0
        %v6390 = vadd.f32 0.0, %v6389
        %v6391 = vpop.f32.mrf.mxu0
        %v6392 = vadd.f32 0.0, %v6391
        %6393 = vmatmul.bf16.gmra.mxu0 %v6058
        %v6394 = vpop.f32.mrf.mxu0
        %v6395 = vadd.f32 0.0, %v6394
        %v6396 = vpop.f32.mrf.mxu0
        %v6397 = vadd.f32 0.0, %v6396
        %6398 = vdwg.mxu0
        %6399 = vmatpush.bf16.msra.mxu0 %v2116
        %6400 = vmatpush.bf16.msra.mxu0 %v2114
        %6401 = vmatpush.bf16.msra.mxu0 %v2112
        %6402 = vmatpush.bf16.msra.mxu0 %v2110
        %6403 = vmatpush.bf16.msra.mxu0 %v2108
        %6404 = vmatpush.bf16.msra.mxu0 %v2106
        %6405 = vmatpush.bf16.msra.mxu0 %v2104
        %6406 = vmatpush.bf16.msra.mxu0 %v2102
        %6407 = vmatmul.bf16.gmra.mxu0 %v6057
        %v6408 = vpop.f32.mrf.mxu0
        %v6409 = vadd.f32 %v6390, %v6408
        %v6410 = vpop.f32.mrf.mxu0
        %v6411 = vadd.f32 %v6392, %v6410
        %6412 = vmatmul.bf16.gmra.mxu0 %v6059
        %v6413 = vpop.f32.mrf.mxu0
        %v6414 = vadd.f32 %v6395, %v6413
        %v6415 = vpop.f32.mrf.mxu0
        %v6416 = vadd.f32 %v6397, %v6415
        %6417 = vdwg.mxu0
        %6418 = vmatpush.bf16.msra.mxu0 %v2101
        %6419 = vmatpush.bf16.msra.mxu0 %v2099
        %6420 = vmatpush.bf16.msra.mxu0 %v2097
        %6421 = vmatpush.bf16.msra.mxu0 %v2095
        %6422 = vmatpush.bf16.msra.mxu0 %v2093
        %6423 = vmatpush.bf16.msra.mxu0 %v2091
        %6424 = vmatpush.bf16.msra.mxu0 %v2089
        %6425 = vmatpush.bf16.msra.mxu0 %v2087
        %6426 = vmatmul.bf16.gmra.mxu0 %v6056
        %v6427 = vpop.f32.mrf.mxu0
        %v6428 = vadd.f32 0.0, %v6427
        %v6429 = vpop.f32.mrf.mxu0
        %v6430 = vadd.f32 0.0, %v6429
        %6431 = vmatmul.bf16.gmra.mxu0 %v6058
        %v6432 = vpop.f32.mrf.mxu0
        %v6433 = vadd.f32 0.0, %v6432
        %v6434 = vpop.f32.mrf.mxu0
        %v6435 = vadd.f32 0.0, %v6434
        %6436 = vdwg.mxu0
        %6437 = vmatpush.bf16.msra.mxu0 %v2117
        %6438 = vmatpush.bf16.msra.mxu0 %v2115
        %6439 = vmatpush.bf16.msra.mxu0 %v2113
        %6440 = vmatpush.bf16.msra.mxu0 %v2111
        %6441 = vmatpush.bf16.msra.mxu0 %v2109
        %6442 = vmatpush.bf16.msra.mxu0 %v2107
        %6443 = vmatpush.bf16.msra.mxu0 %v2105
        %6444 = vmatpush.bf16.msra.mxu0 %v2103
        %6445 = vmatmul.bf16.gmra.mxu0 %v6057
        %v6446 = vpop.f32.mrf.mxu0
        %v6447 = vadd.f32 %v6428, %v6446
        %v6448 = vpop.f32.mrf.mxu0
        %v6449 = vadd.f32 %v6430, %v6448
        %6450 = vmatmul.bf16.gmra.mxu0 %v6059
        %v6451 = vpop.f32.mrf.mxu0
        %v6452 = vadd.f32 %v6433, %v6451
        %v6453 = vpop.f32.mrf.mxu0
        %v6454 = vadd.f32 %v6435, %v6453
        %6455 = vdwg.mxu0
        %v6456 = vpack.c.bf16 %v6447, %v6409
        %v6457 = vpack.c.bf16 %v6449, %v6411
        %v6458 = vpack.c.bf16 %v6452, %v6414
        %v6459 = vpack.c.bf16 %v6454, %v6416
        %6460 = vmatpush.bf16.msra.mxu0 %v2373
        %6461 = vmatpush.bf16.msra.mxu0 %v2371
        %6462 = vmatpush.bf16.msra.mxu0 %v2369
        %6463 = vmatpush.bf16.msra.mxu0 %v2367
        %6464 = vmatpush.bf16.msra.mxu0 %v2365
        %6465 = vmatpush.bf16.msra.mxu0 %v2363
        %6466 = vmatpush.bf16.msra.mxu0 %v2361
        %6467 = vmatpush.bf16.msra.mxu0 %v2359
        %6468 = vmatmul.bf16.gmra.mxu0 %v6056
        %v6469 = vpop.f32.mrf.mxu0
        %v6470 = vadd.f32 0.0, %v6469
        %v6471 = vpop.f32.mrf.mxu0
        %v6472 = vadd.f32 0.0, %v6471
        %6473 = vmatmul.bf16.gmra.mxu0 %v6058
        %v6474 = vpop.f32.mrf.mxu0
        %v6475 = vadd.f32 0.0, %v6474
        %v6476 = vpop.f32.mrf.mxu0
        %v6477 = vadd.f32 0.0, %v6476
        %6478 = vdwg.mxu0
        %6479 = vmatpush.bf16.msra.mxu0 %v2389
        %6480 = vmatpush.bf16.msra.mxu0 %v2387
        %6481 = vmatpush.bf16.msra.mxu0 %v2385
        %6482 = vmatpush.bf16.msra.mxu0 %v2383
        %6483 = vmatpush.bf16.msra.mxu0 %v2381
        %6484 = vmatpush.bf16.msra.mxu0 %v2379
        %6485 = vmatpush.bf16.msra.mxu0 %v2377
        %6486 = vmatpush.bf16.msra.mxu0 %v2375
        %6487 = vmatmul.bf16.gmra.mxu0 %v6057
        %v6488 = vpop.f32.mrf.mxu0
        %v6489 = vadd.f32 %v6470, %v6488
        %v6490 = vpop.f32.mrf.mxu0
        %v6491 = vadd.f32 %v6472, %v6490
        %6492 = vmatmul.bf16.gmra.mxu0 %v6059
        %v6493 = vpop.f32.mrf.mxu0
        %v6494 = vadd.f32 %v6475, %v6493
        %v6495 = vpop.f32.mrf.mxu0
        %v6496 = vadd.f32 %v6477, %v6495
        %6497 = vdwg.mxu0
        %6498 = vmatpush.bf16.msra.mxu0 %v2374
        %6499 = vmatpush.bf16.msra.mxu0 %v2372
        %6500 = vmatpush.bf16.msra.mxu0 %v2370
        %6501 = vmatpush.bf16.msra.mxu0 %v2368
        %6502 = vmatpush.bf16.msra.mxu0 %v2366
        %6503 = vmatpush.bf16.msra.mxu0 %v2364
        %6504 = vmatpush.bf16.msra.mxu0 %v2362
        %6505 = vmatpush.bf16.msra.mxu0 %v2360
        %6506 = vmatmul.bf16.gmra.mxu0 %v6056
        %v6507 = vpop.f32.mrf.mxu0
        %v6508 = vadd.f32 0.0, %v6507
        %v6509 = vpop.f32.mrf.mxu0
        %v6510 = vadd.f32 0.0, %v6509
        %6511 = vmatmul.bf16.gmra.mxu0 %v6058
        %v6512 = vpop.f32.mrf.mxu0
        %v6513 = vadd.f32 0.0, %v6512
        %v6514 = vpop.f32.mrf.mxu0
        %v6515 = vadd.f32 0.0, %v6514
        %6516 = vdwg.mxu0
        %6517 = vmatpush.bf16.msra.mxu0 %v2390
        %6518 = vmatpush.bf16.msra.mxu0 %v2388
        %6519 = vmatpush.bf16.msra.mxu0 %v2386
        %6520 = vmatpush.bf16.msra.mxu0 %v2384
        %6521 = vmatpush.bf16.msra.mxu0 %v2382
        %6522 = vmatpush.bf16.msra.mxu0 %v2380
        %6523 = vmatpush.bf16.msra.mxu0 %v2378
        %6524 = vmatpush.bf16.msra.mxu0 %v2376
        %6525 = vmatmul.bf16.gmra.mxu0 %v6057
        %v6526 = vpop.f32.mrf.mxu0
        %v6527 = vadd.f32 %v6508, %v6526
        %v6528 = vpop.f32.mrf.mxu0
        %v6529 = vadd.f32 %v6510, %v6528
        %6530 = vmatmul.bf16.gmra.mxu0 %v6059
        %v6531 = vpop.f32.mrf.mxu0
        %v6532 = vadd.f32 %v6513, %v6531
        %v6533 = vpop.f32.mrf.mxu0
        %v6534 = vadd.f32 %v6515, %v6533
        %6535 = vdwg.mxu0
        %v6536 = vpack.c.bf16 %v6527, %v6489
        %v6537 = vpack.c.bf16 %v6529, %v6491
        %v6538 = vpack.c.bf16 %v6532, %v6494
        %v6539 = vpack.c.bf16 %v6534, %v6496
        %6540 = vmatpush.bf16.msra.mxu0 %v2646
        %6541 = vmatpush.bf16.msra.mxu0 %v2644
        %6542 = vmatpush.bf16.msra.mxu0 %v2642
        %6543 = vmatpush.bf16.msra.mxu0 %v2640
        %6544 = vmatpush.bf16.msra.mxu0 %v2638
        %6545 = vmatpush.bf16.msra.mxu0 %v2636
        %6546 = vmatpush.bf16.msra.mxu0 %v2634
        %6547 = vmatpush.bf16.msra.mxu0 %v2632
        %6548 = vmatmul.bf16.gmra.mxu0 %v6056
        %v6549 = vpop.f32.mrf.mxu0
        %v6550 = vadd.f32 0.0, %v6549
        %v6551 = vpop.f32.mrf.mxu0
        %v6552 = vadd.f32 0.0, %v6551
        %6553 = vmatmul.bf16.gmra.mxu0 %v6058
        %v6554 = vpop.f32.mrf.mxu0
        %v6555 = vadd.f32 0.0, %v6554
        %v6556 = vpop.f32.mrf.mxu0
        %v6557 = vadd.f32 0.0, %v6556
        %6558 = vdwg.mxu0
        %6559 = vmatpush.bf16.msra.mxu0 %v2662
        %6560 = vmatpush.bf16.msra.mxu0 %v2660
        %6561 = vmatpush.bf16.msra.mxu0 %v2658
        %6562 = vmatpush.bf16.msra.mxu0 %v2656
        %6563 = vmatpush.bf16.msra.mxu0 %v2654
        %6564 = vmatpush.bf16.msra.mxu0 %v2652
        %6565 = vmatpush.bf16.msra.mxu0 %v2650
        %6566 = vmatpush.bf16.msra.mxu0 %v2648
        %6567 = vmatmul.bf16.gmra.mxu0 %v6057
        %v6568 = vpop.f32.mrf.mxu0
        %v6569 = vadd.f32 %v6550, %v6568
        %v6570 = vpop.f32.mrf.mxu0
        %v6571 = vadd.f32 %v6552, %v6570
        %6572 = vmatmul.bf16.gmra.mxu0 %v6059
        %v6573 = vpop.f32.mrf.mxu0
        %v6574 = vadd.f32 %v6555, %v6573
        %v6575 = vpop.f32.mrf.mxu0
        %v6576 = vadd.f32 %v6557, %v6575
        %6577 = vdwg.mxu0
        %6578 = vmatpush.bf16.msra.mxu0 %v2647
        %6579 = vmatpush.bf16.msra.mxu0 %v2645
        %6580 = vmatpush.bf16.msra.mxu0 %v2643
        %6581 = vmatpush.bf16.msra.mxu0 %v2641
        %6582 = vmatpush.bf16.msra.mxu0 %v2639
        %6583 = vmatpush.bf16.msra.mxu0 %v2637
        %6584 = vmatpush.bf16.msra.mxu0 %v2635
        %6585 = vmatpush.bf16.msra.mxu0 %v2633
        %6586 = vmatmul.bf16.gmra.mxu0 %v6056
        %v6587 = vpop.f32.mrf.mxu0
        %v6588 = vadd.f32 0.0, %v6587
        %v6589 = vpop.f32.mrf.mxu0
        %v6590 = vadd.f32 0.0, %v6589
        %6591 = vmatmul.bf16.gmra.mxu0 %v6058
        %v6592 = vpop.f32.mrf.mxu0
        %v6593 = vadd.f32 0.0, %v6592
        %v6594 = vpop.f32.mrf.mxu0
        %v6595 = vadd.f32 0.0, %v6594
        %6596 = vdwg.mxu0
        %6597 = vmatpush.bf16.msra.mxu0 %v2663
        %6598 = vmatpush.bf16.msra.mxu0 %v2661
        %6599 = vmatpush.bf16.msra.mxu0 %v2659
        %6600 = vmatpush.bf16.msra.mxu0 %v2657
        %6601 = vmatpush.bf16.msra.mxu0 %v2655
        %6602 = vmatpush.bf16.msra.mxu0 %v2653
        %6603 = vmatpush.bf16.msra.mxu0 %v2651
        %6604 = vmatpush.bf16.msra.mxu0 %v2649
        %6605 = vmatmul.bf16.gmra.mxu0 %v6057
        %v6606 = vpop.f32.mrf.mxu0
        %v6607 = vadd.f32 %v6588, %v6606
        %v6608 = vpop.f32.mrf.mxu0
        %v6609 = vadd.f32 %v6590, %v6608
        %6610 = vmatmul.bf16.gmra.mxu0 %v6059
        %v6611 = vpop.f32.mrf.mxu0
        %v6612 = vadd.f32 %v6593, %v6611
        %v6613 = vpop.f32.mrf.mxu0
        %v6614 = vadd.f32 %v6595, %v6613
        %6615 = vdwg.mxu0
        %v6616 = vpack.c.bf16 %v6607, %v6569
        %v6617 = vpack.c.bf16 %v6609, %v6571
        %v6618 = vpack.c.bf16 %v6612, %v6574
        %v6619 = vpack.c.bf16 %v6614, %v6576
        %6620 = vmatpush.bf16.msra.mxu0 %v2919
        %6621 = vmatpush.bf16.msra.mxu0 %v2917
        %6622 = vmatpush.bf16.msra.mxu0 %v2915
        %6623 = vmatpush.bf16.msra.mxu0 %v2913
        %6624 = vmatpush.bf16.msra.mxu0 %v2911
        %6625 = vmatpush.bf16.msra.mxu0 %v2909
        %6626 = vmatpush.bf16.msra.mxu0 %v2907
        %6627 = vmatpush.bf16.msra.mxu0 %v2905
        %6628 = vmatmul.bf16.gmra.mxu0 %v6056
        %v6629 = vpop.f32.mrf.mxu0
        %v6630 = vadd.f32 0.0, %v6629
        %v6631 = vpop.f32.mrf.mxu0
        %v6632 = vadd.f32 0.0, %v6631
        %6633 = vmatmul.bf16.gmra.mxu0 %v6058
        %v6634 = vpop.f32.mrf.mxu0
        %v6635 = vadd.f32 0.0, %v6634
        %v6636 = vpop.f32.mrf.mxu0
        %v6637 = vadd.f32 0.0, %v6636
        %6638 = vdwg.mxu0
        %6639 = vmatpush.bf16.msra.mxu0 %v2935
        %6640 = vmatpush.bf16.msra.mxu0 %v2933
        %6641 = vmatpush.bf16.msra.mxu0 %v2931
        %6642 = vmatpush.bf16.msra.mxu0 %v2929
        %6643 = vmatpush.bf16.msra.mxu0 %v2927
        %6644 = vmatpush.bf16.msra.mxu0 %v2925
        %6645 = vmatpush.bf16.msra.mxu0 %v2923
        %6646 = vmatpush.bf16.msra.mxu0 %v2921
        %6647 = vmatmul.bf16.gmra.mxu0 %v6057
        %v6648 = vpop.f32.mrf.mxu0
        %v6649 = vadd.f32 %v6630, %v6648
        %v6650 = vpop.f32.mrf.mxu0
        %v6651 = vadd.f32 %v6632, %v6650
        %6652 = vmatmul.bf16.gmra.mxu0 %v6059
        %v6653 = vpop.f32.mrf.mxu0
        %v6654 = vadd.f32 %v6635, %v6653
        %v6655 = vpop.f32.mrf.mxu0
        %v6656 = vadd.f32 %v6637, %v6655
        %6657 = vdwg.mxu0
        %6658 = vmatpush.bf16.msra.mxu0 %v2920
        %6659 = vmatpush.bf16.msra.mxu0 %v2918
        %6660 = vmatpush.bf16.msra.mxu0 %v2916
        %6661 = vmatpush.bf16.msra.mxu0 %v2914
        %6662 = vmatpush.bf16.msra.mxu0 %v2912
        %6663 = vmatpush.bf16.msra.mxu0 %v2910
        %6664 = vmatpush.bf16.msra.mxu0 %v2908
        %6665 = vmatpush.bf16.msra.mxu0 %v2906
        %6666 = vmatmul.bf16.gmra.mxu0 %v6056
        %v6667 = vpop.f32.mrf.mxu0
        %v6668 = vadd.f32 0.0, %v6667
        %v6669 = vpop.f32.mrf.mxu0
        %v6670 = vadd.f32 0.0, %v6669
        %6671 = vmatmul.bf16.gmra.mxu0 %v6058
        %v6672 = vpop.f32.mrf.mxu0
        %v6673 = vadd.f32 0.0, %v6672
        %v6674 = vpop.f32.mrf.mxu0
        %v6675 = vadd.f32 0.0, %v6674
        %6676 = vdwg.mxu0
        %6677 = vmatpush.bf16.msra.mxu0 %v2936
        %6678 = vmatpush.bf16.msra.mxu0 %v2934
        %6679 = vmatpush.bf16.msra.mxu0 %v2932
        %6680 = vmatpush.bf16.msra.mxu0 %v2930
        %6681 = vmatpush.bf16.msra.mxu0 %v2928
        %6682 = vmatpush.bf16.msra.mxu0 %v2926
        %6683 = vmatpush.bf16.msra.mxu0 %v2924
        %6684 = vmatpush.bf16.msra.mxu0 %v2922
        %6685 = vmatmul.bf16.gmra.mxu0 %v6057
        %v6686 = vpop.f32.mrf.mxu0
        %v6687 = vadd.f32 %v6668, %v6686
        %v6688 = vpop.f32.mrf.mxu0
        %v6689 = vadd.f32 %v6670, %v6688
        %6690 = vmatmul.bf16.gmra.mxu0 %v6059
        %v6691 = vpop.f32.mrf.mxu0
        %v6692 = vadd.f32 %v6673, %v6691
        %v6693 = vpop.f32.mrf.mxu0
        %v6694 = vadd.f32 %v6675, %v6693
        %6695 = vdwg.mxu0
        %v6696 = vpack.c.bf16 %v6687, %v6649
        %v6697 = vpack.c.bf16 %v6689, %v6651
        %v6698 = vpack.c.bf16 %v6692, %v6654
        %v6699 = vpack.c.bf16 %v6694, %v6656
        %6700 = vmatpush.bf16.msra.mxu0 %v3192
        %6701 = vmatpush.bf16.msra.mxu0 %v3190
        %6702 = vmatpush.bf16.msra.mxu0 %v3188
        %6703 = vmatpush.bf16.msra.mxu0 %v3186
        %6704 = vmatpush.bf16.msra.mxu0 %v3184
        %6705 = vmatpush.bf16.msra.mxu0 %v3182
        %6706 = vmatpush.bf16.msra.mxu0 %v3180
        %6707 = vmatpush.bf16.msra.mxu0 %v3178
        %6708 = vmatmul.bf16.gmra.mxu0 %v6056
        %v6709 = vpop.f32.mrf.mxu0
        %v6710 = vadd.f32 0.0, %v6709
        %v6711 = vpop.f32.mrf.mxu0
        %v6712 = vadd.f32 0.0, %v6711
        %6713 = vmatmul.bf16.gmra.mxu0 %v6058
        %v6714 = vpop.f32.mrf.mxu0
        %v6715 = vadd.f32 0.0, %v6714
        %v6716 = vpop.f32.mrf.mxu0
        %v6717 = vadd.f32 0.0, %v6716
        %6718 = vdwg.mxu0
        %6719 = vmatpush.bf16.msra.mxu0 %v3208
        %6720 = vmatpush.bf16.msra.mxu0 %v3206
        %6721 = vmatpush.bf16.msra.mxu0 %v3204
        %6722 = vmatpush.bf16.msra.mxu0 %v3202
        %6723 = vmatpush.bf16.msra.mxu0 %v3200
        %6724 = vmatpush.bf16.msra.mxu0 %v3198
        %6725 = vmatpush.bf16.msra.mxu0 %v3196
        %6726 = vmatpush.bf16.msra.mxu0 %v3194
        %6727 = vmatmul.bf16.gmra.mxu0 %v6057
        %v6728 = vpop.f32.mrf.mxu0
        %v6729 = vadd.f32 %v6710, %v6728
        %v6730 = vpop.f32.mrf.mxu0
        %v6731 = vadd.f32 %v6712, %v6730
        %6732 = vmatmul.bf16.gmra.mxu0 %v6059
        %v6733 = vpop.f32.mrf.mxu0
        %v6734 = vadd.f32 %v6715, %v6733
        %v6735 = vpop.f32.mrf.mxu0
        %v6736 = vadd.f32 %v6717, %v6735
        %6737 = vdwg.mxu0
        %6738 = vmatpush.bf16.msra.mxu0 %v3193
        %6739 = vmatpush.bf16.msra.mxu0 %v3191
        %6740 = vmatpush.bf16.msra.mxu0 %v3189
        %6741 = vmatpush.bf16.msra.mxu0 %v3187
        %6742 = vmatpush.bf16.msra.mxu0 %v3185
        %6743 = vmatpush.bf16.msra.mxu0 %v3183
        %6744 = vmatpush.bf16.msra.mxu0 %v3181
        %6745 = vmatpush.bf16.msra.mxu0 %v3179
        %6746 = vmatmul.bf16.gmra.mxu0 %v6056
        %v6747 = vpop.f32.mrf.mxu0
        %v6748 = vadd.f32 0.0, %v6747
        %v6749 = vpop.f32.mrf.mxu0
        %v6750 = vadd.f32 0.0, %v6749
        %6751 = vmatmul.bf16.gmra.mxu0 %v6058
        %v6752 = vpop.f32.mrf.mxu0
        %v6753 = vadd.f32 0.0, %v6752
        %v6754 = vpop.f32.mrf.mxu0
        %v6755 = vadd.f32 0.0, %v6754
        %6756 = vdwg.mxu0
        %6757 = vmatpush.bf16.msra.mxu0 %v3209
        %6758 = vmatpush.bf16.msra.mxu0 %v3207
        %6759 = vmatpush.bf16.msra.mxu0 %v3205
        %6760 = vmatpush.bf16.msra.mxu0 %v3203
        %6761 = vmatpush.bf16.msra.mxu0 %v3201
        %6762 = vmatpush.bf16.msra.mxu0 %v3199
        %6763 = vmatpush.bf16.msra.mxu0 %v3197
        %6764 = vmatpush.bf16.msra.mxu0 %v3195
        %6765 = vmatmul.bf16.gmra.mxu0 %v6057
        %v6766 = vpop.f32.mrf.mxu0
        %v6767 = vadd.f32 %v6748, %v6766
        %v6768 = vpop.f32.mrf.mxu0
        %v6769 = vadd.f32 %v6750, %v6768
        %6770 = vmatmul.bf16.gmra.mxu0 %v6059
        %v6771 = vpop.f32.mrf.mxu0
        %v6772 = vadd.f32 %v6753, %v6771
        %v6773 = vpop.f32.mrf.mxu0
        %v6774 = vadd.f32 %v6755, %v6773
        %6775 = vdwg.mxu0
        %v6776 = vpack.c.bf16 %v6767, %v6729
        %v6777 = vpack.c.bf16 %v6769, %v6731
        %v6778 = vpack.c.bf16 %v6772, %v6734
        %v6779 = vpack.c.bf16 %v6774, %v6736
        %v6784 = vunpack.c.l.b16 %v6136
        %v6785 = vunpack.c.h.b16 %v6136
        %v6786 = vunpack.c.l.b16 %v6137
        %v6787 = vunpack.c.h.b16 %v6137
        %v6788 = vunpack.c.l.b16 %v6138
        %v6789 = vunpack.c.h.b16 %v6138
        %v6790 = vunpack.c.l.b16 %v6139
        %v6791 = vunpack.c.h.b16 %v6139
        %v6792 = vpack.c.b16 %v6786, %v6784
        %v6793 = vpack.c.b16 %v6787, %v6785
        %v6794 = vpack.c.b16 %v6790, %v6788
        %v6795 = vpack.c.b16 %v6791, %v6789
        %v6804 = vunpack.c.l.b16 %v6216
        %v6805 = vunpack.c.h.b16 %v6216
        %v6806 = vunpack.c.l.b16 %v6217
        %v6807 = vunpack.c.h.b16 %v6217
        %v6808 = vunpack.c.l.b16 %v6218
        %v6809 = vunpack.c.h.b16 %v6218
        %v6810 = vunpack.c.l.b16 %v6219
        %v6811 = vunpack.c.h.b16 %v6219
        %v6812 = vpack.c.b16 %v6806, %v6804
        %v6813 = vpack.c.b16 %v6807, %v6805
        %v6814 = vpack.c.b16 %v6810, %v6808
        %v6815 = vpack.c.b16 %v6811, %v6809
        %v6824 = vunpack.c.l.b16 %v6296
        %v6825 = vunpack.c.h.b16 %v6296
        %v6826 = vunpack.c.l.b16 %v6297
        %v6827 = vunpack.c.h.b16 %v6297
        %v6828 = vunpack.c.l.b16 %v6298
        %v6829 = vunpack.c.h.b16 %v6298
        %v6830 = vunpack.c.l.b16 %v6299
        %v6831 = vunpack.c.h.b16 %v6299
        %v6832 = vpack.c.b16 %v6826, %v6824
        %v6833 = vpack.c.b16 %v6827, %v6825
        %v6834 = vpack.c.b16 %v6830, %v6828
        %v6835 = vpack.c.b16 %v6831, %v6829
        %v6844 = vunpack.c.l.b16 %v6376
        %v6845 = vunpack.c.h.b16 %v6376
        %v6846 = vunpack.c.l.b16 %v6377
        %v6847 = vunpack.c.h.b16 %v6377
        %v6848 = vunpack.c.l.b16 %v6378
        %v6849 = vunpack.c.h.b16 %v6378
        %v6850 = vunpack.c.l.b16 %v6379
        %v6851 = vunpack.c.h.b16 %v6379
        %v6852 = vpack.c.b16 %v6846, %v6844
        %v6853 = vpack.c.b16 %v6847, %v6845
        %v6854 = vpack.c.b16 %v6850, %v6848
        %v6855 = vpack.c.b16 %v6851, %v6849
        %v6864 = vunpack.c.l.b16 %v6456
        %v6865 = vunpack.c.h.b16 %v6456
        %v6866 = vunpack.c.l.b16 %v6457
        %v6867 = vunpack.c.h.b16 %v6457
        %v6868 = vunpack.c.l.b16 %v6458
        %v6869 = vunpack.c.h.b16 %v6458
        %v6870 = vunpack.c.l.b16 %v6459
        %v6871 = vunpack.c.h.b16 %v6459
        %v6872 = vpack.c.b16 %v6866, %v6864
        %v6873 = vpack.c.b16 %v6867, %v6865
        %v6874 = vpack.c.b16 %v6870, %v6868
        %v6875 = vpack.c.b16 %v6871, %v6869
        %v6884 = vunpack.c.l.b16 %v6536
        %v6885 = vunpack.c.h.b16 %v6536
        %v6886 = vunpack.c.l.b16 %v6537
        %v6887 = vunpack.c.h.b16 %v6537
        %v6888 = vunpack.c.l.b16 %v6538
        %v6889 = vunpack.c.h.b16 %v6538
        %v6890 = vunpack.c.l.b16 %v6539
        %v6891 = vunpack.c.h.b16 %v6539
        %v6892 = vpack.c.b16 %v6886, %v6884
        %v6893 = vpack.c.b16 %v6887, %v6885
        %v6894 = vpack.c.b16 %v6890, %v6888
        %v6895 = vpack.c.b16 %v6891, %v6889
        %v6904 = vunpack.c.l.b16 %v6616
        %v6905 = vunpack.c.h.b16 %v6616
        %v6906 = vunpack.c.l.b16 %v6617
        %v6907 = vunpack.c.h.b16 %v6617
        %v6908 = vunpack.c.l.b16 %v6618
        %v6909 = vunpack.c.h.b16 %v6618
        %v6910 = vunpack.c.l.b16 %v6619
        %v6911 = vunpack.c.h.b16 %v6619
        %v6912 = vpack.c.b16 %v6906, %v6904
        %v6913 = vpack.c.b16 %v6907, %v6905
        %v6914 = vpack.c.b16 %v6910, %v6908
        %v6915 = vpack.c.b16 %v6911, %v6909
        %v6924 = vunpack.c.l.b16 %v6696
        %v6925 = vunpack.c.h.b16 %v6696
        %v6926 = vunpack.c.l.b16 %v6697
        %v6927 = vunpack.c.h.b16 %v6697
        %v6928 = vunpack.c.l.b16 %v6698
        %v6929 = vunpack.c.h.b16 %v6698
        %v6930 = vunpack.c.l.b16 %v6699
        %v6931 = vunpack.c.h.b16 %v6699
        %v6932 = vpack.c.b16 %v6926, %v6924
        %v6933 = vpack.c.b16 %v6927, %v6925
        %v6934 = vpack.c.b16 %v6930, %v6928
        %v6935 = vpack.c.b16 %v6931, %v6929
        %v6944 = vunpack.c.l.b16 %v6776
        %v6945 = vunpack.c.h.b16 %v6776
        %v6946 = vunpack.c.l.b16 %v6777
        %v6947 = vunpack.c.h.b16 %v6777
        %v6948 = vunpack.c.l.b16 %v6778
        %v6949 = vunpack.c.h.b16 %v6778
        %v6950 = vunpack.c.l.b16 %v6779
        %v6951 = vunpack.c.h.b16 %v6779
        %v6952 = vpack.c.b16 %v6946, %v6944
        %v6953 = vpack.c.b16 %v6947, %v6945
        %v6954 = vpack.c.b16 %v6950, %v6948
        %v6955 = vpack.c.b16 %v6951, %v6949
        %v6960 = vld [vmem:[#allocation16] sm:$0xff]
        %v6961 = vld [vmem:[#allocation16 + $0x8] sm:$0xf]
        %v6962 = vld [vmem:[#allocation16 + $0xc] sm:$0xff]
        %v6963 = vld [vmem:[#allocation16 + $0x14] sm:$0xf]
        %v6964 = vld [vmem:[#allocation16 + $0x18] sm:$0xff]
        %v6965 = vld [vmem:[#allocation16 + $0x20] sm:$0xf]
        %v6966 = vld [vmem:[#allocation16 + $0x24] sm:$0xff]
        %v6967 = vld [vmem:[#allocation16 + $0x2c] sm:$0xf]
        %v6968 = vld [vmem:[#allocation18] sm:$0xff]
        %v6969 = vld [vmem:[#allocation18 + $0x8] sm:$0xff]
        %v6970 = vld [vmem:[#allocation18 + $0x10] sm:$0xff]
        %v6971 = vld [vmem:[#allocation18 + $0x18] sm:$0xff]
        %6973 = vset.pattern.permute.xlu0 0
        %6974 = vperm.xlu0 %6973, %v6968
        %v6975 = vpop.permute.xlu0 %6974
        %6978 = vset.pattern.permute.xlu0 0
        %6979 = vperm.xlu0 %6978, %v6969
        %v6980 = vpop.permute.xlu0 %6979
        %6983 = vset.pattern.permute.xlu0 0
        %6984 = vperm.xlu0 %6983, %v6970
        %v6985 = vpop.permute.xlu0 %6984
        %6988 = vset.pattern.permute.xlu0 0
        %6989 = vperm.xlu0 %6988, %v6971
        %v6990 = vpop.permute.xlu0 %6989
        %v7000 = vunpack.c.l.b16 %v6960
        %v7001 = vunpack.c.h.b16 %v6960
        %v7002 = vunpack.c.l.b16 %v6961
        %v7003 = vunpack.c.l.b16 %v6962
        %v7004 = vunpack.c.h.b16 %v6962
        %v7005 = vunpack.c.l.b16 %v6963
        %v7006 = vunpack.c.l.b16 %v6964
        %v7007 = vunpack.c.h.b16 %v6964
        %v7008 = vunpack.c.l.b16 %v6965
        %v7009 = vunpack.c.l.b16 %v6966
        %v7010 = vunpack.c.h.b16 %v6966
        %v7011 = vunpack.c.l.b16 %v6967
        %v7012 = vpack.c.b16 %v7003, %v7000
        %v7013 = vpack.c.b16 %v7004, %v7001
        %v7014 = vpack.c.b16 %v7005, %v7002
        %v7015 = vpack.c.b16 %v7009, %v7006
        %v7016 = vpack.c.b16 %v7010, %v7007
        %v7017 = vpack.c.b16 %v7011, %v7008
        %v7023 = vsel %vm3564, %v7014, 0
        %v7026 = vsel %vm3564, %v7017, 0
        %7028 = vmatpush.bf16.msra.mxu0 %v6854
        %7029 = vmatpush.bf16.msra.mxu0 %v6852
        %7030 = vmatpush.bf16.msra.mxu0 %v6834
        %7031 = vmatpush.bf16.msra.mxu0 %v6832
        %7032 = vmatpush.bf16.msra.mxu0 %v6814
        %7033 = vmatpush.bf16.msra.mxu0 %v6812
        %7034 = vmatpush.bf16.msra.mxu0 %v6794
        %7035 = vmatpush.bf16.msra.mxu0 %v6792
        %7036 = vmatmul.bf16.gmra.mxu0 %v7012
        %v7037 = vpop.f32.mrf.mxu0
        %v7038 = vadd.f32 %v6975, %v7037
        %v7039 = vpop.f32.mrf.mxu0
        %v7040 = vadd.f32 %v6980, %v7039
        %7041 = vmatmul.bf16.gmra.mxu0 %v7015
        %v7042 = vpop.f32.mrf.mxu0
        %v7043 = vadd.f32 %v6985, %v7042
        %v7044 = vpop.f32.mrf.mxu0
        %v7045 = vadd.f32 %v6990, %v7044
        %7046 = vdwg.mxu0
        %7047 = vmatpush.bf16.msra.mxu0 %v6934
        %7048 = vmatpush.bf16.msra.mxu0 %v6932
        %7049 = vmatpush.bf16.msra.mxu0 %v6914
        %7050 = vmatpush.bf16.msra.mxu0 %v6912
        %7051 = vmatpush.bf16.msra.mxu0 %v6894
        %7052 = vmatpush.bf16.msra.mxu0 %v6892
        %7053 = vmatpush.bf16.msra.mxu0 %v6874
        %7054 = vmatpush.bf16.msra.mxu0 %v6872
        %7055 = vmatmul.bf16.gmra.mxu0 %v7013
        %v7056 = vpop.f32.mrf.mxu0
        %v7057 = vadd.f32 %v7038, %v7056
        %v7058 = vpop.f32.mrf.mxu0
        %v7059 = vadd.f32 %v7040, %v7058
        %7060 = vmatmul.bf16.gmra.mxu0 %v7016
        %v7061 = vpop.f32.mrf.mxu0
        %v7062 = vadd.f32 %v7043, %v7061
        %v7063 = vpop.f32.mrf.mxu0
        %v7064 = vadd.f32 %v7045, %v7063
        %7065 = vdwg.mxu0
        %7066 = vmatpush.bf16.msra.mxu0 0
        %7067 = vmatpush.bf16.msra.mxu0 0
        %7068 = vmatpush.bf16.msra.mxu0 0
        %7069 = vmatpush.bf16.msra.mxu0 0
        %7070 = vmatpush.bf16.msra.mxu0 0
        %7071 = vmatpush.bf16.msra.mxu0 0
        %7072 = vmatpush.bf16.msra.mxu0 %v6954
        %7073 = vmatpush.bf16.msra.mxu0 %v6952
        %7074 = vmatmul.bf16.gmra.mxu0 %v7023
        %v7075 = vpop.f32.mrf.mxu0
        %v7076 = vadd.f32 %v7057, %v7075
        %v7077 = vpop.f32.mrf.mxu0
        %v7078 = vadd.f32 %v7059, %v7077
        %7079 = vmatmul.bf16.gmra.mxu0 %v7026
        %v7080 = vpop.f32.mrf.mxu0
        %v7081 = vadd.f32 %v7062, %v7080
        %v7082 = vpop.f32.mrf.mxu0
        %v7083 = vadd.f32 %v7064, %v7082
        %7084 = vdwg.mxu0
        %7085 = vmatpush.bf16.msra.mxu0 %v6855
        %7086 = vmatpush.bf16.msra.mxu0 %v6853
        %7087 = vmatpush.bf16.msra.mxu0 %v6835
        %7088 = vmatpush.bf16.msra.mxu0 %v6833
        %7089 = vmatpush.bf16.msra.mxu0 %v6815
        %7090 = vmatpush.bf16.msra.mxu0 %v6813
        %7091 = vmatpush.bf16.msra.mxu0 %v6795
        %7092 = vmatpush.bf16.msra.mxu0 %v6793
        %7093 = vmatmul.bf16.gmra.mxu0 %v7012
        %v7094 = vpop.f32.mrf.mxu0
        %v7095 = vadd.f32 %v6975, %v7094
        %v7096 = vpop.f32.mrf.mxu0
        %v7097 = vadd.f32 %v6980, %v7096
        %7098 = vmatmul.bf16.gmra.mxu0 %v7015
        %v7099 = vpop.f32.mrf.mxu0
        %v7100 = vadd.f32 %v6985, %v7099
        %v7101 = vpop.f32.mrf.mxu0
        %v7102 = vadd.f32 %v6990, %v7101
        %7103 = vdwg.mxu0
        %7104 = vmatpush.bf16.msra.mxu0 %v6935
        %7105 = vmatpush.bf16.msra.mxu0 %v6933
        %7106 = vmatpush.bf16.msra.mxu0 %v6915
        %7107 = vmatpush.bf16.msra.mxu0 %v6913
        %7108 = vmatpush.bf16.msra.mxu0 %v6895
        %7109 = vmatpush.bf16.msra.mxu0 %v6893
        %7110 = vmatpush.bf16.msra.mxu0 %v6875
        %7111 = vmatpush.bf16.msra.mxu0 %v6873
        %7112 = vmatmul.bf16.gmra.mxu0 %v7013
        %v7113 = vpop.f32.mrf.mxu0
        %v7114 = vadd.f32 %v7095, %v7113
        %v7115 = vpop.f32.mrf.mxu0
        %v7116 = vadd.f32 %v7097, %v7115
        %7117 = vmatmul.bf16.gmra.mxu0 %v7016
        %v7118 = vpop.f32.mrf.mxu0
        %v7119 = vadd.f32 %v7100, %v7118
        %v7120 = vpop.f32.mrf.mxu0
        %v7121 = vadd.f32 %v7102, %v7120
        %7122 = vdwg.mxu0
        %7123 = vmatpush.bf16.msra.mxu0 0
        %7124 = vmatpush.bf16.msra.mxu0 0
        %7125 = vmatpush.bf16.msra.mxu0 0
        %7126 = vmatpush.bf16.msra.mxu0 0
        %7127 = vmatpush.bf16.msra.mxu0 0
        %7128 = vmatpush.bf16.msra.mxu0 0
        %7129 = vmatpush.bf16.msra.mxu0 %v6955
        %7130 = vmatpush.bf16.msra.mxu0 %v6953
        %7131 = vmatmul.bf16.gmra.mxu0 %v7023
        %v7132 = vpop.f32.mrf.mxu0
        %v7133 = vadd.f32 %v7114, %v7132
        %v7134 = vpop.f32.mrf.mxu0
        %v7135 = vadd.f32 %v7116, %v7134
        %7136 = vmatmul.bf16.gmra.mxu0 %v7026
        %v7137 = vpop.f32.mrf.mxu0
        %v7138 = vadd.f32 %v7119, %v7137
        %v7139 = vpop.f32.mrf.mxu0
        %v7140 = vadd.f32 %v7121, %v7139
        %7141 = vdwg.mxu0
        %v7142 = vmax.f32 %v7076, 0.0
        %v7143 = vmax.f32 %v7133, 0.0
        %v7144 = vmax.f32 %v7078, 0.0
        %v7145 = vmax.f32 %v7135, 0.0
        %v7146 = vmax.f32 %v7081, 0.0
        %v7147 = vmax.f32 %v7138, 0.0
        %v7148 = vmax.f32 %v7083, 0.0
        %v7149 = vmax.f32 %v7140, 0.0
        %v7150 = vpack.c.bf16 %v7144, %v7142
        %v7151 = vpack.c.bf16 %v7145, %v7143
        %v7152 = vpack.c.bf16 %v7148, %v7146
        %v7153 = vpack.c.bf16 %v7149, %v7147
        %7154 = vmatpush.bf16.msra.mxu0 %v1008
        %7155 = vmatpush.bf16.msra.mxu0 %v1006
        %7156 = vmatpush.bf16.msra.mxu0 %v1004
        %7157 = vmatpush.bf16.msra.mxu0 %v1002
        %7158 = vmatpush.bf16.msra.mxu0 %v1000
        %7159 = vmatpush.bf16.msra.mxu0 %v998
        %7160 = vmatpush.bf16.msra.mxu0 %v996
        %7161 = vmatpush.bf16.msra.mxu0 %v994
        %7162 = vmatmul.bf16.gmra.mxu0 %v7150
        %v7163 = vpop.f32.mrf.mxu0
        %v7164 = vadd.f32 0.0, %v7163
        %v7165 = vpop.f32.mrf.mxu0
        %v7166 = vadd.f32 0.0, %v7165
        %7167 = vmatmul.bf16.gmra.mxu0 %v7152
        %v7168 = vpop.f32.mrf.mxu0
        %v7169 = vadd.f32 0.0, %v7168
        %v7170 = vpop.f32.mrf.mxu0
        %v7171 = vadd.f32 0.0, %v7170
        %7172 = vdwg.mxu0
        %7173 = vmatpush.bf16.msra.mxu0 %v1024
        %7174 = vmatpush.bf16.msra.mxu0 %v1022
        %7175 = vmatpush.bf16.msra.mxu0 %v1020
        %7176 = vmatpush.bf16.msra.mxu0 %v1018
        %7177 = vmatpush.bf16.msra.mxu0 %v1016
        %7178 = vmatpush.bf16.msra.mxu0 %v1014
        %7179 = vmatpush.bf16.msra.mxu0 %v1012
        %7180 = vmatpush.bf16.msra.mxu0 %v1010
        %7181 = vmatmul.bf16.gmra.mxu0 %v7151
        %v7182 = vpop.f32.mrf.mxu0
        %v7183 = vadd.f32 %v7164, %v7182
        %v7184 = vpop.f32.mrf.mxu0
        %v7185 = vadd.f32 %v7166, %v7184
        %7186 = vmatmul.bf16.gmra.mxu0 %v7153
        %v7187 = vpop.f32.mrf.mxu0
        %v7188 = vadd.f32 %v7169, %v7187
        %v7189 = vpop.f32.mrf.mxu0
        %v7190 = vadd.f32 %v7171, %v7189
        %7191 = vdwg.mxu0
        %7192 = vmatpush.bf16.msra.mxu0 %v1009
        %7193 = vmatpush.bf16.msra.mxu0 %v1007
        %7194 = vmatpush.bf16.msra.mxu0 %v1005
        %7195 = vmatpush.bf16.msra.mxu0 %v1003
        %7196 = vmatpush.bf16.msra.mxu0 %v1001
        %7197 = vmatpush.bf16.msra.mxu0 %v999
        %7198 = vmatpush.bf16.msra.mxu0 %v997
        %7199 = vmatpush.bf16.msra.mxu0 %v995
        %7200 = vmatmul.bf16.gmra.mxu0 %v7150
        %v7201 = vpop.f32.mrf.mxu0
        %v7202 = vadd.f32 0.0, %v7201
        %v7203 = vpop.f32.mrf.mxu0
        %v7204 = vadd.f32 0.0, %v7203
        %7205 = vmatmul.bf16.gmra.mxu0 %v7152
        %v7206 = vpop.f32.mrf.mxu0
        %v7207 = vadd.f32 0.0, %v7206
        %v7208 = vpop.f32.mrf.mxu0
        %v7209 = vadd.f32 0.0, %v7208
        %7210 = vdwg.mxu0
        %7211 = vmatpush.bf16.msra.mxu0 %v1025
        %7212 = vmatpush.bf16.msra.mxu0 %v1023
        %7213 = vmatpush.bf16.msra.mxu0 %v1021
        %7214 = vmatpush.bf16.msra.mxu0 %v1019
        %7215 = vmatpush.bf16.msra.mxu0 %v1017
        %7216 = vmatpush.bf16.msra.mxu0 %v1015
        %7217 = vmatpush.bf16.msra.mxu0 %v1013
        %7218 = vmatpush.bf16.msra.mxu0 %v1011
        %7219 = vmatmul.bf16.gmra.mxu0 %v7151
        %v7220 = vpop.f32.mrf.mxu0
        %v7221 = vadd.f32 %v7202, %v7220
        %v7222 = vpop.f32.mrf.mxu0
        %v7223 = vadd.f32 %v7204, %v7222
        %7224 = vmatmul.bf16.gmra.mxu0 %v7153
        %v7225 = vpop.f32.mrf.mxu0
        %v7226 = vadd.f32 %v7207, %v7225
        %v7227 = vpop.f32.mrf.mxu0
        %v7228 = vadd.f32 %v7209, %v7227
        %7229 = vdwg.mxu0
        %v7230 = vpack.c.bf16 %v7221, %v7183
        %v7231 = vpack.c.bf16 %v7223, %v7185
        %v7232 = vpack.c.bf16 %v7226, %v7188
        %v7233 = vpack.c.bf16 %v7228, %v7190
        %7234 = vmatpush.bf16.msra.mxu0 %v1281
        %7235 = vmatpush.bf16.msra.mxu0 %v1279
        %7236 = vmatpush.bf16.msra.mxu0 %v1277
        %7237 = vmatpush.bf16.msra.mxu0 %v1275
        %7238 = vmatpush.bf16.msra.mxu0 %v1273
        %7239 = vmatpush.bf16.msra.mxu0 %v1271
        %7240 = vmatpush.bf16.msra.mxu0 %v1269
        %7241 = vmatpush.bf16.msra.mxu0 %v1267
        %7242 = vmatmul.bf16.gmra.mxu0 %v7150
        %v7243 = vpop.f32.mrf.mxu0
        %v7244 = vadd.f32 0.0, %v7243
        %v7245 = vpop.f32.mrf.mxu0
        %v7246 = vadd.f32 0.0, %v7245
        %7247 = vmatmul.bf16.gmra.mxu0 %v7152
        %v7248 = vpop.f32.mrf.mxu0
        %v7249 = vadd.f32 0.0, %v7248
        %v7250 = vpop.f32.mrf.mxu0
        %v7251 = vadd.f32 0.0, %v7250
        %7252 = vdwg.mxu0
        %7253 = vmatpush.bf16.msra.mxu0 %v1297
        %7254 = vmatpush.bf16.msra.mxu0 %v1295
        %7255 = vmatpush.bf16.msra.mxu0 %v1293
        %7256 = vmatpush.bf16.msra.mxu0 %v1291
        %7257 = vmatpush.bf16.msra.mxu0 %v1289
        %7258 = vmatpush.bf16.msra.mxu0 %v1287
        %7259 = vmatpush.bf16.msra.mxu0 %v1285
        %7260 = vmatpush.bf16.msra.mxu0 %v1283
        %7261 = vmatmul.bf16.gmra.mxu0 %v7151
        %v7262 = vpop.f32.mrf.mxu0
        %v7263 = vadd.f32 %v7244, %v7262
        %v7264 = vpop.f32.mrf.mxu0
        %v7265 = vadd.f32 %v7246, %v7264
        %7266 = vmatmul.bf16.gmra.mxu0 %v7153
        %v7267 = vpop.f32.mrf.mxu0
        %v7268 = vadd.f32 %v7249, %v7267
        %v7269 = vpop.f32.mrf.mxu0
        %v7270 = vadd.f32 %v7251, %v7269
        %7271 = vdwg.mxu0
        %7272 = vmatpush.bf16.msra.mxu0 %v1282
        %7273 = vmatpush.bf16.msra.mxu0 %v1280
        %7274 = vmatpush.bf16.msra.mxu0 %v1278
        %7275 = vmatpush.bf16.msra.mxu0 %v1276
        %7276 = vmatpush.bf16.msra.mxu0 %v1274
        %7277 = vmatpush.bf16.msra.mxu0 %v1272
        %7278 = vmatpush.bf16.msra.mxu0 %v1270
        %7279 = vmatpush.bf16.msra.mxu0 %v1268
        %7280 = vmatmul.bf16.gmra.mxu0 %v7150
        %v7281 = vpop.f32.mrf.mxu0
        %v7282 = vadd.f32 0.0, %v7281
        %v7283 = vpop.f32.mrf.mxu0
        %v7284 = vadd.f32 0.0, %v7283
        %7285 = vmatmul.bf16.gmra.mxu0 %v7152
        %v7286 = vpop.f32.mrf.mxu0
        %v7287 = vadd.f32 0.0, %v7286
        %v7288 = vpop.f32.mrf.mxu0
        %v7289 = vadd.f32 0.0, %v7288
        %7290 = vdwg.mxu0
        %7291 = vmatpush.bf16.msra.mxu0 %v1298
        %7292 = vmatpush.bf16.msra.mxu0 %v1296
        %7293 = vmatpush.bf16.msra.mxu0 %v1294
        %7294 = vmatpush.bf16.msra.mxu0 %v1292
        %7295 = vmatpush.bf16.msra.mxu0 %v1290
        %7296 = vmatpush.bf16.msra.mxu0 %v1288
        %7297 = vmatpush.bf16.msra.mxu0 %v1286
        %7298 = vmatpush.bf16.msra.mxu0 %v1284
        %7299 = vmatmul.bf16.gmra.mxu0 %v7151
        %v7300 = vpop.f32.mrf.mxu0
        %v7301 = vadd.f32 %v7282, %v7300
        %v7302 = vpop.f32.mrf.mxu0
        %v7303 = vadd.f32 %v7284, %v7302
        %7304 = vmatmul.bf16.gmra.mxu0 %v7153
        %v7305 = vpop.f32.mrf.mxu0
        %v7306 = vadd.f32 %v7287, %v7305
        %v7307 = vpop.f32.mrf.mxu0
        %v7308 = vadd.f32 %v7289, %v7307
        %7309 = vdwg.mxu0
        %v7310 = vpack.c.bf16 %v7301, %v7263
        %v7311 = vpack.c.bf16 %v7303, %v7265
        %v7312 = vpack.c.bf16 %v7306, %v7268
        %v7313 = vpack.c.bf16 %v7308, %v7270
        %7314 = vmatpush.bf16.msra.mxu0 %v1554
        %7315 = vmatpush.bf16.msra.mxu0 %v1552
        %7316 = vmatpush.bf16.msra.mxu0 %v1550
        %7317 = vmatpush.bf16.msra.mxu0 %v1548
        %7318 = vmatpush.bf16.msra.mxu0 %v1546
        %7319 = vmatpush.bf16.msra.mxu0 %v1544
        %7320 = vmatpush.bf16.msra.mxu0 %v1542
        %7321 = vmatpush.bf16.msra.mxu0 %v1540
        %7322 = vmatmul.bf16.gmra.mxu0 %v7150
        %v7323 = vpop.f32.mrf.mxu0
        %v7324 = vadd.f32 0.0, %v7323
        %v7325 = vpop.f32.mrf.mxu0
        %v7326 = vadd.f32 0.0, %v7325
        %7327 = vmatmul.bf16.gmra.mxu0 %v7152
        %v7328 = vpop.f32.mrf.mxu0
        %v7329 = vadd.f32 0.0, %v7328
        %v7330 = vpop.f32.mrf.mxu0
        %v7331 = vadd.f32 0.0, %v7330
        %7332 = vdwg.mxu0
        %7333 = vmatpush.bf16.msra.mxu0 %v1570
        %7334 = vmatpush.bf16.msra.mxu0 %v1568
        %7335 = vmatpush.bf16.msra.mxu0 %v1566
        %7336 = vmatpush.bf16.msra.mxu0 %v1564
        %7337 = vmatpush.bf16.msra.mxu0 %v1562
        %7338 = vmatpush.bf16.msra.mxu0 %v1560
        %7339 = vmatpush.bf16.msra.mxu0 %v1558
        %7340 = vmatpush.bf16.msra.mxu0 %v1556
        %7341 = vmatmul.bf16.gmra.mxu0 %v7151
        %v7342 = vpop.f32.mrf.mxu0
        %v7343 = vadd.f32 %v7324, %v7342
        %v7344 = vpop.f32.mrf.mxu0
        %v7345 = vadd.f32 %v7326, %v7344
        %7346 = vmatmul.bf16.gmra.mxu0 %v7153
        %v7347 = vpop.f32.mrf.mxu0
        %v7348 = vadd.f32 %v7329, %v7347
        %v7349 = vpop.f32.mrf.mxu0
        %v7350 = vadd.f32 %v7331, %v7349
        %7351 = vdwg.mxu0
        %7352 = vmatpush.bf16.msra.mxu0 %v1555
        %7353 = vmatpush.bf16.msra.mxu0 %v1553
        %7354 = vmatpush.bf16.msra.mxu0 %v1551
        %7355 = vmatpush.bf16.msra.mxu0 %v1549
        %7356 = vmatpush.bf16.msra.mxu0 %v1547
        %7357 = vmatpush.bf16.msra.mxu0 %v1545
        %7358 = vmatpush.bf16.msra.mxu0 %v1543
        %7359 = vmatpush.bf16.msra.mxu0 %v1541
        %7360 = vmatmul.bf16.gmra.mxu0 %v7150
        %v7361 = vpop.f32.mrf.mxu0
        %v7362 = vadd.f32 0.0, %v7361
        %v7363 = vpop.f32.mrf.mxu0
        %v7364 = vadd.f32 0.0, %v7363
        %7365 = vmatmul.bf16.gmra.mxu0 %v7152
        %v7366 = vpop.f32.mrf.mxu0
        %v7367 = vadd.f32 0.0, %v7366
        %v7368 = vpop.f32.mrf.mxu0
        %v7369 = vadd.f32 0.0, %v7368
        %7370 = vdwg.mxu0
        %7371 = vmatpush.bf16.msra.mxu0 %v1571
        %7372 = vmatpush.bf16.msra.mxu0 %v1569
        %7373 = vmatpush.bf16.msra.mxu0 %v1567
        %7374 = vmatpush.bf16.msra.mxu0 %v1565
        %7375 = vmatpush.bf16.msra.mxu0 %v1563
        %7376 = vmatpush.bf16.msra.mxu0 %v1561
        %7377 = vmatpush.bf16.msra.mxu0 %v1559
        %7378 = vmatpush.bf16.msra.mxu0 %v1557
        %7379 = vmatmul.bf16.gmra.mxu0 %v7151
        %v7380 = vpop.f32.mrf.mxu0
        %v7381 = vadd.f32 %v7362, %v7380
        %v7382 = vpop.f32.mrf.mxu0
        %v7383 = vadd.f32 %v7364, %v7382
        %7384 = vmatmul.bf16.gmra.mxu0 %v7153
        %v7385 = vpop.f32.mrf.mxu0
        %v7386 = vadd.f32 %v7367, %v7385
        %v7387 = vpop.f32.mrf.mxu0
        %v7388 = vadd.f32 %v7369, %v7387
        %7389 = vdwg.mxu0
        %v7390 = vpack.c.bf16 %v7381, %v7343
        %v7391 = vpack.c.bf16 %v7383, %v7345
        %v7392 = vpack.c.bf16 %v7386, %v7348
        %v7393 = vpack.c.bf16 %v7388, %v7350
        %7394 = vmatpush.bf16.msra.mxu0 %v1827
        %7395 = vmatpush.bf16.msra.mxu0 %v1825
        %7396 = vmatpush.bf16.msra.mxu0 %v1823
        %7397 = vmatpush.bf16.msra.mxu0 %v1821
        %7398 = vmatpush.bf16.msra.mxu0 %v1819
        %7399 = vmatpush.bf16.msra.mxu0 %v1817
        %7400 = vmatpush.bf16.msra.mxu0 %v1815
        %7401 = vmatpush.bf16.msra.mxu0 %v1813
        %7402 = vmatmul.bf16.gmra.mxu0 %v7150
        %v7403 = vpop.f32.mrf.mxu0
        %v7404 = vadd.f32 0.0, %v7403
        %v7405 = vpop.f32.mrf.mxu0
        %v7406 = vadd.f32 0.0, %v7405
        %7407 = vmatmul.bf16.gmra.mxu0 %v7152
        %v7408 = vpop.f32.mrf.mxu0
        %v7409 = vadd.f32 0.0, %v7408
        %v7410 = vpop.f32.mrf.mxu0
        %v7411 = vadd.f32 0.0, %v7410
        %7412 = vdwg.mxu0
        %7413 = vmatpush.bf16.msra.mxu0 %v1843
        %7414 = vmatpush.bf16.msra.mxu0 %v1841
        %7415 = vmatpush.bf16.msra.mxu0 %v1839
        %7416 = vmatpush.bf16.msra.mxu0 %v1837
        %7417 = vmatpush.bf16.msra.mxu0 %v1835
        %7418 = vmatpush.bf16.msra.mxu0 %v1833
        %7419 = vmatpush.bf16.msra.mxu0 %v1831
        %7420 = vmatpush.bf16.msra.mxu0 %v1829
        %7421 = vmatmul.bf16.gmra.mxu0 %v7151
        %v7422 = vpop.f32.mrf.mxu0
        %v7423 = vadd.f32 %v7404, %v7422
        %v7424 = vpop.f32.mrf.mxu0
        %v7425 = vadd.f32 %v7406, %v7424
        %7426 = vmatmul.bf16.gmra.mxu0 %v7153
        %v7427 = vpop.f32.mrf.mxu0
        %v7428 = vadd.f32 %v7409, %v7427
        %v7429 = vpop.f32.mrf.mxu0
        %v7430 = vadd.f32 %v7411, %v7429
        %7431 = vdwg.mxu0
        %7432 = vmatpush.bf16.msra.mxu0 %v1828
        %7433 = vmatpush.bf16.msra.mxu0 %v1826
        %7434 = vmatpush.bf16.msra.mxu0 %v1824
        %7435 = vmatpush.bf16.msra.mxu0 %v1822
        %7436 = vmatpush.bf16.msra.mxu0 %v1820
        %7437 = vmatpush.bf16.msra.mxu0 %v1818
        %7438 = vmatpush.bf16.msra.mxu0 %v1816
        %7439 = vmatpush.bf16.msra.mxu0 %v1814
        %7440 = vmatmul.bf16.gmra.mxu0 %v7150
        %v7441 = vpop.f32.mrf.mxu0
        %v7442 = vadd.f32 0.0, %v7441
        %v7443 = vpop.f32.mrf.mxu0
        %v7444 = vadd.f32 0.0, %v7443
        %7445 = vmatmul.bf16.gmra.mxu0 %v7152
        %v7446 = vpop.f32.mrf.mxu0
        %v7447 = vadd.f32 0.0, %v7446
        %v7448 = vpop.f32.mrf.mxu0
        %v7449 = vadd.f32 0.0, %v7448
        %7450 = vdwg.mxu0
        %7451 = vmatpush.bf16.msra.mxu0 %v1844
        %7452 = vmatpush.bf16.msra.mxu0 %v1842
        %7453 = vmatpush.bf16.msra.mxu0 %v1840
        %7454 = vmatpush.bf16.msra.mxu0 %v1838
        %7455 = vmatpush.bf16.msra.mxu0 %v1836
        %7456 = vmatpush.bf16.msra.mxu0 %v1834
        %7457 = vmatpush.bf16.msra.mxu0 %v1832
        %7458 = vmatpush.bf16.msra.mxu0 %v1830
        %7459 = vmatmul.bf16.gmra.mxu0 %v7151
        %v7460 = vpop.f32.mrf.mxu0
        %v7461 = vadd.f32 %v7442, %v7460
        %v7462 = vpop.f32.mrf.mxu0
        %v7463 = vadd.f32 %v7444, %v7462
        %7464 = vmatmul.bf16.gmra.mxu0 %v7153
        %v7465 = vpop.f32.mrf.mxu0
        %v7466 = vadd.f32 %v7447, %v7465
        %v7467 = vpop.f32.mrf.mxu0
        %v7468 = vadd.f32 %v7449, %v7467
        %7469 = vdwg.mxu0
        %v7470 = vpack.c.bf16 %v7461, %v7423
        %v7471 = vpack.c.bf16 %v7463, %v7425
        %v7472 = vpack.c.bf16 %v7466, %v7428
        %v7473 = vpack.c.bf16 %v7468, %v7430
        %7474 = vmatpush.bf16.msra.mxu0 %v2100
        %7475 = vmatpush.bf16.msra.mxu0 %v2098
        %7476 = vmatpush.bf16.msra.mxu0 %v2096
        %7477 = vmatpush.bf16.msra.mxu0 %v2094
        %7478 = vmatpush.bf16.msra.mxu0 %v2092
        %7479 = vmatpush.bf16.msra.mxu0 %v2090
        %7480 = vmatpush.bf16.msra.mxu0 %v2088
        %7481 = vmatpush.bf16.msra.mxu0 %v2086
        %7482 = vmatmul.bf16.gmra.mxu0 %v7150
        %v7483 = vpop.f32.mrf.mxu0
        %v7484 = vadd.f32 0.0, %v7483
        %v7485 = vpop.f32.mrf.mxu0
        %v7486 = vadd.f32 0.0, %v7485
        %7487 = vmatmul.bf16.gmra.mxu0 %v7152
        %v7488 = vpop.f32.mrf.mxu0
        %v7489 = vadd.f32 0.0, %v7488
        %v7490 = vpop.f32.mrf.mxu0
        %v7491 = vadd.f32 0.0, %v7490
        %7492 = vdwg.mxu0
        %7493 = vmatpush.bf16.msra.mxu0 %v2116
        %7494 = vmatpush.bf16.msra.mxu0 %v2114
        %7495 = vmatpush.bf16.msra.mxu0 %v2112
        %7496 = vmatpush.bf16.msra.mxu0 %v2110
        %7497 = vmatpush.bf16.msra.mxu0 %v2108
        %7498 = vmatpush.bf16.msra.mxu0 %v2106
        %7499 = vmatpush.bf16.msra.mxu0 %v2104
        %7500 = vmatpush.bf16.msra.mxu0 %v2102
        %7501 = vmatmul.bf16.gmra.mxu0 %v7151
        %v7502 = vpop.f32.mrf.mxu0
        %v7503 = vadd.f32 %v7484, %v7502
        %v7504 = vpop.f32.mrf.mxu0
        %v7505 = vadd.f32 %v7486, %v7504
        %7506 = vmatmul.bf16.gmra.mxu0 %v7153
        %v7507 = vpop.f32.mrf.mxu0
        %v7508 = vadd.f32 %v7489, %v7507
        %v7509 = vpop.f32.mrf.mxu0
        %v7510 = vadd.f32 %v7491, %v7509
        %7511 = vdwg.mxu0
        %7512 = vmatpush.bf16.msra.mxu0 %v2101
        %7513 = vmatpush.bf16.msra.mxu0 %v2099
        %7514 = vmatpush.bf16.msra.mxu0 %v2097
        %7515 = vmatpush.bf16.msra.mxu0 %v2095
        %7516 = vmatpush.bf16.msra.mxu0 %v2093
        %7517 = vmatpush.bf16.msra.mxu0 %v2091
        %7518 = vmatpush.bf16.msra.mxu0 %v2089
        %7519 = vmatpush.bf16.msra.mxu0 %v2087
        %7520 = vmatmul.bf16.gmra.mxu0 %v7150
        %v7521 = vpop.f32.mrf.mxu0
        %v7522 = vadd.f32 0.0, %v7521
        %v7523 = vpop.f32.mrf.mxu0
        %v7524 = vadd.f32 0.0, %v7523
        %7525 = vmatmul.bf16.gmra.mxu0 %v7152
        %v7526 = vpop.f32.mrf.mxu0
        %v7527 = vadd.f32 0.0, %v7526
        %v7528 = vpop.f32.mrf.mxu0
        %v7529 = vadd.f32 0.0, %v7528
        %7530 = vdwg.mxu0
        %7531 = vmatpush.bf16.msra.mxu0 %v2117
        %7532 = vmatpush.bf16.msra.mxu0 %v2115
        %7533 = vmatpush.bf16.msra.mxu0 %v2113
        %7534 = vmatpush.bf16.msra.mxu0 %v2111
        %7535 = vmatpush.bf16.msra.mxu0 %v2109
        %7536 = vmatpush.bf16.msra.mxu0 %v2107
        %7537 = vmatpush.bf16.msra.mxu0 %v2105
        %7538 = vmatpush.bf16.msra.mxu0 %v2103
        %7539 = vmatmul.bf16.gmra.mxu0 %v7151
        %v7540 = vpop.f32.mrf.mxu0
        %v7541 = vadd.f32 %v7522, %v7540
        %v7542 = vpop.f32.mrf.mxu0
        %v7543 = vadd.f32 %v7524, %v7542
        %7544 = vmatmul.bf16.gmra.mxu0 %v7153
        %v7545 = vpop.f32.mrf.mxu0
        %v7546 = vadd.f32 %v7527, %v7545
        %v7547 = vpop.f32.mrf.mxu0
        %v7548 = vadd.f32 %v7529, %v7547
        %7549 = vdwg.mxu0
        %v7550 = vpack.c.bf16 %v7541, %v7503
        %v7551 = vpack.c.bf16 %v7543, %v7505
        %v7552 = vpack.c.bf16 %v7546, %v7508
        %v7553 = vpack.c.bf16 %v7548, %v7510
        %7554 = vmatpush.bf16.msra.mxu0 %v2373
        %7555 = vmatpush.bf16.msra.mxu0 %v2371
        %7556 = vmatpush.bf16.msra.mxu0 %v2369
        %7557 = vmatpush.bf16.msra.mxu0 %v2367
        %7558 = vmatpush.bf16.msra.mxu0 %v2365
        %7559 = vmatpush.bf16.msra.mxu0 %v2363
        %7560 = vmatpush.bf16.msra.mxu0 %v2361
        %7561 = vmatpush.bf16.msra.mxu0 %v2359
        %7562 = vmatmul.bf16.gmra.mxu0 %v7150
        %v7563 = vpop.f32.mrf.mxu0
        %v7564 = vadd.f32 0.0, %v7563
        %v7565 = vpop.f32.mrf.mxu0
        %v7566 = vadd.f32 0.0, %v7565
        %7567 = vmatmul.bf16.gmra.mxu0 %v7152
        %v7568 = vpop.f32.mrf.mxu0
        %v7569 = vadd.f32 0.0, %v7568
        %v7570 = vpop.f32.mrf.mxu0
        %v7571 = vadd.f32 0.0, %v7570
        %7572 = vdwg.mxu0
        %7573 = vmatpush.bf16.msra.mxu0 %v2389
        %7574 = vmatpush.bf16.msra.mxu0 %v2387
        %7575 = vmatpush.bf16.msra.mxu0 %v2385
        %7576 = vmatpush.bf16.msra.mxu0 %v2383
        %7577 = vmatpush.bf16.msra.mxu0 %v2381
        %7578 = vmatpush.bf16.msra.mxu0 %v2379
        %7579 = vmatpush.bf16.msra.mxu0 %v2377
        %7580 = vmatpush.bf16.msra.mxu0 %v2375
        %7581 = vmatmul.bf16.gmra.mxu0 %v7151
        %v7582 = vpop.f32.mrf.mxu0
        %v7583 = vadd.f32 %v7564, %v7582
        %v7584 = vpop.f32.mrf.mxu0
        %v7585 = vadd.f32 %v7566, %v7584
        %7586 = vmatmul.bf16.gmra.mxu0 %v7153
        %v7587 = vpop.f32.mrf.mxu0
        %v7588 = vadd.f32 %v7569, %v7587
        %v7589 = vpop.f32.mrf.mxu0
        %v7590 = vadd.f32 %v7571, %v7589
        %7591 = vdwg.mxu0
        %7592 = vmatpush.bf16.msra.mxu0 %v2374
        %7593 = vmatpush.bf16.msra.mxu0 %v2372
        %7594 = vmatpush.bf16.msra.mxu0 %v2370
        %7595 = vmatpush.bf16.msra.mxu0 %v2368
        %7596 = vmatpush.bf16.msra.mxu0 %v2366
        %7597 = vmatpush.bf16.msra.mxu0 %v2364
        %7598 = vmatpush.bf16.msra.mxu0 %v2362
        %7599 = vmatpush.bf16.msra.mxu0 %v2360
        %7600 = vmatmul.bf16.gmra.mxu0 %v7150
        %v7601 = vpop.f32.mrf.mxu0
        %v7602 = vadd.f32 0.0, %v7601
        %v7603 = vpop.f32.mrf.mxu0
        %v7604 = vadd.f32 0.0, %v7603
        %7605 = vmatmul.bf16.gmra.mxu0 %v7152
        %v7606 = vpop.f32.mrf.mxu0
        %v7607 = vadd.f32 0.0, %v7606
        %v7608 = vpop.f32.mrf.mxu0
        %v7609 = vadd.f32 0.0, %v7608
        %7610 = vdwg.mxu0
        %7611 = vmatpush.bf16.msra.mxu0 %v2390
        %7612 = vmatpush.bf16.msra.mxu0 %v2388
        %7613 = vmatpush.bf16.msra.mxu0 %v2386
        %7614 = vmatpush.bf16.msra.mxu0 %v2384
        %7615 = vmatpush.bf16.msra.mxu0 %v2382
        %7616 = vmatpush.bf16.msra.mxu0 %v2380
        %7617 = vmatpush.bf16.msra.mxu0 %v2378
        %7618 = vmatpush.bf16.msra.mxu0 %v2376
        %7619 = vmatmul.bf16.gmra.mxu0 %v7151
        %v7620 = vpop.f32.mrf.mxu0
        %v7621 = vadd.f32 %v7602, %v7620
        %v7622 = vpop.f32.mrf.mxu0
        %v7623 = vadd.f32 %v7604, %v7622
        %7624 = vmatmul.bf16.gmra.mxu0 %v7153
        %v7625 = vpop.f32.mrf.mxu0
        %v7626 = vadd.f32 %v7607, %v7625
        %v7627 = vpop.f32.mrf.mxu0
        %v7628 = vadd.f32 %v7609, %v7627
        %7629 = vdwg.mxu0
        %v7630 = vpack.c.bf16 %v7621, %v7583
        %v7631 = vpack.c.bf16 %v7623, %v7585
        %v7632 = vpack.c.bf16 %v7626, %v7588
        %v7633 = vpack.c.bf16 %v7628, %v7590
        %7634 = vmatpush.bf16.msra.mxu0 %v2646
        %7635 = vmatpush.bf16.msra.mxu0 %v2644
        %7636 = vmatpush.bf16.msra.mxu0 %v2642
        %7637 = vmatpush.bf16.msra.mxu0 %v2640
        %7638 = vmatpush.bf16.msra.mxu0 %v2638
        %7639 = vmatpush.bf16.msra.mxu0 %v2636
        %7640 = vmatpush.bf16.msra.mxu0 %v2634
        %7641 = vmatpush.bf16.msra.mxu0 %v2632
        %7642 = vmatmul.bf16.gmra.mxu0 %v7150
        %v7643 = vpop.f32.mrf.mxu0
        %v7644 = vadd.f32 0.0, %v7643
        %v7645 = vpop.f32.mrf.mxu0
        %v7646 = vadd.f32 0.0, %v7645
        %7647 = vmatmul.bf16.gmra.mxu0 %v7152
        %v7648 = vpop.f32.mrf.mxu0
        %v7649 = vadd.f32 0.0, %v7648
        %v7650 = vpop.f32.mrf.mxu0
        %v7651 = vadd.f32 0.0, %v7650
        %7652 = vdwg.mxu0
        %7653 = vmatpush.bf16.msra.mxu0 %v2662
        %7654 = vmatpush.bf16.msra.mxu0 %v2660
        %7655 = vmatpush.bf16.msra.mxu0 %v2658
        %7656 = vmatpush.bf16.msra.mxu0 %v2656
        %7657 = vmatpush.bf16.msra.mxu0 %v2654
        %7658 = vmatpush.bf16.msra.mxu0 %v2652
        %7659 = vmatpush.bf16.msra.mxu0 %v2650
        %7660 = vmatpush.bf16.msra.mxu0 %v2648
        %7661 = vmatmul.bf16.gmra.mxu0 %v7151
        %v7662 = vpop.f32.mrf.mxu0
        %v7663 = vadd.f32 %v7644, %v7662
        %v7664 = vpop.f32.mrf.mxu0
        %v7665 = vadd.f32 %v7646, %v7664
        %7666 = vmatmul.bf16.gmra.mxu0 %v7153
        %v7667 = vpop.f32.mrf.mxu0
        %v7668 = vadd.f32 %v7649, %v7667
        %v7669 = vpop.f32.mrf.mxu0
        %v7670 = vadd.f32 %v7651, %v7669
        %7671 = vdwg.mxu0
        %7672 = vmatpush.bf16.msra.mxu0 %v2647
        %7673 = vmatpush.bf16.msra.mxu0 %v2645
        %7674 = vmatpush.bf16.msra.mxu0 %v2643
        %7675 = vmatpush.bf16.msra.mxu0 %v2641
        %7676 = vmatpush.bf16.msra.mxu0 %v2639
        %7677 = vmatpush.bf16.msra.mxu0 %v2637
        %7678 = vmatpush.bf16.msra.mxu0 %v2635
        %7679 = vmatpush.bf16.msra.mxu0 %v2633
        %7680 = vmatmul.bf16.gmra.mxu0 %v7150
        %v7681 = vpop.f32.mrf.mxu0
        %v7682 = vadd.f32 0.0, %v7681
        %v7683 = vpop.f32.mrf.mxu0
        %v7684 = vadd.f32 0.0, %v7683
        %7685 = vmatmul.bf16.gmra.mxu0 %v7152
        %v7686 = vpop.f32.mrf.mxu0
        %v7687 = vadd.f32 0.0, %v7686
        %v7688 = vpop.f32.mrf.mxu0
        %v7689 = vadd.f32 0.0, %v7688
        %7690 = vdwg.mxu0
        %7691 = vmatpush.bf16.msra.mxu0 %v2663
        %7692 = vmatpush.bf16.msra.mxu0 %v2661
        %7693 = vmatpush.bf16.msra.mxu0 %v2659
        %7694 = vmatpush.bf16.msra.mxu0 %v2657
        %7695 = vmatpush.bf16.msra.mxu0 %v2655
        %7696 = vmatpush.bf16.msra.mxu0 %v2653
        %7697 = vmatpush.bf16.msra.mxu0 %v2651
        %7698 = vmatpush.bf16.msra.mxu0 %v2649
        %7699 = vmatmul.bf16.gmra.mxu0 %v7151
        %v7700 = vpop.f32.mrf.mxu0
        %v7701 = vadd.f32 %v7682, %v7700
        %v7702 = vpop.f32.mrf.mxu0
        %v7703 = vadd.f32 %v7684, %v7702
        %7704 = vmatmul.bf16.gmra.mxu0 %v7153
        %v7705 = vpop.f32.mrf.mxu0
        %v7706 = vadd.f32 %v7687, %v7705
        %v7707 = vpop.f32.mrf.mxu0
        %v7708 = vadd.f32 %v7689, %v7707
        %7709 = vdwg.mxu0
        %v7710 = vpack.c.bf16 %v7701, %v7663
        %v7711 = vpack.c.bf16 %v7703, %v7665
        %v7712 = vpack.c.bf16 %v7706, %v7668
        %v7713 = vpack.c.bf16 %v7708, %v7670
        %7714 = vmatpush.bf16.msra.mxu0 %v2919
        %7715 = vmatpush.bf16.msra.mxu0 %v2917
        %7716 = vmatpush.bf16.msra.mxu0 %v2915
        %7717 = vmatpush.bf16.msra.mxu0 %v2913
        %7718 = vmatpush.bf16.msra.mxu0 %v2911
        %7719 = vmatpush.bf16.msra.mxu0 %v2909
        %7720 = vmatpush.bf16.msra.mxu0 %v2907
        %7721 = vmatpush.bf16.msra.mxu0 %v2905
        %7722 = vmatmul.bf16.gmra.mxu0 %v7150
        %v7723 = vpop.f32.mrf.mxu0
        %v7724 = vadd.f32 0.0, %v7723
        %v7725 = vpop.f32.mrf.mxu0
        %v7726 = vadd.f32 0.0, %v7725
        %7727 = vmatmul.bf16.gmra.mxu0 %v7152
        %v7728 = vpop.f32.mrf.mxu0
        %v7729 = vadd.f32 0.0, %v7728
        %v7730 = vpop.f32.mrf.mxu0
        %v7731 = vadd.f32 0.0, %v7730
        %7732 = vdwg.mxu0
        %7733 = vmatpush.bf16.msra.mxu0 %v2935
        %7734 = vmatpush.bf16.msra.mxu0 %v2933
        %7735 = vmatpush.bf16.msra.mxu0 %v2931
        %7736 = vmatpush.bf16.msra.mxu0 %v2929
        %7737 = vmatpush.bf16.msra.mxu0 %v2927
        %7738 = vmatpush.bf16.msra.mxu0 %v2925
        %7739 = vmatpush.bf16.msra.mxu0 %v2923
        %7740 = vmatpush.bf16.msra.mxu0 %v2921
        %7741 = vmatmul.bf16.gmra.mxu0 %v7151
        %v7742 = vpop.f32.mrf.mxu0
        %v7743 = vadd.f32 %v7724, %v7742
        %v7744 = vpop.f32.mrf.mxu0
        %v7745 = vadd.f32 %v7726, %v7744
        %7746 = vmatmul.bf16.gmra.mxu0 %v7153
        %v7747 = vpop.f32.mrf.mxu0
        %v7748 = vadd.f32 %v7729, %v7747
        %v7749 = vpop.f32.mrf.mxu0
        %v7750 = vadd.f32 %v7731, %v7749
        %7751 = vdwg.mxu0
        %7752 = vmatpush.bf16.msra.mxu0 %v2920
        %7753 = vmatpush.bf16.msra.mxu0 %v2918
        %7754 = vmatpush.bf16.msra.mxu0 %v2916
        %7755 = vmatpush.bf16.msra.mxu0 %v2914
        %7756 = vmatpush.bf16.msra.mxu0 %v2912
        %7757 = vmatpush.bf16.msra.mxu0 %v2910
        %7758 = vmatpush.bf16.msra.mxu0 %v2908
        %7759 = vmatpush.bf16.msra.mxu0 %v2906
        %7760 = vmatmul.bf16.gmra.mxu0 %v7150
        %v7761 = vpop.f32.mrf.mxu0
        %v7762 = vadd.f32 0.0, %v7761
        %v7763 = vpop.f32.mrf.mxu0
        %v7764 = vadd.f32 0.0, %v7763
        %7765 = vmatmul.bf16.gmra.mxu0 %v7152
        %v7766 = vpop.f32.mrf.mxu0
        %v7767 = vadd.f32 0.0, %v7766
        %v7768 = vpop.f32.mrf.mxu0
        %v7769 = vadd.f32 0.0, %v7768
        %7770 = vdwg.mxu0
        %7771 = vmatpush.bf16.msra.mxu0 %v2936
        %7772 = vmatpush.bf16.msra.mxu0 %v2934
        %7773 = vmatpush.bf16.msra.mxu0 %v2932
        %7774 = vmatpush.bf16.msra.mxu0 %v2930
        %7775 = vmatpush.bf16.msra.mxu0 %v2928
        %7776 = vmatpush.bf16.msra.mxu0 %v2926
        %7777 = vmatpush.bf16.msra.mxu0 %v2924
        %7778 = vmatpush.bf16.msra.mxu0 %v2922
        %7779 = vmatmul.bf16.gmra.mxu0 %v7151
        %v7780 = vpop.f32.mrf.mxu0
        %v7781 = vadd.f32 %v7762, %v7780
        %v7782 = vpop.f32.mrf.mxu0
        %v7783 = vadd.f32 %v7764, %v7782
        %7784 = vmatmul.bf16.gmra.mxu0 %v7153
        %v7785 = vpop.f32.mrf.mxu0
        %v7786 = vadd.f32 %v7767, %v7785
        %v7787 = vpop.f32.mrf.mxu0
        %v7788 = vadd.f32 %v7769, %v7787
        %7789 = vdwg.mxu0
        %v7790 = vpack.c.bf16 %v7781, %v7743
        %v7791 = vpack.c.bf16 %v7783, %v7745
        %v7792 = vpack.c.bf16 %v7786, %v7748
        %v7793 = vpack.c.bf16 %v7788, %v7750
        %7794 = vmatpush.bf16.msra.mxu0 %v3192
        %7795 = vmatpush.bf16.msra.mxu0 %v3190
        %7796 = vmatpush.bf16.msra.mxu0 %v3188
        %7797 = vmatpush.bf16.msra.mxu0 %v3186
        %7798 = vmatpush.bf16.msra.mxu0 %v3184
        %7799 = vmatpush.bf16.msra.mxu0 %v3182
        %7800 = vmatpush.bf16.msra.mxu0 %v3180
        %7801 = vmatpush.bf16.msra.mxu0 %v3178
        %7802 = vmatmul.bf16.gmra.mxu0 %v7150
        %v7803 = vpop.f32.mrf.mxu0
        %v7804 = vadd.f32 0.0, %v7803
        %v7805 = vpop.f32.mrf.mxu0
        %v7806 = vadd.f32 0.0, %v7805
        %7807 = vmatmul.bf16.gmra.mxu0 %v7152
        %v7808 = vpop.f32.mrf.mxu0
        %v7809 = vadd.f32 0.0, %v7808
        %v7810 = vpop.f32.mrf.mxu0
        %v7811 = vadd.f32 0.0, %v7810
        %7812 = vdwg.mxu0
        %7813 = vmatpush.bf16.msra.mxu0 %v3208
        %7814 = vmatpush.bf16.msra.mxu0 %v3206
        %7815 = vmatpush.bf16.msra.mxu0 %v3204
        %7816 = vmatpush.bf16.msra.mxu0 %v3202
        %7817 = vmatpush.bf16.msra.mxu0 %v3200
        %7818 = vmatpush.bf16.msra.mxu0 %v3198
        %7819 = vmatpush.bf16.msra.mxu0 %v3196
        %7820 = vmatpush.bf16.msra.mxu0 %v3194
        %7821 = vmatmul.bf16.gmra.mxu0 %v7151
        %v7822 = vpop.f32.mrf.mxu0
        %v7823 = vadd.f32 %v7804, %v7822
        %v7824 = vpop.f32.mrf.mxu0
        %v7825 = vadd.f32 %v7806, %v7824
        %7826 = vmatmul.bf16.gmra.mxu0 %v7153
        %v7827 = vpop.f32.mrf.mxu0
        %v7828 = vadd.f32 %v7809, %v7827
        %v7829 = vpop.f32.mrf.mxu0
        %v7830 = vadd.f32 %v7811, %v7829
        %7831 = vdwg.mxu0
        %7832 = vmatpush.bf16.msra.mxu0 %v3193
        %7833 = vmatpush.bf16.msra.mxu0 %v3191
        %7834 = vmatpush.bf16.msra.mxu0 %v3189
        %7835 = vmatpush.bf16.msra.mxu0 %v3187
        %7836 = vmatpush.bf16.msra.mxu0 %v3185
        %7837 = vmatpush.bf16.msra.mxu0 %v3183
        %7838 = vmatpush.bf16.msra.mxu0 %v3181
        %7839 = vmatpush.bf16.msra.mxu0 %v3179
        %7840 = vmatmul.bf16.gmra.mxu0 %v7150
        %v7841 = vpop.f32.mrf.mxu0
        %v7842 = vadd.f32 0.0, %v7841
        %v7843 = vpop.f32.mrf.mxu0
        %v7844 = vadd.f32 0.0, %v7843
        %7845 = vmatmul.bf16.gmra.mxu0 %v7152
        %v7846 = vpop.f32.mrf.mxu0
        %v7847 = vadd.f32 0.0, %v7846
        %v7848 = vpop.f32.mrf.mxu0
        %v7849 = vadd.f32 0.0, %v7848
        %7850 = vdwg.mxu0
        %7851 = vmatpush.bf16.msra.mxu0 %v3209
        %7852 = vmatpush.bf16.msra.mxu0 %v3207
        %7853 = vmatpush.bf16.msra.mxu0 %v3205
        %7854 = vmatpush.bf16.msra.mxu0 %v3203
        %7855 = vmatpush.bf16.msra.mxu0 %v3201
        %7856 = vmatpush.bf16.msra.mxu0 %v3199
        %7857 = vmatpush.bf16.msra.mxu0 %v3197
        %7858 = vmatpush.bf16.msra.mxu0 %v3195
        %7859 = vmatmul.bf16.gmra.mxu0 %v7151
        %v7860 = vpop.f32.mrf.mxu0
        %v7861 = vadd.f32 %v7842, %v7860
        %v7862 = vpop.f32.mrf.mxu0
        %v7863 = vadd.f32 %v7844, %v7862
        %7864 = vmatmul.bf16.gmra.mxu0 %v7153
        %v7865 = vpop.f32.mrf.mxu0
        %v7866 = vadd.f32 %v7847, %v7865
        %v7867 = vpop.f32.mrf.mxu0
        %v7868 = vadd.f32 %v7849, %v7867
        %7869 = vdwg.mxu0
        %v7870 = vpack.c.bf16 %v7861, %v7823
        %v7871 = vpack.c.bf16 %v7863, %v7825
        %v7872 = vpack.c.bf16 %v7866, %v7828
        %v7873 = vpack.c.bf16 %v7868, %v7830
        %v7878 = vunpack.c.l.b16 %v7230
        %v7879 = vunpack.c.h.b16 %v7230
        %v7880 = vunpack.c.l.b16 %v7231
        %v7881 = vunpack.c.h.b16 %v7231
        %v7882 = vunpack.c.l.b16 %v7232
        %v7883 = vunpack.c.h.b16 %v7232
        %v7884 = vunpack.c.l.b16 %v7233
        %v7885 = vunpack.c.h.b16 %v7233
        %v7886 = vpack.c.b16 %v7880, %v7878
        %v7887 = vpack.c.b16 %v7881, %v7879
        %v7888 = vpack.c.b16 %v7884, %v7882
        %v7889 = vpack.c.b16 %v7885, %v7883
        %v7898 = vunpack.c.l.b16 %v7310
        %v7899 = vunpack.c.h.b16 %v7310
        %v7900 = vunpack.c.l.b16 %v7311
        %v7901 = vunpack.c.h.b16 %v7311
        %v7902 = vunpack.c.l.b16 %v7312
        %v7903 = vunpack.c.h.b16 %v7312
        %v7904 = vunpack.c.l.b16 %v7313
        %v7905 = vunpack.c.h.b16 %v7313
        %v7906 = vpack.c.b16 %v7900, %v7898
        %v7907 = vpack.c.b16 %v7901, %v7899
        %v7908 = vpack.c.b16 %v7904, %v7902
        %v7909 = vpack.c.b16 %v7905, %v7903
        %v7918 = vunpack.c.l.b16 %v7390
        %v7919 = vunpack.c.h.b16 %v7390
        %v7920 = vunpack.c.l.b16 %v7391
        %v7921 = vunpack.c.h.b16 %v7391
        %v7922 = vunpack.c.l.b16 %v7392
        %v7923 = vunpack.c.h.b16 %v7392
        %v7924 = vunpack.c.l.b16 %v7393
        %v7925 = vunpack.c.h.b16 %v7393
        %v7926 = vpack.c.b16 %v7920, %v7918
        %v7927 = vpack.c.b16 %v7921, %v7919
        %v7928 = vpack.c.b16 %v7924, %v7922
        %v7929 = vpack.c.b16 %v7925, %v7923
        %v7938 = vunpack.c.l.b16 %v7470
        %v7939 = vunpack.c.h.b16 %v7470
        %v7940 = vunpack.c.l.b16 %v7471
        %v7941 = vunpack.c.h.b16 %v7471
        %v7942 = vunpack.c.l.b16 %v7472
        %v7943 = vunpack.c.h.b16 %v7472
        %v7944 = vunpack.c.l.b16 %v7473
        %v7945 = vunpack.c.h.b16 %v7473
        %v7946 = vpack.c.b16 %v7940, %v7938
        %v7947 = vpack.c.b16 %v7941, %v7939
        %v7948 = vpack.c.b16 %v7944, %v7942
        %v7949 = vpack.c.b16 %v7945, %v7943
        %v7958 = vunpack.c.l.b16 %v7550
        %v7959 = vunpack.c.h.b16 %v7550
        %v7960 = vunpack.c.l.b16 %v7551
        %v7961 = vunpack.c.h.b16 %v7551
        %v7962 = vunpack.c.l.b16 %v7552
        %v7963 = vunpack.c.h.b16 %v7552
        %v7964 = vunpack.c.l.b16 %v7553
        %v7965 = vunpack.c.h.b16 %v7553
        %v7966 = vpack.c.b16 %v7960, %v7958
        %v7967 = vpack.c.b16 %v7961, %v7959
        %v7968 = vpack.c.b16 %v7964, %v7962
        %v7969 = vpack.c.b16 %v7965, %v7963
        %v7978 = vunpack.c.l.b16 %v7630
        %v7979 = vunpack.c.h.b16 %v7630
        %v7980 = vunpack.c.l.b16 %v7631
        %v7981 = vunpack.c.h.b16 %v7631
        %v7982 = vunpack.c.l.b16 %v7632
        %v7983 = vunpack.c.h.b16 %v7632
        %v7984 = vunpack.c.l.b16 %v7633
        %v7985 = vunpack.c.h.b16 %v7633
        %v7986 = vpack.c.b16 %v7980, %v7978
        %v7987 = vpack.c.b16 %v7981, %v7979
        %v7988 = vpack.c.b16 %v7984, %v7982
        %v7989 = vpack.c.b16 %v7985, %v7983
        %v7998 = vunpack.c.l.b16 %v7710
        %v7999 = vunpack.c.h.b16 %v7710
        %v8000 = vunpack.c.l.b16 %v7711
        %v8001 = vunpack.c.h.b16 %v7711
        %v8002 = vunpack.c.l.b16 %v7712
        %v8003 = vunpack.c.h.b16 %v7712
        %v8004 = vunpack.c.l.b16 %v7713
        %v8005 = vunpack.c.h.b16 %v7713
        %v8006 = vpack.c.b16 %v8000, %v7998
        %v8007 = vpack.c.b16 %v8001, %v7999
        %v8008 = vpack.c.b16 %v8004, %v8002
        %v8009 = vpack.c.b16 %v8005, %v8003
        %v8018 = vunpack.c.l.b16 %v7790
        %v8019 = vunpack.c.h.b16 %v7790
        %v8020 = vunpack.c.l.b16 %v7791
        %v8021 = vunpack.c.h.b16 %v7791
        %v8022 = vunpack.c.l.b16 %v7792
        %v8023 = vunpack.c.h.b16 %v7792
        %v8024 = vunpack.c.l.b16 %v7793
        %v8025 = vunpack.c.h.b16 %v7793
        %v8026 = vpack.c.b16 %v8020, %v8018
        %v8027 = vpack.c.b16 %v8021, %v8019
        %v8028 = vpack.c.b16 %v8024, %v8022
        %v8029 = vpack.c.b16 %v8025, %v8023
        %v8038 = vunpack.c.l.b16 %v7870
        %v8039 = vunpack.c.h.b16 %v7870
        %v8040 = vunpack.c.l.b16 %v7871
        %v8041 = vunpack.c.h.b16 %v7871
        %v8042 = vunpack.c.l.b16 %v7872
        %v8043 = vunpack.c.h.b16 %v7872
        %v8044 = vunpack.c.l.b16 %v7873
        %v8045 = vunpack.c.h.b16 %v7873
        %v8046 = vpack.c.b16 %v8040, %v8038
        %v8047 = vpack.c.b16 %v8041, %v8039
        %v8048 = vpack.c.b16 %v8044, %v8042
        %v8049 = vpack.c.b16 %v8045, %v8043
        %v8054 = vld [vmem:[#allocation19] sm:$0xff]
        %v8055 = vld [vmem:[#allocation19 + $0x8] sm:$0xf]
        %v8056 = vld [vmem:[#allocation19 + $0xc] sm:$0xff]
        %v8057 = vld [vmem:[#allocation19 + $0x14] sm:$0xf]
        %v8058 = vld [vmem:[#allocation19 + $0x18] sm:$0xff]
        %v8059 = vld [vmem:[#allocation19 + $0x20] sm:$0xf]
        %v8060 = vld [vmem:[#allocation19 + $0x24] sm:$0xff]
        %v8061 = vld [vmem:[#allocation19 + $0x2c] sm:$0xf]
        %v8062 = vld [vmem:[#allocation21] sm:$0xff]
        %v8063 = vld [vmem:[#allocation21 + $0x8] sm:$0xff]
        %v8064 = vld [vmem:[#allocation21 + $0x10] sm:$0xff]
        %v8065 = vld [vmem:[#allocation21 + $0x18] sm:$0xff]
        %8067 = vset.pattern.permute.xlu0 0
        %8068 = vperm.xlu0 %8067, %v8062
        %v8069 = vpop.permute.xlu0 %8068
        %8072 = vset.pattern.permute.xlu0 0
        %8073 = vperm.xlu0 %8072, %v8063
        %v8074 = vpop.permute.xlu0 %8073
        %8077 = vset.pattern.permute.xlu0 0
        %8078 = vperm.xlu0 %8077, %v8064
        %v8079 = vpop.permute.xlu0 %8078
        %8082 = vset.pattern.permute.xlu0 0
        %8083 = vperm.xlu0 %8082, %v8065
        %v8084 = vpop.permute.xlu0 %8083
        %v8094 = vunpack.c.l.b16 %v8054
        %v8095 = vunpack.c.h.b16 %v8054
        %v8096 = vunpack.c.l.b16 %v8055
        %v8097 = vunpack.c.l.b16 %v8056
        %v8098 = vunpack.c.h.b16 %v8056
        %v8099 = vunpack.c.l.b16 %v8057
        %v8100 = vunpack.c.l.b16 %v8058
        %v8101 = vunpack.c.h.b16 %v8058
        %v8102 = vunpack.c.l.b16 %v8059
        %v8103 = vunpack.c.l.b16 %v8060
        %v8104 = vunpack.c.h.b16 %v8060
        %v8105 = vunpack.c.l.b16 %v8061
        %v8106 = vpack.c.b16 %v8097, %v8094
        %v8107 = vpack.c.b16 %v8098, %v8095
        %v8108 = vpack.c.b16 %v8099, %v8096
        %v8109 = vpack.c.b16 %v8103, %v8100
        %v8110 = vpack.c.b16 %v8104, %v8101
        %v8111 = vpack.c.b16 %v8105, %v8102
        %v8117 = vsel %vm3564, %v8108, 0
        %v8120 = vsel %vm3564, %v8111, 0
        %8122 = vmatpush.bf16.msra.mxu0 %v7948
        %8123 = vmatpush.bf16.msra.mxu0 %v7946
        %8124 = vmatpush.bf16.msra.mxu0 %v7928
        %8125 = vmatpush.bf16.msra.mxu0 %v7926
        %8126 = vmatpush.bf16.msra.mxu0 %v7908
        %8127 = vmatpush.bf16.msra.mxu0 %v7906
        %8128 = vmatpush.bf16.msra.mxu0 %v7888
        %8129 = vmatpush.bf16.msra.mxu0 %v7886
        %8130 = vmatmul.bf16.gmra.mxu0 %v8106
        %v8131 = vpop.f32.mrf.mxu0
        %v8132 = vadd.f32 %v8069, %v8131
        %v8133 = vpop.f32.mrf.mxu0
        %v8134 = vadd.f32 %v8074, %v8133
        %8135 = vmatmul.bf16.gmra.mxu0 %v8109
        %v8136 = vpop.f32.mrf.mxu0
        %v8137 = vadd.f32 %v8079, %v8136
        %v8138 = vpop.f32.mrf.mxu0
        %v8139 = vadd.f32 %v8084, %v8138
        %8140 = vdwg.mxu0
        %8141 = vmatpush.bf16.msra.mxu0 %v8028
        %8142 = vmatpush.bf16.msra.mxu0 %v8026
        %8143 = vmatpush.bf16.msra.mxu0 %v8008
        %8144 = vmatpush.bf16.msra.mxu0 %v8006
        %8145 = vmatpush.bf16.msra.mxu0 %v7988
        %8146 = vmatpush.bf16.msra.mxu0 %v7986
        %8147 = vmatpush.bf16.msra.mxu0 %v7968
        %8148 = vmatpush.bf16.msra.mxu0 %v7966
        %8149 = vmatmul.bf16.gmra.mxu0 %v8107
        %v8150 = vpop.f32.mrf.mxu0
        %v8151 = vadd.f32 %v8132, %v8150
        %v8152 = vpop.f32.mrf.mxu0
        %v8153 = vadd.f32 %v8134, %v8152
        %8154 = vmatmul.bf16.gmra.mxu0 %v8110
        %v8155 = vpop.f32.mrf.mxu0
        %v8156 = vadd.f32 %v8137, %v8155
        %v8157 = vpop.f32.mrf.mxu0
        %v8158 = vadd.f32 %v8139, %v8157
        %8159 = vdwg.mxu0
        %8160 = vmatpush.bf16.msra.mxu0 0
        %8161 = vmatpush.bf16.msra.mxu0 0
        %8162 = vmatpush.bf16.msra.mxu0 0
        %8163 = vmatpush.bf16.msra.mxu0 0
        %8164 = vmatpush.bf16.msra.mxu0 0
        %8165 = vmatpush.bf16.msra.mxu0 0
        %8166 = vmatpush.bf16.msra.mxu0 %v8048
        %8167 = vmatpush.bf16.msra.mxu0 %v8046
        %8168 = vmatmul.bf16.gmra.mxu0 %v8117
        %v8169 = vpop.f32.mrf.mxu0
        %v8170 = vadd.f32 %v8151, %v8169
        %v8171 = vpop.f32.mrf.mxu0
        %v8172 = vadd.f32 %v8153, %v8171
        %8173 = vmatmul.bf16.gmra.mxu0 %v8120
        %v8174 = vpop.f32.mrf.mxu0
        %v8175 = vadd.f32 %v8156, %v8174
        %v8176 = vpop.f32.mrf.mxu0
        %v8177 = vadd.f32 %v8158, %v8176
        %8178 = vdwg.mxu0
        %8179 = vmatpush.bf16.msra.mxu0 %v7949
        %8180 = vmatpush.bf16.msra.mxu0 %v7947
        %8181 = vmatpush.bf16.msra.mxu0 %v7929
        %8182 = vmatpush.bf16.msra.mxu0 %v7927
        %8183 = vmatpush.bf16.msra.mxu0 %v7909
        %8184 = vmatpush.bf16.msra.mxu0 %v7907
        %8185 = vmatpush.bf16.msra.mxu0 %v7889
        %8186 = vmatpush.bf16.msra.mxu0 %v7887
        %8187 = vmatmul.bf16.gmra.mxu0 %v8106
        %v8188 = vpop.f32.mrf.mxu0
        %v8189 = vadd.f32 %v8069, %v8188
        %v8190 = vpop.f32.mrf.mxu0
        %v8191 = vadd.f32 %v8074, %v8190
        %8192 = vmatmul.bf16.gmra.mxu0 %v8109
        %v8193 = vpop.f32.mrf.mxu0
        %v8194 = vadd.f32 %v8079, %v8193
        %v8195 = vpop.f32.mrf.mxu0
        %v8196 = vadd.f32 %v8084, %v8195
        %8197 = vdwg.mxu0
        %8198 = vmatpush.bf16.msra.mxu0 %v8029
        %8199 = vmatpush.bf16.msra.mxu0 %v8027
        %8200 = vmatpush.bf16.msra.mxu0 %v8009
        %8201 = vmatpush.bf16.msra.mxu0 %v8007
        %8202 = vmatpush.bf16.msra.mxu0 %v7989
        %8203 = vmatpush.bf16.msra.mxu0 %v7987
        %8204 = vmatpush.bf16.msra.mxu0 %v7969
        %8205 = vmatpush.bf16.msra.mxu0 %v7967
        %8206 = vmatmul.bf16.gmra.mxu0 %v8107
        %v8207 = vpop.f32.mrf.mxu0
        %v8208 = vadd.f32 %v8189, %v8207
        %v8209 = vpop.f32.mrf.mxu0
        %v8210 = vadd.f32 %v8191, %v8209
        %8211 = vmatmul.bf16.gmra.mxu0 %v8110
        %v8212 = vpop.f32.mrf.mxu0
        %v8213 = vadd.f32 %v8194, %v8212
        %v8214 = vpop.f32.mrf.mxu0
        %v8215 = vadd.f32 %v8196, %v8214
        %8216 = vdwg.mxu0
        %8217 = vmatpush.bf16.msra.mxu0 0
        %8218 = vmatpush.bf16.msra.mxu0 0
        %8219 = vmatpush.bf16.msra.mxu0 0
        %8220 = vmatpush.bf16.msra.mxu0 0
        %8221 = vmatpush.bf16.msra.mxu0 0
        %8222 = vmatpush.bf16.msra.mxu0 0
        %8223 = vmatpush.bf16.msra.mxu0 %v8049
        %8224 = vmatpush.bf16.msra.mxu0 %v8047
        %8225 = vmatmul.bf16.gmra.mxu0 %v8117
        %v8226 = vpop.f32.mrf.mxu0
        %v8227 = vadd.f32 %v8208, %v8226
        %v8228 = vpop.f32.mrf.mxu0
        %v8229 = vadd.f32 %v8210, %v8228
        %8230 = vmatmul.bf16.gmra.mxu0 %v8120
        %v8231 = vpop.f32.mrf.mxu0
        %v8232 = vadd.f32 %v8213, %v8231
        %v8233 = vpop.f32.mrf.mxu0
        %v8234 = vadd.f32 %v8215, %v8233
        %8235 = vdwg.mxu0
        %v8236 = vadd.f32 %v8170, %v8227
        %8237 = vadd.xlane.f32.xlu0 %v8236
        %v8238 = vpop.xlane.xlu0 %8237
        %v8239 = vadd.f32 %v8172, %v8229
        %8240 = vadd.xlane.f32.xlu0 %v8239
        %v8241 = vpop.xlane.xlu0 %8240
        %v8242 = vadd.f32 %v8175, %v8232
        %8243 = vadd.xlane.f32.xlu0 %v8242
        %v8244 = vpop.xlane.xlu0 %8243
        %v8245 = vadd.f32 %v8177, %v8234
        %8246 = vadd.xlane.f32.xlu0 %v8245
        %v8247 = vpop.xlane.xlu0 %8246
        %v8248 = vrcp.pop 256.0
        %v8249 = vmul.f32 256.0, %v8248
        %v8250 = vsub.f32 1.0, %v8249
        %v8251 = vmul.f32 %v8248, %v8250
        %v8252 = vadd.f32 %v8248, %v8251
        %vm8253 = vweird.f32 %v8248
        %v8254 = vsel %vm8253, %v8248, %v8252
        %v8255 = vmul.f32 %v8238, %v8254
        %v8256 = vmul.f32 %v8241, %v8254
        %v8257 = vmul.f32 %v8244, %v8254
        %v8258 = vmul.f32 %v8247, %v8254
        %v8259 = vld [vmem:[#allocation22] sm:$0x3]
        %v8260 = vld [vmem:[#allocation24] sm:$0x3]
        %8262 = vset.pattern.permute.xlu0 0
        %8263 = vperm.xlu0 %8262, %v8260
        %v8264 = vpop.permute.xlu0 %8263
        %v8267 = vsel %vm3564, %v8259, 0
        %8269 = vmatpush.msra.mxu0 0.0
        %8270 = vmatpush.msra.mxu0 0.0
        %8271 = vmatpush.msra.mxu0 0.0
        %8272 = vmatpush.msra.mxu0 0.0
        %8273 = vmatpush.msra.mxu0 0.0
        %8274 = vmatpush.msra.mxu0 0.0
        %8275 = vmatpush.msra.mxu0 0.0
        %8276 = vmatpush.msra.mxu0 0.0
        %8277 = vmatpush.msra.mxu0 0.0
        %8278 = vmatpush.msra.mxu0 0.0
        %8279 = vmatpush.msra.mxu0 0.0
        %8280 = vmatpush.msra.mxu0 0.0
        %8281 = vmatpush.msra.mxu0 %v8258
        %8282 = vmatpush.msra.mxu0 %v8257
        %8283 = vmatpush.msra.mxu0 %v8256
        %8284 = vmatpush.msra.mxu0 %v8255
        %8285 = vmatmul.f32.gmra.mxu0 %v8267
        %v8286 = vpop.f32.mrf.mxu0
        %v8287 = vadd.f32 %v8264, %v8286
        %8288 = vdwg.mxu0
        %v8289 = vmax.f32 %v8287, 0.0
        %v8290 = vld [vmem:[#allocation25] sm:$0xff]
        %v8291 = vld [vmem:[#allocation25 + $0x8] sm:$0xff]
        %v8292 = vld [vmem:[#allocation25 + $0x10] sm:$0xff]
        %v8293 = vld [vmem:[#allocation25 + $0x18] sm:$0xff]
        %v8294 = vld [vmem:[#allocation27] sm:$0xff]
        %v8295 = vld [vmem:[#allocation27 + $0x8] sm:$0xff]
        %v8296 = vld [vmem:[#allocation27 + $0x10] sm:$0xff]
        %v8297 = vld [vmem:[#allocation27 + $0x18] sm:$0xff]
        %8299 = vset.pattern.permute.xlu0 0
        %8300 = vperm.xlu0 %8299, %v8294
        %v8301 = vpop.permute.xlu0 %8300
        %8304 = vset.pattern.permute.xlu0 0
        %8305 = vperm.xlu0 %8304, %v8295
        %v8306 = vpop.permute.xlu0 %8305
        %8309 = vset.pattern.permute.xlu0 0
        %8310 = vperm.xlu0 %8309, %v8296
        %v8311 = vpop.permute.xlu0 %8310
        %8314 = vset.pattern.permute.xlu0 0
        %8315 = vperm.xlu0 %8314, %v8297
        %v8316 = vpop.permute.xlu0 %8315
        %vm8318 = vcmask 15360
        %v8320 = vsel %vm8318, %v8290, 0
        %v8323 = vsel %vm8318, %v8291, 0
        %v8326 = vsel %vm8318, %v8292, 0
        %v8329 = vsel %vm8318, %v8293, 0
        %vm8331 = vcmask 1041408
        %v8333 = vsel %vm8331, %v8289, 0
        %8335 = vmatpush.msra.mxu0 0.0
        %8336 = vmatpush.msra.mxu0 0.0
        %8337 = vmatpush.msra.mxu0 0.0
        %8338 = vmatpush.msra.mxu0 0.0
        %8339 = vmatpush.msra.mxu0 0.0
        %8340 = vmatpush.msra.mxu0 0.0
        %8341 = vmatpush.msra.mxu0 0.0
        %8342 = vmatpush.msra.mxu0 0.0
        %8343 = vmatpush.msra.mxu0 0.0
        %8344 = vmatpush.msra.mxu0 0.0
        %8345 = vmatpush.msra.mxu0 0.0
        %8346 = vmatpush.msra.mxu0 0.0
        %8347 = vmatpush.msra.mxu0 0.0
        %8348 = vmatpush.msra.mxu0 0.0
        %8349 = vmatpush.msra.mxu0 0.0
        %8350 = vmatpush.msra.mxu0 %v8333
        %8351 = vmatmul.f32.gmra.mxu0 %v8320
        %v8352 = vpop.f32.mrf.mxu0
        %v8353 = vadd.f32 %v8301, %v8352
        %8354 = vmatmul.f32.gmra.mxu0 %v8323
        %v8355 = vpop.f32.mrf.mxu0
        %v8356 = vadd.f32 %v8306, %v8355
        %8357 = vmatmul.f32.gmra.mxu0 %v8326
        %v8358 = vpop.f32.mrf.mxu0
        %v8359 = vadd.f32 %v8311, %v8358
        %8360 = vmatmul.f32.gmra.mxu0 %v8329
        %v8361 = vpop.f32.mrf.mxu0
        %v8362 = vadd.f32 %v8316, %v8361
        %8363 = vdwg.mxu0
        %v8364 = vsub.f32 0.0, %v8353
        %v8365 = vsub.f32 0.0, %v8356
        %v8366 = vsub.f32 0.0, %v8359
        %v8367 = vsub.f32 0.0, %v8362
        %v8368 = vmul.f32 %v8364, 1.442695
        %v8369 = vpow.pop %v8368
        %v8370 = vmul.f32 %v8365, 1.442695
        %v8371 = vpow.pop %v8370
        %v8372 = vmul.f32 %v8366, 1.442695
        %v8373 = vpow.pop %v8372
        %v8374 = vmul.f32 %v8367, 1.442695
        %v8375 = vpow.pop %v8374
        %v8376 = vadd.f32 %v8369, 1.0
        %v8377 = vadd.f32 %v8371, 1.0
        %v8378 = vadd.f32 %v8373, 1.0
        %v8379 = vadd.f32 %v8375, 1.0
        %v8380 = vrcp.pop %v8376
        %v8381 = vmul.f32 %v8376, %v8380
        %v8382 = vsub.f32 1.0, %v8381
        %v8383 = vmul.f32 %v8380, %v8382
        %v8384 = vadd.f32 %v8380, %v8383
        %vm8385 = vweird.f32 %v8376
        %vm8386 = vweird.f32 %v8380
        %vm8387 = vmor %vm8385, %vm8386
        %v8388 = vsel %vm8387, %v8380, %v8384
        %v8389 = vand.u32 2147483647, %v8376
        %vm8390 = vcmp.eq.f32.partialorder %v8389, 8.507059e+37
        %v8391 = vand.u32 %v8376, 2147483648
        %v8392 = vor.u32 1.1754944e-38, %v8391
        %v8393 = vsel %vm8390, %v8392, %v8388
        %v8394 = vmul.f32 1.0, %v8393
        %v8395 = vrcp.pop %v8377
        %v8396 = vmul.f32 %v8377, %v8395
        %v8397 = vsub.f32 1.0, %v8396
        %v8398 = vmul.f32 %v8395, %v8397
        %v8399 = vadd.f32 %v8395, %v8398
        %vm8400 = vweird.f32 %v8377
        %vm8401 = vweird.f32 %v8395
        %vm8402 = vmor %vm8400, %vm8401
        %v8403 = vsel %vm8402, %v8395, %v8399
        %v8404 = vand.u32 2147483647, %v8377
        %vm8405 = vcmp.eq.f32.partialorder %v8404, 8.507059e+37
        %v8406 = vand.u32 %v8377, 2147483648
        %v8407 = vor.u32 1.1754944e-38, %v8406
        %v8408 = vsel %vm8405, %v8407, %v8403
        %v8409 = vmul.f32 1.0, %v8408
        %v8410 = vrcp.pop %v8378
        %v8411 = vmul.f32 %v8378, %v8410
        %v8412 = vsub.f32 1.0, %v8411
        %v8413 = vmul.f32 %v8410, %v8412
        %v8414 = vadd.f32 %v8410, %v8413
        %vm8415 = vweird.f32 %v8378
        %vm8416 = vweird.f32 %v8410
        %vm8417 = vmor %vm8415, %vm8416
        %v8418 = vsel %vm8417, %v8410, %v8414
        %v8419 = vand.u32 2147483647, %v8378
        %vm8420 = vcmp.eq.f32.partialorder %v8419, 8.507059e+37
        %v8421 = vand.u32 %v8378, 2147483648
        %v8422 = vor.u32 1.1754944e-38, %v8421
        %v8423 = vsel %vm8420, %v8422, %v8418
        %v8424 = vmul.f32 1.0, %v8423
        %v8425 = vrcp.pop %v8379
        %v8426 = vmul.f32 %v8379, %v8425
        %v8427 = vsub.f32 1.0, %v8426
        %v8428 = vmul.f32 %v8425, %v8427
        %v8429 = vadd.f32 %v8425, %v8428
        %vm8430 = vweird.f32 %v8379
        %vm8431 = vweird.f32 %v8425
        %vm8432 = vmor %vm8430, %vm8431
        %v8433 = vsel %vm8432, %v8425, %v8429
        %v8434 = vand.u32 2147483647, %v8379
        %vm8435 = vcmp.eq.f32.partialorder %v8434, 8.507059e+37
        %v8436 = vand.u32 %v8379, 2147483648
        %v8437 = vor.u32 1.1754944e-38, %v8436
        %v8438 = vsel %vm8435, %v8437, %v8433
        %v8439 = vmul.f32 1.0, %v8438
        %8441 = vset.pattern.permute.xlu0 0
        %8442 = vperm.xlu0 %8441, %v8394
        %v8443 = vpop.permute.xlu0 %8442
        %8446 = vset.pattern.permute.xlu0 0
        %8447 = vperm.xlu0 %8446, %v8409
        %v8448 = vpop.permute.xlu0 %8447
        %8451 = vset.pattern.permute.xlu0 0
        %8452 = vperm.xlu0 %8451, %v8424
        %v8453 = vpop.permute.xlu0 %8452
        %8456 = vset.pattern.permute.xlu0 0
        %8457 = vperm.xlu0 %8456, %v8439
        %v8458 = vpop.permute.xlu0 %8457
        %v8460 = vmul.f32 %v8170, %v8443
        %v8461 = vmul.f32 %v8227, %v8443
        %v8462 = vmul.f32 %v8172, %v8448
        %v8463 = vmul.f32 %v8229, %v8448
        %v8464 = vmul.f32 %v8175, %v8453
        %v8465 = vmul.f32 %v8232, %v8453
        %v8466 = vmul.f32 %v8177, %v8458
        %v8467 = vmul.f32 %v8234, %v8458
        %v8468 = vadd.f32 %v8460, %v6052
        %v8469 = vadd.f32 %v8461, %v6053
        %v8470 = vadd.f32 %v8462, %v6054
        %v8471 = vadd.f32 %v8463, %v6055
        %v8472 = vadd.f32 %v8464, %v5352
        %v8473 = vadd.f32 %v8465, %v5353
        %v8474 = vadd.f32 %v8466, %v5354
        %v8475 = vadd.f32 %v8467, %v5355
        %v8476 = vadd.f32 %v8468, %v854
        %v8477 = vadd.f32 %v8469, %v855
        %v8478 = vadd.f32 %v8470, %v856
        %v8479 = vadd.f32 %v8471, %v857
        %v8480 = vadd.f32 %v8472, %v858
        %v8481 = vadd.f32 %v8473, %v859
        %v8482 = vadd.f32 %v8474, %v860
        %v8483 = vadd.f32 %v8475, %v861
        %8484 = vst [vmem:[%s852] sm:$0xff] %v8476
        %8485 = vst [vmem:[%s852 + $0x8] sm:$0xff] %v8477
        %8486 = vst [vmem:[%s852 + $0x10] sm:$0xff] %v8478
        %8487 = vst [vmem:[%s852 + $0x18] sm:$0xff] %v8479
        %8488 = vst [vmem:[%s852 + $0x20] sm:$0xff] %v8480
        %8489 = vst [vmem:[%s852 + $0x28] sm:$0xff] %v8481
        %8490 = vst [vmem:[%s852 + $0x30] sm:$0xff] %v8482
        %8491 = vst [vmem:[%s852 + $0x38] sm:$0xff] %v8483
        %p8492 = scmp.lt.s32.totalorder %s38, 1
        %s8493 = scalar_select %p8492, %s38, 1
        %s8494 = smul.addr %s8493, 8
        %s8495 = smul.addr %s8494, 8
        %s8496 = scalar_lea.vmem %s18, %s8495
        // Predicated region
        $region161: #{sselb_forward.1} parent=91 // pred_check
          %p8497 = pneg %p439
        $region162: #{sselb_forward.1} parent=91 // pred_check_branch
          %8499 = sbr.rel (%p8497) target = $region164
        $region163: #{sselb_forward.1} parent=91 // pred_region
          _
        $region164: #{sselb_forward.1} parent=91 // pred_fallthru
          _
      $region92: #{sselb_forward.1} parent=5 // pred_fallthru
        _
      %p8500 = scmp.le.s32.totalorder 2, %s33
      // Predicated region
      $region165: #{sselb_forward.1} parent=5 // pred_check
        %p8501 = pneg %p8500
      $region166: #{sselb_forward.1} parent=5 // pred_check_branch
        %8503 = sbr.rel (%p8501) target = $region168
      $region167: #{sselb_forward.1} parent=5 // pred_region
        %s8504 = ssub.s32 %s33, 2
        // Predicated region
        $region169: #{sselb_forward.1} parent=167 // pred_check
          %p8505 = pneg %p445
        $region170: #{sselb_forward.1} parent=167 // pred_check_branch
          %8507 = sbr.rel (%p8505) target = $region172
        $region171: #{sselb_forward.1} parent=167 // pred_region
          %p8508 = scmp.lt.s32.totalorder %s39, 1
          %s8509 = scalar_select %p8508, %s39, 1
          %s8510 = smul.addr %s8509, 8
          %s8511 = smul.addr %s8510, 8
          %s8512 = scalar_lea.vmem %s18, %s8511
        $region172: #{sselb_forward.1} parent=167 // pred_fallthru
          _
      $region168: #{sselb_forward.1} parent=5 // pred_fallthru
        _
    $region6: #{sselb_forward.1} parent=1 // loop_footer
      %s37 = sadd.s32 1, %s33
    $region7: #{sselb_forward.1} parent=1 // loop_footer_branch
      %32 = sbr.rel target = $region3
    $region8: #{sselb_forward.1} parent=1 // loop_exit
      _
    %8513 = vsyncpa [#allocation3], 1
    %s8514 = scalar_lea.sflag [#allocation3], 1
    %8515 = vsyncpa %s8514, 1
    %8516 = vsyncpa [#allocation5], 1
    %8517 = vsyncpa [#allocation8], 1
    %8518 = vsyncpa [#allocation11], 1
    %8519 = vsyncpa [#allocation14], 1
    %8520 = vsyncpa [#allocation17], 1
    %8521 = vsyncpa [#allocation20], 1
    %8522 = vsyncpa [#allocation23], 1
    %8523 = vsyncpa [#allocation26], 1

</llo_original>
